<compile_context>
chip_gen: v7x
topology: tpu7x:2x2x1
jax: 0.10.0
libtpu: 0.0.40
codegen_flags: <defaults>
</compile_context>

<pallas_src>
import functools

import jax
import jax.numpy as jnp
from jax import lax
from jax.experimental import pallas as pl
from jax.experimental.pallas import tpu as pltpu

EPS = 1e-5


def _basic_block_kernel(x_ref, w1_ref, g1_ref, b1_ref, w2_ref, g2_ref, b2_ref,
                        out_ref, xpad_ref, col_ref, *, channel_major_out):
    """Fused BasicBlock: conv1+BN1+ReLU -> conv2+BN2+residual+ReLU.

    x_ref    : (N, H, W, C)       input activations (NHWC), f32
    w*_ref   : (9*C, C)           im2col-flattened HWIO conv weights, bf16
    g*/b*    : (1, C)             BN gamma/beta, f32
    out_ref  : (C, M) or (M, C)   lane-dense output (channel-major iff C < 128)
    xpad_ref : (N, H+2, W+2, C)   VMEM scratch: zero-halo image, reused per stage
    col_ref  : (M, 9*C) bf16      VMEM scratch: im2col matrix, reused per stage
    """
    N, H, W, C = x_ref.shape
    M = N * H * W
    inv_cnt = jnp.float32(1.0 / M)

    # Zero only the four 1-pixel halo strips (the interior is overwritten twice).
    zrow = jnp.zeros((N, 1, W + 2, C), xpad_ref.dtype)
    xpad_ref[:, pl.ds(0, 1), :, :] = zrow
    xpad_ref[:, pl.ds(H + 1, 1), :, :] = zrow
    zcol = jnp.zeros((N, H, 1, C), xpad_ref.dtype)
    xpad_ref[:, pl.ds(1, H), pl.ds(0, 1), :] = zcol
    xpad_ref[:, pl.ds(1, H), pl.ds(W + 1, 1), :] = zcol

    ones_row = jnp.ones((1, M), jnp.float32)   # hoisted: reused by all 4 BN reductions

    def conv3x3(w_ref):
        # im2col: pack the 9 shifted (M, C) slabs into one bf16 (M, 9C) matrix,
        # then a single deep-K GEMM (M, 9C) x (9C, C) with f32 accumulation.
        # The reshape only merges leading dims (channel stays minor) => layout-cheap.
        for kh in range(3):
            for kw in range(3):
                t = kh * 3 + kw
                patch = xpad_ref[:, pl.ds(kh, H), pl.ds(kw, W), :]       # (N,H,W,C)
                col_ref[:, pl.ds(t * C, C)] = (
                    patch.reshape(M, C).astype(col_ref.dtype))
        return jnp.dot(col_ref[...], w_ref[...],
                       preferred_element_type=jnp.float32)               # (M, C) f32

    def batchnorm(v, g_ref, b_ref):
        # Two-pass batch stats (mean, then centered variance) — no E[x^2]-E[x]^2
        # cancellation. Both reductions are ones-row MXU matmuls instead of
        # cross-sublane jnp.sum(axis=0) (XLU relief, uses an otherwise idle unit).
        mean = jnp.dot(ones_row, v, preferred_element_type=jnp.float32) * inv_cnt
        centered = v - mean
        var = jnp.dot(ones_row, centered * centered,
                      preferred_element_type=jnp.float32) * inv_cnt
        scale = g_ref[...] * lax.rsqrt(var + EPS)
        return centered * scale + b_ref[...]

    # ---- stage 1: conv1 + BN1 (batch stats) + ReLU -------------------------
    xpad_ref[:, pl.ds(1, H), pl.ds(1, W), :] = x_ref[...].astype(xpad_ref.dtype)
    y1 = jnp.maximum(batchnorm(conv3x3(w1_ref), g1_ref, b1_ref), 0.0)    # (M, C)

    # ---- stage 2: conv2 + BN2 + residual + ReLU (pixel-major, no transposes) --
    xpad_ref[:, pl.ds(1, H), pl.ds(1, W), :] = (
        y1.reshape(N, H, W, C).astype(xpad_ref.dtype))
    res = x_ref[...].reshape(M, C)                                       # identity, f32
    out_mc = jnp.maximum(batchnorm(conv3x3(w2_ref), g2_ref, b2_ref) + res, 0.0)

    if channel_major_out:
        # C < 128: one transpose to a lane-dense (C, M) slab -> unmasked stores.
        out_ref[...] = out_mc.T.astype(out_ref.dtype)
    else:
        # C >= 128: (M, C) is already lane-dense, store directly.
        out_ref[...] = out_mc.astype(out_ref.dtype)


def basic_block_forward(x_nchw, params):
    """BasicBlock.forward with stride=1, downsample=None (identity residual)."""
    N, C, H, W = x_nchw.shape
    M = N * H * W
    # TODO(synk): when chaining BasicBlocks, keep activations NHWC / (M, C) across
    # blocks and convert NCHW only at model boundaries — each transpose below is a
    # full HBM round trip of the activation tensor.
    x_nhwc = jnp.transpose(x_nchw, (0, 2, 3, 1))

    channel_major_out = C < 128
    if channel_major_out:
        out_shape = jax.ShapeDtypeStruct((C, M), jnp.float32)
        out_spec = pl.BlockSpec((C, M), lambda i: (0, 0))
    else:
        out_shape = jax.ShapeDtypeStruct((M, C), jnp.float32)
        out_spec = pl.BlockSpec((M, C), lambda i: (0, 0))

    # Weights: HWIO (3,3,Cin,Cout) -> (9*Cin, Cout), row order (kh, kw, cin) to
    # match the im2col packing order; pre-cast to bf16 (half DMA/VMEM, no in-kernel casts).
    w1 = params["w1"].reshape(9 * C, C).astype(jnp.bfloat16)
    w2 = params["w2"].reshape(9 * C, C).astype(jnp.bfloat16)

    kernel = functools.partial(_basic_block_kernel,
                               channel_major_out=channel_major_out)

    # TODO(synk): at ResNet-scale shapes, tile the grid over N (and H with a 1-row
    # halo), mark the tiled axes "parallel" (2 TensorCores on v7x), two-phase the BN
    # reduction across tiles, and budget tiles / vmem_limit_bytes per generation
    # (v5e 16 MiB scoped default / 128 MiB phys, v6e 32/128, v7x 32/64).
    out2d = pl.pallas_call(
        kernel,
        out_shape=out_shape,
        grid_spec=pltpu.PrefetchScalarGridSpec(
            num_scalar_prefetch=0,
            grid=(1,),
            in_specs=[
                pl.BlockSpec((N, H, W, C), lambda i: (0, 0, 0, 0)),   # x (NHWC, f32)
                pl.BlockSpec((9 * C, C), lambda i: (0, 0)),           # w1 (bf16)
                pl.BlockSpec((1, C), lambda i: (0, 0)),               # gamma1
                pl.BlockSpec((1, C), lambda i: (0, 0)),               # beta1
                pl.BlockSpec((9 * C, C), lambda i: (0, 0)),           # w2 (bf16)
                pl.BlockSpec((1, C), lambda i: (0, 0)),               # gamma2
                pl.BlockSpec((1, C), lambda i: (0, 0)),               # beta2
            ],
            out_specs=out_spec,
            scratch_shapes=[
                pltpu.VMEM((N, H + 2, W + 2, C), jnp.float32),        # halo image
                pltpu.VMEM((M, 9 * C), jnp.bfloat16),                 # im2col buffer
            ],
        ),
        compiler_params=pltpu.CompilerParams(
            dimension_semantics=("arbitrary",)),
    )(
        x_nhwc,
        w1,
        params["gamma1"].reshape(1, C), params["beta1"].reshape(1, C),
        w2,
        params["gamma2"].reshape(1, C), params["beta2"].reshape(1, C),
    )

    if channel_major_out:
        # (C, N*H*W) -> (N, C, H, W): free reshape + leading-axis transpose.
        return jnp.transpose(out2d.reshape(C, N, H, W), (1, 0, 2, 3))
    return jnp.transpose(out2d.reshape(N, H, W, C), (0, 3, 1, 2))


# ---------------------------------------------------------------------------
# Plain-JAX reference (apples-to-apples: same bf16-input / f32-accum convs)
# ---------------------------------------------------------------------------
def _reference(x_nchw, params):
    x = jnp.transpose(x_nchw, (0, 2, 3, 1))

    def conv(h, w):
        return lax.conv_general_dilated(
            h.astype(jnp.bfloat16), w.astype(jnp.bfloat16),
            window_strides=(1, 1), padding="SAME",
            dimension_numbers=("NHWC", "HWIO", "NHWC"),
            preferred_element_type=jnp.float32)

    def bn(h, g, b):
        m = jnp.mean(h, axis=(0, 1, 2), keepdims=True)
        v = jnp.mean((h - m) ** 2, axis=(0, 1, 2), keepdims=True)
        return (h - m) * lax.rsqrt(v + EPS) * g + b

    out = jnp.maximum(bn(conv(x, params["w1"]), params["gamma1"], params["beta1"]), 0.0)
    out = bn(conv(out, params["w2"]), params["gamma2"], params["beta2"]) + x
    out = jnp.maximum(out, 0.0)
    return jnp.transpose(out, (0, 3, 1, 2))


if __name__ == "__main__":
    N, C, H, W = 2, 4, 16, 16          # in_channel = out_channel = 4, stride = 1
    key = jax.random.PRNGKey(0)
    kx, kw1, kw2, kg1, kb1, kg2, kb2 = jax.random.split(key, 7)

    x = jax.random.normal(kx, (N, C, H, W), dtype=jnp.float32)      # NCHW like PyTorch

    fan_in = 3 * 3 * C
    params = {
        "w1": jax.random.normal(kw1, (3, 3, C, C), jnp.float32) / jnp.sqrt(fan_in),
        "w2": jax.random.normal(kw2, (3, 3, C, C), jnp.float32) / jnp.sqrt(fan_in),
        "gamma1": 1.0 + 0.1 * jax.random.normal(kg1, (C,), jnp.float32),
        "beta1": 0.1 * jax.random.normal(kb1, (C,), jnp.float32),
        "gamma2": 1.0 + 0.1 * jax.random.normal(kg2, (C,), jnp.float32),
        "beta2": 0.1 * jax.random.normal(kb2, (C,), jnp.float32),
    }

    out = jax.block_until_ready(jax.jit(basic_block_forward)(x, params))
    ref = jax.block_until_ready(_reference(x, params))

    assert out.shape == (N, C, H, W) and out.dtype == jnp.float32
    err = float(jnp.max(jnp.abs(out - ref)))
    # Tolerance covers bf16-input rounding differences between the fused kernel and
    # the XLA conv reference; structural bugs would be orders of magnitude larger.
    assert jnp.allclose(out, ref, atol=1e-2, rtol=1e-2), f"max abs err = {err}"

    print("KERNEL_OK")
</pallas_src>

<mosaic_0001>
module attributes {stable_mosaic.version = 11 : i64} {
  func.func @_basic_block_kernel(%arg0: i32, %arg1: memref<2x16x16x4xf32, #tpu.memory_space<vmem>>, %arg2: memref<36x4xbf16, #tpu.memory_space<vmem>>, %arg3: memref<1x4xf32, #tpu.memory_space<vmem>>, %arg4: memref<1x4xf32, #tpu.memory_space<vmem>>, %arg5: memref<36x4xbf16, #tpu.memory_space<vmem>>, %arg6: memref<1x4xf32, #tpu.memory_space<vmem>>, %arg7: memref<1x4xf32, #tpu.memory_space<vmem>>, %arg8: memref<4x512xf32, #tpu.memory_space<vmem>>, %arg9: memref<2x18x18x4xf32, #tpu.memory_space<vmem>>, %arg10: memref<512x36xbf16, #tpu.memory_space<vmem>>) attributes {dimension_semantics = [#tpu.dimension_semantics<arbitrary>], iteration_bounds = array<i64: 1>, scalar_prefetch = 0 : i64, scratch_operands = 2 : i64, tpu.core_type = #tpu.core_type<tc>, window_params = [{pipeline_mode = #tpu.pipeline_mode<synchronous>, transform_indices = @transform_0, window_bounds = array<i64: 2, 16, 16, 4>}, {pipeline_mode = #tpu.pipeline_mode<synchronous>, transform_indices = @transform_1, window_bounds = array<i64: 36, 4>}, {pipeline_mode = #tpu.pipeline_mode<synchronous>, transform_indices = @transform_2, window_bounds = array<i64: 1, 4>}, {pipeline_mode = #tpu.pipeline_mode<synchronous>, transform_indices = @transform_3, window_bounds = array<i64: 1, 4>}, {pipeline_mode = #tpu.pipeline_mode<synchronous>, transform_indices = @transform_4, window_bounds = array<i64: 36, 4>}, {pipeline_mode = #tpu.pipeline_mode<synchronous>, transform_indices = @transform_5, window_bounds = array<i64: 1, 4>}, {pipeline_mode = #tpu.pipeline_mode<synchronous>, transform_indices = @transform_6, window_bounds = array<i64: 1, 4>}, {pipeline_mode = #tpu.pipeline_mode<synchronous>, transform_indices = @transform_7, window_bounds = array<i64: 4, 512>}]} {
    %cst = arith.constant 0.000000e+00 : f32
    %0 = vector.broadcast %cst : f32 to vector<2x1x18x4xf32>
    %c0 = arith.constant 0 : index
    %c0_0 = arith.constant 0 : index
    %c0_1 = arith.constant 0 : index
    %c0_2 = arith.constant 0 : index
    %1 = vector.load %arg9[%c0, %c0_0, %c0_1, %c0_2] : memref<2x18x18x4xf32, #tpu.memory_space<vmem>>, vector<2x1x18x4xf32>
    tpu.vector_store %arg9[%c0, %c0_0, %c0_1, %c0_2], %0 {strides = array<i32>} : memref<2x18x18x4xf32, #tpu.memory_space<vmem>>, vector<2x1x18x4xf32>,
    %c0_3 = arith.constant 0 : index
    %c17 = arith.constant 17 : index
    %c0_4 = arith.constant 0 : index
    %c0_5 = arith.constant 0 : index
    %2 = vector.load %arg9[%c0_3, %c17, %c0_4, %c0_5] : memref<2x18x18x4xf32, #tpu.memory_space<vmem>>, vector<2x1x18x4xf32>
    tpu.vector_store %arg9[%c0_3, %c17, %c0_4, %c0_5], %0 {strides = array<i32>} : memref<2x18x18x4xf32, #tpu.memory_space<vmem>>, vector<2x1x18x4xf32>,
    %cst_6 = arith.constant 0.000000e+00 : f32
    %3 = vector.broadcast %cst_6 : f32 to vector<2x16x1x4xf32>
    %c0_7 = arith.constant 0 : index
    %c1 = arith.constant 1 : index
    %c0_8 = arith.constant 0 : index
    %c0_9 = arith.constant 0 : index
    %4 = vector.load %arg9[%c0_7, %c1, %c0_8, %c0_9] : memref<2x18x18x4xf32, #tpu.memory_space<vmem>>, vector<2x16x1x4xf32>
    tpu.vector_store %arg9[%c0_7, %c1, %c0_8, %c0_9], %3 {strides = array<i32>} : memref<2x18x18x4xf32, #tpu.memory_space<vmem>>, vector<2x16x1x4xf32>,
    %c0_10 = arith.constant 0 : index
    %c1_11 = arith.constant 1 : index
    %c17_12 = arith.constant 17 : index
    %c0_13 = arith.constant 0 : index
    %5 = vector.load %arg9[%c0_10, %c1_11, %c17_12, %c0_13] : memref<2x18x18x4xf32, #tpu.memory_space<vmem>>, vector<2x16x1x4xf32>
    tpu.vector_store %arg9[%c0_10, %c1_11, %c17_12, %c0_13], %3 {strides = array<i32>} : memref<2x18x18x4xf32, #tpu.memory_space<vmem>>, vector<2x16x1x4xf32>,
    %cst_14 = arith.constant 1.000000e+00 : f32
    %6 = vector.broadcast %cst_14 : f32 to vector<1x512xf32>
    %c0_15 = arith.constant 0 : index
    %c0_16 = arith.constant 0 : index
    %c0_17 = arith.constant 0 : index
    %c0_18 = arith.constant 0 : index
    %7 = vector.load %arg1[%c0_15, %c0_16, %c0_17, %c0_18] : memref<2x16x16x4xf32, #tpu.memory_space<vmem>>, vector<2x16x16x4xf32>
    %c0_19 = arith.constant 0 : index
    %c1_20 = arith.constant 1 : index
    %c1_21 = arith.constant 1 : index
    %c0_22 = arith.constant 0 : index
    %8 = vector.load %arg9[%c0_19, %c1_20, %c1_21, %c0_22] : memref<2x18x18x4xf32, #tpu.memory_space<vmem>>, vector<2x16x16x4xf32>
    tpu.vector_store %arg9[%c0_19, %c1_20, %c1_21, %c0_22], %7 {strides = array<i32>} : memref<2x18x18x4xf32, #tpu.memory_space<vmem>>, vector<2x16x16x4xf32>,
    %c0_23 = arith.constant 0 : index
    %c0_24 = arith.constant 0 : index
    %c0_25 = arith.constant 0 : index
    %c0_26 = arith.constant 0 : index
    %9 = vector.load %arg9[%c0_23, %c0_24, %c0_25, %c0_26] : memref<2x18x18x4xf32, #tpu.memory_space<vmem>>, vector<2x16x16x4xf32>
    %10 = vector.shape_cast %9 : vector<2x16x16x4xf32> to vector<512x4xf32>
    %11 = arith.truncf %10 : vector<512x4xf32> to vector<512x4xbf16>
    %c0_27 = arith.constant 0 : index
    %c0_28 = arith.constant 0 : index
    %12 = vector.load %arg10[%c0_27, %c0_28] : memref<512x36xbf16, #tpu.memory_space<vmem>>, vector<512x4xbf16>
    tpu.vector_store %arg10[%c0_27, %c0_28], %11 {strides = array<i32>} : memref<512x36xbf16, #tpu.memory_space<vmem>>, vector<512x4xbf16>,
    %c0_29 = arith.constant 0 : index
    %c0_30 = arith.constant 0 : index
    %c1_31 = arith.constant 1 : index
    %c0_32 = arith.constant 0 : index
    %13 = vector.load %arg9[%c0_29, %c0_30, %c1_31, %c0_32] : memref<2x18x18x4xf32, #tpu.memory_space<vmem>>, vector<2x16x16x4xf32>
    %14 = vector.shape_cast %13 : vector<2x16x16x4xf32> to vector<512x4xf32>
    %15 = arith.truncf %14 : vector<512x4xf32> to vector<512x4xbf16>
    %c0_33 = arith.constant 0 : index
    %c4 = arith.constant 4 : index
    %16 = vector.load %arg10[%c0_33, %c4] : memref<512x36xbf16, #tpu.memory_space<vmem>>, vector<512x4xbf16>
    tpu.vector_store %arg10[%c0_33, %c4], %15 {strides = array<i32>} : memref<512x36xbf16, #tpu.memory_space<vmem>>, vector<512x4xbf16>,
    %c0_34 = arith.constant 0 : index
    %c0_35 = arith.constant 0 : index
    %c2 = arith.constant 2 : index
    %c0_36 = arith.constant 0 : index
    %17 = vector.load %arg9[%c0_34, %c0_35, %c2, %c0_36] : memref<2x18x18x4xf32, #tpu.memory_space<vmem>>, vector<2x16x16x4xf32>
    %18 = vector.shape_cast %17 : vector<2x16x16x4xf32> to vector<512x4xf32>
    %19 = arith.truncf %18 : vector<512x4xf32> to vector<512x4xbf16>
    %c0_37 = arith.constant 0 : index
    %c8 = arith.constant 8 : index
    %20 = vector.load %arg10[%c0_37, %c8] : memref<512x36xbf16, #tpu.memory_space<vmem>>, vector<512x4xbf16>
    tpu.vector_store %arg10[%c0_37, %c8], %19 {strides = array<i32>} : memref<512x36xbf16, #tpu.memory_space<vmem>>, vector<512x4xbf16>,
    %c0_38 = arith.constant 0 : index
    %c1_39 = arith.constant 1 : index
    %c0_40 = arith.constant 0 : index
    %c0_41 = arith.constant 0 : index
    %21 = vector.load %arg9[%c0_38, %c1_39, %c0_40, %c0_41] : memref<2x18x18x4xf32, #tpu.memory_space<vmem>>, vector<2x16x16x4xf32>
    %22 = vector.shape_cast %21 : vector<2x16x16x4xf32> to vector<512x4xf32>
    %23 = arith.truncf %22 : vector<512x4xf32> to vector<512x4xbf16>
    %c0_42 = arith.constant 0 : index
    %c12 = arith.constant 12 : index
    %24 = vector.load %arg10[%c0_42, %c12] : memref<512x36xbf16, #tpu.memory_space<vmem>>, vector<512x4xbf16>
    tpu.vector_store %arg10[%c0_42, %c12], %23 {strides = array<i32>} : memref<512x36xbf16, #tpu.memory_space<vmem>>, vector<512x4xbf16>,
    %c0_43 = arith.constant 0 : index
    %c1_44 = arith.constant 1 : index
    %c1_45 = arith.constant 1 : index
    %c0_46 = arith.constant 0 : index
    %25 = vector.load %arg9[%c0_43, %c1_44, %c1_45, %c0_46] : memref<2x18x18x4xf32, #tpu.memory_space<vmem>>, vector<2x16x16x4xf32>
    %26 = vector.shape_cast %25 : vector<2x16x16x4xf32> to vector<512x4xf32>
    %27 = arith.truncf %26 : vector<512x4xf32> to vector<512x4xbf16>
    %c0_47 = arith.constant 0 : index
    %c16 = arith.constant 16 : index
    %28 = vector.load %arg10[%c0_47, %c16] : memref<512x36xbf16, #tpu.memory_space<vmem>>, vector<512x4xbf16>
    tpu.vector_store %arg10[%c0_47, %c16], %27 {strides = array<i32>} : memref<512x36xbf16, #tpu.memory_space<vmem>>, vector<512x4xbf16>,
    %c0_48 = arith.constant 0 : index
    %c1_49 = arith.constant 1 : index
    %c2_50 = arith.constant 2 : index
    %c0_51 = arith.constant 0 : index
    %29 = vector.load %arg9[%c0_48, %c1_49, %c2_50, %c0_51] : memref<2x18x18x4xf32, #tpu.memory_space<vmem>>, vector<2x16x16x4xf32>
    %30 = vector.shape_cast %29 : vector<2x16x16x4xf32> to vector<512x4xf32>
    %31 = arith.truncf %30 : vector<512x4xf32> to vector<512x4xbf16>
    %c0_52 = arith.constant 0 : index
    %c20 = arith.constant 20 : index
    %32 = vector.load %arg10[%c0_52, %c20] : memref<512x36xbf16, #tpu.memory_space<vmem>>, vector<512x4xbf16>
    tpu.vector_store %arg10[%c0_52, %c20], %31 {strides = array<i32>} : memref<512x36xbf16, #tpu.memory_space<vmem>>, vector<512x4xbf16>,
    %c0_53 = arith.constant 0 : index
    %c2_54 = arith.constant 2 : index
    %c0_55 = arith.constant 0 : index
    %c0_56 = arith.constant 0 : index
    %33 = vector.load %arg9[%c0_53, %c2_54, %c0_55, %c0_56] : memref<2x18x18x4xf32, #tpu.memory_space<vmem>>, vector<2x16x16x4xf32>
    %34 = vector.shape_cast %33 : vector<2x16x16x4xf32> to vector<512x4xf32>
    %35 = arith.truncf %34 : vector<512x4xf32> to vector<512x4xbf16>
    %c0_57 = arith.constant 0 : index
    %c24 = arith.constant 24 : index
    %36 = vector.load %arg10[%c0_57, %c24] : memref<512x36xbf16, #tpu.memory_space<vmem>>, vector<512x4xbf16>
    tpu.vector_store %arg10[%c0_57, %c24], %35 {strides = array<i32>} : memref<512x36xbf16, #tpu.memory_space<vmem>>, vector<512x4xbf16>,
    %c0_58 = arith.constant 0 : index
    %c2_59 = arith.constant 2 : index
    %c1_60 = arith.constant 1 : index
    %c0_61 = arith.constant 0 : index
    %37 = vector.load %arg9[%c0_58, %c2_59, %c1_60, %c0_61] : memref<2x18x18x4xf32, #tpu.memory_space<vmem>>, vector<2x16x16x4xf32>
    %38 = vector.shape_cast %37 : vector<2x16x16x4xf32> to vector<512x4xf32>
    %39 = arith.truncf %38 : vector<512x4xf32> to vector<512x4xbf16>
    %c0_62 = arith.constant 0 : index
    %c28 = arith.constant 28 : index
    %40 = vector.load %arg10[%c0_62, %c28] : memref<512x36xbf16, #tpu.memory_space<vmem>>, vector<512x4xbf16>
    tpu.vector_store %arg10[%c0_62, %c28], %39 {strides = array<i32>} : memref<512x36xbf16, #tpu.memory_space<vmem>>, vector<512x4xbf16>,
    %c0_63 = arith.constant 0 : index
    %c2_64 = arith.constant 2 : index
    %c2_65 = arith.constant 2 : index
    %c0_66 = arith.constant 0 : index
    %41 = vector.load %arg9[%c0_63, %c2_64, %c2_65, %c0_66] : memref<2x18x18x4xf32, #tpu.memory_space<vmem>>, vector<2x16x16x4xf32>
    %42 = vector.shape_cast %41 : vector<2x16x16x4xf32> to vector<512x4xf32>
    %43 = arith.truncf %42 : vector<512x4xf32> to vector<512x4xbf16>
    %c0_67 = arith.constant 0 : index
    %c32 = arith.constant 32 : index
    %44 = vector.load %arg10[%c0_67, %c32] : memref<512x36xbf16, #tpu.memory_space<vmem>>, vector<512x4xbf16>
    tpu.vector_store %arg10[%c0_67, %c32], %43 {strides = array<i32>} : memref<512x36xbf16, #tpu.memory_space<vmem>>, vector<512x4xbf16>,
    %c0_68 = arith.constant 0 : index
    %c0_69 = arith.constant 0 : index
    %45 = vector.load %arg10[%c0_68, %c0_69] : memref<512x36xbf16, #tpu.memory_space<vmem>>, vector<512x36xbf16>
    %c0_70 = arith.constant 0 : index
    %c0_71 = arith.constant 0 : index
    %46 = vector.load %arg2[%c0_70, %c0_71] : memref<36x4xbf16, #tpu.memory_space<vmem>>, vector<36x4xbf16>
    %cst_72 = arith.constant dense<0.000000e+00> : vector<512x4xf32>
    %47 = tpu.matmul %45, %46, %cst_72 {dimension_numbers = #tpu.dot_dimension_numbers<[1], [0], [0], [1], [0, 0, 1, 1], [], []>} : vector<512x36xbf16>, vector<36x4xbf16>, vector<512x4xf32> -> vector<512x4xf32>
    %cst_73 = arith.constant dense<0.000000e+00> : vector<1x4xf32>
    %48 = tpu.matmul %6, %47, %cst_73 {dimension_numbers = #tpu.dot_dimension_numbers<[1], [0], [0], [1], [0, 0, 1, 1], [], []>} : vector<1x512xf32>, vector<512x4xf32>, vector<1x4xf32> -> vector<1x4xf32>
    %cst_74 = arith.constant 0.001953125 : f32
    %49 = vector.broadcast %cst_74 : f32 to vector<1x4xf32>
    %50 = arith.mulf %48, %49 : vector<1x4xf32>
    %51 = vector.broadcast %50 : vector<1x4xf32> to vector<512x4xf32>
    %52 = arith.subf %47, %51 : vector<512x4xf32>
    %53 = arith.mulf %52, %52 : vector<512x4xf32>
    %cst_75 = arith.constant dense<0.000000e+00> : vector<1x4xf32>
    %54 = tpu.matmul %6, %53, %cst_75 {dimension_numbers = #tpu.dot_dimension_numbers<[1], [0], [0], [1], [0, 0, 1, 1], [], []>} : vector<1x512xf32>, vector<512x4xf32>, vector<1x4xf32> -> vector<1x4xf32>
    %cst_76 = arith.constant 0.001953125 : f32
    %55 = vector.broadcast %cst_76 : f32 to vector<1x4xf32>
    %56 = arith.mulf %54, %55 : vector<1x4xf32>
    %c0_77 = arith.constant 0 : index
    %c0_78 = arith.constant 0 : index
    %57 = vector.load %arg3[%c0_77, %c0_78] : memref<1x4xf32, #tpu.memory_space<vmem>>, vector<1x4xf32>
    %cst_79 = arith.constant 9.99999974E-6 : f32
    %58 = vector.broadcast %cst_79 : f32 to vector<1x4xf32>
    %59 = arith.addf %56, %58 : vector<1x4xf32>
    %60 = math.rsqrt %59 : vector<1x4xf32>
    %61 = arith.mulf %57, %60 : vector<1x4xf32>
    %62 = vector.broadcast %61 : vector<1x4xf32> to vector<512x4xf32>
    %63 = arith.mulf %52, %62 : vector<512x4xf32>
    %c0_80 = arith.constant 0 : index
    %c0_81 = arith.constant 0 : index
    %64 = vector.load %arg4[%c0_80, %c0_81] : memref<1x4xf32, #tpu.memory_space<vmem>>, vector<1x4xf32>
    %65 = vector.broadcast %64 : vector<1x4xf32> to vector<512x4xf32>
    %66 = arith.addf %63, %65 : vector<512x4xf32>
    %cst_82 = arith.constant 0.000000e+00 : f32
    %67 = vector.broadcast %cst_82 : f32 to vector<512x4xf32>
    %68 = arith.maximumf %66, %67 : vector<512x4xf32>
    %69 = vector.shape_cast %68 : vector<512x4xf32> to vector<2x16x16x4xf32>
    %c0_83 = arith.constant 0 : index
    %c1_84 = arith.constant 1 : index
    %c1_85 = arith.constant 1 : index
    %c0_86 = arith.constant 0 : index
    %70 = vector.load %arg9[%c0_83, %c1_84, %c1_85, %c0_86] : memref<2x18x18x4xf32, #tpu.memory_space<vmem>>, vector<2x16x16x4xf32>
    tpu.vector_store %arg9[%c0_83, %c1_84, %c1_85, %c0_86], %69 {strides = array<i32>} : memref<2x18x18x4xf32, #tpu.memory_space<vmem>>, vector<2x16x16x4xf32>,
    %c0_87 = arith.constant 0 : index
    %c0_88 = arith.constant 0 : index
    %c0_89 = arith.constant 0 : index
    %c0_90 = arith.constant 0 : index
    %71 = vector.load %arg1[%c0_87, %c0_88, %c0_89, %c0_90] : memref<2x16x16x4xf32, #tpu.memory_space<vmem>>, vector<2x16x16x4xf32>
    %72 = vector.shape_cast %71 : vector<2x16x16x4xf32> to vector<512x4xf32>
    %c0_91 = arith.constant 0 : index
    %c0_92 = arith.constant 0 : index
    %c0_93 = arith.constant 0 : index
    %c0_94 = arith.constant 0 : index
    %73 = vector.load %arg9[%c0_91, %c0_92, %c0_93, %c0_94] : memref<2x18x18x4xf32, #tpu.memory_space<vmem>>, vector<2x16x16x4xf32>
    %74 = vector.shape_cast %73 : vector<2x16x16x4xf32> to vector<512x4xf32>
    %75 = arith.truncf %74 : vector<512x4xf32> to vector<512x4xbf16>
    %c0_95 = arith.constant 0 : index
    %c0_96 = arith.constant 0 : index
    %76 = vector.load %arg10[%c0_95, %c0_96] : memref<512x36xbf16, #tpu.memory_space<vmem>>, vector<512x4xbf16>
    tpu.vector_store %arg10[%c0_95, %c0_96], %75 {strides = array<i32>} : memref<512x36xbf16, #tpu.memory_space<vmem>>, vector<512x4xbf16>,
    %c0_97 = arith.constant 0 : index
    %c0_98 = arith.constant 0 : index
    %c1_99 = arith.constant 1 : index
    %c0_100 = arith.constant 0 : index
    %77 = vector.load %arg9[%c0_97, %c0_98, %c1_99, %c0_100] : memref<2x18x18x4xf32, #tpu.memory_space<vmem>>, vector<2x16x16x4xf32>
    %78 = vector.shape_cast %77 : vector<2x16x16x4xf32> to vector<512x4xf32>
    %79 = arith.truncf %78 : vector<512x4xf32> to vector<512x4xbf16>
    %c0_101 = arith.constant 0 : index
    %c4_102 = arith.constant 4 : index
    %80 = vector.load %arg10[%c0_101, %c4_102] : memref<512x36xbf16, #tpu.memory_space<vmem>>, vector<512x4xbf16>
    tpu.vector_store %arg10[%c0_101, %c4_102], %79 {strides = array<i32>} : memref<512x36xbf16, #tpu.memory_space<vmem>>, vector<512x4xbf16>,
    %c0_103 = arith.constant 0 : index
    %c0_104 = arith.constant 0 : index
    %c2_105 = arith.constant 2 : index
    %c0_106 = arith.constant 0 : index
    %81 = vector.load %arg9[%c0_103, %c0_104, %c2_105, %c0_106] : memref<2x18x18x4xf32, #tpu.memory_space<vmem>>, vector<2x16x16x4xf32>
    %82 = vector.shape_cast %81 : vector<2x16x16x4xf32> to vector<512x4xf32>
    %83 = arith.truncf %82 : vector<512x4xf32> to vector<512x4xbf16>
    %c0_107 = arith.constant 0 : index
    %c8_108 = arith.constant 8 : index
    %84 = vector.load %arg10[%c0_107, %c8_108] : memref<512x36xbf16, #tpu.memory_space<vmem>>, vector<512x4xbf16>
    tpu.vector_store %arg10[%c0_107, %c8_108], %83 {strides = array<i32>} : memref<512x36xbf16, #tpu.memory_space<vmem>>, vector<512x4xbf16>,
    %c0_109 = arith.constant 0 : index
    %c1_110 = arith.constant 1 : index
    %c0_111 = arith.constant 0 : index
    %c0_112 = arith.constant 0 : index
    %85 = vector.load %arg9[%c0_109, %c1_110, %c0_111, %c0_112] : memref<2x18x18x4xf32, #tpu.memory_space<vmem>>, vector<2x16x16x4xf32>
    %86 = vector.shape_cast %85 : vector<2x16x16x4xf32> to vector<512x4xf32>
    %87 = arith.truncf %86 : vector<512x4xf32> to vector<512x4xbf16>
    %c0_113 = arith.constant 0 : index
    %c12_114 = arith.constant 12 : index
    %88 = vector.load %arg10[%c0_113, %c12_114] : memref<512x36xbf16, #tpu.memory_space<vmem>>, vector<512x4xbf16>
    tpu.vector_store %arg10[%c0_113, %c12_114], %87 {strides = array<i32>} : memref<512x36xbf16, #tpu.memory_space<vmem>>, vector<512x4xbf16>,
    %c0_115 = arith.constant 0 : index
    %c1_116 = arith.constant 1 : index
    %c1_117 = arith.constant 1 : index
    %c0_118 = arith.constant 0 : index
    %89 = vector.load %arg9[%c0_115, %c1_116, %c1_117, %c0_118] : memref<2x18x18x4xf32, #tpu.memory_space<vmem>>, vector<2x16x16x4xf32>
    %90 = vector.shape_cast %89 : vector<2x16x16x4xf32> to vector<512x4xf32>
    %91 = arith.truncf %90 : vector<512x4xf32> to vector<512x4xbf16>
    %c0_119 = arith.constant 0 : index
    %c16_120 = arith.constant 16 : index
    %92 = vector.load %arg10[%c0_119, %c16_120] : memref<512x36xbf16, #tpu.memory_space<vmem>>, vector<512x4xbf16>
    tpu.vector_store %arg10[%c0_119, %c16_120], %91 {strides = array<i32>} : memref<512x36xbf16, #tpu.memory_space<vmem>>, vector<512x4xbf16>,
    %c0_121 = arith.constant 0 : index
    %c1_122 = arith.constant 1 : index
    %c2_123 = arith.constant 2 : index
    %c0_124 = arith.constant 0 : index
    %93 = vector.load %arg9[%c0_121, %c1_122, %c2_123, %c0_124] : memref<2x18x18x4xf32, #tpu.memory_space<vmem>>, vector<2x16x16x4xf32>
    %94 = vector.shape_cast %93 : vector<2x16x16x4xf32> to vector<512x4xf32>
    %95 = arith.truncf %94 : vector<512x4xf32> to vector<512x4xbf16>
    %c0_125 = arith.constant 0 : index
    %c20_126 = arith.constant 20 : index
    %96 = vector.load %arg10[%c0_125, %c20_126] : memref<512x36xbf16, #tpu.memory_space<vmem>>, vector<512x4xbf16>
    tpu.vector_store %arg10[%c0_125, %c20_126], %95 {strides = array<i32>} : memref<512x36xbf16, #tpu.memory_space<vmem>>, vector<512x4xbf16>,
    %c0_127 = arith.constant 0 : index
    %c2_128 = arith.constant 2 : index
    %c0_129 = arith.constant 0 : index
    %c0_130 = arith.constant 0 : index
    %97 = vector.load %arg9[%c0_127, %c2_128, %c0_129, %c0_130] : memref<2x18x18x4xf32, #tpu.memory_space<vmem>>, vector<2x16x16x4xf32>
    %98 = vector.shape_cast %97 : vector<2x16x16x4xf32> to vector<512x4xf32>
    %99 = arith.truncf %98 : vector<512x4xf32> to vector<512x4xbf16>
    %c0_131 = arith.constant 0 : index
    %c24_132 = arith.constant 24 : index
    %100 = vector.load %arg10[%c0_131, %c24_132] : memref<512x36xbf16, #tpu.memory_space<vmem>>, vector<512x4xbf16>
    tpu.vector_store %arg10[%c0_131, %c24_132], %99 {strides = array<i32>} : memref<512x36xbf16, #tpu.memory_space<vmem>>, vector<512x4xbf16>,
    %c0_133 = arith.constant 0 : index
    %c2_134 = arith.constant 2 : index
    %c1_135 = arith.constant 1 : index
    %c0_136 = arith.constant 0 : index
    %101 = vector.load %arg9[%c0_133, %c2_134, %c1_135, %c0_136] : memref<2x18x18x4xf32, #tpu.memory_space<vmem>>, vector<2x16x16x4xf32>
    %102 = vector.shape_cast %101 : vector<2x16x16x4xf32> to vector<512x4xf32>
    %103 = arith.truncf %102 : vector<512x4xf32> to vector<512x4xbf16>
    %c0_137 = arith.constant 0 : index
    %c28_138 = arith.constant 28 : index
    %104 = vector.load %arg10[%c0_137, %c28_138] : memref<512x36xbf16, #tpu.memory_space<vmem>>, vector<512x4xbf16>
    tpu.vector_store %arg10[%c0_137, %c28_138], %103 {strides = array<i32>} : memref<512x36xbf16, #tpu.memory_space<vmem>>, vector<512x4xbf16>,
    %c0_139 = arith.constant 0 : index
    %c2_140 = arith.constant 2 : index
    %c2_141 = arith.constant 2 : index
    %c0_142 = arith.constant 0 : index
    %105 = vector.load %arg9[%c0_139, %c2_140, %c2_141, %c0_142] : memref<2x18x18x4xf32, #tpu.memory_space<vmem>>, vector<2x16x16x4xf32>
    %106 = vector.shape_cast %105 : vector<2x16x16x4xf32> to vector<512x4xf32>
    %107 = arith.truncf %106 : vector<512x4xf32> to vector<512x4xbf16>
    %c0_143 = arith.constant 0 : index
    %c32_144 = arith.constant 32 : index
    %108 = vector.load %arg10[%c0_143, %c32_144] : memref<512x36xbf16, #tpu.memory_space<vmem>>, vector<512x4xbf16>
    tpu.vector_store %arg10[%c0_143, %c32_144], %107 {strides = array<i32>} : memref<512x36xbf16, #tpu.memory_space<vmem>>, vector<512x4xbf16>,
    %c0_145 = arith.constant 0 : index
    %c0_146 = arith.constant 0 : index
    %109 = vector.load %arg10[%c0_145, %c0_146] : memref<512x36xbf16, #tpu.memory_space<vmem>>, vector<512x36xbf16>
    %c0_147 = arith.constant 0 : index
    %c0_148 = arith.constant 0 : index
    %110 = vector.load %arg5[%c0_147, %c0_148] : memref<36x4xbf16, #tpu.memory_space<vmem>>, vector<36x4xbf16>
    %cst_149 = arith.constant dense<0.000000e+00> : vector<512x4xf32>
    %111 = tpu.matmul %109, %110, %cst_149 {dimension_numbers = #tpu.dot_dimension_numbers<[1], [0], [0], [1], [0, 0, 1, 1], [], []>} : vector<512x36xbf16>, vector<36x4xbf16>, vector<512x4xf32> -> vector<512x4xf32>
    %cst_150 = arith.constant dense<0.000000e+00> : vector<1x4xf32>
    %112 = tpu.matmul %6, %111, %cst_150 {dimension_numbers = #tpu.dot_dimension_numbers<[1], [0], [0], [1], [0, 0, 1, 1], [], []>} : vector<1x512xf32>, vector<512x4xf32>, vector<1x4xf32> -> vector<1x4xf32>
    %cst_151 = arith.constant 0.001953125 : f32
    %113 = vector.broadcast %cst_151 : f32 to vector<1x4xf32>
    %114 = arith.mulf %112, %113 : vector<1x4xf32>
    %115 = vector.broadcast %114 : vector<1x4xf32> to vector<512x4xf32>
    %116 = arith.subf %111, %115 : vector<512x4xf32>
    %117 = arith.mulf %116, %116 : vector<512x4xf32>
    %cst_152 = arith.constant dense<0.000000e+00> : vector<1x4xf32>
    %118 = tpu.matmul %6, %117, %cst_152 {dimension_numbers = #tpu.dot_dimension_numbers<[1], [0], [0], [1], [0, 0, 1, 1], [], []>} : vector<1x512xf32>, vector<512x4xf32>, vector<1x4xf32> -> vector<1x4xf32>
    %cst_153 = arith.constant 0.001953125 : f32
    %119 = vector.broadcast %cst_153 : f32 to vector<1x4xf32>
    %120 = arith.mulf %118, %119 : vector<1x4xf32>
    %c0_154 = arith.constant 0 : index
    %c0_155 = arith.constant 0 : index
    %121 = vector.load %arg6[%c0_154, %c0_155] : memref<1x4xf32, #tpu.memory_space<vmem>>, vector<1x4xf32>
    %cst_156 = arith.constant 9.99999974E-6 : f32
    %122 = vector.broadcast %cst_156 : f32 to vector<1x4xf32>
    %123 = arith.addf %120, %122 : vector<1x4xf32>
    %124 = math.rsqrt %123 : vector<1x4xf32>
    %125 = arith.mulf %121, %124 : vector<1x4xf32>
    %126 = vector.broadcast %125 : vector<1x4xf32> to vector<512x4xf32>
    %127 = arith.mulf %116, %126 : vector<512x4xf32>
    %c0_157 = arith.constant 0 : index
    %c0_158 = arith.constant 0 : index
    %128 = vector.load %arg7[%c0_157, %c0_158] : memref<1x4xf32, #tpu.memory_space<vmem>>, vector<1x4xf32>
    %129 = vector.broadcast %128 : vector<1x4xf32> to vector<512x4xf32>
    %130 = arith.addf %127, %129 : vector<512x4xf32>
    %131 = arith.addf %130, %72 : vector<512x4xf32>
    %cst_159 = arith.constant 0.000000e+00 : f32
    %132 = vector.broadcast %cst_159 : f32 to vector<512x4xf32>
    %133 = arith.maximumf %131, %132 : vector<512x4xf32>
    %134 = tpu.transpose %133, [1, 0] : vector<512x4xf32> -> vector<4x512xf32>
    %c0_160 = arith.constant 0 : index
    %c0_161 = arith.constant 0 : index
    %135 = vector.load %arg8[%c0_160, %c0_161] : memref<4x512xf32, #tpu.memory_space<vmem>>, vector<4x512xf32>
    tpu.vector_store %arg8[%c0_160, %c0_161], %134 {strides = array<i32>} : memref<4x512xf32, #tpu.memory_space<vmem>>, vector<4x512xf32>,
    return
  }
  func.func @transform_0(%arg0: i32) -> (i32, i32, i32, i32) {
    %c0_i32 = arith.constant 0 : i32
    %c0_i32_0 = arith.constant 0 : i32
    %c0_i32_1 = arith.constant 0 : i32
    %c0_i32_2 = arith.constant 0 : i32
    %c0_i32_3 = arith.constant 0 : i32
    return %c0_i32, %c0_i32_0, %c0_i32_1, %c0_i32_2 : i32, i32, i32, i32
  }
  func.func @transform_1(%arg0: i32) -> (i32, i32) {
    %c0_i32 = arith.constant 0 : i32
    %c0_i32_0 = arith.constant 0 : i32
    %c0_i32_1 = arith.constant 0 : i32
    return %c0_i32, %c0_i32_0 : i32, i32
  }
  func.func @transform_2(%arg0: i32) -> (i32, i32) {
    %c0_i32 = arith.constant 0 : i32
    %c0_i32_0 = arith.constant 0 : i32
    %c0_i32_1 = arith.constant 0 : i32
    return %c0_i32, %c0_i32_0 : i32, i32
  }
  func.func @transform_3(%arg0: i32) -> (i32, i32) {
    %c0_i32 = arith.constant 0 : i32
    %c0_i32_0 = arith.constant 0 : i32
    %c0_i32_1 = arith.constant 0 : i32
    return %c0_i32, %c0_i32_0 : i32, i32
  }
  func.func @transform_4(%arg0: i32) -> (i32, i32) {
    %c0_i32 = arith.constant 0 : i32
    %c0_i32_0 = arith.constant 0 : i32
    %c0_i32_1 = arith.constant 0 : i32
    return %c0_i32, %c0_i32_0 : i32, i32
  }
  func.func @transform_5(%arg0: i32) -> (i32, i32) {
    %c0_i32 = arith.constant 0 : i32
    %c0_i32_0 = arith.constant 0 : i32
    %c0_i32_1 = arith.constant 0 : i32
    return %c0_i32, %c0_i32_0 : i32, i32
  }
  func.func @transform_6(%arg0: i32) -> (i32, i32) {
    %c0_i32 = arith.constant 0 : i32
    %c0_i32_0 = arith.constant 0 : i32
    %c0_i32_1 = arith.constant 0 : i32
    return %c0_i32, %c0_i32_0 : i32, i32
  }
  func.func @transform_7(%arg0: i32) -> (i32, i32) {
    %c0_i32 = arith.constant 0 : i32
    %c0_i32_0 = arith.constant 0 : i32
    %c0_i32_1 = arith.constant 0 : i32
    return %c0_i32, %c0_i32_0 : i32, i32
  }
}

</mosaic_0001>

<llo_original>
// kernel: basic_block_forward.1
$region0: #{basic_block_forward.1}
  #allocation0 [shape = 'u32[]', space=smem, size = 0x4, offset = 0x4, fixed_abs, tag = 'smem constant byte address 0x4 - core index']
  #allocation1 [shape = 'u32[144,128]{1,0:T(1,128)}', space=vmem, size = 0x12000, scoped, tag = 'internal scratch']
  #allocation2 [shape = 'f32[2,18,18,4]{3,2,1,0:T(8,128)}', space=vmem, size = 0x6c000, scoped, tag = 'scratch operand']
  #allocation3 [shape = 'bf16[512,36]{1,0:T(16,128)(2,1)}', space=vmem, size = 0x20000, scoped, tag = 'scratch operand']
  %s0 = inlined_call_operand.vmem [shape: f32[2,16,16,4], index: 0, kind: input, shape index: {}]
  %s1 = inlined_call_operand.vmem [shape: bf16[36,4], index: 1, kind: input, shape index: {}]
  %s2 = inlined_call_operand.vmem [shape: f32[1,4], index: 2, kind: input, shape index: {}]
  %s3 = inlined_call_operand.vmem [shape: f32[1,4], index: 3, kind: input, shape index: {}]
  %s4 = inlined_call_operand.vmem [shape: bf16[36,4], index: 4, kind: input, shape index: {}]
  %s5 = inlined_call_operand.vmem [shape: f32[1,4], index: 5, kind: input, shape index: {}]
  %s6 = inlined_call_operand.vmem [shape: f32[1,4], index: 6, kind: input, shape index: {}]
  %s7 = inlined_call_operand.vmem [shape: f32[4,512], index: 7, kind: output, shape index: {}]
  %s8 = sld [smem:[#allocation0]]
  $region38: #{basic_block_forward.1} parent=0
    _
  %s10 = ssub.s32 1, %s8
  %s11 = scalar_select 0, %s10, %s8
  // Predicated region
  $region2: #{basic_block_forward.1} parent=0 // pred_check
    _
  $region3: #{basic_block_forward.1} parent=0 // pred_check_branch
    %13 = sbr.rel (0) target = $region5
  $region4: #{basic_block_forward.1} parent=0 // pred_region
    _
  $region5: #{basic_block_forward.1} parent=0 // pred_fallthru
    _
  // Predicated region
  $region6: #{basic_block_forward.1} parent=0 // pred_check
    _
  $region7: #{basic_block_forward.1} parent=0 // pred_check_branch
    %15 = sbr.rel (0) target = $region9
  $region8: #{basic_block_forward.1} parent=0 // pred_region
    _
  $region9: #{basic_block_forward.1} parent=0 // pred_fallthru
    _
  // Predicated region
  $region10: #{basic_block_forward.1} parent=0 // pred_check
    _
  $region11: #{basic_block_forward.1} parent=0 // pred_check_branch
    %17 = sbr.rel (0) target = $region13
  $region12: #{basic_block_forward.1} parent=0 // pred_region
    _
  $region13: #{basic_block_forward.1} parent=0 // pred_fallthru
    _
  // Predicated region
  $region14: #{basic_block_forward.1} parent=0 // pred_check
    _
  $region15: #{basic_block_forward.1} parent=0 // pred_check_branch
    %19 = sbr.rel (0) target = $region17
  $region16: #{basic_block_forward.1} parent=0 // pred_region
    _
  $region17: #{basic_block_forward.1} parent=0 // pred_fallthru
    _
  // Predicated region
  $region18: #{basic_block_forward.1} parent=0 // pred_check
    _
  $region19: #{basic_block_forward.1} parent=0 // pred_check_branch
    %21 = sbr.rel (0) target = $region21
  $region20: #{basic_block_forward.1} parent=0 // pred_region
    _
  $region21: #{basic_block_forward.1} parent=0 // pred_fallthru
    _
  // Predicated region
  $region22: #{basic_block_forward.1} parent=0 // pred_check
    _
  $region23: #{basic_block_forward.1} parent=0 // pred_check_branch
    %23 = sbr.rel (0) target = $region25
  $region24: #{basic_block_forward.1} parent=0 // pred_region
    _
  $region25: #{basic_block_forward.1} parent=0 // pred_fallthru
    _
  // Predicated region
  $region26: #{basic_block_forward.1} parent=0 // pred_check
    _
  $region27: #{basic_block_forward.1} parent=0 // pred_check_branch
    %25 = sbr.rel (0) target = $region29
  $region28: #{basic_block_forward.1} parent=0 // pred_region
    _
  $region29: #{basic_block_forward.1} parent=0 // pred_fallthru
    _
  %vm27 = vcmask 31744
  %28 = vst.msk [vmem:[#allocation2] sm:$0xff] %vm27, 0.0
  %29 = vst.msk [vmem:[#allocation2 + $0x8] sm:$0xff] %vm27, 0.0
  %vm30 = vcmask 25600
  %31 = vst.msk [vmem:[#allocation2 + $0x10] sm:$0x3] %vm30, 0.0
  %32 = vst.msk [vmem:[#allocation2 + $0x1b0] sm:$0xff] %vm27, 0.0
  %33 = vst.msk [vmem:[#allocation2 + $0x1b8] sm:$0xff] %vm27, 0.0
  %34 = vst.msk [vmem:[#allocation2 + $0x1c0] sm:$0x3] %vm30, 0.0
  %s35 = scalar_lea.vmem [#allocation2], 408
  %36 = vst.msk [vmem:[%s35] sm:$0xff] %vm27, 0.0
  %37 = vst.msk [vmem:[%s35 + $0x8] sm:$0xff] %vm27, 0.0
  %38 = vst.msk [vmem:[%s35 + $0x10] sm:$0x3] %vm30, 0.0
  %39 = vst.msk [vmem:[%s35 + $0x1b0] sm:$0xff] %vm27, 0.0
  %40 = vst.msk [vmem:[%s35 + $0x1b8] sm:$0xff] %vm27, 0.0
  %41 = vst.msk [vmem:[%s35 + $0x1c0] sm:$0x3] %vm30, 0.0
  %s42 = scalar_lea.vmem [#allocation2], 24
  %vm43 = vcmask 24576
  %44 = vst.msk [vmem:[%s42] sm:$0x1] %vm43, 0.0
  %45 = vst.msk [vmem:[%s42 + $0x18] sm:$0x1] %vm43, 0.0
  %46 = vst.msk [vmem:[%s42 + $0x30] sm:$0x1] %vm43, 0.0
  %47 = vst.msk [vmem:[%s42 + $0x48] sm:$0x1] %vm43, 0.0
  %48 = vst.msk [vmem:[%s42 + $0x60] sm:$0x1] %vm43, 0.0
  %49 = vst.msk [vmem:[%s42 + $0x78] sm:$0x1] %vm43, 0.0
  %50 = vst.msk [vmem:[%s42 + $0x90] sm:$0x1] %vm43, 0.0
  %51 = vst.msk [vmem:[%s42 + $0xa8] sm:$0x1] %vm43, 0.0
  %52 = vst.msk [vmem:[%s42 + $0xc0] sm:$0x1] %vm43, 0.0
  %53 = vst.msk [vmem:[%s42 + $0xd8] sm:$0x1] %vm43, 0.0
  %54 = vst.msk [vmem:[%s42 + $0xf0] sm:$0x1] %vm43, 0.0
  %55 = vst.msk [vmem:[%s42 + $0x108] sm:$0x1] %vm43, 0.0
  %56 = vst.msk [vmem:[%s42 + $0x120] sm:$0x1] %vm43, 0.0
  %57 = vst.msk [vmem:[%s42 + $0x138] sm:$0x1] %vm43, 0.0
  %58 = vst.msk [vmem:[%s42 + $0x150] sm:$0x1] %vm43, 0.0
  %59 = vst.msk [vmem:[%s42 + $0x168] sm:$0x1] %vm43, 0.0
  %60 = vst.msk [vmem:[%s42 + $0x1b0] sm:$0x1] %vm43, 0.0
  %61 = vst.msk [vmem:[%s42 + $0x1c8] sm:$0x1] %vm43, 0.0
  %62 = vst.msk [vmem:[%s42 + $0x1e0] sm:$0x1] %vm43, 0.0
  %63 = vst.msk [vmem:[%s42 + $0x1f8] sm:$0x1] %vm43, 0.0
  %64 = vst.msk [vmem:[%s42 + $0x210] sm:$0x1] %vm43, 0.0
  %65 = vst.msk [vmem:[%s42 + $0x228] sm:$0x1] %vm43, 0.0
  %66 = vst.msk [vmem:[%s42 + $0x240] sm:$0x1] %vm43, 0.0
  %67 = vst.msk [vmem:[%s42 + $0x258] sm:$0x1] %vm43, 0.0
  %68 = vst.msk [vmem:[%s42 + $0x270] sm:$0x1] %vm43, 0.0
  %69 = vst.msk [vmem:[%s42 + $0x288] sm:$0x1] %vm43, 0.0
  %70 = vst.msk [vmem:[%s42 + $0x2a0] sm:$0x1] %vm43, 0.0
  %71 = vst.msk [vmem:[%s42 + $0x2b8] sm:$0x1] %vm43, 0.0
  %72 = vst.msk [vmem:[%s42 + $0x2d0] sm:$0x1] %vm43, 0.0
  %73 = vst.msk [vmem:[%s42 + $0x2e8] sm:$0x1] %vm43, 0.0
  %74 = vst.msk [vmem:[%s42 + $0x300] sm:$0x1] %vm43, 0.0
  %75 = vst.msk [vmem:[%s42 + $0x318] sm:$0x1] %vm43, 0.0
  %76 = vst.msk [vmem:[%s42 + $0x11] sm:$0x1] %vm43, 0.0
  %77 = vst.msk [vmem:[%s42 + $0x29] sm:$0x1] %vm43, 0.0
  %78 = vst.msk [vmem:[%s42 + $0x41] sm:$0x1] %vm43, 0.0
  %79 = vst.msk [vmem:[%s42 + $0x59] sm:$0x1] %vm43, 0.0
  %80 = vst.msk [vmem:[%s42 + $0x71] sm:$0x1] %vm43, 0.0
  %81 = vst.msk [vmem:[%s42 + $0x89] sm:$0x1] %vm43, 0.0
  %82 = vst.msk [vmem:[%s42 + $0xa1] sm:$0x1] %vm43, 0.0
  %83 = vst.msk [vmem:[%s42 + $0xb9] sm:$0x1] %vm43, 0.0
  %84 = vst.msk [vmem:[%s42 + $0xd1] sm:$0x1] %vm43, 0.0
  %85 = vst.msk [vmem:[%s42 + $0xe9] sm:$0x1] %vm43, 0.0
  %86 = vst.msk [vmem:[%s42 + $0x101] sm:$0x1] %vm43, 0.0
  %87 = vst.msk [vmem:[%s42 + $0x119] sm:$0x1] %vm43, 0.0
  %88 = vst.msk [vmem:[%s42 + $0x131] sm:$0x1] %vm43, 0.0
  %89 = vst.msk [vmem:[%s42 + $0x149] sm:$0x1] %vm43, 0.0
  %90 = vst.msk [vmem:[%s42 + $0x161] sm:$0x1] %vm43, 0.0
  %91 = vst.msk [vmem:[%s42 + $0x179] sm:$0x1] %vm43, 0.0
  %92 = vst.msk [vmem:[%s42 + $0x1c1] sm:$0x1] %vm43, 0.0
  %93 = vst.msk [vmem:[%s42 + $0x1d9] sm:$0x1] %vm43, 0.0
  %94 = vst.msk [vmem:[%s42 + $0x1f1] sm:$0x1] %vm43, 0.0
  %95 = vst.msk [vmem:[%s42 + $0x209] sm:$0x1] %vm43, 0.0
  %96 = vst.msk [vmem:[%s42 + $0x221] sm:$0x1] %vm43, 0.0
  %97 = vst.msk [vmem:[%s42 + $0x239] sm:$0x1] %vm43, 0.0
  %98 = vst.msk [vmem:[%s42 + $0x251] sm:$0x1] %vm43, 0.0
  %99 = vst.msk [vmem:[%s42 + $0x269] sm:$0x1] %vm43, 0.0
  %100 = vst.msk [vmem:[%s42 + $0x281] sm:$0x1] %vm43, 0.0
  %101 = vst.msk [vmem:[%s42 + $0x299] sm:$0x1] %vm43, 0.0
  %102 = vst.msk [vmem:[%s42 + $0x2b1] sm:$0x1] %vm43, 0.0
  %103 = vst.msk [vmem:[%s42 + $0x2c9] sm:$0x1] %vm43, 0.0
  %104 = vst.msk [vmem:[%s42 + $0x2e1] sm:$0x1] %vm43, 0.0
  %105 = vst.msk [vmem:[%s42 + $0x2f9] sm:$0x1] %vm43, 0.0
  %106 = vst.msk [vmem:[%s42 + $0x311] sm:$0x1] %vm43, 0.0
  %107 = vst.msk [vmem:[%s42 + $0x329] sm:$0x1] %vm43, 0.0
  %v108 = vld [vmem:[%s0] sm:$0xff]
  %v109 = vld [vmem:[%s0 + $0x8] sm:$0xff]
  %v110 = vld [vmem:[%s0 + $0x10] sm:$0xff]
  %v111 = vld [vmem:[%s0 + $0x18] sm:$0xff]
  %v112 = vld [vmem:[%s0 + $0x20] sm:$0xff]
  %v113 = vld [vmem:[%s0 + $0x28] sm:$0xff]
  %v114 = vld [vmem:[%s0 + $0x30] sm:$0xff]
  %v115 = vld [vmem:[%s0 + $0x38] sm:$0xff]
  %v116 = vld [vmem:[%s0 + $0x40] sm:$0xff]
  %v117 = vld [vmem:[%s0 + $0x48] sm:$0xff]
  %v118 = vld [vmem:[%s0 + $0x50] sm:$0xff]
  %v119 = vld [vmem:[%s0 + $0x58] sm:$0xff]
  %v120 = vld [vmem:[%s0 + $0x60] sm:$0xff]
  %v121 = vld [vmem:[%s0 + $0x68] sm:$0xff]
  %v122 = vld [vmem:[%s0 + $0x70] sm:$0xff]
  %v123 = vld [vmem:[%s0 + $0x78] sm:$0xff]
  %v124 = vld [vmem:[%s0 + $0x80] sm:$0xff]
  %v125 = vld [vmem:[%s0 + $0x88] sm:$0xff]
  %v126 = vld [vmem:[%s0 + $0x90] sm:$0xff]
  %v127 = vld [vmem:[%s0 + $0x98] sm:$0xff]
  %v128 = vld [vmem:[%s0 + $0xa0] sm:$0xff]
  %v129 = vld [vmem:[%s0 + $0xa8] sm:$0xff]
  %v130 = vld [vmem:[%s0 + $0xb0] sm:$0xff]
  %v131 = vld [vmem:[%s0 + $0xb8] sm:$0xff]
  %v132 = vld [vmem:[%s0 + $0xc0] sm:$0xff]
  %v133 = vld [vmem:[%s0 + $0xc8] sm:$0xff]
  %v134 = vld [vmem:[%s0 + $0xd0] sm:$0xff]
  %v135 = vld [vmem:[%s0 + $0xd8] sm:$0xff]
  %v136 = vld [vmem:[%s0 + $0xe0] sm:$0xff]
  %v137 = vld [vmem:[%s0 + $0xe8] sm:$0xff]
  %v138 = vld [vmem:[%s0 + $0xf0] sm:$0xff]
  %v139 = vld [vmem:[%s0 + $0xf8] sm:$0xff]
  %v140 = vld [vmem:[%s0 + $0x100] sm:$0xff]
  %v141 = vld [vmem:[%s0 + $0x108] sm:$0xff]
  %v142 = vld [vmem:[%s0 + $0x110] sm:$0xff]
  %v143 = vld [vmem:[%s0 + $0x118] sm:$0xff]
  %v144 = vld [vmem:[%s0 + $0x120] sm:$0xff]
  %v145 = vld [vmem:[%s0 + $0x128] sm:$0xff]
  %v146 = vld [vmem:[%s0 + $0x130] sm:$0xff]
  %v147 = vld [vmem:[%s0 + $0x138] sm:$0xff]
  %v148 = vld [vmem:[%s0 + $0x140] sm:$0xff]
  %v149 = vld [vmem:[%s0 + $0x148] sm:$0xff]
  %v150 = vld [vmem:[%s0 + $0x150] sm:$0xff]
  %v151 = vld [vmem:[%s0 + $0x158] sm:$0xff]
  %v152 = vld [vmem:[%s0 + $0x160] sm:$0xff]
  %v153 = vld [vmem:[%s0 + $0x168] sm:$0xff]
  %v154 = vld [vmem:[%s0 + $0x170] sm:$0xff]
  %v155 = vld [vmem:[%s0 + $0x178] sm:$0xff]
  %v156 = vld [vmem:[%s0 + $0x180] sm:$0xff]
  %v157 = vld [vmem:[%s0 + $0x188] sm:$0xff]
  %v158 = vld [vmem:[%s0 + $0x190] sm:$0xff]
  %v159 = vld [vmem:[%s0 + $0x198] sm:$0xff]
  %v160 = vld [vmem:[%s0 + $0x1a0] sm:$0xff]
  %v161 = vld [vmem:[%s0 + $0x1a8] sm:$0xff]
  %v162 = vld [vmem:[%s0 + $0x1b0] sm:$0xff]
  %v163 = vld [vmem:[%s0 + $0x1b8] sm:$0xff]
  %v164 = vld [vmem:[%s0 + $0x1c0] sm:$0xff]
  %v165 = vld [vmem:[%s0 + $0x1c8] sm:$0xff]
  %v166 = vld [vmem:[%s0 + $0x1d0] sm:$0xff]
  %v167 = vld [vmem:[%s0 + $0x1d8] sm:$0xff]
  %v168 = vld [vmem:[%s0 + $0x1e0] sm:$0xff]
  %v169 = vld [vmem:[%s0 + $0x1e8] sm:$0xff]
  %v170 = vld [vmem:[%s0 + $0x1f0] sm:$0xff]
  %v171 = vld [vmem:[%s0 + $0x1f8] sm:$0xff]
  %172 = vst.msk [vmem:[%s42 + $0x1] sm:$0xff] %vm27, %v108
  %173 = vst.msk [vmem:[%s42 + $0x9] sm:$0xff] %vm27, %v109
  %174 = vst.msk [vmem:[%s42 + $0x19] sm:$0xff] %vm27, %v110
  %175 = vst.msk [vmem:[%s42 + $0x21] sm:$0xff] %vm27, %v111
  %176 = vst.msk [vmem:[%s42 + $0x31] sm:$0xff] %vm27, %v112
  %177 = vst.msk [vmem:[%s42 + $0x39] sm:$0xff] %vm27, %v113
  %178 = vst.msk [vmem:[%s42 + $0x49] sm:$0xff] %vm27, %v114
  %179 = vst.msk [vmem:[%s42 + $0x51] sm:$0xff] %vm27, %v115
  %180 = vst.msk [vmem:[%s42 + $0x61] sm:$0xff] %vm27, %v116
  %181 = vst.msk [vmem:[%s42 + $0x69] sm:$0xff] %vm27, %v117
  %182 = vst.msk [vmem:[%s42 + $0x79] sm:$0xff] %vm27, %v118
  %183 = vst.msk [vmem:[%s42 + $0x81] sm:$0xff] %vm27, %v119
  %184 = vst.msk [vmem:[%s42 + $0x91] sm:$0xff] %vm27, %v120
  %185 = vst.msk [vmem:[%s42 + $0x99] sm:$0xff] %vm27, %v121
  %186 = vst.msk [vmem:[%s42 + $0xa9] sm:$0xff] %vm27, %v122
  %187 = vst.msk [vmem:[%s42 + $0xb1] sm:$0xff] %vm27, %v123
  %188 = vst.msk [vmem:[%s42 + $0xc1] sm:$0xff] %vm27, %v124
  %189 = vst.msk [vmem:[%s42 + $0xc9] sm:$0xff] %vm27, %v125
  %190 = vst.msk [vmem:[%s42 + $0xd9] sm:$0xff] %vm27, %v126
  %191 = vst.msk [vmem:[%s42 + $0xe1] sm:$0xff] %vm27, %v127
  %192 = vst.msk [vmem:[%s42 + $0xf1] sm:$0xff] %vm27, %v128
  %193 = vst.msk [vmem:[%s42 + $0xf9] sm:$0xff] %vm27, %v129
  %194 = vst.msk [vmem:[%s42 + $0x109] sm:$0xff] %vm27, %v130
  %195 = vst.msk [vmem:[%s42 + $0x111] sm:$0xff] %vm27, %v131
  %196 = vst.msk [vmem:[%s42 + $0x121] sm:$0xff] %vm27, %v132
  %197 = vst.msk [vmem:[%s42 + $0x129] sm:$0xff] %vm27, %v133
  %198 = vst.msk [vmem:[%s42 + $0x139] sm:$0xff] %vm27, %v134
  %199 = vst.msk [vmem:[%s42 + $0x141] sm:$0xff] %vm27, %v135
  %200 = vst.msk [vmem:[%s42 + $0x151] sm:$0xff] %vm27, %v136
  %201 = vst.msk [vmem:[%s42 + $0x159] sm:$0xff] %vm27, %v137
  %202 = vst.msk [vmem:[%s42 + $0x169] sm:$0xff] %vm27, %v138
  %203 = vst.msk [vmem:[%s42 + $0x171] sm:$0xff] %vm27, %v139
  %204 = vst.msk [vmem:[%s42 + $0x1b1] sm:$0xff] %vm27, %v140
  %205 = vst.msk [vmem:[%s42 + $0x1b9] sm:$0xff] %vm27, %v141
  %206 = vst.msk [vmem:[%s42 + $0x1c9] sm:$0xff] %vm27, %v142
  %207 = vst.msk [vmem:[%s42 + $0x1d1] sm:$0xff] %vm27, %v143
  %208 = vst.msk [vmem:[%s42 + $0x1e1] sm:$0xff] %vm27, %v144
  %209 = vst.msk [vmem:[%s42 + $0x1e9] sm:$0xff] %vm27, %v145
  %210 = vst.msk [vmem:[%s42 + $0x1f9] sm:$0xff] %vm27, %v146
  %211 = vst.msk [vmem:[%s42 + $0x201] sm:$0xff] %vm27, %v147
  %212 = vst.msk [vmem:[%s42 + $0x211] sm:$0xff] %vm27, %v148
  %213 = vst.msk [vmem:[%s42 + $0x219] sm:$0xff] %vm27, %v149
  %214 = vst.msk [vmem:[%s42 + $0x229] sm:$0xff] %vm27, %v150
  %215 = vst.msk [vmem:[%s42 + $0x231] sm:$0xff] %vm27, %v151
  %216 = vst.msk [vmem:[%s42 + $0x241] sm:$0xff] %vm27, %v152
  %217 = vst.msk [vmem:[%s42 + $0x249] sm:$0xff] %vm27, %v153
  %218 = vst.msk [vmem:[%s42 + $0x259] sm:$0xff] %vm27, %v154
  %219 = vst.msk [vmem:[%s42 + $0x261] sm:$0xff] %vm27, %v155
  %220 = vst.msk [vmem:[%s42 + $0x271] sm:$0xff] %vm27, %v156
  %221 = vst.msk [vmem:[%s42 + $0x279] sm:$0xff] %vm27, %v157
  %222 = vst.msk [vmem:[%s42 + $0x289] sm:$0xff] %vm27, %v158
  %223 = vst.msk [vmem:[%s42 + $0x291] sm:$0xff] %vm27, %v159
  %224 = vst.msk [vmem:[%s42 + $0x2a1] sm:$0xff] %vm27, %v160
  %225 = vst.msk [vmem:[%s42 + $0x2a9] sm:$0xff] %vm27, %v161
  %226 = vst.msk [vmem:[%s42 + $0x2b9] sm:$0xff] %vm27, %v162
  %227 = vst.msk [vmem:[%s42 + $0x2c1] sm:$0xff] %vm27, %v163
  %228 = vst.msk [vmem:[%s42 + $0x2d1] sm:$0xff] %vm27, %v164
  %229 = vst.msk [vmem:[%s42 + $0x2d9] sm:$0xff] %vm27, %v165
  %230 = vst.msk [vmem:[%s42 + $0x2e9] sm:$0xff] %vm27, %v166
  %231 = vst.msk [vmem:[%s42 + $0x2f1] sm:$0xff] %vm27, %v167
  %232 = vst.msk [vmem:[%s42 + $0x301] sm:$0xff] %vm27, %v168
  %233 = vst.msk [vmem:[%s42 + $0x309] sm:$0xff] %vm27, %v169
  %234 = vst.msk [vmem:[%s42 + $0x319] sm:$0xff] %vm27, %v170
  %235 = vst.msk [vmem:[%s42 + $0x321] sm:$0xff] %vm27, %v171
  %v236 = vld [vmem:[#allocation2] sm:$0xff]
  %v237 = vld [vmem:[#allocation2 + $0x8] sm:$0xff]
  %v238 = vld [vmem:[#allocation2 + $0x18] sm:$0xff]
  %v239 = vld [vmem:[#allocation2 + $0x20] sm:$0xff]
  %v240 = vld [vmem:[#allocation2 + $0x30] sm:$0xff]
  %v241 = vld [vmem:[#allocation2 + $0x38] sm:$0xff]
  %v242 = vld [vmem:[#allocation2 + $0x48] sm:$0xff]
  %v243 = vld [vmem:[#allocation2 + $0x50] sm:$0xff]
  %v244 = vld [vmem:[#allocation2 + $0x60] sm:$0xff]
  %v245 = vld [vmem:[#allocation2 + $0x68] sm:$0xff]
  %v246 = vld [vmem:[#allocation2 + $0x78] sm:$0xff]
  %v247 = vld [vmem:[#allocation2 + $0x80] sm:$0xff]
  %v248 = vld [vmem:[#allocation2 + $0x90] sm:$0xff]
  %v249 = vld [vmem:[#allocation2 + $0x98] sm:$0xff]
  %v250 = vld [vmem:[#allocation2 + $0xa8] sm:$0xff]
  %v251 = vld [vmem:[#allocation2 + $0xb0] sm:$0xff]
  %v252 = vld [vmem:[#allocation2 + $0xc0] sm:$0xff]
  %v253 = vld [vmem:[#allocation2 + $0xc8] sm:$0xff]
  %v254 = vld [vmem:[#allocation2 + $0xd8] sm:$0xff]
  %v255 = vld [vmem:[#allocation2 + $0xe0] sm:$0xff]
  %v256 = vld [vmem:[#allocation2 + $0xf0] sm:$0xff]
  %v257 = vld [vmem:[#allocation2 + $0xf8] sm:$0xff]
  %v258 = vld [vmem:[#allocation2 + $0x108] sm:$0xff]
  %v259 = vld [vmem:[#allocation2 + $0x110] sm:$0xff]
  %v260 = vld [vmem:[#allocation2 + $0x120] sm:$0xff]
  %v261 = vld [vmem:[#allocation2 + $0x128] sm:$0xff]
  %v262 = vld [vmem:[#allocation2 + $0x138] sm:$0xff]
  %v263 = vld [vmem:[#allocation2 + $0x140] sm:$0xff]
  %v264 = vld [vmem:[#allocation2 + $0x150] sm:$0xff]
  %v265 = vld [vmem:[#allocation2 + $0x158] sm:$0xff]
  %v266 = vld [vmem:[#allocation2 + $0x168] sm:$0xff]
  %v267 = vld [vmem:[#allocation2 + $0x170] sm:$0xff]
  %v268 = vld [vmem:[#allocation2 + $0x1b0] sm:$0xff]
  %v269 = vld [vmem:[#allocation2 + $0x1b8] sm:$0xff]
  %v270 = vld [vmem:[#allocation2 + $0x1c8] sm:$0xff]
  %v271 = vld [vmem:[#allocation2 + $0x1d0] sm:$0xff]
  %v272 = vld [vmem:[#allocation2 + $0x1e0] sm:$0xff]
  %v273 = vld [vmem:[#allocation2 + $0x1e8] sm:$0xff]
  %v274 = vld [vmem:[#allocation2 + $0x1f8] sm:$0xff]
  %v275 = vld [vmem:[#allocation2 + $0x200] sm:$0xff]
  %v276 = vld [vmem:[#allocation2 + $0x210] sm:$0xff]
  %v277 = vld [vmem:[#allocation2 + $0x218] sm:$0xff]
  %v278 = vld [vmem:[#allocation2 + $0x228] sm:$0xff]
  %v279 = vld [vmem:[#allocation2 + $0x230] sm:$0xff]
  %v280 = vld [vmem:[#allocation2 + $0x240] sm:$0xff]
  %v281 = vld [vmem:[#allocation2 + $0x248] sm:$0xff]
  %v282 = vld [vmem:[#allocation2 + $0x258] sm:$0xff]
  %v283 = vld [vmem:[#allocation2 + $0x260] sm:$0xff]
  %v284 = vld [vmem:[#allocation2 + $0x270] sm:$0xff]
  %v285 = vld [vmem:[#allocation2 + $0x278] sm:$0xff]
  %v286 = vld [vmem:[#allocation2 + $0x288] sm:$0xff]
  %v287 = vld [vmem:[#allocation2 + $0x290] sm:$0xff]
  %v288 = vld [vmem:[#allocation2 + $0x2a0] sm:$0xff]
  %v289 = vld [vmem:[#allocation2 + $0x2a8] sm:$0xff]
  %v290 = vld [vmem:[#allocation2 + $0x2b8] sm:$0xff]
  %v291 = vld [vmem:[#allocation2 + $0x2c0] sm:$0xff]
  %v292 = vld [vmem:[#allocation2 + $0x2d0] sm:$0xff]
  %v293 = vld [vmem:[#allocation2 + $0x2d8] sm:$0xff]
  %v294 = vld [vmem:[#allocation2 + $0x2e8] sm:$0xff]
  %v295 = vld [vmem:[#allocation2 + $0x2f0] sm:$0xff]
  %v296 = vld [vmem:[#allocation2 + $0x300] sm:$0xff]
  %v297 = vld [vmem:[#allocation2 + $0x308] sm:$0xff]
  %v298 = vld [vmem:[#allocation2 + $0x318] sm:$0xff]
  %v299 = vld [vmem:[#allocation2 + $0x320] sm:$0xff]
  %v300 = vpack.c.bf16 %v237, %v236
  %v301 = vpack.c.bf16 %v239, %v238
  %v302 = vpack.c.bf16 %v241, %v240
  %v303 = vpack.c.bf16 %v243, %v242
  %v304 = vpack.c.bf16 %v245, %v244
  %v305 = vpack.c.bf16 %v247, %v246
  %v306 = vpack.c.bf16 %v249, %v248
  %v307 = vpack.c.bf16 %v251, %v250
  %v308 = vpack.c.bf16 %v253, %v252
  %v309 = vpack.c.bf16 %v255, %v254
  %v310 = vpack.c.bf16 %v257, %v256
  %v311 = vpack.c.bf16 %v259, %v258
  %v312 = vpack.c.bf16 %v261, %v260
  %v313 = vpack.c.bf16 %v263, %v262
  %v314 = vpack.c.bf16 %v265, %v264
  %v315 = vpack.c.bf16 %v267, %v266
  %v316 = vpack.c.bf16 %v269, %v268
  %v317 = vpack.c.bf16 %v271, %v270
  %v318 = vpack.c.bf16 %v273, %v272
  %v319 = vpack.c.bf16 %v275, %v274
  %v320 = vpack.c.bf16 %v277, %v276
  %v321 = vpack.c.bf16 %v279, %v278
  %v322 = vpack.c.bf16 %v281, %v280
  %v323 = vpack.c.bf16 %v283, %v282
  %v324 = vpack.c.bf16 %v285, %v284
  %v325 = vpack.c.bf16 %v287, %v286
  %v326 = vpack.c.bf16 %v289, %v288
  %v327 = vpack.c.bf16 %v291, %v290
  %v328 = vpack.c.bf16 %v293, %v292
  %v329 = vpack.c.bf16 %v295, %v294
  %v330 = vpack.c.bf16 %v297, %v296
  %v331 = vpack.c.bf16 %v299, %v298
  %332 = vst.msk [vmem:[#allocation3] sm:$0xff] %vm27, %v300
  %333 = vst.msk [vmem:[#allocation3 + $0x8] sm:$0xff] %vm27, %v301
  %334 = vst.msk [vmem:[#allocation3 + $0x10] sm:$0xff] %vm27, %v302
  %335 = vst.msk [vmem:[#allocation3 + $0x18] sm:$0xff] %vm27, %v303
  %336 = vst.msk [vmem:[#allocation3 + $0x20] sm:$0xff] %vm27, %v304
  %337 = vst.msk [vmem:[#allocation3 + $0x28] sm:$0xff] %vm27, %v305
  %338 = vst.msk [vmem:[#allocation3 + $0x30] sm:$0xff] %vm27, %v306
  %339 = vst.msk [vmem:[#allocation3 + $0x38] sm:$0xff] %vm27, %v307
  %340 = vst.msk [vmem:[#allocation3 + $0x40] sm:$0xff] %vm27, %v308
  %341 = vst.msk [vmem:[#allocation3 + $0x48] sm:$0xff] %vm27, %v309
  %342 = vst.msk [vmem:[#allocation3 + $0x50] sm:$0xff] %vm27, %v310
  %343 = vst.msk [vmem:[#allocation3 + $0x58] sm:$0xff] %vm27, %v311
  %344 = vst.msk [vmem:[#allocation3 + $0x60] sm:$0xff] %vm27, %v312
  %345 = vst.msk [vmem:[#allocation3 + $0x68] sm:$0xff] %vm27, %v313
  %346 = vst.msk [vmem:[#allocation3 + $0x70] sm:$0xff] %vm27, %v314
  %347 = vst.msk [vmem:[#allocation3 + $0x78] sm:$0xff] %vm27, %v315
  %348 = vst.msk [vmem:[#allocation3 + $0x80] sm:$0xff] %vm27, %v316
  %349 = vst.msk [vmem:[#allocation3 + $0x88] sm:$0xff] %vm27, %v317
  %350 = vst.msk [vmem:[#allocation3 + $0x90] sm:$0xff] %vm27, %v318
  %351 = vst.msk [vmem:[#allocation3 + $0x98] sm:$0xff] %vm27, %v319
  %352 = vst.msk [vmem:[#allocation3 + $0xa0] sm:$0xff] %vm27, %v320
  %353 = vst.msk [vmem:[#allocation3 + $0xa8] sm:$0xff] %vm27, %v321
  %354 = vst.msk [vmem:[#allocation3 + $0xb0] sm:$0xff] %vm27, %v322
  %355 = vst.msk [vmem:[#allocation3 + $0xb8] sm:$0xff] %vm27, %v323
  %356 = vst.msk [vmem:[#allocation3 + $0xc0] sm:$0xff] %vm27, %v324
  %357 = vst.msk [vmem:[#allocation3 + $0xc8] sm:$0xff] %vm27, %v325
  %358 = vst.msk [vmem:[#allocation3 + $0xd0] sm:$0xff] %vm27, %v326
  %359 = vst.msk [vmem:[#allocation3 + $0xd8] sm:$0xff] %vm27, %v327
  %360 = vst.msk [vmem:[#allocation3 + $0xe0] sm:$0xff] %vm27, %v328
  %361 = vst.msk [vmem:[#allocation3 + $0xe8] sm:$0xff] %vm27, %v329
  %362 = vst.msk [vmem:[#allocation3 + $0xf0] sm:$0xff] %vm27, %v330
  %363 = vst.msk [vmem:[#allocation3 + $0xf8] sm:$0xff] %vm27, %v331
  %v364 = vld [vmem:[#allocation2 + $0x1] sm:$0xff]
  %v365 = vld [vmem:[#allocation2 + $0x9] sm:$0xff]
  %v366 = vld [vmem:[#allocation2 + $0x19] sm:$0xff]
  %v367 = vld [vmem:[#allocation2 + $0x21] sm:$0xff]
  %v368 = vld [vmem:[#allocation2 + $0x31] sm:$0xff]
  %v369 = vld [vmem:[#allocation2 + $0x39] sm:$0xff]
  %v370 = vld [vmem:[#allocation2 + $0x49] sm:$0xff]
  %v371 = vld [vmem:[#allocation2 + $0x51] sm:$0xff]
  %v372 = vld [vmem:[#allocation2 + $0x61] sm:$0xff]
  %v373 = vld [vmem:[#allocation2 + $0x69] sm:$0xff]
  %v374 = vld [vmem:[#allocation2 + $0x79] sm:$0xff]
  %v375 = vld [vmem:[#allocation2 + $0x81] sm:$0xff]
  %v376 = vld [vmem:[#allocation2 + $0x91] sm:$0xff]
  %v377 = vld [vmem:[#allocation2 + $0x99] sm:$0xff]
  %v378 = vld [vmem:[#allocation2 + $0xa9] sm:$0xff]
  %v379 = vld [vmem:[#allocation2 + $0xb1] sm:$0xff]
  %v380 = vld [vmem:[#allocation2 + $0xc1] sm:$0xff]
  %v381 = vld [vmem:[#allocation2 + $0xc9] sm:$0xff]
  %v382 = vld [vmem:[#allocation2 + $0xd9] sm:$0xff]
  %v383 = vld [vmem:[#allocation2 + $0xe1] sm:$0xff]
  %v384 = vld [vmem:[#allocation2 + $0xf1] sm:$0xff]
  %v385 = vld [vmem:[#allocation2 + $0xf9] sm:$0xff]
  %v386 = vld [vmem:[#allocation2 + $0x109] sm:$0xff]
  %v387 = vld [vmem:[#allocation2 + $0x111] sm:$0xff]
  %v388 = vld [vmem:[#allocation2 + $0x121] sm:$0xff]
  %v389 = vld [vmem:[#allocation2 + $0x129] sm:$0xff]
  %v390 = vld [vmem:[#allocation2 + $0x139] sm:$0xff]
  %v391 = vld [vmem:[#allocation2 + $0x141] sm:$0xff]
  %v392 = vld [vmem:[#allocation2 + $0x151] sm:$0xff]
  %v393 = vld [vmem:[#allocation2 + $0x159] sm:$0xff]
  %v394 = vld [vmem:[#allocation2 + $0x169] sm:$0xff]
  %v395 = vld [vmem:[#allocation2 + $0x171] sm:$0xff]
  %v396 = vld [vmem:[#allocation2 + $0x1b1] sm:$0xff]
  %v397 = vld [vmem:[#allocation2 + $0x1b9] sm:$0xff]
  %v398 = vld [vmem:[#allocation2 + $0x1c9] sm:$0xff]
  %v399 = vld [vmem:[#allocation2 + $0x1d1] sm:$0xff]
  %v400 = vld [vmem:[#allocation2 + $0x1e1] sm:$0xff]
  %v401 = vld [vmem:[#allocation2 + $0x1e9] sm:$0xff]
  %v402 = vld [vmem:[#allocation2 + $0x1f9] sm:$0xff]
  %v403 = vld [vmem:[#allocation2 + $0x201] sm:$0xff]
  %v404 = vld [vmem:[#allocation2 + $0x211] sm:$0xff]
  %v405 = vld [vmem:[#allocation2 + $0x219] sm:$0xff]
  %v406 = vld [vmem:[#allocation2 + $0x229] sm:$0xff]
  %v407 = vld [vmem:[#allocation2 + $0x231] sm:$0xff]
  %v408 = vld [vmem:[#allocation2 + $0x241] sm:$0xff]
  %v409 = vld [vmem:[#allocation2 + $0x249] sm:$0xff]
  %v410 = vld [vmem:[#allocation2 + $0x259] sm:$0xff]
  %v411 = vld [vmem:[#allocation2 + $0x261] sm:$0xff]
  %v412 = vld [vmem:[#allocation2 + $0x271] sm:$0xff]
  %v413 = vld [vmem:[#allocation2 + $0x279] sm:$0xff]
  %v414 = vld [vmem:[#allocation2 + $0x289] sm:$0xff]
  %v415 = vld [vmem:[#allocation2 + $0x291] sm:$0xff]
  %v416 = vld [vmem:[#allocation2 + $0x2a1] sm:$0xff]
  %v417 = vld [vmem:[#allocation2 + $0x2a9] sm:$0xff]
  %v418 = vld [vmem:[#allocation2 + $0x2b9] sm:$0xff]
  %v419 = vld [vmem:[#allocation2 + $0x2c1] sm:$0xff]
  %v420 = vld [vmem:[#allocation2 + $0x2d1] sm:$0xff]
  %v421 = vld [vmem:[#allocation2 + $0x2d9] sm:$0xff]
  %v422 = vld [vmem:[#allocation2 + $0x2e9] sm:$0xff]
  %v423 = vld [vmem:[#allocation2 + $0x2f1] sm:$0xff]
  %v424 = vld [vmem:[#allocation2 + $0x301] sm:$0xff]
  %v425 = vld [vmem:[#allocation2 + $0x309] sm:$0xff]
  %v426 = vld [vmem:[#allocation2 + $0x319] sm:$0xff]
  %v427 = vld [vmem:[#allocation2 + $0x321] sm:$0xff]
  %v428 = vpack.c.bf16 %v365, %v364
  %v429 = vpack.c.bf16 %v367, %v366
  %v430 = vpack.c.bf16 %v369, %v368
  %v431 = vpack.c.bf16 %v371, %v370
  %v432 = vpack.c.bf16 %v373, %v372
  %v433 = vpack.c.bf16 %v375, %v374
  %v434 = vpack.c.bf16 %v377, %v376
  %v435 = vpack.c.bf16 %v379, %v378
  %v436 = vpack.c.bf16 %v381, %v380
  %v437 = vpack.c.bf16 %v383, %v382
  %v438 = vpack.c.bf16 %v385, %v384
  %v439 = vpack.c.bf16 %v387, %v386
  %v440 = vpack.c.bf16 %v389, %v388
  %v441 = vpack.c.bf16 %v391, %v390
  %v442 = vpack.c.bf16 %v393, %v392
  %v443 = vpack.c.bf16 %v395, %v394
  %v444 = vpack.c.bf16 %v397, %v396
  %v445 = vpack.c.bf16 %v399, %v398
  %v446 = vpack.c.bf16 %v401, %v400
  %v447 = vpack.c.bf16 %v403, %v402
  %v448 = vpack.c.bf16 %v405, %v404
  %v449 = vpack.c.bf16 %v407, %v406
  %v450 = vpack.c.bf16 %v409, %v408
  %v451 = vpack.c.bf16 %v411, %v410
  %v452 = vpack.c.bf16 %v413, %v412
  %v453 = vpack.c.bf16 %v415, %v414
  %v454 = vpack.c.bf16 %v417, %v416
  %v455 = vpack.c.bf16 %v419, %v418
  %v456 = vpack.c.bf16 %v421, %v420
  %v457 = vpack.c.bf16 %v423, %v422
  %v458 = vpack.c.bf16 %v425, %v424
  %v459 = vpack.c.bf16 %v427, %v426
  %492 = vrot.lane.b32.xlu0 %v428, 4
  %v493 = vpop.permute.xlu0 %492
  %494 = vrot.lane.b32.xlu0 %v429, 4
  %v495 = vpop.permute.xlu0 %494
  %496 = vrot.lane.b32.xlu0 %v430, 4
  %v497 = vpop.permute.xlu0 %496
  %498 = vrot.lane.b32.xlu0 %v431, 4
  %v499 = vpop.permute.xlu0 %498
  %500 = vrot.lane.b32.xlu0 %v432, 4
  %v501 = vpop.permute.xlu0 %500
  %502 = vrot.lane.b32.xlu0 %v433, 4
  %v503 = vpop.permute.xlu0 %502
  %504 = vrot.lane.b32.xlu0 %v434, 4
  %v505 = vpop.permute.xlu0 %504
  %506 = vrot.lane.b32.xlu0 %v435, 4
  %v507 = vpop.permute.xlu0 %506
  %508 = vrot.lane.b32.xlu0 %v436, 4
  %v509 = vpop.permute.xlu0 %508
  %510 = vrot.lane.b32.xlu0 %v437, 4
  %v511 = vpop.permute.xlu0 %510
  %512 = vrot.lane.b32.xlu0 %v438, 4
  %v513 = vpop.permute.xlu0 %512
  %514 = vrot.lane.b32.xlu0 %v439, 4
  %v515 = vpop.permute.xlu0 %514
  %516 = vrot.lane.b32.xlu0 %v440, 4
  %v517 = vpop.permute.xlu0 %516
  %518 = vrot.lane.b32.xlu0 %v441, 4
  %v519 = vpop.permute.xlu0 %518
  %520 = vrot.lane.b32.xlu0 %v442, 4
  %v521 = vpop.permute.xlu0 %520
  %522 = vrot.lane.b32.xlu0 %v443, 4
  %v523 = vpop.permute.xlu0 %522
  %524 = vrot.lane.b32.xlu0 %v444, 4
  %v525 = vpop.permute.xlu0 %524
  %526 = vrot.lane.b32.xlu0 %v445, 4
  %v527 = vpop.permute.xlu0 %526
  %528 = vrot.lane.b32.xlu0 %v446, 4
  %v529 = vpop.permute.xlu0 %528
  %530 = vrot.lane.b32.xlu0 %v447, 4
  %v531 = vpop.permute.xlu0 %530
  %532 = vrot.lane.b32.xlu0 %v448, 4
  %v533 = vpop.permute.xlu0 %532
  %534 = vrot.lane.b32.xlu0 %v449, 4
  %v535 = vpop.permute.xlu0 %534
  %536 = vrot.lane.b32.xlu0 %v450, 4
  %v537 = vpop.permute.xlu0 %536
  %538 = vrot.lane.b32.xlu0 %v451, 4
  %v539 = vpop.permute.xlu0 %538
  %540 = vrot.lane.b32.xlu0 %v452, 4
  %v541 = vpop.permute.xlu0 %540
  %542 = vrot.lane.b32.xlu0 %v453, 4
  %v543 = vpop.permute.xlu0 %542
  %544 = vrot.lane.b32.xlu0 %v454, 4
  %v545 = vpop.permute.xlu0 %544
  %546 = vrot.lane.b32.xlu0 %v455, 4
  %v547 = vpop.permute.xlu0 %546
  %548 = vrot.lane.b32.xlu0 %v456, 4
  %v549 = vpop.permute.xlu0 %548
  %550 = vrot.lane.b32.xlu0 %v457, 4
  %v551 = vpop.permute.xlu0 %550
  %552 = vrot.lane.b32.xlu0 %v458, 4
  %v553 = vpop.permute.xlu0 %552
  %554 = vrot.lane.b32.xlu0 %v459, 4
  %v555 = vpop.permute.xlu0 %554
  %vm588 = vcmask 64544
  %589 = vst.msk [vmem:[#allocation3] sm:$0xff] %vm588, %v493
  %590 = vst.msk [vmem:[#allocation3 + $0x8] sm:$0xff] %vm588, %v495
  %591 = vst.msk [vmem:[#allocation3 + $0x10] sm:$0xff] %vm588, %v497
  %592 = vst.msk [vmem:[#allocation3 + $0x18] sm:$0xff] %vm588, %v499
  %593 = vst.msk [vmem:[#allocation3 + $0x20] sm:$0xff] %vm588, %v501
  %594 = vst.msk [vmem:[#allocation3 + $0x28] sm:$0xff] %vm588, %v503
  %595 = vst.msk [vmem:[#allocation3 + $0x30] sm:$0xff] %vm588, %v505
  %596 = vst.msk [vmem:[#allocation3 + $0x38] sm:$0xff] %vm588, %v507
  %597 = vst.msk [vmem:[#allocation3 + $0x40] sm:$0xff] %vm588, %v509
  %598 = vst.msk [vmem:[#allocation3 + $0x48] sm:$0xff] %vm588, %v511
  %599 = vst.msk [vmem:[#allocation3 + $0x50] sm:$0xff] %vm588, %v513
  %600 = vst.msk [vmem:[#allocation3 + $0x58] sm:$0xff] %vm588, %v515
  %601 = vst.msk [vmem:[#allocation3 + $0x60] sm:$0xff] %vm588, %v517
  %602 = vst.msk [vmem:[#allocation3 + $0x68] sm:$0xff] %vm588, %v519
  %603 = vst.msk [vmem:[#allocation3 + $0x70] sm:$0xff] %vm588, %v521
  %604 = vst.msk [vmem:[#allocation3 + $0x78] sm:$0xff] %vm588, %v523
  %605 = vst.msk [vmem:[#allocation3 + $0x80] sm:$0xff] %vm588, %v525
  %606 = vst.msk [vmem:[#allocation3 + $0x88] sm:$0xff] %vm588, %v527
  %607 = vst.msk [vmem:[#allocation3 + $0x90] sm:$0xff] %vm588, %v529
  %608 = vst.msk [vmem:[#allocation3 + $0x98] sm:$0xff] %vm588, %v531
  %609 = vst.msk [vmem:[#allocation3 + $0xa0] sm:$0xff] %vm588, %v533
  %610 = vst.msk [vmem:[#allocation3 + $0xa8] sm:$0xff] %vm588, %v535
  %611 = vst.msk [vmem:[#allocation3 + $0xb0] sm:$0xff] %vm588, %v537
  %612 = vst.msk [vmem:[#allocation3 + $0xb8] sm:$0xff] %vm588, %v539
  %613 = vst.msk [vmem:[#allocation3 + $0xc0] sm:$0xff] %vm588, %v541
  %614 = vst.msk [vmem:[#allocation3 + $0xc8] sm:$0xff] %vm588, %v543
  %615 = vst.msk [vmem:[#allocation3 + $0xd0] sm:$0xff] %vm588, %v545
  %616 = vst.msk [vmem:[#allocation3 + $0xd8] sm:$0xff] %vm588, %v547
  %617 = vst.msk [vmem:[#allocation3 + $0xe0] sm:$0xff] %vm588, %v549
  %618 = vst.msk [vmem:[#allocation3 + $0xe8] sm:$0xff] %vm588, %v551
  %619 = vst.msk [vmem:[#allocation3 + $0xf0] sm:$0xff] %vm588, %v553
  %620 = vst.msk [vmem:[#allocation3 + $0xf8] sm:$0xff] %vm588, %v555
  %v621 = vld [vmem:[#allocation2 + $0x2] sm:$0xff]
  %v622 = vld [vmem:[#allocation2 + $0xa] sm:$0xff]
  %v623 = vld [vmem:[#allocation2 + $0x1a] sm:$0xff]
  %v624 = vld [vmem:[#allocation2 + $0x22] sm:$0xff]
  %v625 = vld [vmem:[#allocation2 + $0x32] sm:$0xff]
  %v626 = vld [vmem:[#allocation2 + $0x3a] sm:$0xff]
  %v627 = vld [vmem:[#allocation2 + $0x4a] sm:$0xff]
  %v628 = vld [vmem:[#allocation2 + $0x52] sm:$0xff]
  %v629 = vld [vmem:[#allocation2 + $0x62] sm:$0xff]
  %v630 = vld [vmem:[#allocation2 + $0x6a] sm:$0xff]
  %v631 = vld [vmem:[#allocation2 + $0x7a] sm:$0xff]
  %v632 = vld [vmem:[#allocation2 + $0x82] sm:$0xff]
  %v633 = vld [vmem:[#allocation2 + $0x92] sm:$0xff]
  %v634 = vld [vmem:[#allocation2 + $0x9a] sm:$0xff]
  %v635 = vld [vmem:[#allocation2 + $0xaa] sm:$0xff]
  %v636 = vld [vmem:[#allocation2 + $0xb2] sm:$0xff]
  %v637 = vld [vmem:[#allocation2 + $0xc2] sm:$0xff]
  %v638 = vld [vmem:[#allocation2 + $0xca] sm:$0xff]
  %v639 = vld [vmem:[#allocation2 + $0xda] sm:$0xff]
  %v640 = vld [vmem:[#allocation2 + $0xe2] sm:$0xff]
  %v641 = vld [vmem:[#allocation2 + $0xf2] sm:$0xff]
  %v642 = vld [vmem:[#allocation2 + $0xfa] sm:$0xff]
  %v643 = vld [vmem:[#allocation2 + $0x10a] sm:$0xff]
  %v644 = vld [vmem:[#allocation2 + $0x112] sm:$0xff]
  %v645 = vld [vmem:[#allocation2 + $0x122] sm:$0xff]
  %v646 = vld [vmem:[#allocation2 + $0x12a] sm:$0xff]
  %v647 = vld [vmem:[#allocation2 + $0x13a] sm:$0xff]
  %v648 = vld [vmem:[#allocation2 + $0x142] sm:$0xff]
  %v649 = vld [vmem:[#allocation2 + $0x152] sm:$0xff]
  %v650 = vld [vmem:[#allocation2 + $0x15a] sm:$0xff]
  %v651 = vld [vmem:[#allocation2 + $0x16a] sm:$0xff]
  %v652 = vld [vmem:[#allocation2 + $0x172] sm:$0xff]
  %v653 = vld [vmem:[#allocation2 + $0x1b2] sm:$0xff]
  %v654 = vld [vmem:[#allocation2 + $0x1ba] sm:$0xff]
  %v655 = vld [vmem:[#allocation2 + $0x1ca] sm:$0xff]
  %v656 = vld [vmem:[#allocation2 + $0x1d2] sm:$0xff]
  %v657 = vld [vmem:[#allocation2 + $0x1e2] sm:$0xff]
  %v658 = vld [vmem:[#allocation2 + $0x1ea] sm:$0xff]
  %v659 = vld [vmem:[#allocation2 + $0x1fa] sm:$0xff]
  %v660 = vld [vmem:[#allocation2 + $0x202] sm:$0xff]
  %v661 = vld [vmem:[#allocation2 + $0x212] sm:$0xff]
  %v662 = vld [vmem:[#allocation2 + $0x21a] sm:$0xff]
  %v663 = vld [vmem:[#allocation2 + $0x22a] sm:$0xff]
  %v664 = vld [vmem:[#allocation2 + $0x232] sm:$0xff]
  %v665 = vld [vmem:[#allocation2 + $0x242] sm:$0xff]
  %v666 = vld [vmem:[#allocation2 + $0x24a] sm:$0xff]
  %v667 = vld [vmem:[#allocation2 + $0x25a] sm:$0xff]
  %v668 = vld [vmem:[#allocation2 + $0x262] sm:$0xff]
  %v669 = vld [vmem:[#allocation2 + $0x272] sm:$0xff]
  %v670 = vld [vmem:[#allocation2 + $0x27a] sm:$0xff]
  %v671 = vld [vmem:[#allocation2 + $0x28a] sm:$0xff]
  %v672 = vld [vmem:[#allocation2 + $0x292] sm:$0xff]
  %v673 = vld [vmem:[#allocation2 + $0x2a2] sm:$0xff]
  %v674 = vld [vmem:[#allocation2 + $0x2aa] sm:$0xff]
  %v675 = vld [vmem:[#allocation2 + $0x2ba] sm:$0xff]
  %v676 = vld [vmem:[#allocation2 + $0x2c2] sm:$0xff]
  %v677 = vld [vmem:[#allocation2 + $0x2d2] sm:$0xff]
  %v678 = vld [vmem:[#allocation2 + $0x2da] sm:$0xff]
  %v679 = vld [vmem:[#allocation2 + $0x2ea] sm:$0xff]
  %v680 = vld [vmem:[#allocation2 + $0x2f2] sm:$0xff]
  %v681 = vld [vmem:[#allocation2 + $0x302] sm:$0xff]
  %v682 = vld [vmem:[#allocation2 + $0x30a] sm:$0xff]
  %v683 = vld [vmem:[#allocation2 + $0x31a] sm:$0xff]
  %v684 = vld [vmem:[#allocation2 + $0x322] sm:$0xff]
  %v685 = vpack.c.bf16 %v622, %v621
  %v686 = vpack.c.bf16 %v624, %v623
  %v687 = vpack.c.bf16 %v626, %v625
  %v688 = vpack.c.bf16 %v628, %v627
  %v689 = vpack.c.bf16 %v630, %v629
  %v690 = vpack.c.bf16 %v632, %v631
  %v691 = vpack.c.bf16 %v634, %v633
  %v692 = vpack.c.bf16 %v636, %v635
  %v693 = vpack.c.bf16 %v638, %v637
  %v694 = vpack.c.bf16 %v640, %v639
  %v695 = vpack.c.bf16 %v642, %v641
  %v696 = vpack.c.bf16 %v644, %v643
  %v697 = vpack.c.bf16 %v646, %v645
  %v698 = vpack.c.bf16 %v648, %v647
  %v699 = vpack.c.bf16 %v650, %v649
  %v700 = vpack.c.bf16 %v652, %v651
  %v701 = vpack.c.bf16 %v654, %v653
  %v702 = vpack.c.bf16 %v656, %v655
  %v703 = vpack.c.bf16 %v658, %v657
  %v704 = vpack.c.bf16 %v660, %v659
  %v705 = vpack.c.bf16 %v662, %v661
  %v706 = vpack.c.bf16 %v664, %v663
  %v707 = vpack.c.bf16 %v666, %v665
  %v708 = vpack.c.bf16 %v668, %v667
  %v709 = vpack.c.bf16 %v670, %v669
  %v710 = vpack.c.bf16 %v672, %v671
  %v711 = vpack.c.bf16 %v674, %v673
  %v712 = vpack.c.bf16 %v676, %v675
  %v713 = vpack.c.bf16 %v678, %v677
  %v714 = vpack.c.bf16 %v680, %v679
  %v715 = vpack.c.bf16 %v682, %v681
  %v716 = vpack.c.bf16 %v684, %v683
  %749 = vrot.lane.b32.xlu0 %v685, 8
  %v750 = vpop.permute.xlu0 %749
  %751 = vrot.lane.b32.xlu0 %v686, 8
  %v752 = vpop.permute.xlu0 %751
  %753 = vrot.lane.b32.xlu0 %v687, 8
  %v754 = vpop.permute.xlu0 %753
  %755 = vrot.lane.b32.xlu0 %v688, 8
  %v756 = vpop.permute.xlu0 %755
  %757 = vrot.lane.b32.xlu0 %v689, 8
  %v758 = vpop.permute.xlu0 %757
  %759 = vrot.lane.b32.xlu0 %v690, 8
  %v760 = vpop.permute.xlu0 %759
  %761 = vrot.lane.b32.xlu0 %v691, 8
  %v762 = vpop.permute.xlu0 %761
  %763 = vrot.lane.b32.xlu0 %v692, 8
  %v764 = vpop.permute.xlu0 %763
  %765 = vrot.lane.b32.xlu0 %v693, 8
  %v766 = vpop.permute.xlu0 %765
  %767 = vrot.lane.b32.xlu0 %v694, 8
  %v768 = vpop.permute.xlu0 %767
  %769 = vrot.lane.b32.xlu0 %v695, 8
  %v770 = vpop.permute.xlu0 %769
  %771 = vrot.lane.b32.xlu0 %v696, 8
  %v772 = vpop.permute.xlu0 %771
  %773 = vrot.lane.b32.xlu0 %v697, 8
  %v774 = vpop.permute.xlu0 %773
  %775 = vrot.lane.b32.xlu0 %v698, 8
  %v776 = vpop.permute.xlu0 %775
  %777 = vrot.lane.b32.xlu0 %v699, 8
  %v778 = vpop.permute.xlu0 %777
  %779 = vrot.lane.b32.xlu0 %v700, 8
  %v780 = vpop.permute.xlu0 %779
  %781 = vrot.lane.b32.xlu0 %v701, 8
  %v782 = vpop.permute.xlu0 %781
  %783 = vrot.lane.b32.xlu0 %v702, 8
  %v784 = vpop.permute.xlu0 %783
  %785 = vrot.lane.b32.xlu0 %v703, 8
  %v786 = vpop.permute.xlu0 %785
  %787 = vrot.lane.b32.xlu0 %v704, 8
  %v788 = vpop.permute.xlu0 %787
  %789 = vrot.lane.b32.xlu0 %v705, 8
  %v790 = vpop.permute.xlu0 %789
  %791 = vrot.lane.b32.xlu0 %v706, 8
  %v792 = vpop.permute.xlu0 %791
  %793 = vrot.lane.b32.xlu0 %v707, 8
  %v794 = vpop.permute.xlu0 %793
  %795 = vrot.lane.b32.xlu0 %v708, 8
  %v796 = vpop.permute.xlu0 %795
  %797 = vrot.lane.b32.xlu0 %v709, 8
  %v798 = vpop.permute.xlu0 %797
  %799 = vrot.lane.b32.xlu0 %v710, 8
  %v800 = vpop.permute.xlu0 %799
  %801 = vrot.lane.b32.xlu0 %v711, 8
  %v802 = vpop.permute.xlu0 %801
  %803 = vrot.lane.b32.xlu0 %v712, 8
  %v804 = vpop.permute.xlu0 %803
  %805 = vrot.lane.b32.xlu0 %v713, 8
  %v806 = vpop.permute.xlu0 %805
  %807 = vrot.lane.b32.xlu0 %v714, 8
  %v808 = vpop.permute.xlu0 %807
  %809 = vrot.lane.b32.xlu0 %v715, 8
  %v810 = vpop.permute.xlu0 %809
  %811 = vrot.lane.b32.xlu0 %v716, 8
  %v812 = vpop.permute.xlu0 %811
  %vm845 = vcmask 97344
  %846 = vst.msk [vmem:[#allocation3] sm:$0xff] %vm845, %v750
  %847 = vst.msk [vmem:[#allocation3 + $0x8] sm:$0xff] %vm845, %v752
  %848 = vst.msk [vmem:[#allocation3 + $0x10] sm:$0xff] %vm845, %v754
  %849 = vst.msk [vmem:[#allocation3 + $0x18] sm:$0xff] %vm845, %v756
  %850 = vst.msk [vmem:[#allocation3 + $0x20] sm:$0xff] %vm845, %v758
  %851 = vst.msk [vmem:[#allocation3 + $0x28] sm:$0xff] %vm845, %v760
  %852 = vst.msk [vmem:[#allocation3 + $0x30] sm:$0xff] %vm845, %v762
  %853 = vst.msk [vmem:[#allocation3 + $0x38] sm:$0xff] %vm845, %v764
  %854 = vst.msk [vmem:[#allocation3 + $0x40] sm:$0xff] %vm845, %v766
  %855 = vst.msk [vmem:[#allocation3 + $0x48] sm:$0xff] %vm845, %v768
  %856 = vst.msk [vmem:[#allocation3 + $0x50] sm:$0xff] %vm845, %v770
  %857 = vst.msk [vmem:[#allocation3 + $0x58] sm:$0xff] %vm845, %v772
  %858 = vst.msk [vmem:[#allocation3 + $0x60] sm:$0xff] %vm845, %v774
  %859 = vst.msk [vmem:[#allocation3 + $0x68] sm:$0xff] %vm845, %v776
  %860 = vst.msk [vmem:[#allocation3 + $0x70] sm:$0xff] %vm845, %v778
  %861 = vst.msk [vmem:[#allocation3 + $0x78] sm:$0xff] %vm845, %v780
  %862 = vst.msk [vmem:[#allocation3 + $0x80] sm:$0xff] %vm845, %v782
  %863 = vst.msk [vmem:[#allocation3 + $0x88] sm:$0xff] %vm845, %v784
  %864 = vst.msk [vmem:[#allocation3 + $0x90] sm:$0xff] %vm845, %v786
  %865 = vst.msk [vmem:[#allocation3 + $0x98] sm:$0xff] %vm845, %v788
  %866 = vst.msk [vmem:[#allocation3 + $0xa0] sm:$0xff] %vm845, %v790
  %867 = vst.msk [vmem:[#allocation3 + $0xa8] sm:$0xff] %vm845, %v792
  %868 = vst.msk [vmem:[#allocation3 + $0xb0] sm:$0xff] %vm845, %v794
  %869 = vst.msk [vmem:[#allocation3 + $0xb8] sm:$0xff] %vm845, %v796
  %870 = vst.msk [vmem:[#allocation3 + $0xc0] sm:$0xff] %vm845, %v798
  %871 = vst.msk [vmem:[#allocation3 + $0xc8] sm:$0xff] %vm845, %v800
  %872 = vst.msk [vmem:[#allocation3 + $0xd0] sm:$0xff] %vm845, %v802
  %873 = vst.msk [vmem:[#allocation3 + $0xd8] sm:$0xff] %vm845, %v804
  %874 = vst.msk [vmem:[#allocation3 + $0xe0] sm:$0xff] %vm845, %v806
  %875 = vst.msk [vmem:[#allocation3 + $0xe8] sm:$0xff] %vm845, %v808
  %876 = vst.msk [vmem:[#allocation3 + $0xf0] sm:$0xff] %vm845, %v810
  %877 = vst.msk [vmem:[#allocation3 + $0xf8] sm:$0xff] %vm845, %v812
  %v878 = vld [vmem:[%s42] sm:$0xff]
  %v879 = vld [vmem:[%s42 + $0x8] sm:$0xff]
  %v880 = vld [vmem:[%s42 + $0x18] sm:$0xff]
  %v881 = vld [vmem:[%s42 + $0x20] sm:$0xff]
  %v882 = vld [vmem:[%s42 + $0x30] sm:$0xff]
  %v883 = vld [vmem:[%s42 + $0x38] sm:$0xff]
  %v884 = vld [vmem:[%s42 + $0x48] sm:$0xff]
  %v885 = vld [vmem:[%s42 + $0x50] sm:$0xff]
  %v886 = vld [vmem:[%s42 + $0x60] sm:$0xff]
  %v887 = vld [vmem:[%s42 + $0x68] sm:$0xff]
  %v888 = vld [vmem:[%s42 + $0x78] sm:$0xff]
  %v889 = vld [vmem:[%s42 + $0x80] sm:$0xff]
  %v890 = vld [vmem:[%s42 + $0x90] sm:$0xff]
  %v891 = vld [vmem:[%s42 + $0x98] sm:$0xff]
  %v892 = vld [vmem:[%s42 + $0xa8] sm:$0xff]
  %v893 = vld [vmem:[%s42 + $0xb0] sm:$0xff]
  %v894 = vld [vmem:[%s42 + $0xc0] sm:$0xff]
  %v895 = vld [vmem:[%s42 + $0xc8] sm:$0xff]
  %v896 = vld [vmem:[%s42 + $0xd8] sm:$0xff]
  %v897 = vld [vmem:[%s42 + $0xe0] sm:$0xff]
  %v898 = vld [vmem:[%s42 + $0xf0] sm:$0xff]
  %v899 = vld [vmem:[%s42 + $0xf8] sm:$0xff]
  %v900 = vld [vmem:[%s42 + $0x108] sm:$0xff]
  %v901 = vld [vmem:[%s42 + $0x110] sm:$0xff]
  %v902 = vld [vmem:[%s42 + $0x120] sm:$0xff]
  %v903 = vld [vmem:[%s42 + $0x128] sm:$0xff]
  %v904 = vld [vmem:[%s42 + $0x138] sm:$0xff]
  %v905 = vld [vmem:[%s42 + $0x140] sm:$0xff]
  %v906 = vld [vmem:[%s42 + $0x150] sm:$0xff]
  %v907 = vld [vmem:[%s42 + $0x158] sm:$0xff]
  %v908 = vld [vmem:[%s42 + $0x168] sm:$0xff]
  %v909 = vld [vmem:[%s42 + $0x170] sm:$0xff]
  %v910 = vld [vmem:[%s42 + $0x1b0] sm:$0xff]
  %v911 = vld [vmem:[%s42 + $0x1b8] sm:$0xff]
  %v912 = vld [vmem:[%s42 + $0x1c8] sm:$0xff]
  %v913 = vld [vmem:[%s42 + $0x1d0] sm:$0xff]
  %v914 = vld [vmem:[%s42 + $0x1e0] sm:$0xff]
  %v915 = vld [vmem:[%s42 + $0x1e8] sm:$0xff]
  %v916 = vld [vmem:[%s42 + $0x1f8] sm:$0xff]
  %v917 = vld [vmem:[%s42 + $0x200] sm:$0xff]
  %v918 = vld [vmem:[%s42 + $0x210] sm:$0xff]
  %v919 = vld [vmem:[%s42 + $0x218] sm:$0xff]
  %v920 = vld [vmem:[%s42 + $0x228] sm:$0xff]
  %v921 = vld [vmem:[%s42 + $0x230] sm:$0xff]
  %v922 = vld [vmem:[%s42 + $0x240] sm:$0xff]
  %v923 = vld [vmem:[%s42 + $0x248] sm:$0xff]
  %v924 = vld [vmem:[%s42 + $0x258] sm:$0xff]
  %v925 = vld [vmem:[%s42 + $0x260] sm:$0xff]
  %v926 = vld [vmem:[%s42 + $0x270] sm:$0xff]
  %v927 = vld [vmem:[%s42 + $0x278] sm:$0xff]
  %v928 = vld [vmem:[%s42 + $0x288] sm:$0xff]
  %v929 = vld [vmem:[%s42 + $0x290] sm:$0xff]
  %v930 = vld [vmem:[%s42 + $0x2a0] sm:$0xff]
  %v931 = vld [vmem:[%s42 + $0x2a8] sm:$0xff]
  %v932 = vld [vmem:[%s42 + $0x2b8] sm:$0xff]
  %v933 = vld [vmem:[%s42 + $0x2c0] sm:$0xff]
  %v934 = vld [vmem:[%s42 + $0x2d0] sm:$0xff]
  %v935 = vld [vmem:[%s42 + $0x2d8] sm:$0xff]
  %v936 = vld [vmem:[%s42 + $0x2e8] sm:$0xff]
  %v937 = vld [vmem:[%s42 + $0x2f0] sm:$0xff]
  %v938 = vld [vmem:[%s42 + $0x300] sm:$0xff]
  %v939 = vld [vmem:[%s42 + $0x308] sm:$0xff]
  %v940 = vld [vmem:[%s42 + $0x318] sm:$0xff]
  %v941 = vld [vmem:[%s42 + $0x320] sm:$0xff]
  %v942 = vpack.c.bf16 %v879, %v878
  %v943 = vpack.c.bf16 %v881, %v880
  %v944 = vpack.c.bf16 %v883, %v882
  %v945 = vpack.c.bf16 %v885, %v884
  %v946 = vpack.c.bf16 %v887, %v886
  %v947 = vpack.c.bf16 %v889, %v888
  %v948 = vpack.c.bf16 %v891, %v890
  %v949 = vpack.c.bf16 %v893, %v892
  %v950 = vpack.c.bf16 %v895, %v894
  %v951 = vpack.c.bf16 %v897, %v896
  %v952 = vpack.c.bf16 %v899, %v898
  %v953 = vpack.c.bf16 %v901, %v900
  %v954 = vpack.c.bf16 %v903, %v902
  %v955 = vpack.c.bf16 %v905, %v904
  %v956 = vpack.c.bf16 %v907, %v906
  %v957 = vpack.c.bf16 %v909, %v908
  %v958 = vpack.c.bf16 %v911, %v910
  %v959 = vpack.c.bf16 %v913, %v912
  %v960 = vpack.c.bf16 %v915, %v914
  %v961 = vpack.c.bf16 %v917, %v916
  %v962 = vpack.c.bf16 %v919, %v918
  %v963 = vpack.c.bf16 %v921, %v920
  %v964 = vpack.c.bf16 %v923, %v922
  %v965 = vpack.c.bf16 %v925, %v924
  %v966 = vpack.c.bf16 %v927, %v926
  %v967 = vpack.c.bf16 %v929, %v928
  %v968 = vpack.c.bf16 %v931, %v930
  %v969 = vpack.c.bf16 %v933, %v932
  %v970 = vpack.c.bf16 %v935, %v934
  %v971 = vpack.c.bf16 %v937, %v936
  %v972 = vpack.c.bf16 %v939, %v938
  %v973 = vpack.c.bf16 %v941, %v940
  %1006 = vrot.lane.b32.xlu0 %v942, 12
  %v1007 = vpop.permute.xlu0 %1006
  %1008 = vrot.lane.b32.xlu0 %v943, 12
  %v1009 = vpop.permute.xlu0 %1008
  %1010 = vrot.lane.b32.xlu0 %v944, 12
  %v1011 = vpop.permute.xlu0 %1010
  %1012 = vrot.lane.b32.xlu0 %v945, 12
  %v1013 = vpop.permute.xlu0 %1012
  %1014 = vrot.lane.b32.xlu0 %v946, 12
  %v1015 = vpop.permute.xlu0 %1014
  %1016 = vrot.lane.b32.xlu0 %v947, 12
  %v1017 = vpop.permute.xlu0 %1016
  %1018 = vrot.lane.b32.xlu0 %v948, 12
  %v1019 = vpop.permute.xlu0 %1018
  %1020 = vrot.lane.b32.xlu0 %v949, 12
  %v1021 = vpop.permute.xlu0 %1020
  %1022 = vrot.lane.b32.xlu0 %v950, 12
  %v1023 = vpop.permute.xlu0 %1022
  %1024 = vrot.lane.b32.xlu0 %v951, 12
  %v1025 = vpop.permute.xlu0 %1024
  %1026 = vrot.lane.b32.xlu0 %v952, 12
  %v1027 = vpop.permute.xlu0 %1026
  %1028 = vrot.lane.b32.xlu0 %v953, 12
  %v1029 = vpop.permute.xlu0 %1028
  %1030 = vrot.lane.b32.xlu0 %v954, 12
  %v1031 = vpop.permute.xlu0 %1030
  %1032 = vrot.lane.b32.xlu0 %v955, 12
  %v1033 = vpop.permute.xlu0 %1032
  %1034 = vrot.lane.b32.xlu0 %v956, 12
  %v1035 = vpop.permute.xlu0 %1034
  %1036 = vrot.lane.b32.xlu0 %v957, 12
  %v1037 = vpop.permute.xlu0 %1036
  %1038 = vrot.lane.b32.xlu0 %v958, 12
  %v1039 = vpop.permute.xlu0 %1038
  %1040 = vrot.lane.b32.xlu0 %v959, 12
  %v1041 = vpop.permute.xlu0 %1040
  %1042 = vrot.lane.b32.xlu0 %v960, 12
  %v1043 = vpop.permute.xlu0 %1042
  %1044 = vrot.lane.b32.xlu0 %v961, 12
  %v1045 = vpop.permute.xlu0 %1044
  %1046 = vrot.lane.b32.xlu0 %v962, 12
  %v1047 = vpop.permute.xlu0 %1046
  %1048 = vrot.lane.b32.xlu0 %v963, 12
  %v1049 = vpop.permute.xlu0 %1048
  %1050 = vrot.lane.b32.xlu0 %v964, 12
  %v1051 = vpop.permute.xlu0 %1050
  %1052 = vrot.lane.b32.xlu0 %v965, 12
  %v1053 = vpop.permute.xlu0 %1052
  %1054 = vrot.lane.b32.xlu0 %v966, 12
  %v1055 = vpop.permute.xlu0 %1054
  %1056 = vrot.lane.b32.xlu0 %v967, 12
  %v1057 = vpop.permute.xlu0 %1056
  %1058 = vrot.lane.b32.xlu0 %v968, 12
  %v1059 = vpop.permute.xlu0 %1058
  %1060 = vrot.lane.b32.xlu0 %v969, 12
  %v1061 = vpop.permute.xlu0 %1060
  %1062 = vrot.lane.b32.xlu0 %v970, 12
  %v1063 = vpop.permute.xlu0 %1062
  %1064 = vrot.lane.b32.xlu0 %v971, 12
  %v1065 = vpop.permute.xlu0 %1064
  %1066 = vrot.lane.b32.xlu0 %v972, 12
  %v1067 = vpop.permute.xlu0 %1066
  %1068 = vrot.lane.b32.xlu0 %v973, 12
  %v1069 = vpop.permute.xlu0 %1068
  %vm1102 = vcmask 130144
  %1103 = vst.msk [vmem:[#allocation3] sm:$0xff] %vm1102, %v1007
  %1104 = vst.msk [vmem:[#allocation3 + $0x8] sm:$0xff] %vm1102, %v1009
  %1105 = vst.msk [vmem:[#allocation3 + $0x10] sm:$0xff] %vm1102, %v1011
  %1106 = vst.msk [vmem:[#allocation3 + $0x18] sm:$0xff] %vm1102, %v1013
  %1107 = vst.msk [vmem:[#allocation3 + $0x20] sm:$0xff] %vm1102, %v1015
  %1108 = vst.msk [vmem:[#allocation3 + $0x28] sm:$0xff] %vm1102, %v1017
  %1109 = vst.msk [vmem:[#allocation3 + $0x30] sm:$0xff] %vm1102, %v1019
  %1110 = vst.msk [vmem:[#allocation3 + $0x38] sm:$0xff] %vm1102, %v1021
  %1111 = vst.msk [vmem:[#allocation3 + $0x40] sm:$0xff] %vm1102, %v1023
  %1112 = vst.msk [vmem:[#allocation3 + $0x48] sm:$0xff] %vm1102, %v1025
  %1113 = vst.msk [vmem:[#allocation3 + $0x50] sm:$0xff] %vm1102, %v1027
  %1114 = vst.msk [vmem:[#allocation3 + $0x58] sm:$0xff] %vm1102, %v1029
  %1115 = vst.msk [vmem:[#allocation3 + $0x60] sm:$0xff] %vm1102, %v1031
  %1116 = vst.msk [vmem:[#allocation3 + $0x68] sm:$0xff] %vm1102, %v1033
  %1117 = vst.msk [vmem:[#allocation3 + $0x70] sm:$0xff] %vm1102, %v1035
  %1118 = vst.msk [vmem:[#allocation3 + $0x78] sm:$0xff] %vm1102, %v1037
  %1119 = vst.msk [vmem:[#allocation3 + $0x80] sm:$0xff] %vm1102, %v1039
  %1120 = vst.msk [vmem:[#allocation3 + $0x88] sm:$0xff] %vm1102, %v1041
  %1121 = vst.msk [vmem:[#allocation3 + $0x90] sm:$0xff] %vm1102, %v1043
  %1122 = vst.msk [vmem:[#allocation3 + $0x98] sm:$0xff] %vm1102, %v1045
  %1123 = vst.msk [vmem:[#allocation3 + $0xa0] sm:$0xff] %vm1102, %v1047
  %1124 = vst.msk [vmem:[#allocation3 + $0xa8] sm:$0xff] %vm1102, %v1049
  %1125 = vst.msk [vmem:[#allocation3 + $0xb0] sm:$0xff] %vm1102, %v1051
  %1126 = vst.msk [vmem:[#allocation3 + $0xb8] sm:$0xff] %vm1102, %v1053
  %1127 = vst.msk [vmem:[#allocation3 + $0xc0] sm:$0xff] %vm1102, %v1055
  %1128 = vst.msk [vmem:[#allocation3 + $0xc8] sm:$0xff] %vm1102, %v1057
  %1129 = vst.msk [vmem:[#allocation3 + $0xd0] sm:$0xff] %vm1102, %v1059
  %1130 = vst.msk [vmem:[#allocation3 + $0xd8] sm:$0xff] %vm1102, %v1061
  %1131 = vst.msk [vmem:[#allocation3 + $0xe0] sm:$0xff] %vm1102, %v1063
  %1132 = vst.msk [vmem:[#allocation3 + $0xe8] sm:$0xff] %vm1102, %v1065
  %1133 = vst.msk [vmem:[#allocation3 + $0xf0] sm:$0xff] %vm1102, %v1067
  %1134 = vst.msk [vmem:[#allocation3 + $0xf8] sm:$0xff] %vm1102, %v1069
  %v1135 = vld [vmem:[%s42 + $0x1] sm:$0xff]
  %v1136 = vld [vmem:[%s42 + $0x9] sm:$0xff]
  %v1137 = vld [vmem:[%s42 + $0x19] sm:$0xff]
  %v1138 = vld [vmem:[%s42 + $0x21] sm:$0xff]
  %v1139 = vld [vmem:[%s42 + $0x31] sm:$0xff]
  %v1140 = vld [vmem:[%s42 + $0x39] sm:$0xff]
  %v1141 = vld [vmem:[%s42 + $0x49] sm:$0xff]
  %v1142 = vld [vmem:[%s42 + $0x51] sm:$0xff]
  %v1143 = vld [vmem:[%s42 + $0x61] sm:$0xff]
  %v1144 = vld [vmem:[%s42 + $0x69] sm:$0xff]
  %v1145 = vld [vmem:[%s42 + $0x79] sm:$0xff]
  %v1146 = vld [vmem:[%s42 + $0x81] sm:$0xff]
  %v1147 = vld [vmem:[%s42 + $0x91] sm:$0xff]
  %v1148 = vld [vmem:[%s42 + $0x99] sm:$0xff]
  %v1149 = vld [vmem:[%s42 + $0xa9] sm:$0xff]
  %v1150 = vld [vmem:[%s42 + $0xb1] sm:$0xff]
  %v1151 = vld [vmem:[%s42 + $0xc1] sm:$0xff]
  %v1152 = vld [vmem:[%s42 + $0xc9] sm:$0xff]
  %v1153 = vld [vmem:[%s42 + $0xd9] sm:$0xff]
  %v1154 = vld [vmem:[%s42 + $0xe1] sm:$0xff]
  %v1155 = vld [vmem:[%s42 + $0xf1] sm:$0xff]
  %v1156 = vld [vmem:[%s42 + $0xf9] sm:$0xff]
  %v1157 = vld [vmem:[%s42 + $0x109] sm:$0xff]
  %v1158 = vld [vmem:[%s42 + $0x111] sm:$0xff]
  %v1159 = vld [vmem:[%s42 + $0x121] sm:$0xff]
  %v1160 = vld [vmem:[%s42 + $0x129] sm:$0xff]
  %v1161 = vld [vmem:[%s42 + $0x139] sm:$0xff]
  %v1162 = vld [vmem:[%s42 + $0x141] sm:$0xff]
  %v1163 = vld [vmem:[%s42 + $0x151] sm:$0xff]
  %v1164 = vld [vmem:[%s42 + $0x159] sm:$0xff]
  %v1165 = vld [vmem:[%s42 + $0x169] sm:$0xff]
  %v1166 = vld [vmem:[%s42 + $0x171] sm:$0xff]
  %v1167 = vld [vmem:[%s42 + $0x1b1] sm:$0xff]
  %v1168 = vld [vmem:[%s42 + $0x1b9] sm:$0xff]
  %v1169 = vld [vmem:[%s42 + $0x1c9] sm:$0xff]
  %v1170 = vld [vmem:[%s42 + $0x1d1] sm:$0xff]
  %v1171 = vld [vmem:[%s42 + $0x1e1] sm:$0xff]
  %v1172 = vld [vmem:[%s42 + $0x1e9] sm:$0xff]
  %v1173 = vld [vmem:[%s42 + $0x1f9] sm:$0xff]
  %v1174 = vld [vmem:[%s42 + $0x201] sm:$0xff]
  %v1175 = vld [vmem:[%s42 + $0x211] sm:$0xff]
  %v1176 = vld [vmem:[%s42 + $0x219] sm:$0xff]
  %v1177 = vld [vmem:[%s42 + $0x229] sm:$0xff]
  %v1178 = vld [vmem:[%s42 + $0x231] sm:$0xff]
  %v1179 = vld [vmem:[%s42 + $0x241] sm:$0xff]
  %v1180 = vld [vmem:[%s42 + $0x249] sm:$0xff]
  %v1181 = vld [vmem:[%s42 + $0x259] sm:$0xff]
  %v1182 = vld [vmem:[%s42 + $0x261] sm:$0xff]
  %v1183 = vld [vmem:[%s42 + $0x271] sm:$0xff]
  %v1184 = vld [vmem:[%s42 + $0x279] sm:$0xff]
  %v1185 = vld [vmem:[%s42 + $0x289] sm:$0xff]
  %v1186 = vld [vmem:[%s42 + $0x291] sm:$0xff]
  %v1187 = vld [vmem:[%s42 + $0x2a1] sm:$0xff]
  %v1188 = vld [vmem:[%s42 + $0x2a9] sm:$0xff]
  %v1189 = vld [vmem:[%s42 + $0x2b9] sm:$0xff]
  %v1190 = vld [vmem:[%s42 + $0x2c1] sm:$0xff]
  %v1191 = vld [vmem:[%s42 + $0x2d1] sm:$0xff]
  %v1192 = vld [vmem:[%s42 + $0x2d9] sm:$0xff]
  %v1193 = vld [vmem:[%s42 + $0x2e9] sm:$0xff]
  %v1194 = vld [vmem:[%s42 + $0x2f1] sm:$0xff]
  %v1195 = vld [vmem:[%s42 + $0x301] sm:$0xff]
  %v1196 = vld [vmem:[%s42 + $0x309] sm:$0xff]
  %v1197 = vld [vmem:[%s42 + $0x319] sm:$0xff]
  %v1198 = vld [vmem:[%s42 + $0x321] sm:$0xff]
  %v1199 = vpack.c.bf16 %v1136, %v1135
  %v1200 = vpack.c.bf16 %v1138, %v1137
  %v1201 = vpack.c.bf16 %v1140, %v1139
  %v1202 = vpack.c.bf16 %v1142, %v1141
  %v1203 = vpack.c.bf16 %v1144, %v1143
  %v1204 = vpack.c.bf16 %v1146, %v1145
  %v1205 = vpack.c.bf16 %v1148, %v1147
  %v1206 = vpack.c.bf16 %v1150, %v1149
  %v1207 = vpack.c.bf16 %v1152, %v1151
  %v1208 = vpack.c.bf16 %v1154, %v1153
  %v1209 = vpack.c.bf16 %v1156, %v1155
  %v1210 = vpack.c.bf16 %v1158, %v1157
  %v1211 = vpack.c.bf16 %v1160, %v1159
  %v1212 = vpack.c.bf16 %v1162, %v1161
  %v1213 = vpack.c.bf16 %v1164, %v1163
  %v1214 = vpack.c.bf16 %v1166, %v1165
  %v1215 = vpack.c.bf16 %v1168, %v1167
  %v1216 = vpack.c.bf16 %v1170, %v1169
  %v1217 = vpack.c.bf16 %v1172, %v1171
  %v1218 = vpack.c.bf16 %v1174, %v1173
  %v1219 = vpack.c.bf16 %v1176, %v1175
  %v1220 = vpack.c.bf16 %v1178, %v1177
  %v1221 = vpack.c.bf16 %v1180, %v1179
  %v1222 = vpack.c.bf16 %v1182, %v1181
  %v1223 = vpack.c.bf16 %v1184, %v1183
  %v1224 = vpack.c.bf16 %v1186, %v1185
  %v1225 = vpack.c.bf16 %v1188, %v1187
  %v1226 = vpack.c.bf16 %v1190, %v1189
  %v1227 = vpack.c.bf16 %v1192, %v1191
  %v1228 = vpack.c.bf16 %v1194, %v1193
  %v1229 = vpack.c.bf16 %v1196, %v1195
  %v1230 = vpack.c.bf16 %v1198, %v1197
  %1263 = vrot.lane.b32.xlu0 %v1199, 16
  %v1264 = vpop.permute.xlu0 %1263
  %1265 = vrot.lane.b32.xlu0 %v1200, 16
  %v1266 = vpop.permute.xlu0 %1265
  %1267 = vrot.lane.b32.xlu0 %v1201, 16
  %v1268 = vpop.permute.xlu0 %1267
  %1269 = vrot.lane.b32.xlu0 %v1202, 16
  %v1270 = vpop.permute.xlu0 %1269
  %1271 = vrot.lane.b32.xlu0 %v1203, 16
  %v1272 = vpop.permute.xlu0 %1271
  %1273 = vrot.lane.b32.xlu0 %v1204, 16
  %v1274 = vpop.permute.xlu0 %1273
  %1275 = vrot.lane.b32.xlu0 %v1205, 16
  %v1276 = vpop.permute.xlu0 %1275
  %1277 = vrot.lane.b32.xlu0 %v1206, 16
  %v1278 = vpop.permute.xlu0 %1277
  %1279 = vrot.lane.b32.xlu0 %v1207, 16
  %v1280 = vpop.permute.xlu0 %1279
  %1281 = vrot.lane.b32.xlu0 %v1208, 16
  %v1282 = vpop.permute.xlu0 %1281
  %1283 = vrot.lane.b32.xlu0 %v1209, 16
  %v1284 = vpop.permute.xlu0 %1283
  %1285 = vrot.lane.b32.xlu0 %v1210, 16
  %v1286 = vpop.permute.xlu0 %1285
  %1287 = vrot.lane.b32.xlu0 %v1211, 16
  %v1288 = vpop.permute.xlu0 %1287
  %1289 = vrot.lane.b32.xlu0 %v1212, 16
  %v1290 = vpop.permute.xlu0 %1289
  %1291 = vrot.lane.b32.xlu0 %v1213, 16
  %v1292 = vpop.permute.xlu0 %1291
  %1293 = vrot.lane.b32.xlu0 %v1214, 16
  %v1294 = vpop.permute.xlu0 %1293
  %1295 = vrot.lane.b32.xlu0 %v1215, 16
  %v1296 = vpop.permute.xlu0 %1295
  %1297 = vrot.lane.b32.xlu0 %v1216, 16
  %v1298 = vpop.permute.xlu0 %1297
  %1299 = vrot.lane.b32.xlu0 %v1217, 16
  %v1300 = vpop.permute.xlu0 %1299
  %1301 = vrot.lane.b32.xlu0 %v1218, 16
  %v1302 = vpop.permute.xlu0 %1301
  %1303 = vrot.lane.b32.xlu0 %v1219, 16
  %v1304 = vpop.permute.xlu0 %1303
  %1305 = vrot.lane.b32.xlu0 %v1220, 16
  %v1306 = vpop.permute.xlu0 %1305
  %1307 = vrot.lane.b32.xlu0 %v1221, 16
  %v1308 = vpop.permute.xlu0 %1307
  %1309 = vrot.lane.b32.xlu0 %v1222, 16
  %v1310 = vpop.permute.xlu0 %1309
  %1311 = vrot.lane.b32.xlu0 %v1223, 16
  %v1312 = vpop.permute.xlu0 %1311
  %1313 = vrot.lane.b32.xlu0 %v1224, 16
  %v1314 = vpop.permute.xlu0 %1313
  %1315 = vrot.lane.b32.xlu0 %v1225, 16
  %v1316 = vpop.permute.xlu0 %1315
  %1317 = vrot.lane.b32.xlu0 %v1226, 16
  %v1318 = vpop.permute.xlu0 %1317
  %1319 = vrot.lane.b32.xlu0 %v1227, 16
  %v1320 = vpop.permute.xlu0 %1319
  %1321 = vrot.lane.b32.xlu0 %v1228, 16
  %v1322 = vpop.permute.xlu0 %1321
  %1323 = vrot.lane.b32.xlu0 %v1229, 16
  %v1324 = vpop.permute.xlu0 %1323
  %1325 = vrot.lane.b32.xlu0 %v1230, 16
  %v1326 = vpop.permute.xlu0 %1325
  %vm1359 = vcmask 162944
  %1360 = vst.msk [vmem:[#allocation3] sm:$0xff] %vm1359, %v1264
  %1361 = vst.msk [vmem:[#allocation3 + $0x8] sm:$0xff] %vm1359, %v1266
  %1362 = vst.msk [vmem:[#allocation3 + $0x10] sm:$0xff] %vm1359, %v1268
  %1363 = vst.msk [vmem:[#allocation3 + $0x18] sm:$0xff] %vm1359, %v1270
  %1364 = vst.msk [vmem:[#allocation3 + $0x20] sm:$0xff] %vm1359, %v1272
  %1365 = vst.msk [vmem:[#allocation3 + $0x28] sm:$0xff] %vm1359, %v1274
  %1366 = vst.msk [vmem:[#allocation3 + $0x30] sm:$0xff] %vm1359, %v1276
  %1367 = vst.msk [vmem:[#allocation3 + $0x38] sm:$0xff] %vm1359, %v1278
  %1368 = vst.msk [vmem:[#allocation3 + $0x40] sm:$0xff] %vm1359, %v1280
  %1369 = vst.msk [vmem:[#allocation3 + $0x48] sm:$0xff] %vm1359, %v1282
  %1370 = vst.msk [vmem:[#allocation3 + $0x50] sm:$0xff] %vm1359, %v1284
  %1371 = vst.msk [vmem:[#allocation3 + $0x58] sm:$0xff] %vm1359, %v1286
  %1372 = vst.msk [vmem:[#allocation3 + $0x60] sm:$0xff] %vm1359, %v1288
  %1373 = vst.msk [vmem:[#allocation3 + $0x68] sm:$0xff] %vm1359, %v1290
  %1374 = vst.msk [vmem:[#allocation3 + $0x70] sm:$0xff] %vm1359, %v1292
  %1375 = vst.msk [vmem:[#allocation3 + $0x78] sm:$0xff] %vm1359, %v1294
  %1376 = vst.msk [vmem:[#allocation3 + $0x80] sm:$0xff] %vm1359, %v1296
  %1377 = vst.msk [vmem:[#allocation3 + $0x88] sm:$0xff] %vm1359, %v1298
  %1378 = vst.msk [vmem:[#allocation3 + $0x90] sm:$0xff] %vm1359, %v1300
  %1379 = vst.msk [vmem:[#allocation3 + $0x98] sm:$0xff] %vm1359, %v1302
  %1380 = vst.msk [vmem:[#allocation3 + $0xa0] sm:$0xff] %vm1359, %v1304
  %1381 = vst.msk [vmem:[#allocation3 + $0xa8] sm:$0xff] %vm1359, %v1306
  %1382 = vst.msk [vmem:[#allocation3 + $0xb0] sm:$0xff] %vm1359, %v1308
  %1383 = vst.msk [vmem:[#allocation3 + $0xb8] sm:$0xff] %vm1359, %v1310
  %1384 = vst.msk [vmem:[#allocation3 + $0xc0] sm:$0xff] %vm1359, %v1312
  %1385 = vst.msk [vmem:[#allocation3 + $0xc8] sm:$0xff] %vm1359, %v1314
  %1386 = vst.msk [vmem:[#allocation3 + $0xd0] sm:$0xff] %vm1359, %v1316
  %1387 = vst.msk [vmem:[#allocation3 + $0xd8] sm:$0xff] %vm1359, %v1318
  %1388 = vst.msk [vmem:[#allocation3 + $0xe0] sm:$0xff] %vm1359, %v1320
  %1389 = vst.msk [vmem:[#allocation3 + $0xe8] sm:$0xff] %vm1359, %v1322
  %1390 = vst.msk [vmem:[#allocation3 + $0xf0] sm:$0xff] %vm1359, %v1324
  %1391 = vst.msk [vmem:[#allocation3 + $0xf8] sm:$0xff] %vm1359, %v1326
  %v1392 = vld [vmem:[%s42 + $0x2] sm:$0xff]
  %v1393 = vld [vmem:[%s42 + $0xa] sm:$0xff]
  %v1394 = vld [vmem:[%s42 + $0x1a] sm:$0xff]
  %v1395 = vld [vmem:[%s42 + $0x22] sm:$0xff]
  %v1396 = vld [vmem:[%s42 + $0x32] sm:$0xff]
  %v1397 = vld [vmem:[%s42 + $0x3a] sm:$0xff]
  %v1398 = vld [vmem:[%s42 + $0x4a] sm:$0xff]
  %v1399 = vld [vmem:[%s42 + $0x52] sm:$0xff]
  %v1400 = vld [vmem:[%s42 + $0x62] sm:$0xff]
  %v1401 = vld [vmem:[%s42 + $0x6a] sm:$0xff]
  %v1402 = vld [vmem:[%s42 + $0x7a] sm:$0xff]
  %v1403 = vld [vmem:[%s42 + $0x82] sm:$0xff]
  %v1404 = vld [vmem:[%s42 + $0x92] sm:$0xff]
  %v1405 = vld [vmem:[%s42 + $0x9a] sm:$0xff]
  %v1406 = vld [vmem:[%s42 + $0xaa] sm:$0xff]
  %v1407 = vld [vmem:[%s42 + $0xb2] sm:$0xff]
  %v1408 = vld [vmem:[%s42 + $0xc2] sm:$0xff]
  %v1409 = vld [vmem:[%s42 + $0xca] sm:$0xff]
  %v1410 = vld [vmem:[%s42 + $0xda] sm:$0xff]
  %v1411 = vld [vmem:[%s42 + $0xe2] sm:$0xff]
  %v1412 = vld [vmem:[%s42 + $0xf2] sm:$0xff]
  %v1413 = vld [vmem:[%s42 + $0xfa] sm:$0xff]
  %v1414 = vld [vmem:[%s42 + $0x10a] sm:$0xff]
  %v1415 = vld [vmem:[%s42 + $0x112] sm:$0xff]
  %v1416 = vld [vmem:[%s42 + $0x122] sm:$0xff]
  %v1417 = vld [vmem:[%s42 + $0x12a] sm:$0xff]
  %v1418 = vld [vmem:[%s42 + $0x13a] sm:$0xff]
  %v1419 = vld [vmem:[%s42 + $0x142] sm:$0xff]
  %v1420 = vld [vmem:[%s42 + $0x152] sm:$0xff]
  %v1421 = vld [vmem:[%s42 + $0x15a] sm:$0xff]
  %v1422 = vld [vmem:[%s42 + $0x16a] sm:$0xff]
  %v1423 = vld [vmem:[%s42 + $0x172] sm:$0xff]
  %v1424 = vld [vmem:[%s42 + $0x1b2] sm:$0xff]
  %v1425 = vld [vmem:[%s42 + $0x1ba] sm:$0xff]
  %v1426 = vld [vmem:[%s42 + $0x1ca] sm:$0xff]
  %v1427 = vld [vmem:[%s42 + $0x1d2] sm:$0xff]
  %v1428 = vld [vmem:[%s42 + $0x1e2] sm:$0xff]
  %v1429 = vld [vmem:[%s42 + $0x1ea] sm:$0xff]
  %v1430 = vld [vmem:[%s42 + $0x1fa] sm:$0xff]
  %v1431 = vld [vmem:[%s42 + $0x202] sm:$0xff]
  %v1432 = vld [vmem:[%s42 + $0x212] sm:$0xff]
  %v1433 = vld [vmem:[%s42 + $0x21a] sm:$0xff]
  %v1434 = vld [vmem:[%s42 + $0x22a] sm:$0xff]
  %v1435 = vld [vmem:[%s42 + $0x232] sm:$0xff]
  %v1436 = vld [vmem:[%s42 + $0x242] sm:$0xff]
  %v1437 = vld [vmem:[%s42 + $0x24a] sm:$0xff]
  %v1438 = vld [vmem:[%s42 + $0x25a] sm:$0xff]
  %v1439 = vld [vmem:[%s42 + $0x262] sm:$0xff]
  %v1440 = vld [vmem:[%s42 + $0x272] sm:$0xff]
  %v1441 = vld [vmem:[%s42 + $0x27a] sm:$0xff]
  %v1442 = vld [vmem:[%s42 + $0x28a] sm:$0xff]
  %v1443 = vld [vmem:[%s42 + $0x292] sm:$0xff]
  %v1444 = vld [vmem:[%s42 + $0x2a2] sm:$0xff]
  %v1445 = vld [vmem:[%s42 + $0x2aa] sm:$0xff]
  %v1446 = vld [vmem:[%s42 + $0x2ba] sm:$0xff]
  %v1447 = vld [vmem:[%s42 + $0x2c2] sm:$0xff]
  %v1448 = vld [vmem:[%s42 + $0x2d2] sm:$0xff]
  %v1449 = vld [vmem:[%s42 + $0x2da] sm:$0xff]
  %v1450 = vld [vmem:[%s42 + $0x2ea] sm:$0xff]
  %v1451 = vld [vmem:[%s42 + $0x2f2] sm:$0xff]
  %v1452 = vld [vmem:[%s42 + $0x302] sm:$0xff]
  %v1453 = vld [vmem:[%s42 + $0x30a] sm:$0xff]
  %v1454 = vld [vmem:[%s42 + $0x31a] sm:$0xff]
  %v1455 = vld [vmem:[%s42 + $0x322] sm:$0xff]
  %v1456 = vpack.c.bf16 %v1393, %v1392
  %v1457 = vpack.c.bf16 %v1395, %v1394
  %v1458 = vpack.c.bf16 %v1397, %v1396
  %v1459 = vpack.c.bf16 %v1399, %v1398
  %v1460 = vpack.c.bf16 %v1401, %v1400
  %v1461 = vpack.c.bf16 %v1403, %v1402
  %v1462 = vpack.c.bf16 %v1405, %v1404
  %v1463 = vpack.c.bf16 %v1407, %v1406
  %v1464 = vpack.c.bf16 %v1409, %v1408
  %v1465 = vpack.c.bf16 %v1411, %v1410
  %v1466 = vpack.c.bf16 %v1413, %v1412
  %v1467 = vpack.c.bf16 %v1415, %v1414
  %v1468 = vpack.c.bf16 %v1417, %v1416
  %v1469 = vpack.c.bf16 %v1419, %v1418
  %v1470 = vpack.c.bf16 %v1421, %v1420
  %v1471 = vpack.c.bf16 %v1423, %v1422
  %v1472 = vpack.c.bf16 %v1425, %v1424
  %v1473 = vpack.c.bf16 %v1427, %v1426
  %v1474 = vpack.c.bf16 %v1429, %v1428
  %v1475 = vpack.c.bf16 %v1431, %v1430
  %v1476 = vpack.c.bf16 %v1433, %v1432
  %v1477 = vpack.c.bf16 %v1435, %v1434
  %v1478 = vpack.c.bf16 %v1437, %v1436
  %v1479 = vpack.c.bf16 %v1439, %v1438
  %v1480 = vpack.c.bf16 %v1441, %v1440
  %v1481 = vpack.c.bf16 %v1443, %v1442
  %v1482 = vpack.c.bf16 %v1445, %v1444
  %v1483 = vpack.c.bf16 %v1447, %v1446
  %v1484 = vpack.c.bf16 %v1449, %v1448
  %v1485 = vpack.c.bf16 %v1451, %v1450
  %v1486 = vpack.c.bf16 %v1453, %v1452
  %v1487 = vpack.c.bf16 %v1455, %v1454
  %1520 = vrot.lane.b32.xlu0 %v1456, 20
  %v1521 = vpop.permute.xlu0 %1520
  %1522 = vrot.lane.b32.xlu0 %v1457, 20
  %v1523 = vpop.permute.xlu0 %1522
  %1524 = vrot.lane.b32.xlu0 %v1458, 20
  %v1525 = vpop.permute.xlu0 %1524
  %1526 = vrot.lane.b32.xlu0 %v1459, 20
  %v1527 = vpop.permute.xlu0 %1526
  %1528 = vrot.lane.b32.xlu0 %v1460, 20
  %v1529 = vpop.permute.xlu0 %1528
  %1530 = vrot.lane.b32.xlu0 %v1461, 20
  %v1531 = vpop.permute.xlu0 %1530
  %1532 = vrot.lane.b32.xlu0 %v1462, 20
  %v1533 = vpop.permute.xlu0 %1532
  %1534 = vrot.lane.b32.xlu0 %v1463, 20
  %v1535 = vpop.permute.xlu0 %1534
  %1536 = vrot.lane.b32.xlu0 %v1464, 20
  %v1537 = vpop.permute.xlu0 %1536
  %1538 = vrot.lane.b32.xlu0 %v1465, 20
  %v1539 = vpop.permute.xlu0 %1538
  %1540 = vrot.lane.b32.xlu0 %v1466, 20
  %v1541 = vpop.permute.xlu0 %1540
  %1542 = vrot.lane.b32.xlu0 %v1467, 20
  %v1543 = vpop.permute.xlu0 %1542
  %1544 = vrot.lane.b32.xlu0 %v1468, 20
  %v1545 = vpop.permute.xlu0 %1544
  %1546 = vrot.lane.b32.xlu0 %v1469, 20
  %v1547 = vpop.permute.xlu0 %1546
  %1548 = vrot.lane.b32.xlu0 %v1470, 20
  %v1549 = vpop.permute.xlu0 %1548
  %1550 = vrot.lane.b32.xlu0 %v1471, 20
  %v1551 = vpop.permute.xlu0 %1550
  %1552 = vrot.lane.b32.xlu0 %v1472, 20
  %v1553 = vpop.permute.xlu0 %1552
  %1554 = vrot.lane.b32.xlu0 %v1473, 20
  %v1555 = vpop.permute.xlu0 %1554
  %1556 = vrot.lane.b32.xlu0 %v1474, 20
  %v1557 = vpop.permute.xlu0 %1556
  %1558 = vrot.lane.b32.xlu0 %v1475, 20
  %v1559 = vpop.permute.xlu0 %1558
  %1560 = vrot.lane.b32.xlu0 %v1476, 20
  %v1561 = vpop.permute.xlu0 %1560
  %1562 = vrot.lane.b32.xlu0 %v1477, 20
  %v1563 = vpop.permute.xlu0 %1562
  %1564 = vrot.lane.b32.xlu0 %v1478, 20
  %v1565 = vpop.permute.xlu0 %1564
  %1566 = vrot.lane.b32.xlu0 %v1479, 20
  %v1567 = vpop.permute.xlu0 %1566
  %1568 = vrot.lane.b32.xlu0 %v1480, 20
  %v1569 = vpop.permute.xlu0 %1568
  %1570 = vrot.lane.b32.xlu0 %v1481, 20
  %v1571 = vpop.permute.xlu0 %1570
  %1572 = vrot.lane.b32.xlu0 %v1482, 20
  %v1573 = vpop.permute.xlu0 %1572
  %1574 = vrot.lane.b32.xlu0 %v1483, 20
  %v1575 = vpop.permute.xlu0 %1574
  %1576 = vrot.lane.b32.xlu0 %v1484, 20
  %v1577 = vpop.permute.xlu0 %1576
  %1578 = vrot.lane.b32.xlu0 %v1485, 20
  %v1579 = vpop.permute.xlu0 %1578
  %1580 = vrot.lane.b32.xlu0 %v1486, 20
  %v1581 = vpop.permute.xlu0 %1580
  %1582 = vrot.lane.b32.xlu0 %v1487, 20
  %v1583 = vpop.permute.xlu0 %1582
  %vm1616 = vcmask 195744
  %1617 = vst.msk [vmem:[#allocation3] sm:$0xff] %vm1616, %v1521
  %1618 = vst.msk [vmem:[#allocation3 + $0x8] sm:$0xff] %vm1616, %v1523
  %1619 = vst.msk [vmem:[#allocation3 + $0x10] sm:$0xff] %vm1616, %v1525
  %1620 = vst.msk [vmem:[#allocation3 + $0x18] sm:$0xff] %vm1616, %v1527
  %1621 = vst.msk [vmem:[#allocation3 + $0x20] sm:$0xff] %vm1616, %v1529
  %1622 = vst.msk [vmem:[#allocation3 + $0x28] sm:$0xff] %vm1616, %v1531
  %1623 = vst.msk [vmem:[#allocation3 + $0x30] sm:$0xff] %vm1616, %v1533
  %1624 = vst.msk [vmem:[#allocation3 + $0x38] sm:$0xff] %vm1616, %v1535
  %1625 = vst.msk [vmem:[#allocation3 + $0x40] sm:$0xff] %vm1616, %v1537
  %1626 = vst.msk [vmem:[#allocation3 + $0x48] sm:$0xff] %vm1616, %v1539
  %1627 = vst.msk [vmem:[#allocation3 + $0x50] sm:$0xff] %vm1616, %v1541
  %1628 = vst.msk [vmem:[#allocation3 + $0x58] sm:$0xff] %vm1616, %v1543
  %1629 = vst.msk [vmem:[#allocation3 + $0x60] sm:$0xff] %vm1616, %v1545
  %1630 = vst.msk [vmem:[#allocation3 + $0x68] sm:$0xff] %vm1616, %v1547
  %1631 = vst.msk [vmem:[#allocation3 + $0x70] sm:$0xff] %vm1616, %v1549
  %1632 = vst.msk [vmem:[#allocation3 + $0x78] sm:$0xff] %vm1616, %v1551
  %1633 = vst.msk [vmem:[#allocation3 + $0x80] sm:$0xff] %vm1616, %v1553
  %1634 = vst.msk [vmem:[#allocation3 + $0x88] sm:$0xff] %vm1616, %v1555
  %1635 = vst.msk [vmem:[#allocation3 + $0x90] sm:$0xff] %vm1616, %v1557
  %1636 = vst.msk [vmem:[#allocation3 + $0x98] sm:$0xff] %vm1616, %v1559
  %1637 = vst.msk [vmem:[#allocation3 + $0xa0] sm:$0xff] %vm1616, %v1561
  %1638 = vst.msk [vmem:[#allocation3 + $0xa8] sm:$0xff] %vm1616, %v1563
  %1639 = vst.msk [vmem:[#allocation3 + $0xb0] sm:$0xff] %vm1616, %v1565
  %1640 = vst.msk [vmem:[#allocation3 + $0xb8] sm:$0xff] %vm1616, %v1567
  %1641 = vst.msk [vmem:[#allocation3 + $0xc0] sm:$0xff] %vm1616, %v1569
  %1642 = vst.msk [vmem:[#allocation3 + $0xc8] sm:$0xff] %vm1616, %v1571
  %1643 = vst.msk [vmem:[#allocation3 + $0xd0] sm:$0xff] %vm1616, %v1573
  %1644 = vst.msk [vmem:[#allocation3 + $0xd8] sm:$0xff] %vm1616, %v1575
  %1645 = vst.msk [vmem:[#allocation3 + $0xe0] sm:$0xff] %vm1616, %v1577
  %1646 = vst.msk [vmem:[#allocation3 + $0xe8] sm:$0xff] %vm1616, %v1579
  %1647 = vst.msk [vmem:[#allocation3 + $0xf0] sm:$0xff] %vm1616, %v1581
  %1648 = vst.msk [vmem:[#allocation3 + $0xf8] sm:$0xff] %vm1616, %v1583
  %s1649 = scalar_lea.vmem [#allocation2], 48
  %v1650 = vld [vmem:[%s1649] sm:$0xff]
  %v1651 = vld [vmem:[%s1649 + $0x8] sm:$0xff]
  %v1652 = vld [vmem:[%s1649 + $0x18] sm:$0xff]
  %v1653 = vld [vmem:[%s1649 + $0x20] sm:$0xff]
  %v1654 = vld [vmem:[%s1649 + $0x30] sm:$0xff]
  %v1655 = vld [vmem:[%s1649 + $0x38] sm:$0xff]
  %v1656 = vld [vmem:[%s1649 + $0x48] sm:$0xff]
  %v1657 = vld [vmem:[%s1649 + $0x50] sm:$0xff]
  %v1658 = vld [vmem:[%s1649 + $0x60] sm:$0xff]
  %v1659 = vld [vmem:[%s1649 + $0x68] sm:$0xff]
  %v1660 = vld [vmem:[%s1649 + $0x78] sm:$0xff]
  %v1661 = vld [vmem:[%s1649 + $0x80] sm:$0xff]
  %v1662 = vld [vmem:[%s1649 + $0x90] sm:$0xff]
  %v1663 = vld [vmem:[%s1649 + $0x98] sm:$0xff]
  %v1664 = vld [vmem:[%s1649 + $0xa8] sm:$0xff]
  %v1665 = vld [vmem:[%s1649 + $0xb0] sm:$0xff]
  %v1666 = vld [vmem:[%s1649 + $0xc0] sm:$0xff]
  %v1667 = vld [vmem:[%s1649 + $0xc8] sm:$0xff]
  %v1668 = vld [vmem:[%s1649 + $0xd8] sm:$0xff]
  %v1669 = vld [vmem:[%s1649 + $0xe0] sm:$0xff]
  %v1670 = vld [vmem:[%s1649 + $0xf0] sm:$0xff]
  %v1671 = vld [vmem:[%s1649 + $0xf8] sm:$0xff]
  %v1672 = vld [vmem:[%s1649 + $0x108] sm:$0xff]
  %v1673 = vld [vmem:[%s1649 + $0x110] sm:$0xff]
  %v1674 = vld [vmem:[%s1649 + $0x120] sm:$0xff]
  %v1675 = vld [vmem:[%s1649 + $0x128] sm:$0xff]
  %v1676 = vld [vmem:[%s1649 + $0x138] sm:$0xff]
  %v1677 = vld [vmem:[%s1649 + $0x140] sm:$0xff]
  %v1678 = vld [vmem:[%s1649 + $0x150] sm:$0xff]
  %v1679 = vld [vmem:[%s1649 + $0x158] sm:$0xff]
  %v1680 = vld [vmem:[%s1649 + $0x168] sm:$0xff]
  %v1681 = vld [vmem:[%s1649 + $0x170] sm:$0xff]
  %v1682 = vld [vmem:[%s1649 + $0x1b0] sm:$0xff]
  %v1683 = vld [vmem:[%s1649 + $0x1b8] sm:$0xff]
  %v1684 = vld [vmem:[%s1649 + $0x1c8] sm:$0xff]
  %v1685 = vld [vmem:[%s1649 + $0x1d0] sm:$0xff]
  %v1686 = vld [vmem:[%s1649 + $0x1e0] sm:$0xff]
  %v1687 = vld [vmem:[%s1649 + $0x1e8] sm:$0xff]
  %v1688 = vld [vmem:[%s1649 + $0x1f8] sm:$0xff]
  %v1689 = vld [vmem:[%s1649 + $0x200] sm:$0xff]
  %v1690 = vld [vmem:[%s1649 + $0x210] sm:$0xff]
  %v1691 = vld [vmem:[%s1649 + $0x218] sm:$0xff]
  %v1692 = vld [vmem:[%s1649 + $0x228] sm:$0xff]
  %v1693 = vld [vmem:[%s1649 + $0x230] sm:$0xff]
  %v1694 = vld [vmem:[%s1649 + $0x240] sm:$0xff]
  %v1695 = vld [vmem:[%s1649 + $0x248] sm:$0xff]
  %v1696 = vld [vmem:[%s1649 + $0x258] sm:$0xff]
  %v1697 = vld [vmem:[%s1649 + $0x260] sm:$0xff]
  %v1698 = vld [vmem:[%s1649 + $0x270] sm:$0xff]
  %v1699 = vld [vmem:[%s1649 + $0x278] sm:$0xff]
  %v1700 = vld [vmem:[%s1649 + $0x288] sm:$0xff]
  %v1701 = vld [vmem:[%s1649 + $0x290] sm:$0xff]
  %v1702 = vld [vmem:[%s1649 + $0x2a0] sm:$0xff]
  %v1703 = vld [vmem:[%s1649 + $0x2a8] sm:$0xff]
  %v1704 = vld [vmem:[%s1649 + $0x2b8] sm:$0xff]
  %v1705 = vld [vmem:[%s1649 + $0x2c0] sm:$0xff]
  %v1706 = vld [vmem:[%s1649 + $0x2d0] sm:$0xff]
  %v1707 = vld [vmem:[%s1649 + $0x2d8] sm:$0xff]
  %v1708 = vld [vmem:[%s1649 + $0x2e8] sm:$0xff]
  %v1709 = vld [vmem:[%s1649 + $0x2f0] sm:$0xff]
  %v1710 = vld [vmem:[%s1649 + $0x300] sm:$0xff]
  %v1711 = vld [vmem:[%s1649 + $0x308] sm:$0xff]
  %v1712 = vld [vmem:[%s1649 + $0x318] sm:$0xff]
  %v1713 = vld [vmem:[%s1649 + $0x320] sm:$0xff]
  %v1714 = vpack.c.bf16 %v1651, %v1650
  %v1715 = vpack.c.bf16 %v1653, %v1652
  %v1716 = vpack.c.bf16 %v1655, %v1654
  %v1717 = vpack.c.bf16 %v1657, %v1656
  %v1718 = vpack.c.bf16 %v1659, %v1658
  %v1719 = vpack.c.bf16 %v1661, %v1660
  %v1720 = vpack.c.bf16 %v1663, %v1662
  %v1721 = vpack.c.bf16 %v1665, %v1664
  %v1722 = vpack.c.bf16 %v1667, %v1666
  %v1723 = vpack.c.bf16 %v1669, %v1668
  %v1724 = vpack.c.bf16 %v1671, %v1670
  %v1725 = vpack.c.bf16 %v1673, %v1672
  %v1726 = vpack.c.bf16 %v1675, %v1674
  %v1727 = vpack.c.bf16 %v1677, %v1676
  %v1728 = vpack.c.bf16 %v1679, %v1678
  %v1729 = vpack.c.bf16 %v1681, %v1680
  %v1730 = vpack.c.bf16 %v1683, %v1682
  %v1731 = vpack.c.bf16 %v1685, %v1684
  %v1732 = vpack.c.bf16 %v1687, %v1686
  %v1733 = vpack.c.bf16 %v1689, %v1688
  %v1734 = vpack.c.bf16 %v1691, %v1690
  %v1735 = vpack.c.bf16 %v1693, %v1692
  %v1736 = vpack.c.bf16 %v1695, %v1694
  %v1737 = vpack.c.bf16 %v1697, %v1696
  %v1738 = vpack.c.bf16 %v1699, %v1698
  %v1739 = vpack.c.bf16 %v1701, %v1700
  %v1740 = vpack.c.bf16 %v1703, %v1702
  %v1741 = vpack.c.bf16 %v1705, %v1704
  %v1742 = vpack.c.bf16 %v1707, %v1706
  %v1743 = vpack.c.bf16 %v1709, %v1708
  %v1744 = vpack.c.bf16 %v1711, %v1710
  %v1745 = vpack.c.bf16 %v1713, %v1712
  %1778 = vrot.lane.b32.xlu0 %v1714, 24
  %v1779 = vpop.permute.xlu0 %1778
  %1780 = vrot.lane.b32.xlu0 %v1715, 24
  %v1781 = vpop.permute.xlu0 %1780
  %1782 = vrot.lane.b32.xlu0 %v1716, 24
  %v1783 = vpop.permute.xlu0 %1782
  %1784 = vrot.lane.b32.xlu0 %v1717, 24
  %v1785 = vpop.permute.xlu0 %1784
  %1786 = vrot.lane.b32.xlu0 %v1718, 24
  %v1787 = vpop.permute.xlu0 %1786
  %1788 = vrot.lane.b32.xlu0 %v1719, 24
  %v1789 = vpop.permute.xlu0 %1788
  %1790 = vrot.lane.b32.xlu0 %v1720, 24
  %v1791 = vpop.permute.xlu0 %1790
  %1792 = vrot.lane.b32.xlu0 %v1721, 24
  %v1793 = vpop.permute.xlu0 %1792
  %1794 = vrot.lane.b32.xlu0 %v1722, 24
  %v1795 = vpop.permute.xlu0 %1794
  %1796 = vrot.lane.b32.xlu0 %v1723, 24
  %v1797 = vpop.permute.xlu0 %1796
  %1798 = vrot.lane.b32.xlu0 %v1724, 24
  %v1799 = vpop.permute.xlu0 %1798
  %1800 = vrot.lane.b32.xlu0 %v1725, 24
  %v1801 = vpop.permute.xlu0 %1800
  %1802 = vrot.lane.b32.xlu0 %v1726, 24
  %v1803 = vpop.permute.xlu0 %1802
  %1804 = vrot.lane.b32.xlu0 %v1727, 24
  %v1805 = vpop.permute.xlu0 %1804
  %1806 = vrot.lane.b32.xlu0 %v1728, 24
  %v1807 = vpop.permute.xlu0 %1806
  %1808 = vrot.lane.b32.xlu0 %v1729, 24
  %v1809 = vpop.permute.xlu0 %1808
  %1810 = vrot.lane.b32.xlu0 %v1730, 24
  %v1811 = vpop.permute.xlu0 %1810
  %1812 = vrot.lane.b32.xlu0 %v1731, 24
  %v1813 = vpop.permute.xlu0 %1812
  %1814 = vrot.lane.b32.xlu0 %v1732, 24
  %v1815 = vpop.permute.xlu0 %1814
  %1816 = vrot.lane.b32.xlu0 %v1733, 24
  %v1817 = vpop.permute.xlu0 %1816
  %1818 = vrot.lane.b32.xlu0 %v1734, 24
  %v1819 = vpop.permute.xlu0 %1818
  %1820 = vrot.lane.b32.xlu0 %v1735, 24
  %v1821 = vpop.permute.xlu0 %1820
  %1822 = vrot.lane.b32.xlu0 %v1736, 24
  %v1823 = vpop.permute.xlu0 %1822
  %1824 = vrot.lane.b32.xlu0 %v1737, 24
  %v1825 = vpop.permute.xlu0 %1824
  %1826 = vrot.lane.b32.xlu0 %v1738, 24
  %v1827 = vpop.permute.xlu0 %1826
  %1828 = vrot.lane.b32.xlu0 %v1739, 24
  %v1829 = vpop.permute.xlu0 %1828
  %1830 = vrot.lane.b32.xlu0 %v1740, 24
  %v1831 = vpop.permute.xlu0 %1830
  %1832 = vrot.lane.b32.xlu0 %v1741, 24
  %v1833 = vpop.permute.xlu0 %1832
  %1834 = vrot.lane.b32.xlu0 %v1742, 24
  %v1835 = vpop.permute.xlu0 %1834
  %1836 = vrot.lane.b32.xlu0 %v1743, 24
  %v1837 = vpop.permute.xlu0 %1836
  %1838 = vrot.lane.b32.xlu0 %v1744, 24
  %v1839 = vpop.permute.xlu0 %1838
  %1840 = vrot.lane.b32.xlu0 %v1745, 24
  %v1841 = vpop.permute.xlu0 %1840
  %vm1874 = vcmask 228544
  %1875 = vst.msk [vmem:[#allocation3] sm:$0xff] %vm1874, %v1779
  %1876 = vst.msk [vmem:[#allocation3 + $0x8] sm:$0xff] %vm1874, %v1781
  %1877 = vst.msk [vmem:[#allocation3 + $0x10] sm:$0xff] %vm1874, %v1783
  %1878 = vst.msk [vmem:[#allocation3 + $0x18] sm:$0xff] %vm1874, %v1785
  %1879 = vst.msk [vmem:[#allocation3 + $0x20] sm:$0xff] %vm1874, %v1787
  %1880 = vst.msk [vmem:[#allocation3 + $0x28] sm:$0xff] %vm1874, %v1789
  %1881 = vst.msk [vmem:[#allocation3 + $0x30] sm:$0xff] %vm1874, %v1791
  %1882 = vst.msk [vmem:[#allocation3 + $0x38] sm:$0xff] %vm1874, %v1793
  %1883 = vst.msk [vmem:[#allocation3 + $0x40] sm:$0xff] %vm1874, %v1795
  %1884 = vst.msk [vmem:[#allocation3 + $0x48] sm:$0xff] %vm1874, %v1797
  %1885 = vst.msk [vmem:[#allocation3 + $0x50] sm:$0xff] %vm1874, %v1799
  %1886 = vst.msk [vmem:[#allocation3 + $0x58] sm:$0xff] %vm1874, %v1801
  %1887 = vst.msk [vmem:[#allocation3 + $0x60] sm:$0xff] %vm1874, %v1803
  %1888 = vst.msk [vmem:[#allocation3 + $0x68] sm:$0xff] %vm1874, %v1805
  %1889 = vst.msk [vmem:[#allocation3 + $0x70] sm:$0xff] %vm1874, %v1807
  %1890 = vst.msk [vmem:[#allocation3 + $0x78] sm:$0xff] %vm1874, %v1809
  %1891 = vst.msk [vmem:[#allocation3 + $0x80] sm:$0xff] %vm1874, %v1811
  %1892 = vst.msk [vmem:[#allocation3 + $0x88] sm:$0xff] %vm1874, %v1813
  %1893 = vst.msk [vmem:[#allocation3 + $0x90] sm:$0xff] %vm1874, %v1815
  %1894 = vst.msk [vmem:[#allocation3 + $0x98] sm:$0xff] %vm1874, %v1817
  %1895 = vst.msk [vmem:[#allocation3 + $0xa0] sm:$0xff] %vm1874, %v1819
  %1896 = vst.msk [vmem:[#allocation3 + $0xa8] sm:$0xff] %vm1874, %v1821
  %1897 = vst.msk [vmem:[#allocation3 + $0xb0] sm:$0xff] %vm1874, %v1823
  %1898 = vst.msk [vmem:[#allocation3 + $0xb8] sm:$0xff] %vm1874, %v1825
  %1899 = vst.msk [vmem:[#allocation3 + $0xc0] sm:$0xff] %vm1874, %v1827
  %1900 = vst.msk [vmem:[#allocation3 + $0xc8] sm:$0xff] %vm1874, %v1829
  %1901 = vst.msk [vmem:[#allocation3 + $0xd0] sm:$0xff] %vm1874, %v1831
  %1902 = vst.msk [vmem:[#allocation3 + $0xd8] sm:$0xff] %vm1874, %v1833
  %1903 = vst.msk [vmem:[#allocation3 + $0xe0] sm:$0xff] %vm1874, %v1835
  %1904 = vst.msk [vmem:[#allocation3 + $0xe8] sm:$0xff] %vm1874, %v1837
  %1905 = vst.msk [vmem:[#allocation3 + $0xf0] sm:$0xff] %vm1874, %v1839
  %1906 = vst.msk [vmem:[#allocation3 + $0xf8] sm:$0xff] %vm1874, %v1841
  %v1907 = vld [vmem:[%s1649 + $0x1] sm:$0xff]
  %v1908 = vld [vmem:[%s1649 + $0x9] sm:$0xff]
  %v1909 = vld [vmem:[%s1649 + $0x19] sm:$0xff]
  %v1910 = vld [vmem:[%s1649 + $0x21] sm:$0xff]
  %v1911 = vld [vmem:[%s1649 + $0x31] sm:$0xff]
  %v1912 = vld [vmem:[%s1649 + $0x39] sm:$0xff]
  %v1913 = vld [vmem:[%s1649 + $0x49] sm:$0xff]
  %v1914 = vld [vmem:[%s1649 + $0x51] sm:$0xff]
  %v1915 = vld [vmem:[%s1649 + $0x61] sm:$0xff]
  %v1916 = vld [vmem:[%s1649 + $0x69] sm:$0xff]
  %v1917 = vld [vmem:[%s1649 + $0x79] sm:$0xff]
  %v1918 = vld [vmem:[%s1649 + $0x81] sm:$0xff]
  %v1919 = vld [vmem:[%s1649 + $0x91] sm:$0xff]
  %v1920 = vld [vmem:[%s1649 + $0x99] sm:$0xff]
  %v1921 = vld [vmem:[%s1649 + $0xa9] sm:$0xff]
  %v1922 = vld [vmem:[%s1649 + $0xb1] sm:$0xff]
  %v1923 = vld [vmem:[%s1649 + $0xc1] sm:$0xff]
  %v1924 = vld [vmem:[%s1649 + $0xc9] sm:$0xff]
  %v1925 = vld [vmem:[%s1649 + $0xd9] sm:$0xff]
  %v1926 = vld [vmem:[%s1649 + $0xe1] sm:$0xff]
  %v1927 = vld [vmem:[%s1649 + $0xf1] sm:$0xff]
  %v1928 = vld [vmem:[%s1649 + $0xf9] sm:$0xff]
  %v1929 = vld [vmem:[%s1649 + $0x109] sm:$0xff]
  %v1930 = vld [vmem:[%s1649 + $0x111] sm:$0xff]
  %v1931 = vld [vmem:[%s1649 + $0x121] sm:$0xff]
  %v1932 = vld [vmem:[%s1649 + $0x129] sm:$0xff]
  %v1933 = vld [vmem:[%s1649 + $0x139] sm:$0xff]
  %v1934 = vld [vmem:[%s1649 + $0x141] sm:$0xff]
  %v1935 = vld [vmem:[%s1649 + $0x151] sm:$0xff]
  %v1936 = vld [vmem:[%s1649 + $0x159] sm:$0xff]
  %v1937 = vld [vmem:[%s1649 + $0x169] sm:$0xff]
  %v1938 = vld [vmem:[%s1649 + $0x171] sm:$0xff]
  %v1939 = vld [vmem:[%s1649 + $0x1b1] sm:$0xff]
  %v1940 = vld [vmem:[%s1649 + $0x1b9] sm:$0xff]
  %v1941 = vld [vmem:[%s1649 + $0x1c9] sm:$0xff]
  %v1942 = vld [vmem:[%s1649 + $0x1d1] sm:$0xff]
  %v1943 = vld [vmem:[%s1649 + $0x1e1] sm:$0xff]
  %v1944 = vld [vmem:[%s1649 + $0x1e9] sm:$0xff]
  %v1945 = vld [vmem:[%s1649 + $0x1f9] sm:$0xff]
  %v1946 = vld [vmem:[%s1649 + $0x201] sm:$0xff]
  %v1947 = vld [vmem:[%s1649 + $0x211] sm:$0xff]
  %v1948 = vld [vmem:[%s1649 + $0x219] sm:$0xff]
  %v1949 = vld [vmem:[%s1649 + $0x229] sm:$0xff]
  %v1950 = vld [vmem:[%s1649 + $0x231] sm:$0xff]
  %v1951 = vld [vmem:[%s1649 + $0x241] sm:$0xff]
  %v1952 = vld [vmem:[%s1649 + $0x249] sm:$0xff]
  %v1953 = vld [vmem:[%s1649 + $0x259] sm:$0xff]
  %v1954 = vld [vmem:[%s1649 + $0x261] sm:$0xff]
  %v1955 = vld [vmem:[%s1649 + $0x271] sm:$0xff]
  %v1956 = vld [vmem:[%s1649 + $0x279] sm:$0xff]
  %v1957 = vld [vmem:[%s1649 + $0x289] sm:$0xff]
  %v1958 = vld [vmem:[%s1649 + $0x291] sm:$0xff]
  %v1959 = vld [vmem:[%s1649 + $0x2a1] sm:$0xff]
  %v1960 = vld [vmem:[%s1649 + $0x2a9] sm:$0xff]
  %v1961 = vld [vmem:[%s1649 + $0x2b9] sm:$0xff]
  %v1962 = vld [vmem:[%s1649 + $0x2c1] sm:$0xff]
  %v1963 = vld [vmem:[%s1649 + $0x2d1] sm:$0xff]
  %v1964 = vld [vmem:[%s1649 + $0x2d9] sm:$0xff]
  %v1965 = vld [vmem:[%s1649 + $0x2e9] sm:$0xff]
  %v1966 = vld [vmem:[%s1649 + $0x2f1] sm:$0xff]
  %v1967 = vld [vmem:[%s1649 + $0x301] sm:$0xff]
  %v1968 = vld [vmem:[%s1649 + $0x309] sm:$0xff]
  %v1969 = vld [vmem:[%s1649 + $0x319] sm:$0xff]
  %v1970 = vld [vmem:[%s1649 + $0x321] sm:$0xff]
  %v1971 = vpack.c.bf16 %v1908, %v1907
  %v1972 = vpack.c.bf16 %v1910, %v1909
  %v1973 = vpack.c.bf16 %v1912, %v1911
  %v1974 = vpack.c.bf16 %v1914, %v1913
  %v1975 = vpack.c.bf16 %v1916, %v1915
  %v1976 = vpack.c.bf16 %v1918, %v1917
  %v1977 = vpack.c.bf16 %v1920, %v1919
  %v1978 = vpack.c.bf16 %v1922, %v1921
  %v1979 = vpack.c.bf16 %v1924, %v1923
  %v1980 = vpack.c.bf16 %v1926, %v1925
  %v1981 = vpack.c.bf16 %v1928, %v1927
  %v1982 = vpack.c.bf16 %v1930, %v1929
  %v1983 = vpack.c.bf16 %v1932, %v1931
  %v1984 = vpack.c.bf16 %v1934, %v1933
  %v1985 = vpack.c.bf16 %v1936, %v1935
  %v1986 = vpack.c.bf16 %v1938, %v1937
  %v1987 = vpack.c.bf16 %v1940, %v1939
  %v1988 = vpack.c.bf16 %v1942, %v1941
  %v1989 = vpack.c.bf16 %v1944, %v1943
  %v1990 = vpack.c.bf16 %v1946, %v1945
  %v1991 = vpack.c.bf16 %v1948, %v1947
  %v1992 = vpack.c.bf16 %v1950, %v1949
  %v1993 = vpack.c.bf16 %v1952, %v1951
  %v1994 = vpack.c.bf16 %v1954, %v1953
  %v1995 = vpack.c.bf16 %v1956, %v1955
  %v1996 = vpack.c.bf16 %v1958, %v1957
  %v1997 = vpack.c.bf16 %v1960, %v1959
  %v1998 = vpack.c.bf16 %v1962, %v1961
  %v1999 = vpack.c.bf16 %v1964, %v1963
  %v2000 = vpack.c.bf16 %v1966, %v1965
  %v2001 = vpack.c.bf16 %v1968, %v1967
  %v2002 = vpack.c.bf16 %v1970, %v1969
  %2035 = vrot.lane.b32.xlu0 %v1971, 28
  %v2036 = vpop.permute.xlu0 %2035
  %2037 = vrot.lane.b32.xlu0 %v1972, 28
  %v2038 = vpop.permute.xlu0 %2037
  %2039 = vrot.lane.b32.xlu0 %v1973, 28
  %v2040 = vpop.permute.xlu0 %2039
  %2041 = vrot.lane.b32.xlu0 %v1974, 28
  %v2042 = vpop.permute.xlu0 %2041
  %2043 = vrot.lane.b32.xlu0 %v1975, 28
  %v2044 = vpop.permute.xlu0 %2043
  %2045 = vrot.lane.b32.xlu0 %v1976, 28
  %v2046 = vpop.permute.xlu0 %2045
  %2047 = vrot.lane.b32.xlu0 %v1977, 28
  %v2048 = vpop.permute.xlu0 %2047
  %2049 = vrot.lane.b32.xlu0 %v1978, 28
  %v2050 = vpop.permute.xlu0 %2049
  %2051 = vrot.lane.b32.xlu0 %v1979, 28
  %v2052 = vpop.permute.xlu0 %2051
  %2053 = vrot.lane.b32.xlu0 %v1980, 28
  %v2054 = vpop.permute.xlu0 %2053
  %2055 = vrot.lane.b32.xlu0 %v1981, 28
  %v2056 = vpop.permute.xlu0 %2055
  %2057 = vrot.lane.b32.xlu0 %v1982, 28
  %v2058 = vpop.permute.xlu0 %2057
  %2059 = vrot.lane.b32.xlu0 %v1983, 28
  %v2060 = vpop.permute.xlu0 %2059
  %2061 = vrot.lane.b32.xlu0 %v1984, 28
  %v2062 = vpop.permute.xlu0 %2061
  %2063 = vrot.lane.b32.xlu0 %v1985, 28
  %v2064 = vpop.permute.xlu0 %2063
  %2065 = vrot.lane.b32.xlu0 %v1986, 28
  %v2066 = vpop.permute.xlu0 %2065
  %2067 = vrot.lane.b32.xlu0 %v1987, 28
  %v2068 = vpop.permute.xlu0 %2067
  %2069 = vrot.lane.b32.xlu0 %v1988, 28
  %v2070 = vpop.permute.xlu0 %2069
  %2071 = vrot.lane.b32.xlu0 %v1989, 28
  %v2072 = vpop.permute.xlu0 %2071
  %2073 = vrot.lane.b32.xlu0 %v1990, 28
  %v2074 = vpop.permute.xlu0 %2073
  %2075 = vrot.lane.b32.xlu0 %v1991, 28
  %v2076 = vpop.permute.xlu0 %2075
  %2077 = vrot.lane.b32.xlu0 %v1992, 28
  %v2078 = vpop.permute.xlu0 %2077
  %2079 = vrot.lane.b32.xlu0 %v1993, 28
  %v2080 = vpop.permute.xlu0 %2079
  %2081 = vrot.lane.b32.xlu0 %v1994, 28
  %v2082 = vpop.permute.xlu0 %2081
  %2083 = vrot.lane.b32.xlu0 %v1995, 28
  %v2084 = vpop.permute.xlu0 %2083
  %2085 = vrot.lane.b32.xlu0 %v1996, 28
  %v2086 = vpop.permute.xlu0 %2085
  %2087 = vrot.lane.b32.xlu0 %v1997, 28
  %v2088 = vpop.permute.xlu0 %2087
  %2089 = vrot.lane.b32.xlu0 %v1998, 28
  %v2090 = vpop.permute.xlu0 %2089
  %2091 = vrot.lane.b32.xlu0 %v1999, 28
  %v2092 = vpop.permute.xlu0 %2091
  %2093 = vrot.lane.b32.xlu0 %v2000, 28
  %v2094 = vpop.permute.xlu0 %2093
  %2095 = vrot.lane.b32.xlu0 %v2001, 28
  %v2096 = vpop.permute.xlu0 %2095
  %2097 = vrot.lane.b32.xlu0 %v2002, 28
  %v2098 = vpop.permute.xlu0 %2097
  %vm2131 = vcmask 261344
  %2132 = vst.msk [vmem:[#allocation3] sm:$0xff] %vm2131, %v2036
  %2133 = vst.msk [vmem:[#allocation3 + $0x8] sm:$0xff] %vm2131, %v2038
  %2134 = vst.msk [vmem:[#allocation3 + $0x10] sm:$0xff] %vm2131, %v2040
  %2135 = vst.msk [vmem:[#allocation3 + $0x18] sm:$0xff] %vm2131, %v2042
  %2136 = vst.msk [vmem:[#allocation3 + $0x20] sm:$0xff] %vm2131, %v2044
  %2137 = vst.msk [vmem:[#allocation3 + $0x28] sm:$0xff] %vm2131, %v2046
  %2138 = vst.msk [vmem:[#allocation3 + $0x30] sm:$0xff] %vm2131, %v2048
  %2139 = vst.msk [vmem:[#allocation3 + $0x38] sm:$0xff] %vm2131, %v2050
  %2140 = vst.msk [vmem:[#allocation3 + $0x40] sm:$0xff] %vm2131, %v2052
  %2141 = vst.msk [vmem:[#allocation3 + $0x48] sm:$0xff] %vm2131, %v2054
  %2142 = vst.msk [vmem:[#allocation3 + $0x50] sm:$0xff] %vm2131, %v2056
  %2143 = vst.msk [vmem:[#allocation3 + $0x58] sm:$0xff] %vm2131, %v2058
  %2144 = vst.msk [vmem:[#allocation3 + $0x60] sm:$0xff] %vm2131, %v2060
  %2145 = vst.msk [vmem:[#allocation3 + $0x68] sm:$0xff] %vm2131, %v2062
  %2146 = vst.msk [vmem:[#allocation3 + $0x70] sm:$0xff] %vm2131, %v2064
  %2147 = vst.msk [vmem:[#allocation3 + $0x78] sm:$0xff] %vm2131, %v2066
  %2148 = vst.msk [vmem:[#allocation3 + $0x80] sm:$0xff] %vm2131, %v2068
  %2149 = vst.msk [vmem:[#allocation3 + $0x88] sm:$0xff] %vm2131, %v2070
  %2150 = vst.msk [vmem:[#allocation3 + $0x90] sm:$0xff] %vm2131, %v2072
  %2151 = vst.msk [vmem:[#allocation3 + $0x98] sm:$0xff] %vm2131, %v2074
  %2152 = vst.msk [vmem:[#allocation3 + $0xa0] sm:$0xff] %vm2131, %v2076
  %2153 = vst.msk [vmem:[#allocation3 + $0xa8] sm:$0xff] %vm2131, %v2078
  %2154 = vst.msk [vmem:[#allocation3 + $0xb0] sm:$0xff] %vm2131, %v2080
  %2155 = vst.msk [vmem:[#allocation3 + $0xb8] sm:$0xff] %vm2131, %v2082
  %2156 = vst.msk [vmem:[#allocation3 + $0xc0] sm:$0xff] %vm2131, %v2084
  %2157 = vst.msk [vmem:[#allocation3 + $0xc8] sm:$0xff] %vm2131, %v2086
  %2158 = vst.msk [vmem:[#allocation3 + $0xd0] sm:$0xff] %vm2131, %v2088
  %2159 = vst.msk [vmem:[#allocation3 + $0xd8] sm:$0xff] %vm2131, %v2090
  %2160 = vst.msk [vmem:[#allocation3 + $0xe0] sm:$0xff] %vm2131, %v2092
  %2161 = vst.msk [vmem:[#allocation3 + $0xe8] sm:$0xff] %vm2131, %v2094
  %2162 = vst.msk [vmem:[#allocation3 + $0xf0] sm:$0xff] %vm2131, %v2096
  %2163 = vst.msk [vmem:[#allocation3 + $0xf8] sm:$0xff] %vm2131, %v2098
  %v2164 = vld [vmem:[%s1649 + $0x2] sm:$0xff]
  %v2165 = vld [vmem:[%s1649 + $0xa] sm:$0xff]
  %v2166 = vld [vmem:[%s1649 + $0x1a] sm:$0xff]
  %v2167 = vld [vmem:[%s1649 + $0x22] sm:$0xff]
  %v2168 = vld [vmem:[%s1649 + $0x32] sm:$0xff]
  %v2169 = vld [vmem:[%s1649 + $0x3a] sm:$0xff]
  %v2170 = vld [vmem:[%s1649 + $0x4a] sm:$0xff]
  %v2171 = vld [vmem:[%s1649 + $0x52] sm:$0xff]
  %v2172 = vld [vmem:[%s1649 + $0x62] sm:$0xff]
  %v2173 = vld [vmem:[%s1649 + $0x6a] sm:$0xff]
  %v2174 = vld [vmem:[%s1649 + $0x7a] sm:$0xff]
  %v2175 = vld [vmem:[%s1649 + $0x82] sm:$0xff]
  %v2176 = vld [vmem:[%s1649 + $0x92] sm:$0xff]
  %v2177 = vld [vmem:[%s1649 + $0x9a] sm:$0xff]
  %v2178 = vld [vmem:[%s1649 + $0xaa] sm:$0xff]
  %v2179 = vld [vmem:[%s1649 + $0xb2] sm:$0xff]
  %v2180 = vld [vmem:[%s1649 + $0xc2] sm:$0xff]
  %v2181 = vld [vmem:[%s1649 + $0xca] sm:$0xff]
  %v2182 = vld [vmem:[%s1649 + $0xda] sm:$0xff]
  %v2183 = vld [vmem:[%s1649 + $0xe2] sm:$0xff]
  %v2184 = vld [vmem:[%s1649 + $0xf2] sm:$0xff]
  %v2185 = vld [vmem:[%s1649 + $0xfa] sm:$0xff]
  %v2186 = vld [vmem:[%s1649 + $0x10a] sm:$0xff]
  %v2187 = vld [vmem:[%s1649 + $0x112] sm:$0xff]
  %v2188 = vld [vmem:[%s1649 + $0x122] sm:$0xff]
  %v2189 = vld [vmem:[%s1649 + $0x12a] sm:$0xff]
  %v2190 = vld [vmem:[%s1649 + $0x13a] sm:$0xff]
  %v2191 = vld [vmem:[%s1649 + $0x142] sm:$0xff]
  %v2192 = vld [vmem:[%s1649 + $0x152] sm:$0xff]
  %v2193 = vld [vmem:[%s1649 + $0x15a] sm:$0xff]
  %v2194 = vld [vmem:[%s1649 + $0x16a] sm:$0xff]
  %v2195 = vld [vmem:[%s1649 + $0x172] sm:$0xff]
  %v2196 = vld [vmem:[%s1649 + $0x1b2] sm:$0xff]
  %v2197 = vld [vmem:[%s1649 + $0x1ba] sm:$0xff]
  %v2198 = vld [vmem:[%s1649 + $0x1ca] sm:$0xff]
  %v2199 = vld [vmem:[%s1649 + $0x1d2] sm:$0xff]
  %v2200 = vld [vmem:[%s1649 + $0x1e2] sm:$0xff]
  %v2201 = vld [vmem:[%s1649 + $0x1ea] sm:$0xff]
  %v2202 = vld [vmem:[%s1649 + $0x1fa] sm:$0xff]
  %v2203 = vld [vmem:[%s1649 + $0x202] sm:$0xff]
  %v2204 = vld [vmem:[%s1649 + $0x212] sm:$0xff]
  %v2205 = vld [vmem:[%s1649 + $0x21a] sm:$0xff]
  %v2206 = vld [vmem:[%s1649 + $0x22a] sm:$0xff]
  %v2207 = vld [vmem:[%s1649 + $0x232] sm:$0xff]
  %v2208 = vld [vmem:[%s1649 + $0x242] sm:$0xff]
  %v2209 = vld [vmem:[%s1649 + $0x24a] sm:$0xff]
  %v2210 = vld [vmem:[%s1649 + $0x25a] sm:$0xff]
  %v2211 = vld [vmem:[%s1649 + $0x262] sm:$0xff]
  %v2212 = vld [vmem:[%s1649 + $0x272] sm:$0xff]
  %v2213 = vld [vmem:[%s1649 + $0x27a] sm:$0xff]
  %v2214 = vld [vmem:[%s1649 + $0x28a] sm:$0xff]
  %v2215 = vld [vmem:[%s1649 + $0x292] sm:$0xff]
  %v2216 = vld [vmem:[%s1649 + $0x2a2] sm:$0xff]
  %v2217 = vld [vmem:[%s1649 + $0x2aa] sm:$0xff]
  %v2218 = vld [vmem:[%s1649 + $0x2ba] sm:$0xff]
  %v2219 = vld [vmem:[%s1649 + $0x2c2] sm:$0xff]
  %v2220 = vld [vmem:[%s1649 + $0x2d2] sm:$0xff]
  %v2221 = vld [vmem:[%s1649 + $0x2da] sm:$0xff]
  %v2222 = vld [vmem:[%s1649 + $0x2ea] sm:$0xff]
  %v2223 = vld [vmem:[%s1649 + $0x2f2] sm:$0xff]
  %v2224 = vld [vmem:[%s1649 + $0x302] sm:$0xff]
  %v2225 = vld [vmem:[%s1649 + $0x30a] sm:$0xff]
  %v2226 = vld [vmem:[%s1649 + $0x31a] sm:$0xff]
  %v2227 = vld [vmem:[%s1649 + $0x322] sm:$0xff]
  %v2228 = vpack.c.bf16 %v2165, %v2164
  %v2229 = vpack.c.bf16 %v2167, %v2166
  %v2230 = vpack.c.bf16 %v2169, %v2168
  %v2231 = vpack.c.bf16 %v2171, %v2170
  %v2232 = vpack.c.bf16 %v2173, %v2172
  %v2233 = vpack.c.bf16 %v2175, %v2174
  %v2234 = vpack.c.bf16 %v2177, %v2176
  %v2235 = vpack.c.bf16 %v2179, %v2178
  %v2236 = vpack.c.bf16 %v2181, %v2180
  %v2237 = vpack.c.bf16 %v2183, %v2182
  %v2238 = vpack.c.bf16 %v2185, %v2184
  %v2239 = vpack.c.bf16 %v2187, %v2186
  %v2240 = vpack.c.bf16 %v2189, %v2188
  %v2241 = vpack.c.bf16 %v2191, %v2190
  %v2242 = vpack.c.bf16 %v2193, %v2192
  %v2243 = vpack.c.bf16 %v2195, %v2194
  %v2244 = vpack.c.bf16 %v2197, %v2196
  %v2245 = vpack.c.bf16 %v2199, %v2198
  %v2246 = vpack.c.bf16 %v2201, %v2200
  %v2247 = vpack.c.bf16 %v2203, %v2202
  %v2248 = vpack.c.bf16 %v2205, %v2204
  %v2249 = vpack.c.bf16 %v2207, %v2206
  %v2250 = vpack.c.bf16 %v2209, %v2208
  %v2251 = vpack.c.bf16 %v2211, %v2210
  %v2252 = vpack.c.bf16 %v2213, %v2212
  %v2253 = vpack.c.bf16 %v2215, %v2214
  %v2254 = vpack.c.bf16 %v2217, %v2216
  %v2255 = vpack.c.bf16 %v2219, %v2218
  %v2256 = vpack.c.bf16 %v2221, %v2220
  %v2257 = vpack.c.bf16 %v2223, %v2222
  %v2258 = vpack.c.bf16 %v2225, %v2224
  %v2259 = vpack.c.bf16 %v2227, %v2226
  %2292 = vrot.lane.b32.xlu0 %v2228, 32
  %v2293 = vpop.permute.xlu0 %2292
  %2294 = vrot.lane.b32.xlu0 %v2229, 32
  %v2295 = vpop.permute.xlu0 %2294
  %2296 = vrot.lane.b32.xlu0 %v2230, 32
  %v2297 = vpop.permute.xlu0 %2296
  %2298 = vrot.lane.b32.xlu0 %v2231, 32
  %v2299 = vpop.permute.xlu0 %2298
  %2300 = vrot.lane.b32.xlu0 %v2232, 32
  %v2301 = vpop.permute.xlu0 %2300
  %2302 = vrot.lane.b32.xlu0 %v2233, 32
  %v2303 = vpop.permute.xlu0 %2302
  %2304 = vrot.lane.b32.xlu0 %v2234, 32
  %v2305 = vpop.permute.xlu0 %2304
  %2306 = vrot.lane.b32.xlu0 %v2235, 32
  %v2307 = vpop.permute.xlu0 %2306
  %2308 = vrot.lane.b32.xlu0 %v2236, 32
  %v2309 = vpop.permute.xlu0 %2308
  %2310 = vrot.lane.b32.xlu0 %v2237, 32
  %v2311 = vpop.permute.xlu0 %2310
  %2312 = vrot.lane.b32.xlu0 %v2238, 32
  %v2313 = vpop.permute.xlu0 %2312
  %2314 = vrot.lane.b32.xlu0 %v2239, 32
  %v2315 = vpop.permute.xlu0 %2314
  %2316 = vrot.lane.b32.xlu0 %v2240, 32
  %v2317 = vpop.permute.xlu0 %2316
  %2318 = vrot.lane.b32.xlu0 %v2241, 32
  %v2319 = vpop.permute.xlu0 %2318
  %2320 = vrot.lane.b32.xlu0 %v2242, 32
  %v2321 = vpop.permute.xlu0 %2320
  %2322 = vrot.lane.b32.xlu0 %v2243, 32
  %v2323 = vpop.permute.xlu0 %2322
  %2324 = vrot.lane.b32.xlu0 %v2244, 32
  %v2325 = vpop.permute.xlu0 %2324
  %2326 = vrot.lane.b32.xlu0 %v2245, 32
  %v2327 = vpop.permute.xlu0 %2326
  %2328 = vrot.lane.b32.xlu0 %v2246, 32
  %v2329 = vpop.permute.xlu0 %2328
  %2330 = vrot.lane.b32.xlu0 %v2247, 32
  %v2331 = vpop.permute.xlu0 %2330
  %2332 = vrot.lane.b32.xlu0 %v2248, 32
  %v2333 = vpop.permute.xlu0 %2332
  %2334 = vrot.lane.b32.xlu0 %v2249, 32
  %v2335 = vpop.permute.xlu0 %2334
  %2336 = vrot.lane.b32.xlu0 %v2250, 32
  %v2337 = vpop.permute.xlu0 %2336
  %2338 = vrot.lane.b32.xlu0 %v2251, 32
  %v2339 = vpop.permute.xlu0 %2338
  %2340 = vrot.lane.b32.xlu0 %v2252, 32
  %v2341 = vpop.permute.xlu0 %2340
  %2342 = vrot.lane.b32.xlu0 %v2253, 32
  %v2343 = vpop.permute.xlu0 %2342
  %2344 = vrot.lane.b32.xlu0 %v2254, 32
  %v2345 = vpop.permute.xlu0 %2344
  %2346 = vrot.lane.b32.xlu0 %v2255, 32
  %v2347 = vpop.permute.xlu0 %2346
  %2348 = vrot.lane.b32.xlu0 %v2256, 32
  %v2349 = vpop.permute.xlu0 %2348
  %2350 = vrot.lane.b32.xlu0 %v2257, 32
  %v2351 = vpop.permute.xlu0 %2350
  %2352 = vrot.lane.b32.xlu0 %v2258, 32
  %v2353 = vpop.permute.xlu0 %2352
  %2354 = vrot.lane.b32.xlu0 %v2259, 32
  %v2355 = vpop.permute.xlu0 %2354
  %vm2388 = vcmask 294144
  %2389 = vst.msk [vmem:[#allocation3] sm:$0xff] %vm2388, %v2293
  %2390 = vst.msk [vmem:[#allocation3 + $0x8] sm:$0xff] %vm2388, %v2295
  %2391 = vst.msk [vmem:[#allocation3 + $0x10] sm:$0xff] %vm2388, %v2297
  %2392 = vst.msk [vmem:[#allocation3 + $0x18] sm:$0xff] %vm2388, %v2299
  %2393 = vst.msk [vmem:[#allocation3 + $0x20] sm:$0xff] %vm2388, %v2301
  %2394 = vst.msk [vmem:[#allocation3 + $0x28] sm:$0xff] %vm2388, %v2303
  %2395 = vst.msk [vmem:[#allocation3 + $0x30] sm:$0xff] %vm2388, %v2305
  %2396 = vst.msk [vmem:[#allocation3 + $0x38] sm:$0xff] %vm2388, %v2307
  %2397 = vst.msk [vmem:[#allocation3 + $0x40] sm:$0xff] %vm2388, %v2309
  %2398 = vst.msk [vmem:[#allocation3 + $0x48] sm:$0xff] %vm2388, %v2311
  %2399 = vst.msk [vmem:[#allocation3 + $0x50] sm:$0xff] %vm2388, %v2313
  %2400 = vst.msk [vmem:[#allocation3 + $0x58] sm:$0xff] %vm2388, %v2315
  %2401 = vst.msk [vmem:[#allocation3 + $0x60] sm:$0xff] %vm2388, %v2317
  %2402 = vst.msk [vmem:[#allocation3 + $0x68] sm:$0xff] %vm2388, %v2319
  %2403 = vst.msk [vmem:[#allocation3 + $0x70] sm:$0xff] %vm2388, %v2321
  %2404 = vst.msk [vmem:[#allocation3 + $0x78] sm:$0xff] %vm2388, %v2323
  %2405 = vst.msk [vmem:[#allocation3 + $0x80] sm:$0xff] %vm2388, %v2325
  %2406 = vst.msk [vmem:[#allocation3 + $0x88] sm:$0xff] %vm2388, %v2327
  %2407 = vst.msk [vmem:[#allocation3 + $0x90] sm:$0xff] %vm2388, %v2329
  %2408 = vst.msk [vmem:[#allocation3 + $0x98] sm:$0xff] %vm2388, %v2331
  %2409 = vst.msk [vmem:[#allocation3 + $0xa0] sm:$0xff] %vm2388, %v2333
  %2410 = vst.msk [vmem:[#allocation3 + $0xa8] sm:$0xff] %vm2388, %v2335
  %2411 = vst.msk [vmem:[#allocation3 + $0xb0] sm:$0xff] %vm2388, %v2337
  %2412 = vst.msk [vmem:[#allocation3 + $0xb8] sm:$0xff] %vm2388, %v2339
  %2413 = vst.msk [vmem:[#allocation3 + $0xc0] sm:$0xff] %vm2388, %v2341
  %2414 = vst.msk [vmem:[#allocation3 + $0xc8] sm:$0xff] %vm2388, %v2343
  %2415 = vst.msk [vmem:[#allocation3 + $0xd0] sm:$0xff] %vm2388, %v2345
  %2416 = vst.msk [vmem:[#allocation3 + $0xd8] sm:$0xff] %vm2388, %v2347
  %2417 = vst.msk [vmem:[#allocation3 + $0xe0] sm:$0xff] %vm2388, %v2349
  %2418 = vst.msk [vmem:[#allocation3 + $0xe8] sm:$0xff] %vm2388, %v2351
  %2419 = vst.msk [vmem:[#allocation3 + $0xf0] sm:$0xff] %vm2388, %v2353
  %2420 = vst.msk [vmem:[#allocation3 + $0xf8] sm:$0xff] %vm2388, %v2355
  %v2421 = vld [vmem:[#allocation3] sm:$0xff]
  %v2422 = vld [vmem:[#allocation3 + $0x8] sm:$0xff]
  %v2423 = vld [vmem:[#allocation3 + $0x10] sm:$0xff]
  %v2424 = vld [vmem:[#allocation3 + $0x18] sm:$0xff]
  %v2425 = vld [vmem:[#allocation3 + $0x20] sm:$0xff]
  %v2426 = vld [vmem:[#allocation3 + $0x28] sm:$0xff]
  %v2427 = vld [vmem:[#allocation3 + $0x30] sm:$0xff]
  %v2428 = vld [vmem:[#allocation3 + $0x38] sm:$0xff]
  %v2429 = vld [vmem:[#allocation3 + $0x40] sm:$0xff]
  %v2430 = vld [vmem:[#allocation3 + $0x48] sm:$0xff]
  %v2431 = vld [vmem:[#allocation3 + $0x50] sm:$0xff]
  %v2432 = vld [vmem:[#allocation3 + $0x58] sm:$0xff]
  %v2433 = vld [vmem:[#allocation3 + $0x60] sm:$0xff]
  %v2434 = vld [vmem:[#allocation3 + $0x68] sm:$0xff]
  %v2435 = vld [vmem:[#allocation3 + $0x70] sm:$0xff]
  %v2436 = vld [vmem:[#allocation3 + $0x78] sm:$0xff]
  %v2437 = vld [vmem:[#allocation3 + $0x80] sm:$0xff]
  %v2438 = vld [vmem:[#allocation3 + $0x88] sm:$0xff]
  %v2439 = vld [vmem:[#allocation3 + $0x90] sm:$0xff]
  %v2440 = vld [vmem:[#allocation3 + $0x98] sm:$0xff]
  %v2441 = vld [vmem:[#allocation3 + $0xa0] sm:$0xff]
  %v2442 = vld [vmem:[#allocation3 + $0xa8] sm:$0xff]
  %v2443 = vld [vmem:[#allocation3 + $0xb0] sm:$0xff]
  %v2444 = vld [vmem:[#allocation3 + $0xb8] sm:$0xff]
  %v2445 = vld [vmem:[#allocation3 + $0xc0] sm:$0xff]
  %v2446 = vld [vmem:[#allocation3 + $0xc8] sm:$0xff]
  %v2447 = vld [vmem:[#allocation3 + $0xd0] sm:$0xff]
  %v2448 = vld [vmem:[#allocation3 + $0xd8] sm:$0xff]
  %v2449 = vld [vmem:[#allocation3 + $0xe0] sm:$0xff]
  %v2450 = vld [vmem:[#allocation3 + $0xe8] sm:$0xff]
  %v2451 = vld [vmem:[#allocation3 + $0xf0] sm:$0xff]
  %v2452 = vld [vmem:[#allocation3 + $0xf8] sm:$0xff]
  %v2453 = vld [vmem:[%s1] sm:$0xf]
  %v2454 = vld [vmem:[%s1 + $0x4] sm:$0xf]
  %v2455 = vld [vmem:[%s1 + $0x8] sm:$0xf]
  %v2456 = vld [vmem:[%s1 + $0xc] sm:$0xf]
  %v2457 = vld [vmem:[%s1 + $0x10] sm:$0x3]
  %v2463 = vunpack.c.l.b16 %v2453
  %v2464 = vunpack.c.l.b16 %v2454
  %v2465 = vunpack.c.l.b16 %v2455
  %v2466 = vunpack.c.l.b16 %v2456
  %v2467 = vunpack.c.l.b16 %v2457
  %v2468 = vpack.c.b16 %v2464, %v2463
  %v2469 = vpack.c.b16 %v2466, %v2465
  %v2470 = vpack.c.b16 %v2467, %v2467
  %vm2473 = vcmask 293888
  %v2475 = vsel %vm2473, %v2421, 0
  %v2478 = vsel %vm2473, %v2422, 0
  %v2481 = vsel %vm2473, %v2423, 0
  %v2484 = vsel %vm2473, %v2424, 0
  %v2487 = vsel %vm2473, %v2425, 0
  %v2490 = vsel %vm2473, %v2426, 0
  %v2493 = vsel %vm2473, %v2427, 0
  %v2496 = vsel %vm2473, %v2428, 0
  %v2499 = vsel %vm2473, %v2429, 0
  %v2502 = vsel %vm2473, %v2430, 0
  %v2505 = vsel %vm2473, %v2431, 0
  %v2508 = vsel %vm2473, %v2432, 0
  %v2511 = vsel %vm2473, %v2433, 0
  %v2514 = vsel %vm2473, %v2434, 0
  %v2517 = vsel %vm2473, %v2435, 0
  %v2520 = vsel %vm2473, %v2436, 0
  %v2523 = vsel %vm2473, %v2437, 0
  %v2526 = vsel %vm2473, %v2438, 0
  %v2529 = vsel %vm2473, %v2439, 0
  %v2532 = vsel %vm2473, %v2440, 0
  %v2535 = vsel %vm2473, %v2441, 0
  %v2538 = vsel %vm2473, %v2442, 0
  %v2541 = vsel %vm2473, %v2443, 0
  %v2544 = vsel %vm2473, %v2444, 0
  %v2547 = vsel %vm2473, %v2445, 0
  %v2550 = vsel %vm2473, %v2446, 0
  %v2553 = vsel %vm2473, %v2447, 0
  %v2556 = vsel %vm2473, %v2448, 0
  %v2559 = vsel %vm2473, %v2449, 0
  %v2562 = vsel %vm2473, %v2450, 0
  %v2565 = vsel %vm2473, %v2451, 0
  %v2568 = vsel %vm2473, %v2452, 0
  %vm2570 = vcmask 1041408
  %v2572 = vsel %vm2570, %v2470, 0
  %2574 = vmatprep.subr.bf16.mxu0 0
  %2575 = vmatpush1.bf16.msra.mxu0 %v2468
  %2576 = vmatprep.subr.bf16.mxu0 0
  %2577 = vmatpush1.bf16.msra.mxu0 %v2469
  %2578 = vmatprep.subr.bf16.mxu0 0
  %2579 = vmatpush1.bf16.msra.mxu0 %v2572
  %2580 = vmatprep.subr.bf16.mxu0 0
  %2581 = vmatpush1.bf16.msra.mxu0 0
  %2582 = vmatprep.subr.bf16.mxu0 0
  %2583 = vmatpush1.bf16.msra.mxu0 0
  %2584 = vmatprep.subr.bf16.mxu0 0
  %2585 = vmatpush1.bf16.msra.mxu0 0
  %2586 = vmatprep.subr.bf16.mxu0 0
  %2587 = vmatpush1.bf16.msra.mxu0 0
  %2588 = vmatprep.subr.bf16.mxu0 0
  %2589 = vmatpush1.bf16.msra.mxu0 0
  %2590 = vmatprep.subr.bf16.mxu0 0
  %2591 = vmatpush1.bf16.msra.mxu0 0
  %2592 = vmatprep.subr.bf16.mxu0 0
  %2593 = vmatpush1.bf16.msra.mxu0 0
  %2594 = vmatprep.subr.bf16.mxu0 0
  %2595 = vmatpush1.bf16.msra.mxu0 0
  %2596 = vmatprep.subr.bf16.mxu0 0
  %2597 = vmatpush1.bf16.msra.mxu0 0
  %2598 = vmatprep.subr.bf16.mxu0 0
  %2599 = vmatpush1.bf16.msra.mxu0 0
  %2600 = vmatprep.subr.bf16.mxu0 0
  %2601 = vmatpush1.bf16.msra.mxu0 0
  %2602 = vmatprep.subr.bf16.mxu0 0
  %2603 = vmatpush1.bf16.msra.mxu0 0
  %2604 = vmatprep.subr.bf16.mxu0 0
  %2605 = vmatpush1.bf16.msra.mxu0 0
  %2606 = vmatprep.mubr.bf16.mxu0 0
  %2607 = vmatmul.mubr.bf16.gmra.mrb[0].mxu0 %v2475
  %v2608 = vpop.f32.mrb[0].mxu0
  %v2609 = vadd.f32 0.0, %v2608
  %v2610 = vpop.f32.mrb[0].mxu0
  %v2611 = vpop.f32.mrb[0].mxu0
  %v2612 = vadd.f32 0.0, %v2611
  %v2613 = vpop.f32.mrb[0].mxu0
  %2614 = vmatprep.mubr.bf16.mxu0 0
  %2615 = vmatmul.mubr.bf16.gmra.mrb[0].mxu0 %v2478
  %v2616 = vpop.f32.mrb[0].mxu0
  %v2617 = vadd.f32 0.0, %v2616
  %v2618 = vpop.f32.mrb[0].mxu0
  %v2619 = vpop.f32.mrb[0].mxu0
  %v2620 = vadd.f32 0.0, %v2619
  %v2621 = vpop.f32.mrb[0].mxu0
  %2622 = vmatprep.mubr.bf16.mxu0 0
  %2623 = vmatmul.mubr.bf16.gmra.mrb[0].mxu0 %v2481
  %v2624 = vpop.f32.mrb[0].mxu0
  %v2625 = vadd.f32 0.0, %v2624
  %v2626 = vpop.f32.mrb[0].mxu0
  %v2627 = vpop.f32.mrb[0].mxu0
  %v2628 = vadd.f32 0.0, %v2627
  %v2629 = vpop.f32.mrb[0].mxu0
  %2630 = vmatprep.mubr.bf16.mxu0 0
  %2631 = vmatmul.mubr.bf16.gmra.mrb[0].mxu0 %v2484
  %v2632 = vpop.f32.mrb[0].mxu0
  %v2633 = vadd.f32 0.0, %v2632
  %v2634 = vpop.f32.mrb[0].mxu0
  %v2635 = vpop.f32.mrb[0].mxu0
  %v2636 = vadd.f32 0.0, %v2635
  %v2637 = vpop.f32.mrb[0].mxu0
  %2638 = vmatprep.mubr.bf16.mxu0 0
  %2639 = vmatmul.mubr.bf16.gmra.mrb[0].mxu0 %v2487
  %v2640 = vpop.f32.mrb[0].mxu0
  %v2641 = vadd.f32 0.0, %v2640
  %v2642 = vpop.f32.mrb[0].mxu0
  %v2643 = vpop.f32.mrb[0].mxu0
  %v2644 = vadd.f32 0.0, %v2643
  %v2645 = vpop.f32.mrb[0].mxu0
  %2646 = vmatprep.mubr.bf16.mxu0 0
  %2647 = vmatmul.mubr.bf16.gmra.mrb[0].mxu0 %v2490
  %v2648 = vpop.f32.mrb[0].mxu0
  %v2649 = vadd.f32 0.0, %v2648
  %v2650 = vpop.f32.mrb[0].mxu0
  %v2651 = vpop.f32.mrb[0].mxu0
  %v2652 = vadd.f32 0.0, %v2651
  %v2653 = vpop.f32.mrb[0].mxu0
  %2654 = vmatprep.mubr.bf16.mxu0 0
  %2655 = vmatmul.mubr.bf16.gmra.mrb[0].mxu0 %v2493
  %v2656 = vpop.f32.mrb[0].mxu0
  %v2657 = vadd.f32 0.0, %v2656
  %v2658 = vpop.f32.mrb[0].mxu0
  %v2659 = vpop.f32.mrb[0].mxu0
  %v2660 = vadd.f32 0.0, %v2659
  %v2661 = vpop.f32.mrb[0].mxu0
  %2662 = vmatprep.mubr.bf16.mxu0 0
  %2663 = vmatmul.mubr.bf16.gmra.mrb[0].mxu0 %v2496
  %v2664 = vpop.f32.mrb[0].mxu0
  %v2665 = vadd.f32 0.0, %v2664
  %v2666 = vpop.f32.mrb[0].mxu0
  %v2667 = vpop.f32.mrb[0].mxu0
  %v2668 = vadd.f32 0.0, %v2667
  %v2669 = vpop.f32.mrb[0].mxu0
  %2670 = vmatprep.mubr.bf16.mxu0 0
  %2671 = vmatmul.mubr.bf16.gmra.mrb[0].mxu0 %v2499
  %v2672 = vpop.f32.mrb[0].mxu0
  %v2673 = vadd.f32 0.0, %v2672
  %v2674 = vpop.f32.mrb[0].mxu0
  %v2675 = vpop.f32.mrb[0].mxu0
  %v2676 = vadd.f32 0.0, %v2675
  %v2677 = vpop.f32.mrb[0].mxu0
  %2678 = vmatprep.mubr.bf16.mxu0 0
  %2679 = vmatmul.mubr.bf16.gmra.mrb[0].mxu0 %v2502
  %v2680 = vpop.f32.mrb[0].mxu0
  %v2681 = vadd.f32 0.0, %v2680
  %v2682 = vpop.f32.mrb[0].mxu0
  %v2683 = vpop.f32.mrb[0].mxu0
  %v2684 = vadd.f32 0.0, %v2683
  %v2685 = vpop.f32.mrb[0].mxu0
  %2686 = vmatprep.mubr.bf16.mxu0 0
  %2687 = vmatmul.mubr.bf16.gmra.mrb[0].mxu0 %v2505
  %v2688 = vpop.f32.mrb[0].mxu0
  %v2689 = vadd.f32 0.0, %v2688
  %v2690 = vpop.f32.mrb[0].mxu0
  %v2691 = vpop.f32.mrb[0].mxu0
  %v2692 = vadd.f32 0.0, %v2691
  %v2693 = vpop.f32.mrb[0].mxu0
  %2694 = vmatprep.mubr.bf16.mxu0 0
  %2695 = vmatmul.mubr.bf16.gmra.mrb[0].mxu0 %v2508
  %v2696 = vpop.f32.mrb[0].mxu0
  %v2697 = vadd.f32 0.0, %v2696
  %v2698 = vpop.f32.mrb[0].mxu0
  %v2699 = vpop.f32.mrb[0].mxu0
  %v2700 = vadd.f32 0.0, %v2699
  %v2701 = vpop.f32.mrb[0].mxu0
  %2702 = vmatprep.mubr.bf16.mxu0 0
  %2703 = vmatmul.mubr.bf16.gmra.mrb[0].mxu0 %v2511
  %v2704 = vpop.f32.mrb[0].mxu0
  %v2705 = vadd.f32 0.0, %v2704
  %v2706 = vpop.f32.mrb[0].mxu0
  %v2707 = vpop.f32.mrb[0].mxu0
  %v2708 = vadd.f32 0.0, %v2707
  %v2709 = vpop.f32.mrb[0].mxu0
  %2710 = vmatprep.mubr.bf16.mxu0 0
  %2711 = vmatmul.mubr.bf16.gmra.mrb[0].mxu0 %v2514
  %v2712 = vpop.f32.mrb[0].mxu0
  %v2713 = vadd.f32 0.0, %v2712
  %v2714 = vpop.f32.mrb[0].mxu0
  %v2715 = vpop.f32.mrb[0].mxu0
  %v2716 = vadd.f32 0.0, %v2715
  %v2717 = vpop.f32.mrb[0].mxu0
  %2718 = vmatprep.mubr.bf16.mxu0 0
  %2719 = vmatmul.mubr.bf16.gmra.mrb[0].mxu0 %v2517
  %v2720 = vpop.f32.mrb[0].mxu0
  %v2721 = vadd.f32 0.0, %v2720
  %v2722 = vpop.f32.mrb[0].mxu0
  %v2723 = vpop.f32.mrb[0].mxu0
  %v2724 = vadd.f32 0.0, %v2723
  %v2725 = vpop.f32.mrb[0].mxu0
  %2726 = vmatprep.mubr.bf16.mxu0 0
  %2727 = vmatmul.mubr.bf16.gmra.mrb[0].mxu0 %v2520
  %v2728 = vpop.f32.mrb[0].mxu0
  %v2729 = vadd.f32 0.0, %v2728
  %v2730 = vpop.f32.mrb[0].mxu0
  %v2731 = vpop.f32.mrb[0].mxu0
  %v2732 = vadd.f32 0.0, %v2731
  %v2733 = vpop.f32.mrb[0].mxu0
  %2734 = vmatprep.mubr.bf16.mxu0 0
  %2735 = vmatmul.mubr.bf16.gmra.mrb[0].mxu0 %v2523
  %v2736 = vpop.f32.mrb[0].mxu0
  %v2737 = vadd.f32 0.0, %v2736
  %v2738 = vpop.f32.mrb[0].mxu0
  %v2739 = vpop.f32.mrb[0].mxu0
  %v2740 = vadd.f32 0.0, %v2739
  %v2741 = vpop.f32.mrb[0].mxu0
  %2742 = vmatprep.mubr.bf16.mxu0 0
  %2743 = vmatmul.mubr.bf16.gmra.mrb[0].mxu0 %v2526
  %v2744 = vpop.f32.mrb[0].mxu0
  %v2745 = vadd.f32 0.0, %v2744
  %v2746 = vpop.f32.mrb[0].mxu0
  %v2747 = vpop.f32.mrb[0].mxu0
  %v2748 = vadd.f32 0.0, %v2747
  %v2749 = vpop.f32.mrb[0].mxu0
  %2750 = vmatprep.mubr.bf16.mxu0 0
  %2751 = vmatmul.mubr.bf16.gmra.mrb[0].mxu0 %v2529
  %v2752 = vpop.f32.mrb[0].mxu0
  %v2753 = vadd.f32 0.0, %v2752
  %v2754 = vpop.f32.mrb[0].mxu0
  %v2755 = vpop.f32.mrb[0].mxu0
  %v2756 = vadd.f32 0.0, %v2755
  %v2757 = vpop.f32.mrb[0].mxu0
  %2758 = vmatprep.mubr.bf16.mxu0 0
  %2759 = vmatmul.mubr.bf16.gmra.mrb[0].mxu0 %v2532
  %v2760 = vpop.f32.mrb[0].mxu0
  %v2761 = vadd.f32 0.0, %v2760
  %v2762 = vpop.f32.mrb[0].mxu0
  %v2763 = vpop.f32.mrb[0].mxu0
  %v2764 = vadd.f32 0.0, %v2763
  %v2765 = vpop.f32.mrb[0].mxu0
  %2766 = vmatprep.mubr.bf16.mxu0 0
  %2767 = vmatmul.mubr.bf16.gmra.mrb[0].mxu0 %v2535
  %v2768 = vpop.f32.mrb[0].mxu0
  %v2769 = vadd.f32 0.0, %v2768
  %v2770 = vpop.f32.mrb[0].mxu0
  %v2771 = vpop.f32.mrb[0].mxu0
  %v2772 = vadd.f32 0.0, %v2771
  %v2773 = vpop.f32.mrb[0].mxu0
  %2774 = vmatprep.mubr.bf16.mxu0 0
  %2775 = vmatmul.mubr.bf16.gmra.mrb[0].mxu0 %v2538
  %v2776 = vpop.f32.mrb[0].mxu0
  %v2777 = vadd.f32 0.0, %v2776
  %v2778 = vpop.f32.mrb[0].mxu0
  %v2779 = vpop.f32.mrb[0].mxu0
  %v2780 = vadd.f32 0.0, %v2779
  %v2781 = vpop.f32.mrb[0].mxu0
  %2782 = vmatprep.mubr.bf16.mxu0 0
  %2783 = vmatmul.mubr.bf16.gmra.mrb[0].mxu0 %v2541
  %v2784 = vpop.f32.mrb[0].mxu0
  %v2785 = vadd.f32 0.0, %v2784
  %v2786 = vpop.f32.mrb[0].mxu0
  %v2787 = vpop.f32.mrb[0].mxu0
  %v2788 = vadd.f32 0.0, %v2787
  %v2789 = vpop.f32.mrb[0].mxu0
  %2790 = vmatprep.mubr.bf16.mxu0 0
  %2791 = vmatmul.mubr.bf16.gmra.mrb[0].mxu0 %v2544
  %v2792 = vpop.f32.mrb[0].mxu0
  %v2793 = vadd.f32 0.0, %v2792
  %v2794 = vpop.f32.mrb[0].mxu0
  %v2795 = vpop.f32.mrb[0].mxu0
  %v2796 = vadd.f32 0.0, %v2795
  %v2797 = vpop.f32.mrb[0].mxu0
  %2798 = vmatprep.mubr.bf16.mxu0 0
  %2799 = vmatmul.mubr.bf16.gmra.mrb[0].mxu0 %v2547
  %v2800 = vpop.f32.mrb[0].mxu0
  %v2801 = vadd.f32 0.0, %v2800
  %v2802 = vpop.f32.mrb[0].mxu0
  %v2803 = vpop.f32.mrb[0].mxu0
  %v2804 = vadd.f32 0.0, %v2803
  %v2805 = vpop.f32.mrb[0].mxu0
  %2806 = vmatprep.mubr.bf16.mxu0 0
  %2807 = vmatmul.mubr.bf16.gmra.mrb[0].mxu0 %v2550
  %v2808 = vpop.f32.mrb[0].mxu0
  %v2809 = vadd.f32 0.0, %v2808
  %v2810 = vpop.f32.mrb[0].mxu0
  %v2811 = vpop.f32.mrb[0].mxu0
  %v2812 = vadd.f32 0.0, %v2811
  %v2813 = vpop.f32.mrb[0].mxu0
  %2814 = vmatprep.mubr.bf16.mxu0 0
  %2815 = vmatmul.mubr.bf16.gmra.mrb[0].mxu0 %v2553
  %v2816 = vpop.f32.mrb[0].mxu0
  %v2817 = vadd.f32 0.0, %v2816
  %v2818 = vpop.f32.mrb[0].mxu0
  %v2819 = vpop.f32.mrb[0].mxu0
  %v2820 = vadd.f32 0.0, %v2819
  %v2821 = vpop.f32.mrb[0].mxu0
  %2822 = vmatprep.mubr.bf16.mxu0 0
  %2823 = vmatmul.mubr.bf16.gmra.mrb[0].mxu0 %v2556
  %v2824 = vpop.f32.mrb[0].mxu0
  %v2825 = vadd.f32 0.0, %v2824
  %v2826 = vpop.f32.mrb[0].mxu0
  %v2827 = vpop.f32.mrb[0].mxu0
  %v2828 = vadd.f32 0.0, %v2827
  %v2829 = vpop.f32.mrb[0].mxu0
  %2830 = vmatprep.mubr.bf16.mxu0 0
  %2831 = vmatmul.mubr.bf16.gmra.mrb[0].mxu0 %v2559
  %v2832 = vpop.f32.mrb[0].mxu0
  %v2833 = vadd.f32 0.0, %v2832
  %v2834 = vpop.f32.mrb[0].mxu0
  %v2835 = vpop.f32.mrb[0].mxu0
  %v2836 = vadd.f32 0.0, %v2835
  %v2837 = vpop.f32.mrb[0].mxu0
  %2838 = vmatprep.mubr.bf16.mxu0 0
  %2839 = vmatmul.mubr.bf16.gmra.mrb[0].mxu0 %v2562
  %v2840 = vpop.f32.mrb[0].mxu0
  %v2841 = vadd.f32 0.0, %v2840
  %v2842 = vpop.f32.mrb[0].mxu0
  %v2843 = vpop.f32.mrb[0].mxu0
  %v2844 = vadd.f32 0.0, %v2843
  %v2845 = vpop.f32.mrb[0].mxu0
  %2846 = vmatprep.mubr.bf16.mxu0 0
  %2847 = vmatmul.mubr.bf16.gmra.mrb[0].mxu0 %v2565
  %v2848 = vpop.f32.mrb[0].mxu0
  %v2849 = vadd.f32 0.0, %v2848
  %v2850 = vpop.f32.mrb[0].mxu0
  %v2851 = vpop.f32.mrb[0].mxu0
  %v2852 = vadd.f32 0.0, %v2851
  %v2853 = vpop.f32.mrb[0].mxu0
  %2854 = vmatprep.mubr.bf16.mxu0 0
  %2855 = vmatmul.mubr.bf16.gmra.mrb[0].mxu0 %v2568
  %v2856 = vpop.f32.mrb[0].mxu0
  %v2857 = vadd.f32 0.0, %v2856
  %v2858 = vpop.f32.mrb[0].mxu0
  %v2859 = vpop.f32.mrb[0].mxu0
  %v2860 = vadd.f32 0.0, %v2859
  %v2861 = vpop.f32.mrb[0].mxu0
  %2862 = vdwg.mxu0
  %2863 = vmatprep.subr.mxu0 0.0
  %2864 = vmatpush1.msra.mxu0 %v2609
  %2865 = vmatprep.subr.mxu0 0.0
  %2866 = vmatpush1.msra.mxu0 %v2612
  %2867 = vmatprep.subr.mxu0 0.0
  %2868 = vmatpush1.msra.mxu0 %v2617
  %2869 = vmatprep.subr.mxu0 0.0
  %2870 = vmatpush1.msra.mxu0 %v2620
  %2871 = vmatprep.subr.mxu0 0.0
  %2872 = vmatpush1.msra.mxu0 %v2625
  %2873 = vmatprep.subr.mxu0 0.0
  %2874 = vmatpush1.msra.mxu0 %v2628
  %2875 = vmatprep.subr.mxu0 0.0
  %2876 = vmatpush1.msra.mxu0 %v2633
  %2877 = vmatprep.subr.mxu0 0.0
  %2878 = vmatpush1.msra.mxu0 %v2636
  %2879 = vmatprep.subr.mxu0 0.0
  %2880 = vmatpush1.msra.mxu0 %v2641
  %2881 = vmatprep.subr.mxu0 0.0
  %2882 = vmatpush1.msra.mxu0 %v2644
  %2883 = vmatprep.subr.mxu0 0.0
  %2884 = vmatpush1.msra.mxu0 %v2649
  %2885 = vmatprep.subr.mxu0 0.0
  %2886 = vmatpush1.msra.mxu0 %v2652
  %2887 = vmatprep.subr.mxu0 0.0
  %2888 = vmatpush1.msra.mxu0 %v2657
  %2889 = vmatprep.subr.mxu0 0.0
  %2890 = vmatpush1.msra.mxu0 %v2660
  %2891 = vmatprep.subr.mxu0 0.0
  %2892 = vmatpush1.msra.mxu0 %v2665
  %2893 = vmatprep.subr.mxu0 0.0
  %2894 = vmatpush1.msra.mxu0 %v2668
  %2895 = vmatprep.subr.mxu0 0.0
  %2896 = vmatpush1.msra.mxu0 %v2673
  %2897 = vmatprep.subr.mxu0 0.0
  %2898 = vmatpush1.msra.mxu0 %v2676
  %2899 = vmatprep.subr.mxu0 0.0
  %2900 = vmatpush1.msra.mxu0 %v2681
  %2901 = vmatprep.subr.mxu0 0.0
  %2902 = vmatpush1.msra.mxu0 %v2684
  %2903 = vmatprep.subr.mxu0 0.0
  %2904 = vmatpush1.msra.mxu0 %v2689
  %2905 = vmatprep.subr.mxu0 0.0
  %2906 = vmatpush1.msra.mxu0 %v2692
  %2907 = vmatprep.subr.mxu0 0.0
  %2908 = vmatpush1.msra.mxu0 %v2697
  %2909 = vmatprep.subr.mxu0 0.0
  %2910 = vmatpush1.msra.mxu0 %v2700
  %2911 = vmatprep.subr.mxu0 0.0
  %2912 = vmatpush1.msra.mxu0 %v2705
  %2913 = vmatprep.subr.mxu0 0.0
  %2914 = vmatpush1.msra.mxu0 %v2708
  %2915 = vmatprep.subr.mxu0 0.0
  %2916 = vmatpush1.msra.mxu0 %v2713
  %2917 = vmatprep.subr.mxu0 0.0
  %2918 = vmatpush1.msra.mxu0 %v2716
  %2919 = vmatprep.subr.mxu0 0.0
  %2920 = vmatpush1.msra.mxu0 %v2721
  %2921 = vmatprep.subr.mxu0 0.0
  %2922 = vmatpush1.msra.mxu0 %v2724
  %2923 = vmatprep.subr.mxu0 0.0
  %2924 = vmatpush1.msra.mxu0 %v2729
  %2925 = vmatprep.subr.mxu0 0.0
  %2926 = vmatpush1.msra.mxu0 %v2732
  %2927 = vmatprep.mubr.f32.mxu0 1.0
  %2928 = vmatmul.mubr.f32.gmra.mrb[0].mxu0 1.0
  %v2929 = vpop.f32.mrb[0].mxu0
  %v2930 = vadd.f32 0.0, %v2929
  %v2931 = vpop.f32.mrb[0].mxu0
  %2932 = vdwg.mxu0
  %2933 = vmatprep.subr.mxu0 0.0
  %2934 = vmatpush1.msra.mxu0 %v2737
  %2935 = vmatprep.subr.mxu0 0.0
  %2936 = vmatpush1.msra.mxu0 %v2740
  %2937 = vmatprep.subr.mxu0 0.0
  %2938 = vmatpush1.msra.mxu0 %v2745
  %2939 = vmatprep.subr.mxu0 0.0
  %2940 = vmatpush1.msra.mxu0 %v2748
  %2941 = vmatprep.subr.mxu0 0.0
  %2942 = vmatpush1.msra.mxu0 %v2753
  %2943 = vmatprep.subr.mxu0 0.0
  %2944 = vmatpush1.msra.mxu0 %v2756
  %2945 = vmatprep.subr.mxu0 0.0
  %2946 = vmatpush1.msra.mxu0 %v2761
  %2947 = vmatprep.subr.mxu0 0.0
  %2948 = vmatpush1.msra.mxu0 %v2764
  %2949 = vmatprep.subr.mxu0 0.0
  %2950 = vmatpush1.msra.mxu0 %v2769
  %2951 = vmatprep.subr.mxu0 0.0
  %2952 = vmatpush1.msra.mxu0 %v2772
  %2953 = vmatprep.subr.mxu0 0.0
  %2954 = vmatpush1.msra.mxu0 %v2777
  %2955 = vmatprep.subr.mxu0 0.0
  %2956 = vmatpush1.msra.mxu0 %v2780
  %2957 = vmatprep.subr.mxu0 0.0
  %2958 = vmatpush1.msra.mxu0 %v2785
  %2959 = vmatprep.subr.mxu0 0.0
  %2960 = vmatpush1.msra.mxu0 %v2788
  %2961 = vmatprep.subr.mxu0 0.0
  %2962 = vmatpush1.msra.mxu0 %v2793
  %2963 = vmatprep.subr.mxu0 0.0
  %2964 = vmatpush1.msra.mxu0 %v2796
  %2965 = vmatprep.subr.mxu0 0.0
  %2966 = vmatpush1.msra.mxu0 %v2801
  %2967 = vmatprep.subr.mxu0 0.0
  %2968 = vmatpush1.msra.mxu0 %v2804
  %2969 = vmatprep.subr.mxu0 0.0
  %2970 = vmatpush1.msra.mxu0 %v2809
  %2971 = vmatprep.subr.mxu0 0.0
  %2972 = vmatpush1.msra.mxu0 %v2812
  %2973 = vmatprep.subr.mxu0 0.0
  %2974 = vmatpush1.msra.mxu0 %v2817
  %2975 = vmatprep.subr.mxu0 0.0
  %2976 = vmatpush1.msra.mxu0 %v2820
  %2977 = vmatprep.subr.mxu0 0.0
  %2978 = vmatpush1.msra.mxu0 %v2825
  %2979 = vmatprep.subr.mxu0 0.0
  %2980 = vmatpush1.msra.mxu0 %v2828
  %2981 = vmatprep.subr.mxu0 0.0
  %2982 = vmatpush1.msra.mxu0 %v2833
  %2983 = vmatprep.subr.mxu0 0.0
  %2984 = vmatpush1.msra.mxu0 %v2836
  %2985 = vmatprep.subr.mxu0 0.0
  %2986 = vmatpush1.msra.mxu0 %v2841
  %2987 = vmatprep.subr.mxu0 0.0
  %2988 = vmatpush1.msra.mxu0 %v2844
  %2989 = vmatprep.subr.mxu0 0.0
  %2990 = vmatpush1.msra.mxu0 %v2849
  %2991 = vmatprep.subr.mxu0 0.0
  %2992 = vmatpush1.msra.mxu0 %v2852
  %2993 = vmatprep.subr.mxu0 0.0
  %2994 = vmatpush1.msra.mxu0 %v2857
  %2995 = vmatprep.subr.mxu0 0.0
  %2996 = vmatpush1.msra.mxu0 %v2860
  %2997 = vmatprep.mubr.f32.mxu0 1.0
  %2998 = vmatmul.mubr.f32.gmra.mrb[0].mxu0 1.0
  %v2999 = vpop.f32.mrb[0].mxu0
  %v3000 = vadd.f32 %v2930, %v2999
  %v3001 = vpop.f32.mrb[0].mxu0
  %3002 = vdwg.mxu0
  %v3003 = vmul.f32 %v3000, 0.001953125
  %v3004 = vlaneseq
  %v3005 = vshrl.u32 %v3004, 7
  %v3006 = vsub.s32 0, %v3005
  %v3007 = vrot.slane %v3003, %v3006
  %v3008 = vsub.f32 %v2609, %v3007
  %v3009 = vsub.f32 %v2612, %v3007
  %v3010 = vsub.f32 %v2617, %v3007
  %v3011 = vsub.f32 %v2620, %v3007
  %v3012 = vsub.f32 %v2625, %v3007
  %v3013 = vsub.f32 %v2628, %v3007
  %v3014 = vsub.f32 %v2633, %v3007
  %v3015 = vsub.f32 %v2636, %v3007
  %v3016 = vsub.f32 %v2641, %v3007
  %v3017 = vsub.f32 %v2644, %v3007
  %v3018 = vsub.f32 %v2649, %v3007
  %v3019 = vsub.f32 %v2652, %v3007
  %v3020 = vsub.f32 %v2657, %v3007
  %v3021 = vsub.f32 %v2660, %v3007
  %v3022 = vsub.f32 %v2665, %v3007
  %v3023 = vsub.f32 %v2668, %v3007
  %v3024 = vsub.f32 %v2673, %v3007
  %v3025 = vsub.f32 %v2676, %v3007
  %v3026 = vsub.f32 %v2681, %v3007
  %v3027 = vsub.f32 %v2684, %v3007
  %v3028 = vsub.f32 %v2689, %v3007
  %v3029 = vsub.f32 %v2692, %v3007
  %v3030 = vsub.f32 %v2697, %v3007
  %v3031 = vsub.f32 %v2700, %v3007
  %v3032 = vsub.f32 %v2705, %v3007
  %v3033 = vsub.f32 %v2708, %v3007
  %v3034 = vsub.f32 %v2713, %v3007
  %v3035 = vsub.f32 %v2716, %v3007
  %v3036 = vsub.f32 %v2721, %v3007
  %v3037 = vsub.f32 %v2724, %v3007
  %v3038 = vsub.f32 %v2729, %v3007
  %v3039 = vsub.f32 %v2732, %v3007
  %v3040 = vsub.f32 %v2737, %v3007
  %v3041 = vsub.f32 %v2740, %v3007
  %v3042 = vsub.f32 %v2745, %v3007
  %v3043 = vsub.f32 %v2748, %v3007
  %v3044 = vsub.f32 %v2753, %v3007
  %v3045 = vsub.f32 %v2756, %v3007
  %v3046 = vsub.f32 %v2761, %v3007
  %v3047 = vsub.f32 %v2764, %v3007
  %v3048 = vsub.f32 %v2769, %v3007
  %v3049 = vsub.f32 %v2772, %v3007
  %v3050 = vsub.f32 %v2777, %v3007
  %v3051 = vsub.f32 %v2780, %v3007
  %v3052 = vsub.f32 %v2785, %v3007
  %v3053 = vsub.f32 %v2788, %v3007
  %v3054 = vsub.f32 %v2793, %v3007
  %v3055 = vsub.f32 %v2796, %v3007
  %v3056 = vsub.f32 %v2801, %v3007
  %v3057 = vsub.f32 %v2804, %v3007
  %v3058 = vsub.f32 %v2809, %v3007
  %v3059 = vsub.f32 %v2812, %v3007
  %v3060 = vsub.f32 %v2817, %v3007
  %v3061 = vsub.f32 %v2820, %v3007
  %v3062 = vsub.f32 %v2825, %v3007
  %v3063 = vsub.f32 %v2828, %v3007
  %v3064 = vsub.f32 %v2833, %v3007
  %v3065 = vsub.f32 %v2836, %v3007
  %v3066 = vsub.f32 %v2841, %v3007
  %v3067 = vsub.f32 %v2844, %v3007
  %v3068 = vsub.f32 %v2849, %v3007
  %v3069 = vsub.f32 %v2852, %v3007
  %v3070 = vsub.f32 %v2857, %v3007
  %v3071 = vsub.f32 %v2860, %v3007
  %v3072 = vmul.f32 %v3008, %v3008
  %v3073 = vmul.f32 %v3009, %v3009
  %v3074 = vmul.f32 %v3010, %v3010
  %v3075 = vmul.f32 %v3011, %v3011
  %v3076 = vmul.f32 %v3012, %v3012
  %v3077 = vmul.f32 %v3013, %v3013
  %v3078 = vmul.f32 %v3014, %v3014
  %v3079 = vmul.f32 %v3015, %v3015
  %v3080 = vmul.f32 %v3016, %v3016
  %v3081 = vmul.f32 %v3017, %v3017
  %v3082 = vmul.f32 %v3018, %v3018
  %v3083 = vmul.f32 %v3019, %v3019
  %v3084 = vmul.f32 %v3020, %v3020
  %v3085 = vmul.f32 %v3021, %v3021
  %v3086 = vmul.f32 %v3022, %v3022
  %v3087 = vmul.f32 %v3023, %v3023
  %v3088 = vmul.f32 %v3024, %v3024
  %v3089 = vmul.f32 %v3025, %v3025
  %v3090 = vmul.f32 %v3026, %v3026
  %v3091 = vmul.f32 %v3027, %v3027
  %v3092 = vmul.f32 %v3028, %v3028
  %v3093 = vmul.f32 %v3029, %v3029
  %v3094 = vmul.f32 %v3030, %v3030
  %v3095 = vmul.f32 %v3031, %v3031
  %v3096 = vmul.f32 %v3032, %v3032
  %v3097 = vmul.f32 %v3033, %v3033
  %v3098 = vmul.f32 %v3034, %v3034
  %v3099 = vmul.f32 %v3035, %v3035
  %v3100 = vmul.f32 %v3036, %v3036
  %v3101 = vmul.f32 %v3037, %v3037
  %v3102 = vmul.f32 %v3038, %v3038
  %v3103 = vmul.f32 %v3039, %v3039
  %v3104 = vmul.f32 %v3040, %v3040
  %v3105 = vmul.f32 %v3041, %v3041
  %v3106 = vmul.f32 %v3042, %v3042
  %v3107 = vmul.f32 %v3043, %v3043
  %v3108 = vmul.f32 %v3044, %v3044
  %v3109 = vmul.f32 %v3045, %v3045
  %v3110 = vmul.f32 %v3046, %v3046
  %v3111 = vmul.f32 %v3047, %v3047
  %v3112 = vmul.f32 %v3048, %v3048
  %v3113 = vmul.f32 %v3049, %v3049
  %v3114 = vmul.f32 %v3050, %v3050
  %v3115 = vmul.f32 %v3051, %v3051
  %v3116 = vmul.f32 %v3052, %v3052
  %v3117 = vmul.f32 %v3053, %v3053
  %v3118 = vmul.f32 %v3054, %v3054
  %v3119 = vmul.f32 %v3055, %v3055
  %v3120 = vmul.f32 %v3056, %v3056
  %v3121 = vmul.f32 %v3057, %v3057
  %v3122 = vmul.f32 %v3058, %v3058
  %v3123 = vmul.f32 %v3059, %v3059
  %v3124 = vmul.f32 %v3060, %v3060
  %v3125 = vmul.f32 %v3061, %v3061
  %v3126 = vmul.f32 %v3062, %v3062
  %v3127 = vmul.f32 %v3063, %v3063
  %v3128 = vmul.f32 %v3064, %v3064
  %v3129 = vmul.f32 %v3065, %v3065
  %v3130 = vmul.f32 %v3066, %v3066
  %v3131 = vmul.f32 %v3067, %v3067
  %v3132 = vmul.f32 %v3068, %v3068
  %v3133 = vmul.f32 %v3069, %v3069
  %v3134 = vmul.f32 %v3070, %v3070
  %v3135 = vmul.f32 %v3071, %v3071
  %3136 = vmatprep.subr.mxu0 0.0
  %3137 = vmatpush1.msra.mxu0 %v3072
  %3138 = vmatprep.subr.mxu0 0.0
  %3139 = vmatpush1.msra.mxu0 %v3073
  %3140 = vmatprep.subr.mxu0 0.0
  %3141 = vmatpush1.msra.mxu0 %v3074
  %3142 = vmatprep.subr.mxu0 0.0
  %3143 = vmatpush1.msra.mxu0 %v3075
  %3144 = vmatprep.subr.mxu0 0.0
  %3145 = vmatpush1.msra.mxu0 %v3076
  %3146 = vmatprep.subr.mxu0 0.0
  %3147 = vmatpush1.msra.mxu0 %v3077
  %3148 = vmatprep.subr.mxu0 0.0
  %3149 = vmatpush1.msra.mxu0 %v3078
  %3150 = vmatprep.subr.mxu0 0.0
  %3151 = vmatpush1.msra.mxu0 %v3079
  %3152 = vmatprep.subr.mxu0 0.0
  %3153 = vmatpush1.msra.mxu0 %v3080
  %3154 = vmatprep.subr.mxu0 0.0
  %3155 = vmatpush1.msra.mxu0 %v3081
  %3156 = vmatprep.subr.mxu0 0.0
  %3157 = vmatpush1.msra.mxu0 %v3082
  %3158 = vmatprep.subr.mxu0 0.0
  %3159 = vmatpush1.msra.mxu0 %v3083
  %3160 = vmatprep.subr.mxu0 0.0
  %3161 = vmatpush1.msra.mxu0 %v3084
  %3162 = vmatprep.subr.mxu0 0.0
  %3163 = vmatpush1.msra.mxu0 %v3085
  %3164 = vmatprep.subr.mxu0 0.0
  %3165 = vmatpush1.msra.mxu0 %v3086
  %3166 = vmatprep.subr.mxu0 0.0
  %3167 = vmatpush1.msra.mxu0 %v3087
  %3168 = vmatprep.subr.mxu0 0.0
  %3169 = vmatpush1.msra.mxu0 %v3088
  %3170 = vmatprep.subr.mxu0 0.0
  %3171 = vmatpush1.msra.mxu0 %v3089
  %3172 = vmatprep.subr.mxu0 0.0
  %3173 = vmatpush1.msra.mxu0 %v3090
  %3174 = vmatprep.subr.mxu0 0.0
  %3175 = vmatpush1.msra.mxu0 %v3091
  %3176 = vmatprep.subr.mxu0 0.0
  %3177 = vmatpush1.msra.mxu0 %v3092
  %3178 = vmatprep.subr.mxu0 0.0
  %3179 = vmatpush1.msra.mxu0 %v3093
  %3180 = vmatprep.subr.mxu0 0.0
  %3181 = vmatpush1.msra.mxu0 %v3094
  %3182 = vmatprep.subr.mxu0 0.0
  %3183 = vmatpush1.msra.mxu0 %v3095
  %3184 = vmatprep.subr.mxu0 0.0
  %3185 = vmatpush1.msra.mxu0 %v3096
  %3186 = vmatprep.subr.mxu0 0.0
  %3187 = vmatpush1.msra.mxu0 %v3097
  %3188 = vmatprep.subr.mxu0 0.0
  %3189 = vmatpush1.msra.mxu0 %v3098
  %3190 = vmatprep.subr.mxu0 0.0
  %3191 = vmatpush1.msra.mxu0 %v3099
  %3192 = vmatprep.subr.mxu0 0.0
  %3193 = vmatpush1.msra.mxu0 %v3100
  %3194 = vmatprep.subr.mxu0 0.0
  %3195 = vmatpush1.msra.mxu0 %v3101
  %3196 = vmatprep.subr.mxu0 0.0
  %3197 = vmatpush1.msra.mxu0 %v3102
  %3198 = vmatprep.subr.mxu0 0.0
  %3199 = vmatpush1.msra.mxu0 %v3103
  %3200 = vmatprep.mubr.f32.mxu0 1.0
  %3201 = vmatmul.mubr.f32.gmra.mrb[0].mxu0 1.0
  %v3202 = vpop.f32.mrb[0].mxu0
  %v3203 = vadd.f32 0.0, %v3202
  %v3204 = vpop.f32.mrb[0].mxu0
  %3205 = vdwg.mxu0
  %3206 = vmatprep.subr.mxu0 0.0
  %3207 = vmatpush1.msra.mxu0 %v3104
  %3208 = vmatprep.subr.mxu0 0.0
  %3209 = vmatpush1.msra.mxu0 %v3105
  %3210 = vmatprep.subr.mxu0 0.0
  %3211 = vmatpush1.msra.mxu0 %v3106
  %3212 = vmatprep.subr.mxu0 0.0
  %3213 = vmatpush1.msra.mxu0 %v3107
  %3214 = vmatprep.subr.mxu0 0.0
  %3215 = vmatpush1.msra.mxu0 %v3108
  %3216 = vmatprep.subr.mxu0 0.0
  %3217 = vmatpush1.msra.mxu0 %v3109
  %3218 = vmatprep.subr.mxu0 0.0
  %3219 = vmatpush1.msra.mxu0 %v3110
  %3220 = vmatprep.subr.mxu0 0.0
  %3221 = vmatpush1.msra.mxu0 %v3111
  %3222 = vmatprep.subr.mxu0 0.0
  %3223 = vmatpush1.msra.mxu0 %v3112
  %3224 = vmatprep.subr.mxu0 0.0
  %3225 = vmatpush1.msra.mxu0 %v3113
  %3226 = vmatprep.subr.mxu0 0.0
  %3227 = vmatpush1.msra.mxu0 %v3114
  %3228 = vmatprep.subr.mxu0 0.0
  %3229 = vmatpush1.msra.mxu0 %v3115
  %3230 = vmatprep.subr.mxu0 0.0
  %3231 = vmatpush1.msra.mxu0 %v3116
  %3232 = vmatprep.subr.mxu0 0.0
  %3233 = vmatpush1.msra.mxu0 %v3117
  %3234 = vmatprep.subr.mxu0 0.0
  %3235 = vmatpush1.msra.mxu0 %v3118
  %3236 = vmatprep.subr.mxu0 0.0
  %3237 = vmatpush1.msra.mxu0 %v3119
  %3238 = vmatprep.subr.mxu0 0.0
  %3239 = vmatpush1.msra.mxu0 %v3120
  %3240 = vmatprep.subr.mxu0 0.0
  %3241 = vmatpush1.msra.mxu0 %v3121
  %3242 = vmatprep.subr.mxu0 0.0
  %3243 = vmatpush1.msra.mxu0 %v3122
  %3244 = vmatprep.subr.mxu0 0.0
  %3245 = vmatpush1.msra.mxu0 %v3123
  %3246 = vmatprep.subr.mxu0 0.0
  %3247 = vmatpush1.msra.mxu0 %v3124
  %3248 = vmatprep.subr.mxu0 0.0
  %3249 = vmatpush1.msra.mxu0 %v3125
  %3250 = vmatprep.subr.mxu0 0.0
  %3251 = vmatpush1.msra.mxu0 %v3126
  %3252 = vmatprep.subr.mxu0 0.0
  %3253 = vmatpush1.msra.mxu0 %v3127
  %3254 = vmatprep.subr.mxu0 0.0
  %3255 = vmatpush1.msra.mxu0 %v3128
  %3256 = vmatprep.subr.mxu0 0.0
  %3257 = vmatpush1.msra.mxu0 %v3129
  %3258 = vmatprep.subr.mxu0 0.0
  %3259 = vmatpush1.msra.mxu0 %v3130
  %3260 = vmatprep.subr.mxu0 0.0
  %3261 = vmatpush1.msra.mxu0 %v3131
  %3262 = vmatprep.subr.mxu0 0.0
  %3263 = vmatpush1.msra.mxu0 %v3132
  %3264 = vmatprep.subr.mxu0 0.0
  %3265 = vmatpush1.msra.mxu0 %v3133
  %3266 = vmatprep.subr.mxu0 0.0
  %3267 = vmatpush1.msra.mxu0 %v3134
  %3268 = vmatprep.subr.mxu0 0.0
  %3269 = vmatpush1.msra.mxu0 %v3135
  %3270 = vmatprep.mubr.f32.mxu0 1.0
  %3271 = vmatmul.mubr.f32.gmra.mrb[0].mxu0 1.0
  %v3272 = vpop.f32.mrb[0].mxu0
  %v3273 = vadd.f32 %v3203, %v3272
  %v3274 = vpop.f32.mrb[0].mxu0
  %3275 = vdwg.mxu0
  %v3276 = vmul.f32 %v3273, 0.001953125
  %v3277 = vld [vmem:[%s2] sm:$0x1]
  %v3278 = vadd.f32 %v3276, 1e-05
  %v3279 = vrsqrt.pop %v3278
  %v3280 = vmul.f32 %v3277, %v3279
  %v3282 = vlaneseq
  %v3283 = vshrl.u32 %v3282, 7
  %v3284 = vsub.s32 0, %v3283
  %v3285 = vrot.slane %v3280, %v3284
  %v3287 = vmul.f32 %v3008, %v3285
  %v3288 = vmul.f32 %v3009, %v3285
  %v3289 = vmul.f32 %v3010, %v3285
  %v3290 = vmul.f32 %v3011, %v3285
  %v3291 = vmul.f32 %v3012, %v3285
  %v3292 = vmul.f32 %v3013, %v3285
  %v3293 = vmul.f32 %v3014, %v3285
  %v3294 = vmul.f32 %v3015, %v3285
  %v3295 = vmul.f32 %v3016, %v3285
  %v3296 = vmul.f32 %v3017, %v3285
  %v3297 = vmul.f32 %v3018, %v3285
  %v3298 = vmul.f32 %v3019, %v3285
  %v3299 = vmul.f32 %v3020, %v3285
  %v3300 = vmul.f32 %v3021, %v3285
  %v3301 = vmul.f32 %v3022, %v3285
  %v3302 = vmul.f32 %v3023, %v3285
  %v3303 = vmul.f32 %v3024, %v3285
  %v3304 = vmul.f32 %v3025, %v3285
  %v3305 = vmul.f32 %v3026, %v3285
  %v3306 = vmul.f32 %v3027, %v3285
  %v3307 = vmul.f32 %v3028, %v3285
  %v3308 = vmul.f32 %v3029, %v3285
  %v3309 = vmul.f32 %v3030, %v3285
  %v3310 = vmul.f32 %v3031, %v3285
  %v3311 = vmul.f32 %v3032, %v3285
  %v3312 = vmul.f32 %v3033, %v3285
  %v3313 = vmul.f32 %v3034, %v3285
  %v3314 = vmul.f32 %v3035, %v3285
  %v3315 = vmul.f32 %v3036, %v3285
  %v3316 = vmul.f32 %v3037, %v3285
  %v3317 = vmul.f32 %v3038, %v3285
  %v3318 = vmul.f32 %v3039, %v3285
  %v3319 = vmul.f32 %v3040, %v3285
  %v3320 = vmul.f32 %v3041, %v3285
  %v3321 = vmul.f32 %v3042, %v3285
  %v3322 = vmul.f32 %v3043, %v3285
  %v3323 = vmul.f32 %v3044, %v3285
  %v3324 = vmul.f32 %v3045, %v3285
  %v3325 = vmul.f32 %v3046, %v3285
  %v3326 = vmul.f32 %v3047, %v3285
  %v3327 = vmul.f32 %v3048, %v3285
  %v3328 = vmul.f32 %v3049, %v3285
  %v3329 = vmul.f32 %v3050, %v3285
  %v3330 = vmul.f32 %v3051, %v3285
  %v3331 = vmul.f32 %v3052, %v3285
  %v3332 = vmul.f32 %v3053, %v3285
  %v3333 = vmul.f32 %v3054, %v3285
  %v3334 = vmul.f32 %v3055, %v3285
  %v3335 = vmul.f32 %v3056, %v3285
  %v3336 = vmul.f32 %v3057, %v3285
  %v3337 = vmul.f32 %v3058, %v3285
  %v3338 = vmul.f32 %v3059, %v3285
  %v3339 = vmul.f32 %v3060, %v3285
  %v3340 = vmul.f32 %v3061, %v3285
  %v3341 = vmul.f32 %v3062, %v3285
  %v3342 = vmul.f32 %v3063, %v3285
  %v3343 = vmul.f32 %v3064, %v3285
  %v3344 = vmul.f32 %v3065, %v3285
  %v3345 = vmul.f32 %v3066, %v3285
  %v3346 = vmul.f32 %v3067, %v3285
  %v3347 = vmul.f32 %v3068, %v3285
  %v3348 = vmul.f32 %v3069, %v3285
  %v3349 = vmul.f32 %v3070, %v3285
  %v3350 = vmul.f32 %v3071, %v3285
  %v3351 = vld [vmem:[%s3] sm:$0x1]
  %v3353 = vlaneseq
  %v3354 = vshrl.u32 %v3353, 7
  %v3355 = vsub.s32 0, %v3354
  %v3356 = vrot.slane %v3351, %v3355
  %v3358 = vadd.f32 %v3287, %v3356
  %v3359 = vadd.f32 %v3288, %v3356
  %v3360 = vadd.f32 %v3289, %v3356
  %v3361 = vadd.f32 %v3290, %v3356
  %v3362 = vadd.f32 %v3291, %v3356
  %v3363 = vadd.f32 %v3292, %v3356
  %v3364 = vadd.f32 %v3293, %v3356
  %v3365 = vadd.f32 %v3294, %v3356
  %v3366 = vadd.f32 %v3295, %v3356
  %v3367 = vadd.f32 %v3296, %v3356
  %v3368 = vadd.f32 %v3297, %v3356
  %v3369 = vadd.f32 %v3298, %v3356
  %v3370 = vadd.f32 %v3299, %v3356
  %v3371 = vadd.f32 %v3300, %v3356
  %v3372 = vadd.f32 %v3301, %v3356
  %v3373 = vadd.f32 %v3302, %v3356
  %v3374 = vadd.f32 %v3303, %v3356
  %v3375 = vadd.f32 %v3304, %v3356
  %v3376 = vadd.f32 %v3305, %v3356
  %v3377 = vadd.f32 %v3306, %v3356
  %v3378 = vadd.f32 %v3307, %v3356
  %v3379 = vadd.f32 %v3308, %v3356
  %v3380 = vadd.f32 %v3309, %v3356
  %v3381 = vadd.f32 %v3310, %v3356
  %v3382 = vadd.f32 %v3311, %v3356
  %v3383 = vadd.f32 %v3312, %v3356
  %v3384 = vadd.f32 %v3313, %v3356
  %v3385 = vadd.f32 %v3314, %v3356
  %v3386 = vadd.f32 %v3315, %v3356
  %v3387 = vadd.f32 %v3316, %v3356
  %v3388 = vadd.f32 %v3317, %v3356
  %v3389 = vadd.f32 %v3318, %v3356
  %v3390 = vadd.f32 %v3319, %v3356
  %v3391 = vadd.f32 %v3320, %v3356
  %v3392 = vadd.f32 %v3321, %v3356
  %v3393 = vadd.f32 %v3322, %v3356
  %v3394 = vadd.f32 %v3323, %v3356
  %v3395 = vadd.f32 %v3324, %v3356
  %v3396 = vadd.f32 %v3325, %v3356
  %v3397 = vadd.f32 %v3326, %v3356
  %v3398 = vadd.f32 %v3327, %v3356
  %v3399 = vadd.f32 %v3328, %v3356
  %v3400 = vadd.f32 %v3329, %v3356
  %v3401 = vadd.f32 %v3330, %v3356
  %v3402 = vadd.f32 %v3331, %v3356
  %v3403 = vadd.f32 %v3332, %v3356
  %v3404 = vadd.f32 %v3333, %v3356
  %v3405 = vadd.f32 %v3334, %v3356
  %v3406 = vadd.f32 %v3335, %v3356
  %v3407 = vadd.f32 %v3336, %v3356
  %v3408 = vadd.f32 %v3337, %v3356
  %v3409 = vadd.f32 %v3338, %v3356
  %v3410 = vadd.f32 %v3339, %v3356
  %v3411 = vadd.f32 %v3340, %v3356
  %v3412 = vadd.f32 %v3341, %v3356
  %v3413 = vadd.f32 %v3342, %v3356
  %v3414 = vadd.f32 %v3343, %v3356
  %v3415 = vadd.f32 %v3344, %v3356
  %v3416 = vadd.f32 %v3345, %v3356
  %v3417 = vadd.f32 %v3346, %v3356
  %v3418 = vadd.f32 %v3347, %v3356
  %v3419 = vadd.f32 %v3348, %v3356
  %v3420 = vadd.f32 %v3349, %v3356
  %v3421 = vadd.f32 %v3350, %v3356
  %v3422 = vmax.f32 %v3358, 0.0
  %v3423 = vmax.f32 %v3359, 0.0
  %v3424 = vmax.f32 %v3360, 0.0
  %v3425 = vmax.f32 %v3361, 0.0
  %v3426 = vmax.f32 %v3362, 0.0
  %v3427 = vmax.f32 %v3363, 0.0
  %v3428 = vmax.f32 %v3364, 0.0
  %v3429 = vmax.f32 %v3365, 0.0
  %v3430 = vmax.f32 %v3366, 0.0
  %v3431 = vmax.f32 %v3367, 0.0
  %v3432 = vmax.f32 %v3368, 0.0
  %v3433 = vmax.f32 %v3369, 0.0
  %v3434 = vmax.f32 %v3370, 0.0
  %v3435 = vmax.f32 %v3371, 0.0
  %v3436 = vmax.f32 %v3372, 0.0
  %v3437 = vmax.f32 %v3373, 0.0
  %v3438 = vmax.f32 %v3374, 0.0
  %v3439 = vmax.f32 %v3375, 0.0
  %v3440 = vmax.f32 %v3376, 0.0
  %v3441 = vmax.f32 %v3377, 0.0
  %v3442 = vmax.f32 %v3378, 0.0
  %v3443 = vmax.f32 %v3379, 0.0
  %v3444 = vmax.f32 %v3380, 0.0
  %v3445 = vmax.f32 %v3381, 0.0
  %v3446 = vmax.f32 %v3382, 0.0
  %v3447 = vmax.f32 %v3383, 0.0
  %v3448 = vmax.f32 %v3384, 0.0
  %v3449 = vmax.f32 %v3385, 0.0
  %v3450 = vmax.f32 %v3386, 0.0
  %v3451 = vmax.f32 %v3387, 0.0
  %v3452 = vmax.f32 %v3388, 0.0
  %v3453 = vmax.f32 %v3389, 0.0
  %v3454 = vmax.f32 %v3390, 0.0
  %v3455 = vmax.f32 %v3391, 0.0
  %v3456 = vmax.f32 %v3392, 0.0
  %v3457 = vmax.f32 %v3393, 0.0
  %v3458 = vmax.f32 %v3394, 0.0
  %v3459 = vmax.f32 %v3395, 0.0
  %v3460 = vmax.f32 %v3396, 0.0
  %v3461 = vmax.f32 %v3397, 0.0
  %v3462 = vmax.f32 %v3398, 0.0
  %v3463 = vmax.f32 %v3399, 0.0
  %v3464 = vmax.f32 %v3400, 0.0
  %v3465 = vmax.f32 %v3401, 0.0
  %v3466 = vmax.f32 %v3402, 0.0
  %v3467 = vmax.f32 %v3403, 0.0
  %v3468 = vmax.f32 %v3404, 0.0
  %v3469 = vmax.f32 %v3405, 0.0
  %v3470 = vmax.f32 %v3406, 0.0
  %v3471 = vmax.f32 %v3407, 0.0
  %v3472 = vmax.f32 %v3408, 0.0
  %v3473 = vmax.f32 %v3409, 0.0
  %v3474 = vmax.f32 %v3410, 0.0
  %v3475 = vmax.f32 %v3411, 0.0
  %v3476 = vmax.f32 %v3412, 0.0
  %v3477 = vmax.f32 %v3413, 0.0
  %v3478 = vmax.f32 %v3414, 0.0
  %v3479 = vmax.f32 %v3415, 0.0
  %v3480 = vmax.f32 %v3416, 0.0
  %v3481 = vmax.f32 %v3417, 0.0
  %v3482 = vmax.f32 %v3418, 0.0
  %v3483 = vmax.f32 %v3419, 0.0
  %v3484 = vmax.f32 %v3420, 0.0
  %v3485 = vmax.f32 %v3421, 0.0
  %3486 = vst.msk [vmem:[%s42 + $0x1] sm:$0xff] %vm27, %v3422
  %3487 = vst.msk [vmem:[%s42 + $0x9] sm:$0xff] %vm27, %v3423
  %3488 = vst.msk [vmem:[%s42 + $0x19] sm:$0xff] %vm27, %v3424
  %3489 = vst.msk [vmem:[%s42 + $0x21] sm:$0xff] %vm27, %v3425
  %3490 = vst.msk [vmem:[%s42 + $0x31] sm:$0xff] %vm27, %v3426
  %3491 = vst.msk [vmem:[%s42 + $0x39] sm:$0xff] %vm27, %v3427
  %3492 = vst.msk [vmem:[%s42 + $0x49] sm:$0xff] %vm27, %v3428
  %3493 = vst.msk [vmem:[%s42 + $0x51] sm:$0xff] %vm27, %v3429
  %3494 = vst.msk [vmem:[%s42 + $0x61] sm:$0xff] %vm27, %v3430
  %3495 = vst.msk [vmem:[%s42 + $0x69] sm:$0xff] %vm27, %v3431
  %3496 = vst.msk [vmem:[%s42 + $0x79] sm:$0xff] %vm27, %v3432
  %3497 = vst.msk [vmem:[%s42 + $0x81] sm:$0xff] %vm27, %v3433
  %3498 = vst.msk [vmem:[%s42 + $0x91] sm:$0xff] %vm27, %v3434
  %3499 = vst.msk [vmem:[%s42 + $0x99] sm:$0xff] %vm27, %v3435
  %3500 = vst.msk [vmem:[%s42 + $0xa9] sm:$0xff] %vm27, %v3436
  %3501 = vst.msk [vmem:[%s42 + $0xb1] sm:$0xff] %vm27, %v3437
  %3502 = vst.msk [vmem:[%s42 + $0xc1] sm:$0xff] %vm27, %v3438
  %3503 = vst.msk [vmem:[%s42 + $0xc9] sm:$0xff] %vm27, %v3439
  %3504 = vst.msk [vmem:[%s42 + $0xd9] sm:$0xff] %vm27, %v3440
  %3505 = vst.msk [vmem:[%s42 + $0xe1] sm:$0xff] %vm27, %v3441
  %3506 = vst.msk [vmem:[%s42 + $0xf1] sm:$0xff] %vm27, %v3442
  %3507 = vst.msk [vmem:[%s42 + $0xf9] sm:$0xff] %vm27, %v3443
  %3508 = vst.msk [vmem:[%s42 + $0x109] sm:$0xff] %vm27, %v3444
  %3509 = vst.msk [vmem:[%s42 + $0x111] sm:$0xff] %vm27, %v3445
  %3510 = vst.msk [vmem:[%s42 + $0x121] sm:$0xff] %vm27, %v3446
  %3511 = vst.msk [vmem:[%s42 + $0x129] sm:$0xff] %vm27, %v3447
  %3512 = vst.msk [vmem:[%s42 + $0x139] sm:$0xff] %vm27, %v3448
  %3513 = vst.msk [vmem:[%s42 + $0x141] sm:$0xff] %vm27, %v3449
  %3514 = vst.msk [vmem:[%s42 + $0x151] sm:$0xff] %vm27, %v3450
  %3515 = vst.msk [vmem:[%s42 + $0x159] sm:$0xff] %vm27, %v3451
  %3516 = vst.msk [vmem:[%s42 + $0x169] sm:$0xff] %vm27, %v3452
  %3517 = vst.msk [vmem:[%s42 + $0x171] sm:$0xff] %vm27, %v3453
  %3518 = vst.msk [vmem:[%s42 + $0x1b1] sm:$0xff] %vm27, %v3454
  %3519 = vst.msk [vmem:[%s42 + $0x1b9] sm:$0xff] %vm27, %v3455
  %3520 = vst.msk [vmem:[%s42 + $0x1c9] sm:$0xff] %vm27, %v3456
  %3521 = vst.msk [vmem:[%s42 + $0x1d1] sm:$0xff] %vm27, %v3457
  %3522 = vst.msk [vmem:[%s42 + $0x1e1] sm:$0xff] %vm27, %v3458
  %3523 = vst.msk [vmem:[%s42 + $0x1e9] sm:$0xff] %vm27, %v3459
  %3524 = vst.msk [vmem:[%s42 + $0x1f9] sm:$0xff] %vm27, %v3460
  %3525 = vst.msk [vmem:[%s42 + $0x201] sm:$0xff] %vm27, %v3461
  %3526 = vst.msk [vmem:[%s42 + $0x211] sm:$0xff] %vm27, %v3462
  %3527 = vst.msk [vmem:[%s42 + $0x219] sm:$0xff] %vm27, %v3463
  %3528 = vst.msk [vmem:[%s42 + $0x229] sm:$0xff] %vm27, %v3464
  %3529 = vst.msk [vmem:[%s42 + $0x231] sm:$0xff] %vm27, %v3465
  %3530 = vst.msk [vmem:[%s42 + $0x241] sm:$0xff] %vm27, %v3466
  %3531 = vst.msk [vmem:[%s42 + $0x249] sm:$0xff] %vm27, %v3467
  %3532 = vst.msk [vmem:[%s42 + $0x259] sm:$0xff] %vm27, %v3468
  %3533 = vst.msk [vmem:[%s42 + $0x261] sm:$0xff] %vm27, %v3469
  %3534 = vst.msk [vmem:[%s42 + $0x271] sm:$0xff] %vm27, %v3470
  %3535 = vst.msk [vmem:[%s42 + $0x279] sm:$0xff] %vm27, %v3471
  %3536 = vst.msk [vmem:[%s42 + $0x289] sm:$0xff] %vm27, %v3472
  %3537 = vst.msk [vmem:[%s42 + $0x291] sm:$0xff] %vm27, %v3473
  %3538 = vst.msk [vmem:[%s42 + $0x2a1] sm:$0xff] %vm27, %v3474
  %3539 = vst.msk [vmem:[%s42 + $0x2a9] sm:$0xff] %vm27, %v3475
  %3540 = vst.msk [vmem:[%s42 + $0x2b9] sm:$0xff] %vm27, %v3476
  %3541 = vst.msk [vmem:[%s42 + $0x2c1] sm:$0xff] %vm27, %v3477
  %3542 = vst.msk [vmem:[%s42 + $0x2d1] sm:$0xff] %vm27, %v3478
  %3543 = vst.msk [vmem:[%s42 + $0x2d9] sm:$0xff] %vm27, %v3479
  %3544 = vst.msk [vmem:[%s42 + $0x2e9] sm:$0xff] %vm27, %v3480
  %3545 = vst.msk [vmem:[%s42 + $0x2f1] sm:$0xff] %vm27, %v3481
  %3546 = vst.msk [vmem:[%s42 + $0x301] sm:$0xff] %vm27, %v3482
  %3547 = vst.msk [vmem:[%s42 + $0x309] sm:$0xff] %vm27, %v3483
  %3548 = vst.msk [vmem:[%s42 + $0x319] sm:$0xff] %vm27, %v3484
  %3549 = vst.msk [vmem:[%s42 + $0x321] sm:$0xff] %vm27, %v3485
  %v3550 = vld [vmem:[%s0] sm:$0xff]
  %v3551 = vld [vmem:[%s0 + $0x8] sm:$0xff]
  %v3552 = vld [vmem:[%s0 + $0x10] sm:$0xff]
  %v3553 = vld [vmem:[%s0 + $0x18] sm:$0xff]
  %v3554 = vld [vmem:[%s0 + $0x20] sm:$0xff]
  %v3555 = vld [vmem:[%s0 + $0x28] sm:$0xff]
  %v3556 = vld [vmem:[%s0 + $0x30] sm:$0xff]
  %v3557 = vld [vmem:[%s0 + $0x38] sm:$0xff]
  %v3558 = vld [vmem:[%s0 + $0x40] sm:$0xff]
  %v3559 = vld [vmem:[%s0 + $0x48] sm:$0xff]
  %v3560 = vld [vmem:[%s0 + $0x50] sm:$0xff]
  %v3561 = vld [vmem:[%s0 + $0x58] sm:$0xff]
  %v3562 = vld [vmem:[%s0 + $0x60] sm:$0xff]
  %v3563 = vld [vmem:[%s0 + $0x68] sm:$0xff]
  %v3564 = vld [vmem:[%s0 + $0x70] sm:$0xff]
  %v3565 = vld [vmem:[%s0 + $0x78] sm:$0xff]
  %v3566 = vld [vmem:[%s0 + $0x80] sm:$0xff]
  %v3567 = vld [vmem:[%s0 + $0x88] sm:$0xff]
  %v3568 = vld [vmem:[%s0 + $0x90] sm:$0xff]
  %v3569 = vld [vmem:[%s0 + $0x98] sm:$0xff]
  %v3570 = vld [vmem:[%s0 + $0xa0] sm:$0xff]
  %v3571 = vld [vmem:[%s0 + $0xa8] sm:$0xff]
  %v3572 = vld [vmem:[%s0 + $0xb0] sm:$0xff]
  %v3573 = vld [vmem:[%s0 + $0xb8] sm:$0xff]
  %v3574 = vld [vmem:[%s0 + $0xc0] sm:$0xff]
  %v3575 = vld [vmem:[%s0 + $0xc8] sm:$0xff]
  %v3576 = vld [vmem:[%s0 + $0xd0] sm:$0xff]
  %v3577 = vld [vmem:[%s0 + $0xd8] sm:$0xff]
  %v3578 = vld [vmem:[%s0 + $0xe0] sm:$0xff]
  %v3579 = vld [vmem:[%s0 + $0xe8] sm:$0xff]
  %v3580 = vld [vmem:[%s0 + $0xf0] sm:$0xff]
  %v3581 = vld [vmem:[%s0 + $0xf8] sm:$0xff]
  %v3582 = vld [vmem:[%s0 + $0x100] sm:$0xff]
  %v3583 = vld [vmem:[%s0 + $0x108] sm:$0xff]
  %v3584 = vld [vmem:[%s0 + $0x110] sm:$0xff]
  %v3585 = vld [vmem:[%s0 + $0x118] sm:$0xff]
  %v3586 = vld [vmem:[%s0 + $0x120] sm:$0xff]
  %v3587 = vld [vmem:[%s0 + $0x128] sm:$0xff]
  %v3588 = vld [vmem:[%s0 + $0x130] sm:$0xff]
  %v3589 = vld [vmem:[%s0 + $0x138] sm:$0xff]
  %v3590 = vld [vmem:[%s0 + $0x140] sm:$0xff]
  %v3591 = vld [vmem:[%s0 + $0x148] sm:$0xff]
  %v3592 = vld [vmem:[%s0 + $0x150] sm:$0xff]
  %v3593 = vld [vmem:[%s0 + $0x158] sm:$0xff]
  %v3594 = vld [vmem:[%s0 + $0x160] sm:$0xff]
  %v3595 = vld [vmem:[%s0 + $0x168] sm:$0xff]
  %v3596 = vld [vmem:[%s0 + $0x170] sm:$0xff]
  %v3597 = vld [vmem:[%s0 + $0x178] sm:$0xff]
  %v3598 = vld [vmem:[%s0 + $0x180] sm:$0xff]
  %v3599 = vld [vmem:[%s0 + $0x188] sm:$0xff]
  %v3600 = vld [vmem:[%s0 + $0x190] sm:$0xff]
  %v3601 = vld [vmem:[%s0 + $0x198] sm:$0xff]
  %v3602 = vld [vmem:[%s0 + $0x1a0] sm:$0xff]
  %v3603 = vld [vmem:[%s0 + $0x1a8] sm:$0xff]
  %v3604 = vld [vmem:[%s0 + $0x1b0] sm:$0xff]
  %v3605 = vld [vmem:[%s0 + $0x1b8] sm:$0xff]
  %v3606 = vld [vmem:[%s0 + $0x1c0] sm:$0xff]
  %v3607 = vld [vmem:[%s0 + $0x1c8] sm:$0xff]
  %v3608 = vld [vmem:[%s0 + $0x1d0] sm:$0xff]
  %v3609 = vld [vmem:[%s0 + $0x1d8] sm:$0xff]
  %v3610 = vld [vmem:[%s0 + $0x1e0] sm:$0xff]
  %v3611 = vld [vmem:[%s0 + $0x1e8] sm:$0xff]
  %v3612 = vld [vmem:[%s0 + $0x1f0] sm:$0xff]
  %v3613 = vld [vmem:[%s0 + $0x1f8] sm:$0xff]
  %v3614 = vld [vmem:[#allocation2] sm:$0xff]
  %v3615 = vld [vmem:[#allocation2 + $0x8] sm:$0xff]
  %v3616 = vld [vmem:[#allocation2 + $0x18] sm:$0xff]
  %v3617 = vld [vmem:[#allocation2 + $0x20] sm:$0xff]
  %v3618 = vld [vmem:[#allocation2 + $0x30] sm:$0xff]
  %v3619 = vld [vmem:[#allocation2 + $0x38] sm:$0xff]
  %v3620 = vld [vmem:[#allocation2 + $0x48] sm:$0xff]
  %v3621 = vld [vmem:[#allocation2 + $0x50] sm:$0xff]
  %v3622 = vld [vmem:[#allocation2 + $0x60] sm:$0xff]
  %v3623 = vld [vmem:[#allocation2 + $0x68] sm:$0xff]
  %v3624 = vld [vmem:[#allocation2 + $0x78] sm:$0xff]
  %v3625 = vld [vmem:[#allocation2 + $0x80] sm:$0xff]
  %v3626 = vld [vmem:[#allocation2 + $0x90] sm:$0xff]
  %v3627 = vld [vmem:[#allocation2 + $0x98] sm:$0xff]
  %v3628 = vld [vmem:[#allocation2 + $0xa8] sm:$0xff]
  %v3629 = vld [vmem:[#allocation2 + $0xb0] sm:$0xff]
  %v3630 = vld [vmem:[#allocation2 + $0xc0] sm:$0xff]
  %v3631 = vld [vmem:[#allocation2 + $0xc8] sm:$0xff]
  %v3632 = vld [vmem:[#allocation2 + $0xd8] sm:$0xff]
  %v3633 = vld [vmem:[#allocation2 + $0xe0] sm:$0xff]
  %v3634 = vld [vmem:[#allocation2 + $0xf0] sm:$0xff]
  %v3635 = vld [vmem:[#allocation2 + $0xf8] sm:$0xff]
  %v3636 = vld [vmem:[#allocation2 + $0x108] sm:$0xff]
  %v3637 = vld [vmem:[#allocation2 + $0x110] sm:$0xff]
  %v3638 = vld [vmem:[#allocation2 + $0x120] sm:$0xff]
  %v3639 = vld [vmem:[#allocation2 + $0x128] sm:$0xff]
  %v3640 = vld [vmem:[#allocation2 + $0x138] sm:$0xff]
  %v3641 = vld [vmem:[#allocation2 + $0x140] sm:$0xff]
  %v3642 = vld [vmem:[#allocation2 + $0x150] sm:$0xff]
  %v3643 = vld [vmem:[#allocation2 + $0x158] sm:$0xff]
  %v3644 = vld [vmem:[#allocation2 + $0x168] sm:$0xff]
  %v3645 = vld [vmem:[#allocation2 + $0x170] sm:$0xff]
  %v3646 = vld [vmem:[#allocation2 + $0x1b0] sm:$0xff]
  %v3647 = vld [vmem:[#allocation2 + $0x1b8] sm:$0xff]
  %v3648 = vld [vmem:[#allocation2 + $0x1c8] sm:$0xff]
  %v3649 = vld [vmem:[#allocation2 + $0x1d0] sm:$0xff]
  %v3650 = vld [vmem:[#allocation2 + $0x1e0] sm:$0xff]
  %v3651 = vld [vmem:[#allocation2 + $0x1e8] sm:$0xff]
  %v3652 = vld [vmem:[#allocation2 + $0x1f8] sm:$0xff]
  %v3653 = vld [vmem:[#allocation2 + $0x200] sm:$0xff]
  %v3654 = vld [vmem:[#allocation2 + $0x210] sm:$0xff]
  %v3655 = vld [vmem:[#allocation2 + $0x218] sm:$0xff]
  %v3656 = vld [vmem:[#allocation2 + $0x228] sm:$0xff]
  %v3657 = vld [vmem:[#allocation2 + $0x230] sm:$0xff]
  %v3658 = vld [vmem:[#allocation2 + $0x240] sm:$0xff]
  %v3659 = vld [vmem:[#allocation2 + $0x248] sm:$0xff]
  %v3660 = vld [vmem:[#allocation2 + $0x258] sm:$0xff]
  %v3661 = vld [vmem:[#allocation2 + $0x260] sm:$0xff]
  %v3662 = vld [vmem:[#allocation2 + $0x270] sm:$0xff]
  %v3663 = vld [vmem:[#allocation2 + $0x278] sm:$0xff]
  %v3664 = vld [vmem:[#allocation2 + $0x288] sm:$0xff]
  %v3665 = vld [vmem:[#allocation2 + $0x290] sm:$0xff]
  %v3666 = vld [vmem:[#allocation2 + $0x2a0] sm:$0xff]
  %v3667 = vld [vmem:[#allocation2 + $0x2a8] sm:$0xff]
  %v3668 = vld [vmem:[#allocation2 + $0x2b8] sm:$0xff]
  %v3669 = vld [vmem:[#allocation2 + $0x2c0] sm:$0xff]
  %v3670 = vld [vmem:[#allocation2 + $0x2d0] sm:$0xff]
  %v3671 = vld [vmem:[#allocation2 + $0x2d8] sm:$0xff]
  %v3672 = vld [vmem:[#allocation2 + $0x2e8] sm:$0xff]
  %v3673 = vld [vmem:[#allocation2 + $0x2f0] sm:$0xff]
  %v3674 = vld [vmem:[#allocation2 + $0x300] sm:$0xff]
  %v3675 = vld [vmem:[#allocation2 + $0x308] sm:$0xff]
  %v3676 = vld [vmem:[#allocation2 + $0x318] sm:$0xff]
  %v3677 = vld [vmem:[#allocation2 + $0x320] sm:$0xff]
  %v3678 = vpack.c.bf16 %v3615, %v3614
  %v3679 = vpack.c.bf16 %v3617, %v3616
  %v3680 = vpack.c.bf16 %v3619, %v3618
  %v3681 = vpack.c.bf16 %v3621, %v3620
  %v3682 = vpack.c.bf16 %v3623, %v3622
  %v3683 = vpack.c.bf16 %v3625, %v3624
  %v3684 = vpack.c.bf16 %v3627, %v3626
  %v3685 = vpack.c.bf16 %v3629, %v3628
  %v3686 = vpack.c.bf16 %v3631, %v3630
  %v3687 = vpack.c.bf16 %v3633, %v3632
  %v3688 = vpack.c.bf16 %v3635, %v3634
  %v3689 = vpack.c.bf16 %v3637, %v3636
  %v3690 = vpack.c.bf16 %v3639, %v3638
  %v3691 = vpack.c.bf16 %v3641, %v3640
  %v3692 = vpack.c.bf16 %v3643, %v3642
  %v3693 = vpack.c.bf16 %v3645, %v3644
  %v3694 = vpack.c.bf16 %v3647, %v3646
  %v3695 = vpack.c.bf16 %v3649, %v3648
  %v3696 = vpack.c.bf16 %v3651, %v3650
  %v3697 = vpack.c.bf16 %v3653, %v3652
  %v3698 = vpack.c.bf16 %v3655, %v3654
  %v3699 = vpack.c.bf16 %v3657, %v3656
  %v3700 = vpack.c.bf16 %v3659, %v3658
  %v3701 = vpack.c.bf16 %v3661, %v3660
  %v3702 = vpack.c.bf16 %v3663, %v3662
  %v3703 = vpack.c.bf16 %v3665, %v3664
  %v3704 = vpack.c.bf16 %v3667, %v3666
  %v3705 = vpack.c.bf16 %v3669, %v3668
  %v3706 = vpack.c.bf16 %v3671, %v3670
  %v3707 = vpack.c.bf16 %v3673, %v3672
  %v3708 = vpack.c.bf16 %v3675, %v3674
  %v3709 = vpack.c.bf16 %v3677, %v3676
  %3710 = vst.msk [vmem:[#allocation3] sm:$0xff] %vm27, %v3678
  %3711 = vst.msk [vmem:[#allocation3 + $0x8] sm:$0xff] %vm27, %v3679
  %3712 = vst.msk [vmem:[#allocation3 + $0x10] sm:$0xff] %vm27, %v3680
  %3713 = vst.msk [vmem:[#allocation3 + $0x18] sm:$0xff] %vm27, %v3681
  %3714 = vst.msk [vmem:[#allocation3 + $0x20] sm:$0xff] %vm27, %v3682
  %3715 = vst.msk [vmem:[#allocation3 + $0x28] sm:$0xff] %vm27, %v3683
  %3716 = vst.msk [vmem:[#allocation3 + $0x30] sm:$0xff] %vm27, %v3684
  %3717 = vst.msk [vmem:[#allocation3 + $0x38] sm:$0xff] %vm27, %v3685
  %3718 = vst.msk [vmem:[#allocation3 + $0x40] sm:$0xff] %vm27, %v3686
  %3719 = vst.msk [vmem:[#allocation3 + $0x48] sm:$0xff] %vm27, %v3687
  %3720 = vst.msk [vmem:[#allocation3 + $0x50] sm:$0xff] %vm27, %v3688
  %3721 = vst.msk [vmem:[#allocation3 + $0x58] sm:$0xff] %vm27, %v3689
  %3722 = vst.msk [vmem:[#allocation3 + $0x60] sm:$0xff] %vm27, %v3690
  %3723 = vst.msk [vmem:[#allocation3 + $0x68] sm:$0xff] %vm27, %v3691
  %3724 = vst.msk [vmem:[#allocation3 + $0x70] sm:$0xff] %vm27, %v3692
  %3725 = vst.msk [vmem:[#allocation3 + $0x78] sm:$0xff] %vm27, %v3693
  %3726 = vst.msk [vmem:[#allocation3 + $0x80] sm:$0xff] %vm27, %v3694
  %3727 = vst.msk [vmem:[#allocation3 + $0x88] sm:$0xff] %vm27, %v3695
  %3728 = vst.msk [vmem:[#allocation3 + $0x90] sm:$0xff] %vm27, %v3696
  %3729 = vst.msk [vmem:[#allocation3 + $0x98] sm:$0xff] %vm27, %v3697
  %3730 = vst.msk [vmem:[#allocation3 + $0xa0] sm:$0xff] %vm27, %v3698
  %3731 = vst.msk [vmem:[#allocation3 + $0xa8] sm:$0xff] %vm27, %v3699
  %3732 = vst.msk [vmem:[#allocation3 + $0xb0] sm:$0xff] %vm27, %v3700
  %3733 = vst.msk [vmem:[#allocation3 + $0xb8] sm:$0xff] %vm27, %v3701
  %3734 = vst.msk [vmem:[#allocation3 + $0xc0] sm:$0xff] %vm27, %v3702
  %3735 = vst.msk [vmem:[#allocation3 + $0xc8] sm:$0xff] %vm27, %v3703
  %3736 = vst.msk [vmem:[#allocation3 + $0xd0] sm:$0xff] %vm27, %v3704
  %3737 = vst.msk [vmem:[#allocation3 + $0xd8] sm:$0xff] %vm27, %v3705
  %3738 = vst.msk [vmem:[#allocation3 + $0xe0] sm:$0xff] %vm27, %v3706
  %3739 = vst.msk [vmem:[#allocation3 + $0xe8] sm:$0xff] %vm27, %v3707
  %3740 = vst.msk [vmem:[#allocation3 + $0xf0] sm:$0xff] %vm27, %v3708
  %3741 = vst.msk [vmem:[#allocation3 + $0xf8] sm:$0xff] %vm27, %v3709
  %v3742 = vld [vmem:[#allocation2 + $0x1] sm:$0xff]
  %v3743 = vld [vmem:[#allocation2 + $0x9] sm:$0xff]
  %v3744 = vld [vmem:[#allocation2 + $0x19] sm:$0xff]
  %v3745 = vld [vmem:[#allocation2 + $0x21] sm:$0xff]
  %v3746 = vld [vmem:[#allocation2 + $0x31] sm:$0xff]
  %v3747 = vld [vmem:[#allocation2 + $0x39] sm:$0xff]
  %v3748 = vld [vmem:[#allocation2 + $0x49] sm:$0xff]
  %v3749 = vld [vmem:[#allocation2 + $0x51] sm:$0xff]
  %v3750 = vld [vmem:[#allocation2 + $0x61] sm:$0xff]
  %v3751 = vld [vmem:[#allocation2 + $0x69] sm:$0xff]
  %v3752 = vld [vmem:[#allocation2 + $0x79] sm:$0xff]
  %v3753 = vld [vmem:[#allocation2 + $0x81] sm:$0xff]
  %v3754 = vld [vmem:[#allocation2 + $0x91] sm:$0xff]
  %v3755 = vld [vmem:[#allocation2 + $0x99] sm:$0xff]
  %v3756 = vld [vmem:[#allocation2 + $0xa9] sm:$0xff]
  %v3757 = vld [vmem:[#allocation2 + $0xb1] sm:$0xff]
  %v3758 = vld [vmem:[#allocation2 + $0xc1] sm:$0xff]
  %v3759 = vld [vmem:[#allocation2 + $0xc9] sm:$0xff]
  %v3760 = vld [vmem:[#allocation2 + $0xd9] sm:$0xff]
  %v3761 = vld [vmem:[#allocation2 + $0xe1] sm:$0xff]
  %v3762 = vld [vmem:[#allocation2 + $0xf1] sm:$0xff]
  %v3763 = vld [vmem:[#allocation2 + $0xf9] sm:$0xff]
  %v3764 = vld [vmem:[#allocation2 + $0x109] sm:$0xff]
  %v3765 = vld [vmem:[#allocation2 + $0x111] sm:$0xff]
  %v3766 = vld [vmem:[#allocation2 + $0x121] sm:$0xff]
  %v3767 = vld [vmem:[#allocation2 + $0x129] sm:$0xff]
  %v3768 = vld [vmem:[#allocation2 + $0x139] sm:$0xff]
  %v3769 = vld [vmem:[#allocation2 + $0x141] sm:$0xff]
  %v3770 = vld [vmem:[#allocation2 + $0x151] sm:$0xff]
  %v3771 = vld [vmem:[#allocation2 + $0x159] sm:$0xff]
  %v3772 = vld [vmem:[#allocation2 + $0x169] sm:$0xff]
  %v3773 = vld [vmem:[#allocation2 + $0x171] sm:$0xff]
  %v3774 = vld [vmem:[#allocation2 + $0x1b1] sm:$0xff]
  %v3775 = vld [vmem:[#allocation2 + $0x1b9] sm:$0xff]
  %v3776 = vld [vmem:[#allocation2 + $0x1c9] sm:$0xff]
  %v3777 = vld [vmem:[#allocation2 + $0x1d1] sm:$0xff]
  %v3778 = vld [vmem:[#allocation2 + $0x1e1] sm:$0xff]
  %v3779 = vld [vmem:[#allocation2 + $0x1e9] sm:$0xff]
  %v3780 = vld [vmem:[#allocation2 + $0x1f9] sm:$0xff]
  %v3781 = vld [vmem:[#allocation2 + $0x201] sm:$0xff]
  %v3782 = vld [vmem:[#allocation2 + $0x211] sm:$0xff]
  %v3783 = vld [vmem:[#allocation2 + $0x219] sm:$0xff]
  %v3784 = vld [vmem:[#allocation2 + $0x229] sm:$0xff]
  %v3785 = vld [vmem:[#allocation2 + $0x231] sm:$0xff]
  %v3786 = vld [vmem:[#allocation2 + $0x241] sm:$0xff]
  %v3787 = vld [vmem:[#allocation2 + $0x249] sm:$0xff]
  %v3788 = vld [vmem:[#allocation2 + $0x259] sm:$0xff]
  %v3789 = vld [vmem:[#allocation2 + $0x261] sm:$0xff]
  %v3790 = vld [vmem:[#allocation2 + $0x271] sm:$0xff]
  %v3791 = vld [vmem:[#allocation2 + $0x279] sm:$0xff]
  %v3792 = vld [vmem:[#allocation2 + $0x289] sm:$0xff]
  %v3793 = vld [vmem:[#allocation2 + $0x291] sm:$0xff]
  %v3794 = vld [vmem:[#allocation2 + $0x2a1] sm:$0xff]
  %v3795 = vld [vmem:[#allocation2 + $0x2a9] sm:$0xff]
  %v3796 = vld [vmem:[#allocation2 + $0x2b9] sm:$0xff]
  %v3797 = vld [vmem:[#allocation2 + $0x2c1] sm:$0xff]
  %v3798 = vld [vmem:[#allocation2 + $0x2d1] sm:$0xff]
  %v3799 = vld [vmem:[#allocation2 + $0x2d9] sm:$0xff]
  %v3800 = vld [vmem:[#allocation2 + $0x2e9] sm:$0xff]
  %v3801 = vld [vmem:[#allocation2 + $0x2f1] sm:$0xff]
  %v3802 = vld [vmem:[#allocation2 + $0x301] sm:$0xff]
  %v3803 = vld [vmem:[#allocation2 + $0x309] sm:$0xff]
  %v3804 = vld [vmem:[#allocation2 + $0x319] sm:$0xff]
  %v3805 = vld [vmem:[#allocation2 + $0x321] sm:$0xff]
  %v3806 = vpack.c.bf16 %v3743, %v3742
  %v3807 = vpack.c.bf16 %v3745, %v3744
  %v3808 = vpack.c.bf16 %v3747, %v3746
  %v3809 = vpack.c.bf16 %v3749, %v3748
  %v3810 = vpack.c.bf16 %v3751, %v3750
  %v3811 = vpack.c.bf16 %v3753, %v3752
  %v3812 = vpack.c.bf16 %v3755, %v3754
  %v3813 = vpack.c.bf16 %v3757, %v3756
  %v3814 = vpack.c.bf16 %v3759, %v3758
  %v3815 = vpack.c.bf16 %v3761, %v3760
  %v3816 = vpack.c.bf16 %v3763, %v3762
  %v3817 = vpack.c.bf16 %v3765, %v3764
  %v3818 = vpack.c.bf16 %v3767, %v3766
  %v3819 = vpack.c.bf16 %v3769, %v3768
  %v3820 = vpack.c.bf16 %v3771, %v3770
  %v3821 = vpack.c.bf16 %v3773, %v3772
  %v3822 = vpack.c.bf16 %v3775, %v3774
  %v3823 = vpack.c.bf16 %v3777, %v3776
  %v3824 = vpack.c.bf16 %v3779, %v3778
  %v3825 = vpack.c.bf16 %v3781, %v3780
  %v3826 = vpack.c.bf16 %v3783, %v3782
  %v3827 = vpack.c.bf16 %v3785, %v3784
  %v3828 = vpack.c.bf16 %v3787, %v3786
  %v3829 = vpack.c.bf16 %v3789, %v3788
  %v3830 = vpack.c.bf16 %v3791, %v3790
  %v3831 = vpack.c.bf16 %v3793, %v3792
  %v3832 = vpack.c.bf16 %v3795, %v3794
  %v3833 = vpack.c.bf16 %v3797, %v3796
  %v3834 = vpack.c.bf16 %v3799, %v3798
  %v3835 = vpack.c.bf16 %v3801, %v3800
  %v3836 = vpack.c.bf16 %v3803, %v3802
  %v3837 = vpack.c.bf16 %v3805, %v3804
  %3870 = vrot.lane.b32.xlu0 %v3806, 4
  %v3871 = vpop.permute.xlu0 %3870
  %3872 = vrot.lane.b32.xlu0 %v3807, 4
  %v3873 = vpop.permute.xlu0 %3872
  %3874 = vrot.lane.b32.xlu0 %v3808, 4
  %v3875 = vpop.permute.xlu0 %3874
  %3876 = vrot.lane.b32.xlu0 %v3809, 4
  %v3877 = vpop.permute.xlu0 %3876
  %3878 = vrot.lane.b32.xlu0 %v3810, 4
  %v3879 = vpop.permute.xlu0 %3878
  %3880 = vrot.lane.b32.xlu0 %v3811, 4
  %v3881 = vpop.permute.xlu0 %3880
  %3882 = vrot.lane.b32.xlu0 %v3812, 4
  %v3883 = vpop.permute.xlu0 %3882
  %3884 = vrot.lane.b32.xlu0 %v3813, 4
  %v3885 = vpop.permute.xlu0 %3884
  %3886 = vrot.lane.b32.xlu0 %v3814, 4
  %v3887 = vpop.permute.xlu0 %3886
  %3888 = vrot.lane.b32.xlu0 %v3815, 4
  %v3889 = vpop.permute.xlu0 %3888
  %3890 = vrot.lane.b32.xlu0 %v3816, 4
  %v3891 = vpop.permute.xlu0 %3890
  %3892 = vrot.lane.b32.xlu0 %v3817, 4
  %v3893 = vpop.permute.xlu0 %3892
  %3894 = vrot.lane.b32.xlu0 %v3818, 4
  %v3895 = vpop.permute.xlu0 %3894
  %3896 = vrot.lane.b32.xlu0 %v3819, 4
  %v3897 = vpop.permute.xlu0 %3896
  %3898 = vrot.lane.b32.xlu0 %v3820, 4
  %v3899 = vpop.permute.xlu0 %3898
  %3900 = vrot.lane.b32.xlu0 %v3821, 4
  %v3901 = vpop.permute.xlu0 %3900
  %3902 = vrot.lane.b32.xlu0 %v3822, 4
  %v3903 = vpop.permute.xlu0 %3902
  %3904 = vrot.lane.b32.xlu0 %v3823, 4
  %v3905 = vpop.permute.xlu0 %3904
  %3906 = vrot.lane.b32.xlu0 %v3824, 4
  %v3907 = vpop.permute.xlu0 %3906
  %3908 = vrot.lane.b32.xlu0 %v3825, 4
  %v3909 = vpop.permute.xlu0 %3908
  %3910 = vrot.lane.b32.xlu0 %v3826, 4
  %v3911 = vpop.permute.xlu0 %3910
  %3912 = vrot.lane.b32.xlu0 %v3827, 4
  %v3913 = vpop.permute.xlu0 %3912
  %3914 = vrot.lane.b32.xlu0 %v3828, 4
  %v3915 = vpop.permute.xlu0 %3914
  %3916 = vrot.lane.b32.xlu0 %v3829, 4
  %v3917 = vpop.permute.xlu0 %3916
  %3918 = vrot.lane.b32.xlu0 %v3830, 4
  %v3919 = vpop.permute.xlu0 %3918
  %3920 = vrot.lane.b32.xlu0 %v3831, 4
  %v3921 = vpop.permute.xlu0 %3920
  %3922 = vrot.lane.b32.xlu0 %v3832, 4
  %v3923 = vpop.permute.xlu0 %3922
  %3924 = vrot.lane.b32.xlu0 %v3833, 4
  %v3925 = vpop.permute.xlu0 %3924
  %3926 = vrot.lane.b32.xlu0 %v3834, 4
  %v3927 = vpop.permute.xlu0 %3926
  %3928 = vrot.lane.b32.xlu0 %v3835, 4
  %v3929 = vpop.permute.xlu0 %3928
  %3930 = vrot.lane.b32.xlu0 %v3836, 4
  %v3931 = vpop.permute.xlu0 %3930
  %3932 = vrot.lane.b32.xlu0 %v3837, 4
  %v3933 = vpop.permute.xlu0 %3932
  %3966 = vst.msk [vmem:[#allocation3] sm:$0xff] %vm588, %v3871
  %3967 = vst.msk [vmem:[#allocation3 + $0x8] sm:$0xff] %vm588, %v3873
  %3968 = vst.msk [vmem:[#allocation3 + $0x10] sm:$0xff] %vm588, %v3875
  %3969 = vst.msk [vmem:[#allocation3 + $0x18] sm:$0xff] %vm588, %v3877
  %3970 = vst.msk [vmem:[#allocation3 + $0x20] sm:$0xff] %vm588, %v3879
  %3971 = vst.msk [vmem:[#allocation3 + $0x28] sm:$0xff] %vm588, %v3881
  %3972 = vst.msk [vmem:[#allocation3 + $0x30] sm:$0xff] %vm588, %v3883
  %3973 = vst.msk [vmem:[#allocation3 + $0x38] sm:$0xff] %vm588, %v3885
  %3974 = vst.msk [vmem:[#allocation3 + $0x40] sm:$0xff] %vm588, %v3887
  %3975 = vst.msk [vmem:[#allocation3 + $0x48] sm:$0xff] %vm588, %v3889
  %3976 = vst.msk [vmem:[#allocation3 + $0x50] sm:$0xff] %vm588, %v3891
  %3977 = vst.msk [vmem:[#allocation3 + $0x58] sm:$0xff] %vm588, %v3893
  %3978 = vst.msk [vmem:[#allocation3 + $0x60] sm:$0xff] %vm588, %v3895
  %3979 = vst.msk [vmem:[#allocation3 + $0x68] sm:$0xff] %vm588, %v3897
  %3980 = vst.msk [vmem:[#allocation3 + $0x70] sm:$0xff] %vm588, %v3899
  %3981 = vst.msk [vmem:[#allocation3 + $0x78] sm:$0xff] %vm588, %v3901
  %3982 = vst.msk [vmem:[#allocation3 + $0x80] sm:$0xff] %vm588, %v3903
  %3983 = vst.msk [vmem:[#allocation3 + $0x88] sm:$0xff] %vm588, %v3905
  %3984 = vst.msk [vmem:[#allocation3 + $0x90] sm:$0xff] %vm588, %v3907
  %3985 = vst.msk [vmem:[#allocation3 + $0x98] sm:$0xff] %vm588, %v3909
  %3986 = vst.msk [vmem:[#allocation3 + $0xa0] sm:$0xff] %vm588, %v3911
  %3987 = vst.msk [vmem:[#allocation3 + $0xa8] sm:$0xff] %vm588, %v3913
  %3988 = vst.msk [vmem:[#allocation3 + $0xb0] sm:$0xff] %vm588, %v3915
  %3989 = vst.msk [vmem:[#allocation3 + $0xb8] sm:$0xff] %vm588, %v3917
  %3990 = vst.msk [vmem:[#allocation3 + $0xc0] sm:$0xff] %vm588, %v3919
  %3991 = vst.msk [vmem:[#allocation3 + $0xc8] sm:$0xff] %vm588, %v3921
  %3992 = vst.msk [vmem:[#allocation3 + $0xd0] sm:$0xff] %vm588, %v3923
  %3993 = vst.msk [vmem:[#allocation3 + $0xd8] sm:$0xff] %vm588, %v3925
  %3994 = vst.msk [vmem:[#allocation3 + $0xe0] sm:$0xff] %vm588, %v3927
  %3995 = vst.msk [vmem:[#allocation3 + $0xe8] sm:$0xff] %vm588, %v3929
  %3996 = vst.msk [vmem:[#allocation3 + $0xf0] sm:$0xff] %vm588, %v3931
  %3997 = vst.msk [vmem:[#allocation3 + $0xf8] sm:$0xff] %vm588, %v3933
  %v3998 = vld [vmem:[#allocation2 + $0x2] sm:$0xff]
  %v3999 = vld [vmem:[#allocation2 + $0xa] sm:$0xff]
  %v4000 = vld [vmem:[#allocation2 + $0x1a] sm:$0xff]
  %v4001 = vld [vmem:[#allocation2 + $0x22] sm:$0xff]
  %v4002 = vld [vmem:[#allocation2 + $0x32] sm:$0xff]
  %v4003 = vld [vmem:[#allocation2 + $0x3a] sm:$0xff]
  %v4004 = vld [vmem:[#allocation2 + $0x4a] sm:$0xff]
  %v4005 = vld [vmem:[#allocation2 + $0x52] sm:$0xff]
  %v4006 = vld [vmem:[#allocation2 + $0x62] sm:$0xff]
  %v4007 = vld [vmem:[#allocation2 + $0x6a] sm:$0xff]
  %v4008 = vld [vmem:[#allocation2 + $0x7a] sm:$0xff]
  %v4009 = vld [vmem:[#allocation2 + $0x82] sm:$0xff]
  %v4010 = vld [vmem:[#allocation2 + $0x92] sm:$0xff]
  %v4011 = vld [vmem:[#allocation2 + $0x9a] sm:$0xff]
  %v4012 = vld [vmem:[#allocation2 + $0xaa] sm:$0xff]
  %v4013 = vld [vmem:[#allocation2 + $0xb2] sm:$0xff]
  %v4014 = vld [vmem:[#allocation2 + $0xc2] sm:$0xff]
  %v4015 = vld [vmem:[#allocation2 + $0xca] sm:$0xff]
  %v4016 = vld [vmem:[#allocation2 + $0xda] sm:$0xff]
  %v4017 = vld [vmem:[#allocation2 + $0xe2] sm:$0xff]
  %v4018 = vld [vmem:[#allocation2 + $0xf2] sm:$0xff]
  %v4019 = vld [vmem:[#allocation2 + $0xfa] sm:$0xff]
  %v4020 = vld [vmem:[#allocation2 + $0x10a] sm:$0xff]
  %v4021 = vld [vmem:[#allocation2 + $0x112] sm:$0xff]
  %v4022 = vld [vmem:[#allocation2 + $0x122] sm:$0xff]
  %v4023 = vld [vmem:[#allocation2 + $0x12a] sm:$0xff]
  %v4024 = vld [vmem:[#allocation2 + $0x13a] sm:$0xff]
  %v4025 = vld [vmem:[#allocation2 + $0x142] sm:$0xff]
  %v4026 = vld [vmem:[#allocation2 + $0x152] sm:$0xff]
  %v4027 = vld [vmem:[#allocation2 + $0x15a] sm:$0xff]
  %v4028 = vld [vmem:[#allocation2 + $0x16a] sm:$0xff]
  %v4029 = vld [vmem:[#allocation2 + $0x172] sm:$0xff]
  %v4030 = vld [vmem:[#allocation2 + $0x1b2] sm:$0xff]
  %v4031 = vld [vmem:[#allocation2 + $0x1ba] sm:$0xff]
  %v4032 = vld [vmem:[#allocation2 + $0x1ca] sm:$0xff]
  %v4033 = vld [vmem:[#allocation2 + $0x1d2] sm:$0xff]
  %v4034 = vld [vmem:[#allocation2 + $0x1e2] sm:$0xff]
  %v4035 = vld [vmem:[#allocation2 + $0x1ea] sm:$0xff]
  %v4036 = vld [vmem:[#allocation2 + $0x1fa] sm:$0xff]
  %v4037 = vld [vmem:[#allocation2 + $0x202] sm:$0xff]
  %v4038 = vld [vmem:[#allocation2 + $0x212] sm:$0xff]
  %v4039 = vld [vmem:[#allocation2 + $0x21a] sm:$0xff]
  %v4040 = vld [vmem:[#allocation2 + $0x22a] sm:$0xff]
  %v4041 = vld [vmem:[#allocation2 + $0x232] sm:$0xff]
  %v4042 = vld [vmem:[#allocation2 + $0x242] sm:$0xff]
  %v4043 = vld [vmem:[#allocation2 + $0x24a] sm:$0xff]
  %v4044 = vld [vmem:[#allocation2 + $0x25a] sm:$0xff]
  %v4045 = vld [vmem:[#allocation2 + $0x262] sm:$0xff]
  %v4046 = vld [vmem:[#allocation2 + $0x272] sm:$0xff]
  %v4047 = vld [vmem:[#allocation2 + $0x27a] sm:$0xff]
  %v4048 = vld [vmem:[#allocation2 + $0x28a] sm:$0xff]
  %v4049 = vld [vmem:[#allocation2 + $0x292] sm:$0xff]
  %v4050 = vld [vmem:[#allocation2 + $0x2a2] sm:$0xff]
  %v4051 = vld [vmem:[#allocation2 + $0x2aa] sm:$0xff]
  %v4052 = vld [vmem:[#allocation2 + $0x2ba] sm:$0xff]
  %v4053 = vld [vmem:[#allocation2 + $0x2c2] sm:$0xff]
  %v4054 = vld [vmem:[#allocation2 + $0x2d2] sm:$0xff]
  %v4055 = vld [vmem:[#allocation2 + $0x2da] sm:$0xff]
  %v4056 = vld [vmem:[#allocation2 + $0x2ea] sm:$0xff]
  %v4057 = vld [vmem:[#allocation2 + $0x2f2] sm:$0xff]
  %v4058 = vld [vmem:[#allocation2 + $0x302] sm:$0xff]
  %v4059 = vld [vmem:[#allocation2 + $0x30a] sm:$0xff]
  %v4060 = vld [vmem:[#allocation2 + $0x31a] sm:$0xff]
  %v4061 = vld [vmem:[#allocation2 + $0x322] sm:$0xff]
  %v4062 = vpack.c.bf16 %v3999, %v3998
  %v4063 = vpack.c.bf16 %v4001, %v4000
  %v4064 = vpack.c.bf16 %v4003, %v4002
  %v4065 = vpack.c.bf16 %v4005, %v4004
  %v4066 = vpack.c.bf16 %v4007, %v4006
  %v4067 = vpack.c.bf16 %v4009, %v4008
  %v4068 = vpack.c.bf16 %v4011, %v4010
  %v4069 = vpack.c.bf16 %v4013, %v4012
  %v4070 = vpack.c.bf16 %v4015, %v4014
  %v4071 = vpack.c.bf16 %v4017, %v4016
  %v4072 = vpack.c.bf16 %v4019, %v4018
  %v4073 = vpack.c.bf16 %v4021, %v4020
  %v4074 = vpack.c.bf16 %v4023, %v4022
  %v4075 = vpack.c.bf16 %v4025, %v4024
  %v4076 = vpack.c.bf16 %v4027, %v4026
  %v4077 = vpack.c.bf16 %v4029, %v4028
  %v4078 = vpack.c.bf16 %v4031, %v4030
  %v4079 = vpack.c.bf16 %v4033, %v4032
  %v4080 = vpack.c.bf16 %v4035, %v4034
  %v4081 = vpack.c.bf16 %v4037, %v4036
  %v4082 = vpack.c.bf16 %v4039, %v4038
  %v4083 = vpack.c.bf16 %v4041, %v4040
  %v4084 = vpack.c.bf16 %v4043, %v4042
  %v4085 = vpack.c.bf16 %v4045, %v4044
  %v4086 = vpack.c.bf16 %v4047, %v4046
  %v4087 = vpack.c.bf16 %v4049, %v4048
  %v4088 = vpack.c.bf16 %v4051, %v4050
  %v4089 = vpack.c.bf16 %v4053, %v4052
  %v4090 = vpack.c.bf16 %v4055, %v4054
  %v4091 = vpack.c.bf16 %v4057, %v4056
  %v4092 = vpack.c.bf16 %v4059, %v4058
  %v4093 = vpack.c.bf16 %v4061, %v4060
  %4126 = vrot.lane.b32.xlu0 %v4062, 8
  %v4127 = vpop.permute.xlu0 %4126
  %4128 = vrot.lane.b32.xlu0 %v4063, 8
  %v4129 = vpop.permute.xlu0 %4128
  %4130 = vrot.lane.b32.xlu0 %v4064, 8
  %v4131 = vpop.permute.xlu0 %4130
  %4132 = vrot.lane.b32.xlu0 %v4065, 8
  %v4133 = vpop.permute.xlu0 %4132
  %4134 = vrot.lane.b32.xlu0 %v4066, 8
  %v4135 = vpop.permute.xlu0 %4134
  %4136 = vrot.lane.b32.xlu0 %v4067, 8
  %v4137 = vpop.permute.xlu0 %4136
  %4138 = vrot.lane.b32.xlu0 %v4068, 8
  %v4139 = vpop.permute.xlu0 %4138
  %4140 = vrot.lane.b32.xlu0 %v4069, 8
  %v4141 = vpop.permute.xlu0 %4140
  %4142 = vrot.lane.b32.xlu0 %v4070, 8
  %v4143 = vpop.permute.xlu0 %4142
  %4144 = vrot.lane.b32.xlu0 %v4071, 8
  %v4145 = vpop.permute.xlu0 %4144
  %4146 = vrot.lane.b32.xlu0 %v4072, 8
  %v4147 = vpop.permute.xlu0 %4146
  %4148 = vrot.lane.b32.xlu0 %v4073, 8
  %v4149 = vpop.permute.xlu0 %4148
  %4150 = vrot.lane.b32.xlu0 %v4074, 8
  %v4151 = vpop.permute.xlu0 %4150
  %4152 = vrot.lane.b32.xlu0 %v4075, 8
  %v4153 = vpop.permute.xlu0 %4152
  %4154 = vrot.lane.b32.xlu0 %v4076, 8
  %v4155 = vpop.permute.xlu0 %4154
  %4156 = vrot.lane.b32.xlu0 %v4077, 8
  %v4157 = vpop.permute.xlu0 %4156
  %4158 = vrot.lane.b32.xlu0 %v4078, 8
  %v4159 = vpop.permute.xlu0 %4158
  %4160 = vrot.lane.b32.xlu0 %v4079, 8
  %v4161 = vpop.permute.xlu0 %4160
  %4162 = vrot.lane.b32.xlu0 %v4080, 8
  %v4163 = vpop.permute.xlu0 %4162
  %4164 = vrot.lane.b32.xlu0 %v4081, 8
  %v4165 = vpop.permute.xlu0 %4164
  %4166 = vrot.lane.b32.xlu0 %v4082, 8
  %v4167 = vpop.permute.xlu0 %4166
  %4168 = vrot.lane.b32.xlu0 %v4083, 8
  %v4169 = vpop.permute.xlu0 %4168
  %4170 = vrot.lane.b32.xlu0 %v4084, 8
  %v4171 = vpop.permute.xlu0 %4170
  %4172 = vrot.lane.b32.xlu0 %v4085, 8
  %v4173 = vpop.permute.xlu0 %4172
  %4174 = vrot.lane.b32.xlu0 %v4086, 8
  %v4175 = vpop.permute.xlu0 %4174
  %4176 = vrot.lane.b32.xlu0 %v4087, 8
  %v4177 = vpop.permute.xlu0 %4176
  %4178 = vrot.lane.b32.xlu0 %v4088, 8
  %v4179 = vpop.permute.xlu0 %4178
  %4180 = vrot.lane.b32.xlu0 %v4089, 8
  %v4181 = vpop.permute.xlu0 %4180
  %4182 = vrot.lane.b32.xlu0 %v4090, 8
  %v4183 = vpop.permute.xlu0 %4182
  %4184 = vrot.lane.b32.xlu0 %v4091, 8
  %v4185 = vpop.permute.xlu0 %4184
  %4186 = vrot.lane.b32.xlu0 %v4092, 8
  %v4187 = vpop.permute.xlu0 %4186
  %4188 = vrot.lane.b32.xlu0 %v4093, 8
  %v4189 = vpop.permute.xlu0 %4188
  %4222 = vst.msk [vmem:[#allocation3] sm:$0xff] %vm845, %v4127
  %4223 = vst.msk [vmem:[#allocation3 + $0x8] sm:$0xff] %vm845, %v4129
  %4224 = vst.msk [vmem:[#allocation3 + $0x10] sm:$0xff] %vm845, %v4131
  %4225 = vst.msk [vmem:[#allocation3 + $0x18] sm:$0xff] %vm845, %v4133
  %4226 = vst.msk [vmem:[#allocation3 + $0x20] sm:$0xff] %vm845, %v4135
  %4227 = vst.msk [vmem:[#allocation3 + $0x28] sm:$0xff] %vm845, %v4137
  %4228 = vst.msk [vmem:[#allocation3 + $0x30] sm:$0xff] %vm845, %v4139
  %4229 = vst.msk [vmem:[#allocation3 + $0x38] sm:$0xff] %vm845, %v4141
  %4230 = vst.msk [vmem:[#allocation3 + $0x40] sm:$0xff] %vm845, %v4143
  %4231 = vst.msk [vmem:[#allocation3 + $0x48] sm:$0xff] %vm845, %v4145
  %4232 = vst.msk [vmem:[#allocation3 + $0x50] sm:$0xff] %vm845, %v4147
  %4233 = vst.msk [vmem:[#allocation3 + $0x58] sm:$0xff] %vm845, %v4149
  %4234 = vst.msk [vmem:[#allocation3 + $0x60] sm:$0xff] %vm845, %v4151
  %4235 = vst.msk [vmem:[#allocation3 + $0x68] sm:$0xff] %vm845, %v4153
  %4236 = vst.msk [vmem:[#allocation3 + $0x70] sm:$0xff] %vm845, %v4155
  %4237 = vst.msk [vmem:[#allocation3 + $0x78] sm:$0xff] %vm845, %v4157
  %4238 = vst.msk [vmem:[#allocation3 + $0x80] sm:$0xff] %vm845, %v4159
  %4239 = vst.msk [vmem:[#allocation3 + $0x88] sm:$0xff] %vm845, %v4161
  %4240 = vst.msk [vmem:[#allocation3 + $0x90] sm:$0xff] %vm845, %v4163
  %4241 = vst.msk [vmem:[#allocation3 + $0x98] sm:$0xff] %vm845, %v4165
  %4242 = vst.msk [vmem:[#allocation3 + $0xa0] sm:$0xff] %vm845, %v4167
  %4243 = vst.msk [vmem:[#allocation3 + $0xa8] sm:$0xff] %vm845, %v4169
  %4244 = vst.msk [vmem:[#allocation3 + $0xb0] sm:$0xff] %vm845, %v4171
  %4245 = vst.msk [vmem:[#allocation3 + $0xb8] sm:$0xff] %vm845, %v4173
  %4246 = vst.msk [vmem:[#allocation3 + $0xc0] sm:$0xff] %vm845, %v4175
  %4247 = vst.msk [vmem:[#allocation3 + $0xc8] sm:$0xff] %vm845, %v4177
  %4248 = vst.msk [vmem:[#allocation3 + $0xd0] sm:$0xff] %vm845, %v4179
  %4249 = vst.msk [vmem:[#allocation3 + $0xd8] sm:$0xff] %vm845, %v4181
  %4250 = vst.msk [vmem:[#allocation3 + $0xe0] sm:$0xff] %vm845, %v4183
  %4251 = vst.msk [vmem:[#allocation3 + $0xe8] sm:$0xff] %vm845, %v4185
  %4252 = vst.msk [vmem:[#allocation3 + $0xf0] sm:$0xff] %vm845, %v4187
  %4253 = vst.msk [vmem:[#allocation3 + $0xf8] sm:$0xff] %vm845, %v4189
  %v4254 = vld [vmem:[%s42] sm:$0xff]
  %v4255 = vld [vmem:[%s42 + $0x8] sm:$0xff]
  %v4256 = vld [vmem:[%s42 + $0x18] sm:$0xff]
  %v4257 = vld [vmem:[%s42 + $0x20] sm:$0xff]
  %v4258 = vld [vmem:[%s42 + $0x30] sm:$0xff]
  %v4259 = vld [vmem:[%s42 + $0x38] sm:$0xff]
  %v4260 = vld [vmem:[%s42 + $0x48] sm:$0xff]
  %v4261 = vld [vmem:[%s42 + $0x50] sm:$0xff]
  %v4262 = vld [vmem:[%s42 + $0x60] sm:$0xff]
  %v4263 = vld [vmem:[%s42 + $0x68] sm:$0xff]
  %v4264 = vld [vmem:[%s42 + $0x78] sm:$0xff]
  %v4265 = vld [vmem:[%s42 + $0x80] sm:$0xff]
  %v4266 = vld [vmem:[%s42 + $0x90] sm:$0xff]
  %v4267 = vld [vmem:[%s42 + $0x98] sm:$0xff]
  %v4268 = vld [vmem:[%s42 + $0xa8] sm:$0xff]
  %v4269 = vld [vmem:[%s42 + $0xb0] sm:$0xff]
  %v4270 = vld [vmem:[%s42 + $0xc0] sm:$0xff]
  %v4271 = vld [vmem:[%s42 + $0xc8] sm:$0xff]
  %v4272 = vld [vmem:[%s42 + $0xd8] sm:$0xff]
  %v4273 = vld [vmem:[%s42 + $0xe0] sm:$0xff]
  %v4274 = vld [vmem:[%s42 + $0xf0] sm:$0xff]
  %v4275 = vld [vmem:[%s42 + $0xf8] sm:$0xff]
  %v4276 = vld [vmem:[%s42 + $0x108] sm:$0xff]
  %v4277 = vld [vmem:[%s42 + $0x110] sm:$0xff]
  %v4278 = vld [vmem:[%s42 + $0x120] sm:$0xff]
  %v4279 = vld [vmem:[%s42 + $0x128] sm:$0xff]
  %v4280 = vld [vmem:[%s42 + $0x138] sm:$0xff]
  %v4281 = vld [vmem:[%s42 + $0x140] sm:$0xff]
  %v4282 = vld [vmem:[%s42 + $0x150] sm:$0xff]
  %v4283 = vld [vmem:[%s42 + $0x158] sm:$0xff]
  %v4284 = vld [vmem:[%s42 + $0x168] sm:$0xff]
  %v4285 = vld [vmem:[%s42 + $0x170] sm:$0xff]
  %v4286 = vld [vmem:[%s42 + $0x1b0] sm:$0xff]
  %v4287 = vld [vmem:[%s42 + $0x1b8] sm:$0xff]
  %v4288 = vld [vmem:[%s42 + $0x1c8] sm:$0xff]
  %v4289 = vld [vmem:[%s42 + $0x1d0] sm:$0xff]
  %v4290 = vld [vmem:[%s42 + $0x1e0] sm:$0xff]
  %v4291 = vld [vmem:[%s42 + $0x1e8] sm:$0xff]
  %v4292 = vld [vmem:[%s42 + $0x1f8] sm:$0xff]
  %v4293 = vld [vmem:[%s42 + $0x200] sm:$0xff]
  %v4294 = vld [vmem:[%s42 + $0x210] sm:$0xff]
  %v4295 = vld [vmem:[%s42 + $0x218] sm:$0xff]
  %v4296 = vld [vmem:[%s42 + $0x228] sm:$0xff]
  %v4297 = vld [vmem:[%s42 + $0x230] sm:$0xff]
  %v4298 = vld [vmem:[%s42 + $0x240] sm:$0xff]
  %v4299 = vld [vmem:[%s42 + $0x248] sm:$0xff]
  %v4300 = vld [vmem:[%s42 + $0x258] sm:$0xff]
  %v4301 = vld [vmem:[%s42 + $0x260] sm:$0xff]
  %v4302 = vld [vmem:[%s42 + $0x270] sm:$0xff]
  %v4303 = vld [vmem:[%s42 + $0x278] sm:$0xff]
  %v4304 = vld [vmem:[%s42 + $0x288] sm:$0xff]
  %v4305 = vld [vmem:[%s42 + $0x290] sm:$0xff]
  %v4306 = vld [vmem:[%s42 + $0x2a0] sm:$0xff]
  %v4307 = vld [vmem:[%s42 + $0x2a8] sm:$0xff]
  %v4308 = vld [vmem:[%s42 + $0x2b8] sm:$0xff]
  %v4309 = vld [vmem:[%s42 + $0x2c0] sm:$0xff]
  %v4310 = vld [vmem:[%s42 + $0x2d0] sm:$0xff]
  %v4311 = vld [vmem:[%s42 + $0x2d8] sm:$0xff]
  %v4312 = vld [vmem:[%s42 + $0x2e8] sm:$0xff]
  %v4313 = vld [vmem:[%s42 + $0x2f0] sm:$0xff]
  %v4314 = vld [vmem:[%s42 + $0x300] sm:$0xff]
  %v4315 = vld [vmem:[%s42 + $0x308] sm:$0xff]
  %v4316 = vld [vmem:[%s42 + $0x318] sm:$0xff]
  %v4317 = vld [vmem:[%s42 + $0x320] sm:$0xff]
  %v4318 = vpack.c.bf16 %v4255, %v4254
  %v4319 = vpack.c.bf16 %v4257, %v4256
  %v4320 = vpack.c.bf16 %v4259, %v4258
  %v4321 = vpack.c.bf16 %v4261, %v4260
  %v4322 = vpack.c.bf16 %v4263, %v4262
  %v4323 = vpack.c.bf16 %v4265, %v4264
  %v4324 = vpack.c.bf16 %v4267, %v4266
  %v4325 = vpack.c.bf16 %v4269, %v4268
  %v4326 = vpack.c.bf16 %v4271, %v4270
  %v4327 = vpack.c.bf16 %v4273, %v4272
  %v4328 = vpack.c.bf16 %v4275, %v4274
  %v4329 = vpack.c.bf16 %v4277, %v4276
  %v4330 = vpack.c.bf16 %v4279, %v4278
  %v4331 = vpack.c.bf16 %v4281, %v4280
  %v4332 = vpack.c.bf16 %v4283, %v4282
  %v4333 = vpack.c.bf16 %v4285, %v4284
  %v4334 = vpack.c.bf16 %v4287, %v4286
  %v4335 = vpack.c.bf16 %v4289, %v4288
  %v4336 = vpack.c.bf16 %v4291, %v4290
  %v4337 = vpack.c.bf16 %v4293, %v4292
  %v4338 = vpack.c.bf16 %v4295, %v4294
  %v4339 = vpack.c.bf16 %v4297, %v4296
  %v4340 = vpack.c.bf16 %v4299, %v4298
  %v4341 = vpack.c.bf16 %v4301, %v4300
  %v4342 = vpack.c.bf16 %v4303, %v4302
  %v4343 = vpack.c.bf16 %v4305, %v4304
  %v4344 = vpack.c.bf16 %v4307, %v4306
  %v4345 = vpack.c.bf16 %v4309, %v4308
  %v4346 = vpack.c.bf16 %v4311, %v4310
  %v4347 = vpack.c.bf16 %v4313, %v4312
  %v4348 = vpack.c.bf16 %v4315, %v4314
  %v4349 = vpack.c.bf16 %v4317, %v4316
  %4382 = vrot.lane.b32.xlu0 %v4318, 12
  %v4383 = vpop.permute.xlu0 %4382
  %4384 = vrot.lane.b32.xlu0 %v4319, 12
  %v4385 = vpop.permute.xlu0 %4384
  %4386 = vrot.lane.b32.xlu0 %v4320, 12
  %v4387 = vpop.permute.xlu0 %4386
  %4388 = vrot.lane.b32.xlu0 %v4321, 12
  %v4389 = vpop.permute.xlu0 %4388
  %4390 = vrot.lane.b32.xlu0 %v4322, 12
  %v4391 = vpop.permute.xlu0 %4390
  %4392 = vrot.lane.b32.xlu0 %v4323, 12
  %v4393 = vpop.permute.xlu0 %4392
  %4394 = vrot.lane.b32.xlu0 %v4324, 12
  %v4395 = vpop.permute.xlu0 %4394
  %4396 = vrot.lane.b32.xlu0 %v4325, 12
  %v4397 = vpop.permute.xlu0 %4396
  %4398 = vrot.lane.b32.xlu0 %v4326, 12
  %v4399 = vpop.permute.xlu0 %4398
  %4400 = vrot.lane.b32.xlu0 %v4327, 12
  %v4401 = vpop.permute.xlu0 %4400
  %4402 = vrot.lane.b32.xlu0 %v4328, 12
  %v4403 = vpop.permute.xlu0 %4402
  %4404 = vrot.lane.b32.xlu0 %v4329, 12
  %v4405 = vpop.permute.xlu0 %4404
  %4406 = vrot.lane.b32.xlu0 %v4330, 12
  %v4407 = vpop.permute.xlu0 %4406
  %4408 = vrot.lane.b32.xlu0 %v4331, 12
  %v4409 = vpop.permute.xlu0 %4408
  %4410 = vrot.lane.b32.xlu0 %v4332, 12
  %v4411 = vpop.permute.xlu0 %4410
  %4412 = vrot.lane.b32.xlu0 %v4333, 12
  %v4413 = vpop.permute.xlu0 %4412
  %4414 = vrot.lane.b32.xlu0 %v4334, 12
  %v4415 = vpop.permute.xlu0 %4414
  %4416 = vrot.lane.b32.xlu0 %v4335, 12
  %v4417 = vpop.permute.xlu0 %4416
  %4418 = vrot.lane.b32.xlu0 %v4336, 12
  %v4419 = vpop.permute.xlu0 %4418
  %4420 = vrot.lane.b32.xlu0 %v4337, 12
  %v4421 = vpop.permute.xlu0 %4420
  %4422 = vrot.lane.b32.xlu0 %v4338, 12
  %v4423 = vpop.permute.xlu0 %4422
  %4424 = vrot.lane.b32.xlu0 %v4339, 12
  %v4425 = vpop.permute.xlu0 %4424
  %4426 = vrot.lane.b32.xlu0 %v4340, 12
  %v4427 = vpop.permute.xlu0 %4426
  %4428 = vrot.lane.b32.xlu0 %v4341, 12
  %v4429 = vpop.permute.xlu0 %4428
  %4430 = vrot.lane.b32.xlu0 %v4342, 12
  %v4431 = vpop.permute.xlu0 %4430
  %4432 = vrot.lane.b32.xlu0 %v4343, 12
  %v4433 = vpop.permute.xlu0 %4432
  %4434 = vrot.lane.b32.xlu0 %v4344, 12
  %v4435 = vpop.permute.xlu0 %4434
  %4436 = vrot.lane.b32.xlu0 %v4345, 12
  %v4437 = vpop.permute.xlu0 %4436
  %4438 = vrot.lane.b32.xlu0 %v4346, 12
  %v4439 = vpop.permute.xlu0 %4438
  %4440 = vrot.lane.b32.xlu0 %v4347, 12
  %v4441 = vpop.permute.xlu0 %4440
  %4442 = vrot.lane.b32.xlu0 %v4348, 12
  %v4443 = vpop.permute.xlu0 %4442
  %4444 = vrot.lane.b32.xlu0 %v4349, 12
  %v4445 = vpop.permute.xlu0 %4444
  %4478 = vst.msk [vmem:[#allocation3] sm:$0xff] %vm1102, %v4383
  %4479 = vst.msk [vmem:[#allocation3 + $0x8] sm:$0xff] %vm1102, %v4385
  %4480 = vst.msk [vmem:[#allocation3 + $0x10] sm:$0xff] %vm1102, %v4387
  %4481 = vst.msk [vmem:[#allocation3 + $0x18] sm:$0xff] %vm1102, %v4389
  %4482 = vst.msk [vmem:[#allocation3 + $0x20] sm:$0xff] %vm1102, %v4391
  %4483 = vst.msk [vmem:[#allocation3 + $0x28] sm:$0xff] %vm1102, %v4393
  %4484 = vst.msk [vmem:[#allocation3 + $0x30] sm:$0xff] %vm1102, %v4395
  %4485 = vst.msk [vmem:[#allocation3 + $0x38] sm:$0xff] %vm1102, %v4397
  %4486 = vst.msk [vmem:[#allocation3 + $0x40] sm:$0xff] %vm1102, %v4399
  %4487 = vst.msk [vmem:[#allocation3 + $0x48] sm:$0xff] %vm1102, %v4401
  %4488 = vst.msk [vmem:[#allocation3 + $0x50] sm:$0xff] %vm1102, %v4403
  %4489 = vst.msk [vmem:[#allocation3 + $0x58] sm:$0xff] %vm1102, %v4405
  %4490 = vst.msk [vmem:[#allocation3 + $0x60] sm:$0xff] %vm1102, %v4407
  %4491 = vst.msk [vmem:[#allocation3 + $0x68] sm:$0xff] %vm1102, %v4409
  %4492 = vst.msk [vmem:[#allocation3 + $0x70] sm:$0xff] %vm1102, %v4411
  %4493 = vst.msk [vmem:[#allocation3 + $0x78] sm:$0xff] %vm1102, %v4413
  %4494 = vst.msk [vmem:[#allocation3 + $0x80] sm:$0xff] %vm1102, %v4415
  %4495 = vst.msk [vmem:[#allocation3 + $0x88] sm:$0xff] %vm1102, %v4417
  %4496 = vst.msk [vmem:[#allocation3 + $0x90] sm:$0xff] %vm1102, %v4419
  %4497 = vst.msk [vmem:[#allocation3 + $0x98] sm:$0xff] %vm1102, %v4421
  %4498 = vst.msk [vmem:[#allocation3 + $0xa0] sm:$0xff] %vm1102, %v4423
  %4499 = vst.msk [vmem:[#allocation3 + $0xa8] sm:$0xff] %vm1102, %v4425
  %4500 = vst.msk [vmem:[#allocation3 + $0xb0] sm:$0xff] %vm1102, %v4427
  %4501 = vst.msk [vmem:[#allocation3 + $0xb8] sm:$0xff] %vm1102, %v4429
  %4502 = vst.msk [vmem:[#allocation3 + $0xc0] sm:$0xff] %vm1102, %v4431
  %4503 = vst.msk [vmem:[#allocation3 + $0xc8] sm:$0xff] %vm1102, %v4433
  %4504 = vst.msk [vmem:[#allocation3 + $0xd0] sm:$0xff] %vm1102, %v4435
  %4505 = vst.msk [vmem:[#allocation3 + $0xd8] sm:$0xff] %vm1102, %v4437
  %4506 = vst.msk [vmem:[#allocation3 + $0xe0] sm:$0xff] %vm1102, %v4439
  %4507 = vst.msk [vmem:[#allocation3 + $0xe8] sm:$0xff] %vm1102, %v4441
  %4508 = vst.msk [vmem:[#allocation3 + $0xf0] sm:$0xff] %vm1102, %v4443
  %4509 = vst.msk [vmem:[#allocation3 + $0xf8] sm:$0xff] %vm1102, %v4445
  %v4510 = vld [vmem:[%s42 + $0x1] sm:$0xff]
  %v4511 = vld [vmem:[%s42 + $0x9] sm:$0xff]
  %v4512 = vld [vmem:[%s42 + $0x19] sm:$0xff]
  %v4513 = vld [vmem:[%s42 + $0x21] sm:$0xff]
  %v4514 = vld [vmem:[%s42 + $0x31] sm:$0xff]
  %v4515 = vld [vmem:[%s42 + $0x39] sm:$0xff]
  %v4516 = vld [vmem:[%s42 + $0x49] sm:$0xff]
  %v4517 = vld [vmem:[%s42 + $0x51] sm:$0xff]
  %v4518 = vld [vmem:[%s42 + $0x61] sm:$0xff]
  %v4519 = vld [vmem:[%s42 + $0x69] sm:$0xff]
  %v4520 = vld [vmem:[%s42 + $0x79] sm:$0xff]
  %v4521 = vld [vmem:[%s42 + $0x81] sm:$0xff]
  %v4522 = vld [vmem:[%s42 + $0x91] sm:$0xff]
  %v4523 = vld [vmem:[%s42 + $0x99] sm:$0xff]
  %v4524 = vld [vmem:[%s42 + $0xa9] sm:$0xff]
  %v4525 = vld [vmem:[%s42 + $0xb1] sm:$0xff]
  %v4526 = vld [vmem:[%s42 + $0xc1] sm:$0xff]
  %v4527 = vld [vmem:[%s42 + $0xc9] sm:$0xff]
  %v4528 = vld [vmem:[%s42 + $0xd9] sm:$0xff]
  %v4529 = vld [vmem:[%s42 + $0xe1] sm:$0xff]
  %v4530 = vld [vmem:[%s42 + $0xf1] sm:$0xff]
  %v4531 = vld [vmem:[%s42 + $0xf9] sm:$0xff]
  %v4532 = vld [vmem:[%s42 + $0x109] sm:$0xff]
  %v4533 = vld [vmem:[%s42 + $0x111] sm:$0xff]
  %v4534 = vld [vmem:[%s42 + $0x121] sm:$0xff]
  %v4535 = vld [vmem:[%s42 + $0x129] sm:$0xff]
  %v4536 = vld [vmem:[%s42 + $0x139] sm:$0xff]
  %v4537 = vld [vmem:[%s42 + $0x141] sm:$0xff]
  %v4538 = vld [vmem:[%s42 + $0x151] sm:$0xff]
  %v4539 = vld [vmem:[%s42 + $0x159] sm:$0xff]
  %v4540 = vld [vmem:[%s42 + $0x169] sm:$0xff]
  %v4541 = vld [vmem:[%s42 + $0x171] sm:$0xff]
  %v4542 = vld [vmem:[%s42 + $0x1b1] sm:$0xff]
  %v4543 = vld [vmem:[%s42 + $0x1b9] sm:$0xff]
  %v4544 = vld [vmem:[%s42 + $0x1c9] sm:$0xff]
  %v4545 = vld [vmem:[%s42 + $0x1d1] sm:$0xff]
  %v4546 = vld [vmem:[%s42 + $0x1e1] sm:$0xff]
  %v4547 = vld [vmem:[%s42 + $0x1e9] sm:$0xff]
  %v4548 = vld [vmem:[%s42 + $0x1f9] sm:$0xff]
  %v4549 = vld [vmem:[%s42 + $0x201] sm:$0xff]
  %v4550 = vld [vmem:[%s42 + $0x211] sm:$0xff]
  %v4551 = vld [vmem:[%s42 + $0x219] sm:$0xff]
  %v4552 = vld [vmem:[%s42 + $0x229] sm:$0xff]
  %v4553 = vld [vmem:[%s42 + $0x231] sm:$0xff]
  %v4554 = vld [vmem:[%s42 + $0x241] sm:$0xff]
  %v4555 = vld [vmem:[%s42 + $0x249] sm:$0xff]
  %v4556 = vld [vmem:[%s42 + $0x259] sm:$0xff]
  %v4557 = vld [vmem:[%s42 + $0x261] sm:$0xff]
  %v4558 = vld [vmem:[%s42 + $0x271] sm:$0xff]
  %v4559 = vld [vmem:[%s42 + $0x279] sm:$0xff]
  %v4560 = vld [vmem:[%s42 + $0x289] sm:$0xff]
  %v4561 = vld [vmem:[%s42 + $0x291] sm:$0xff]
  %v4562 = vld [vmem:[%s42 + $0x2a1] sm:$0xff]
  %v4563 = vld [vmem:[%s42 + $0x2a9] sm:$0xff]
  %v4564 = vld [vmem:[%s42 + $0x2b9] sm:$0xff]
  %v4565 = vld [vmem:[%s42 + $0x2c1] sm:$0xff]
  %v4566 = vld [vmem:[%s42 + $0x2d1] sm:$0xff]
  %v4567 = vld [vmem:[%s42 + $0x2d9] sm:$0xff]
  %v4568 = vld [vmem:[%s42 + $0x2e9] sm:$0xff]
  %v4569 = vld [vmem:[%s42 + $0x2f1] sm:$0xff]
  %v4570 = vld [vmem:[%s42 + $0x301] sm:$0xff]
  %v4571 = vld [vmem:[%s42 + $0x309] sm:$0xff]
  %v4572 = vld [vmem:[%s42 + $0x319] sm:$0xff]
  %v4573 = vld [vmem:[%s42 + $0x321] sm:$0xff]
  %v4574 = vpack.c.bf16 %v4511, %v4510
  %v4575 = vpack.c.bf16 %v4513, %v4512
  %v4576 = vpack.c.bf16 %v4515, %v4514
  %v4577 = vpack.c.bf16 %v4517, %v4516
  %v4578 = vpack.c.bf16 %v4519, %v4518
  %v4579 = vpack.c.bf16 %v4521, %v4520
  %v4580 = vpack.c.bf16 %v4523, %v4522
  %v4581 = vpack.c.bf16 %v4525, %v4524
  %v4582 = vpack.c.bf16 %v4527, %v4526
  %v4583 = vpack.c.bf16 %v4529, %v4528
  %v4584 = vpack.c.bf16 %v4531, %v4530
  %v4585 = vpack.c.bf16 %v4533, %v4532
  %v4586 = vpack.c.bf16 %v4535, %v4534
  %v4587 = vpack.c.bf16 %v4537, %v4536
  %v4588 = vpack.c.bf16 %v4539, %v4538
  %v4589 = vpack.c.bf16 %v4541, %v4540
  %v4590 = vpack.c.bf16 %v4543, %v4542
  %v4591 = vpack.c.bf16 %v4545, %v4544
  %v4592 = vpack.c.bf16 %v4547, %v4546
  %v4593 = vpack.c.bf16 %v4549, %v4548
  %v4594 = vpack.c.bf16 %v4551, %v4550
  %v4595 = vpack.c.bf16 %v4553, %v4552
  %v4596 = vpack.c.bf16 %v4555, %v4554
  %v4597 = vpack.c.bf16 %v4557, %v4556
  %v4598 = vpack.c.bf16 %v4559, %v4558
  %v4599 = vpack.c.bf16 %v4561, %v4560
  %v4600 = vpack.c.bf16 %v4563, %v4562
  %v4601 = vpack.c.bf16 %v4565, %v4564
  %v4602 = vpack.c.bf16 %v4567, %v4566
  %v4603 = vpack.c.bf16 %v4569, %v4568
  %v4604 = vpack.c.bf16 %v4571, %v4570
  %v4605 = vpack.c.bf16 %v4573, %v4572
  %4638 = vrot.lane.b32.xlu0 %v4574, 16
  %v4639 = vpop.permute.xlu0 %4638
  %4640 = vrot.lane.b32.xlu0 %v4575, 16
  %v4641 = vpop.permute.xlu0 %4640
  %4642 = vrot.lane.b32.xlu0 %v4576, 16
  %v4643 = vpop.permute.xlu0 %4642
  %4644 = vrot.lane.b32.xlu0 %v4577, 16
  %v4645 = vpop.permute.xlu0 %4644
  %4646 = vrot.lane.b32.xlu0 %v4578, 16
  %v4647 = vpop.permute.xlu0 %4646
  %4648 = vrot.lane.b32.xlu0 %v4579, 16
  %v4649 = vpop.permute.xlu0 %4648
  %4650 = vrot.lane.b32.xlu0 %v4580, 16
  %v4651 = vpop.permute.xlu0 %4650
  %4652 = vrot.lane.b32.xlu0 %v4581, 16
  %v4653 = vpop.permute.xlu0 %4652
  %4654 = vrot.lane.b32.xlu0 %v4582, 16
  %v4655 = vpop.permute.xlu0 %4654
  %4656 = vrot.lane.b32.xlu0 %v4583, 16
  %v4657 = vpop.permute.xlu0 %4656
  %4658 = vrot.lane.b32.xlu0 %v4584, 16
  %v4659 = vpop.permute.xlu0 %4658
  %4660 = vrot.lane.b32.xlu0 %v4585, 16
  %v4661 = vpop.permute.xlu0 %4660
  %4662 = vrot.lane.b32.xlu0 %v4586, 16
  %v4663 = vpop.permute.xlu0 %4662
  %4664 = vrot.lane.b32.xlu0 %v4587, 16
  %v4665 = vpop.permute.xlu0 %4664
  %4666 = vrot.lane.b32.xlu0 %v4588, 16
  %v4667 = vpop.permute.xlu0 %4666
  %4668 = vrot.lane.b32.xlu0 %v4589, 16
  %v4669 = vpop.permute.xlu0 %4668
  %4670 = vrot.lane.b32.xlu0 %v4590, 16
  %v4671 = vpop.permute.xlu0 %4670
  %4672 = vrot.lane.b32.xlu0 %v4591, 16
  %v4673 = vpop.permute.xlu0 %4672
  %4674 = vrot.lane.b32.xlu0 %v4592, 16
  %v4675 = vpop.permute.xlu0 %4674
  %4676 = vrot.lane.b32.xlu0 %v4593, 16
  %v4677 = vpop.permute.xlu0 %4676
  %4678 = vrot.lane.b32.xlu0 %v4594, 16
  %v4679 = vpop.permute.xlu0 %4678
  %4680 = vrot.lane.b32.xlu0 %v4595, 16
  %v4681 = vpop.permute.xlu0 %4680
  %4682 = vrot.lane.b32.xlu0 %v4596, 16
  %v4683 = vpop.permute.xlu0 %4682
  %4684 = vrot.lane.b32.xlu0 %v4597, 16
  %v4685 = vpop.permute.xlu0 %4684
  %4686 = vrot.lane.b32.xlu0 %v4598, 16
  %v4687 = vpop.permute.xlu0 %4686
  %4688 = vrot.lane.b32.xlu0 %v4599, 16
  %v4689 = vpop.permute.xlu0 %4688
  %4690 = vrot.lane.b32.xlu0 %v4600, 16
  %v4691 = vpop.permute.xlu0 %4690
  %4692 = vrot.lane.b32.xlu0 %v4601, 16
  %v4693 = vpop.permute.xlu0 %4692
  %4694 = vrot.lane.b32.xlu0 %v4602, 16
  %v4695 = vpop.permute.xlu0 %4694
  %4696 = vrot.lane.b32.xlu0 %v4603, 16
  %v4697 = vpop.permute.xlu0 %4696
  %4698 = vrot.lane.b32.xlu0 %v4604, 16
  %v4699 = vpop.permute.xlu0 %4698
  %4700 = vrot.lane.b32.xlu0 %v4605, 16
  %v4701 = vpop.permute.xlu0 %4700
  %4734 = vst.msk [vmem:[#allocation3] sm:$0xff] %vm1359, %v4639
  %4735 = vst.msk [vmem:[#allocation3 + $0x8] sm:$0xff] %vm1359, %v4641
  %4736 = vst.msk [vmem:[#allocation3 + $0x10] sm:$0xff] %vm1359, %v4643
  %4737 = vst.msk [vmem:[#allocation3 + $0x18] sm:$0xff] %vm1359, %v4645
  %4738 = vst.msk [vmem:[#allocation3 + $0x20] sm:$0xff] %vm1359, %v4647
  %4739 = vst.msk [vmem:[#allocation3 + $0x28] sm:$0xff] %vm1359, %v4649
  %4740 = vst.msk [vmem:[#allocation3 + $0x30] sm:$0xff] %vm1359, %v4651
  %4741 = vst.msk [vmem:[#allocation3 + $0x38] sm:$0xff] %vm1359, %v4653
  %4742 = vst.msk [vmem:[#allocation3 + $0x40] sm:$0xff] %vm1359, %v4655
  %4743 = vst.msk [vmem:[#allocation3 + $0x48] sm:$0xff] %vm1359, %v4657
  %4744 = vst.msk [vmem:[#allocation3 + $0x50] sm:$0xff] %vm1359, %v4659
  %4745 = vst.msk [vmem:[#allocation3 + $0x58] sm:$0xff] %vm1359, %v4661
  %4746 = vst.msk [vmem:[#allocation3 + $0x60] sm:$0xff] %vm1359, %v4663
  %4747 = vst.msk [vmem:[#allocation3 + $0x68] sm:$0xff] %vm1359, %v4665
  %4748 = vst.msk [vmem:[#allocation3 + $0x70] sm:$0xff] %vm1359, %v4667
  %4749 = vst.msk [vmem:[#allocation3 + $0x78] sm:$0xff] %vm1359, %v4669
  %4750 = vst.msk [vmem:[#allocation3 + $0x80] sm:$0xff] %vm1359, %v4671
  %4751 = vst.msk [vmem:[#allocation3 + $0x88] sm:$0xff] %vm1359, %v4673
  %4752 = vst.msk [vmem:[#allocation3 + $0x90] sm:$0xff] %vm1359, %v4675
  %4753 = vst.msk [vmem:[#allocation3 + $0x98] sm:$0xff] %vm1359, %v4677
  %4754 = vst.msk [vmem:[#allocation3 + $0xa0] sm:$0xff] %vm1359, %v4679
  %4755 = vst.msk [vmem:[#allocation3 + $0xa8] sm:$0xff] %vm1359, %v4681
  %4756 = vst.msk [vmem:[#allocation3 + $0xb0] sm:$0xff] %vm1359, %v4683
  %4757 = vst.msk [vmem:[#allocation3 + $0xb8] sm:$0xff] %vm1359, %v4685
  %4758 = vst.msk [vmem:[#allocation3 + $0xc0] sm:$0xff] %vm1359, %v4687
  %4759 = vst.msk [vmem:[#allocation3 + $0xc8] sm:$0xff] %vm1359, %v4689
  %4760 = vst.msk [vmem:[#allocation3 + $0xd0] sm:$0xff] %vm1359, %v4691
  %4761 = vst.msk [vmem:[#allocation3 + $0xd8] sm:$0xff] %vm1359, %v4693
  %4762 = vst.msk [vmem:[#allocation3 + $0xe0] sm:$0xff] %vm1359, %v4695
  %4763 = vst.msk [vmem:[#allocation3 + $0xe8] sm:$0xff] %vm1359, %v4697
  %4764 = vst.msk [vmem:[#allocation3 + $0xf0] sm:$0xff] %vm1359, %v4699
  %4765 = vst.msk [vmem:[#allocation3 + $0xf8] sm:$0xff] %vm1359, %v4701
  %v4766 = vld [vmem:[%s42 + $0x2] sm:$0xff]
  %v4767 = vld [vmem:[%s42 + $0xa] sm:$0xff]
  %v4768 = vld [vmem:[%s42 + $0x1a] sm:$0xff]
  %v4769 = vld [vmem:[%s42 + $0x22] sm:$0xff]
  %v4770 = vld [vmem:[%s42 + $0x32] sm:$0xff]
  %v4771 = vld [vmem:[%s42 + $0x3a] sm:$0xff]
  %v4772 = vld [vmem:[%s42 + $0x4a] sm:$0xff]
  %v4773 = vld [vmem:[%s42 + $0x52] sm:$0xff]
  %v4774 = vld [vmem:[%s42 + $0x62] sm:$0xff]
  %v4775 = vld [vmem:[%s42 + $0x6a] sm:$0xff]
  %v4776 = vld [vmem:[%s42 + $0x7a] sm:$0xff]
  %v4777 = vld [vmem:[%s42 + $0x82] sm:$0xff]
  %v4778 = vld [vmem:[%s42 + $0x92] sm:$0xff]
  %v4779 = vld [vmem:[%s42 + $0x9a] sm:$0xff]
  %v4780 = vld [vmem:[%s42 + $0xaa] sm:$0xff]
  %v4781 = vld [vmem:[%s42 + $0xb2] sm:$0xff]
  %v4782 = vld [vmem:[%s42 + $0xc2] sm:$0xff]
  %v4783 = vld [vmem:[%s42 + $0xca] sm:$0xff]
  %v4784 = vld [vmem:[%s42 + $0xda] sm:$0xff]
  %v4785 = vld [vmem:[%s42 + $0xe2] sm:$0xff]
  %v4786 = vld [vmem:[%s42 + $0xf2] sm:$0xff]
  %v4787 = vld [vmem:[%s42 + $0xfa] sm:$0xff]
  %v4788 = vld [vmem:[%s42 + $0x10a] sm:$0xff]
  %v4789 = vld [vmem:[%s42 + $0x112] sm:$0xff]
  %v4790 = vld [vmem:[%s42 + $0x122] sm:$0xff]
  %v4791 = vld [vmem:[%s42 + $0x12a] sm:$0xff]
  %v4792 = vld [vmem:[%s42 + $0x13a] sm:$0xff]
  %v4793 = vld [vmem:[%s42 + $0x142] sm:$0xff]
  %v4794 = vld [vmem:[%s42 + $0x152] sm:$0xff]
  %v4795 = vld [vmem:[%s42 + $0x15a] sm:$0xff]
  %v4796 = vld [vmem:[%s42 + $0x16a] sm:$0xff]
  %v4797 = vld [vmem:[%s42 + $0x172] sm:$0xff]
  %v4798 = vld [vmem:[%s42 + $0x1b2] sm:$0xff]
  %v4799 = vld [vmem:[%s42 + $0x1ba] sm:$0xff]
  %v4800 = vld [vmem:[%s42 + $0x1ca] sm:$0xff]
  %v4801 = vld [vmem:[%s42 + $0x1d2] sm:$0xff]
  %v4802 = vld [vmem:[%s42 + $0x1e2] sm:$0xff]
  %v4803 = vld [vmem:[%s42 + $0x1ea] sm:$0xff]
  %v4804 = vld [vmem:[%s42 + $0x1fa] sm:$0xff]
  %v4805 = vld [vmem:[%s42 + $0x202] sm:$0xff]
  %v4806 = vld [vmem:[%s42 + $0x212] sm:$0xff]
  %v4807 = vld [vmem:[%s42 + $0x21a] sm:$0xff]
  %v4808 = vld [vmem:[%s42 + $0x22a] sm:$0xff]
  %v4809 = vld [vmem:[%s42 + $0x232] sm:$0xff]
  %v4810 = vld [vmem:[%s42 + $0x242] sm:$0xff]
  %v4811 = vld [vmem:[%s42 + $0x24a] sm:$0xff]
  %v4812 = vld [vmem:[%s42 + $0x25a] sm:$0xff]
  %v4813 = vld [vmem:[%s42 + $0x262] sm:$0xff]
  %v4814 = vld [vmem:[%s42 + $0x272] sm:$0xff]
  %v4815 = vld [vmem:[%s42 + $0x27a] sm:$0xff]
  %v4816 = vld [vmem:[%s42 + $0x28a] sm:$0xff]
  %v4817 = vld [vmem:[%s42 + $0x292] sm:$0xff]
  %v4818 = vld [vmem:[%s42 + $0x2a2] sm:$0xff]
  %v4819 = vld [vmem:[%s42 + $0x2aa] sm:$0xff]
  %v4820 = vld [vmem:[%s42 + $0x2ba] sm:$0xff]
  %v4821 = vld [vmem:[%s42 + $0x2c2] sm:$0xff]
  %v4822 = vld [vmem:[%s42 + $0x2d2] sm:$0xff]
  %v4823 = vld [vmem:[%s42 + $0x2da] sm:$0xff]
  %v4824 = vld [vmem:[%s42 + $0x2ea] sm:$0xff]
  %v4825 = vld [vmem:[%s42 + $0x2f2] sm:$0xff]
  %v4826 = vld [vmem:[%s42 + $0x302] sm:$0xff]
  %v4827 = vld [vmem:[%s42 + $0x30a] sm:$0xff]
  %v4828 = vld [vmem:[%s42 + $0x31a] sm:$0xff]
  %v4829 = vld [vmem:[%s42 + $0x322] sm:$0xff]
  %v4830 = vpack.c.bf16 %v4767, %v4766
  %v4831 = vpack.c.bf16 %v4769, %v4768
  %v4832 = vpack.c.bf16 %v4771, %v4770
  %v4833 = vpack.c.bf16 %v4773, %v4772
  %v4834 = vpack.c.bf16 %v4775, %v4774
  %v4835 = vpack.c.bf16 %v4777, %v4776
  %v4836 = vpack.c.bf16 %v4779, %v4778
  %v4837 = vpack.c.bf16 %v4781, %v4780
  %v4838 = vpack.c.bf16 %v4783, %v4782
  %v4839 = vpack.c.bf16 %v4785, %v4784
  %v4840 = vpack.c.bf16 %v4787, %v4786
  %v4841 = vpack.c.bf16 %v4789, %v4788
  %v4842 = vpack.c.bf16 %v4791, %v4790
  %v4843 = vpack.c.bf16 %v4793, %v4792
  %v4844 = vpack.c.bf16 %v4795, %v4794
  %v4845 = vpack.c.bf16 %v4797, %v4796
  %v4846 = vpack.c.bf16 %v4799, %v4798
  %v4847 = vpack.c.bf16 %v4801, %v4800
  %v4848 = vpack.c.bf16 %v4803, %v4802
  %v4849 = vpack.c.bf16 %v4805, %v4804
  %v4850 = vpack.c.bf16 %v4807, %v4806
  %v4851 = vpack.c.bf16 %v4809, %v4808
  %v4852 = vpack.c.bf16 %v4811, %v4810
  %v4853 = vpack.c.bf16 %v4813, %v4812
  %v4854 = vpack.c.bf16 %v4815, %v4814
  %v4855 = vpack.c.bf16 %v4817, %v4816
  %v4856 = vpack.c.bf16 %v4819, %v4818
  %v4857 = vpack.c.bf16 %v4821, %v4820
  %v4858 = vpack.c.bf16 %v4823, %v4822
  %v4859 = vpack.c.bf16 %v4825, %v4824
  %v4860 = vpack.c.bf16 %v4827, %v4826
  %v4861 = vpack.c.bf16 %v4829, %v4828
  %4894 = vrot.lane.b32.xlu0 %v4830, 20
  %v4895 = vpop.permute.xlu0 %4894
  %4896 = vrot.lane.b32.xlu0 %v4831, 20
  %v4897 = vpop.permute.xlu0 %4896
  %4898 = vrot.lane.b32.xlu0 %v4832, 20
  %v4899 = vpop.permute.xlu0 %4898
  %4900 = vrot.lane.b32.xlu0 %v4833, 20
  %v4901 = vpop.permute.xlu0 %4900
  %4902 = vrot.lane.b32.xlu0 %v4834, 20
  %v4903 = vpop.permute.xlu0 %4902
  %4904 = vrot.lane.b32.xlu0 %v4835, 20
  %v4905 = vpop.permute.xlu0 %4904
  %4906 = vrot.lane.b32.xlu0 %v4836, 20
  %v4907 = vpop.permute.xlu0 %4906
  %4908 = vrot.lane.b32.xlu0 %v4837, 20
  %v4909 = vpop.permute.xlu0 %4908
  %4910 = vrot.lane.b32.xlu0 %v4838, 20
  %v4911 = vpop.permute.xlu0 %4910
  %4912 = vrot.lane.b32.xlu0 %v4839, 20
  %v4913 = vpop.permute.xlu0 %4912
  %4914 = vrot.lane.b32.xlu0 %v4840, 20
  %v4915 = vpop.permute.xlu0 %4914
  %4916 = vrot.lane.b32.xlu0 %v4841, 20
  %v4917 = vpop.permute.xlu0 %4916
  %4918 = vrot.lane.b32.xlu0 %v4842, 20
  %v4919 = vpop.permute.xlu0 %4918
  %4920 = vrot.lane.b32.xlu0 %v4843, 20
  %v4921 = vpop.permute.xlu0 %4920
  %4922 = vrot.lane.b32.xlu0 %v4844, 20
  %v4923 = vpop.permute.xlu0 %4922
  %4924 = vrot.lane.b32.xlu0 %v4845, 20
  %v4925 = vpop.permute.xlu0 %4924
  %4926 = vrot.lane.b32.xlu0 %v4846, 20
  %v4927 = vpop.permute.xlu0 %4926
  %4928 = vrot.lane.b32.xlu0 %v4847, 20
  %v4929 = vpop.permute.xlu0 %4928
  %4930 = vrot.lane.b32.xlu0 %v4848, 20
  %v4931 = vpop.permute.xlu0 %4930
  %4932 = vrot.lane.b32.xlu0 %v4849, 20
  %v4933 = vpop.permute.xlu0 %4932
  %4934 = vrot.lane.b32.xlu0 %v4850, 20
  %v4935 = vpop.permute.xlu0 %4934
  %4936 = vrot.lane.b32.xlu0 %v4851, 20
  %v4937 = vpop.permute.xlu0 %4936
  %4938 = vrot.lane.b32.xlu0 %v4852, 20
  %v4939 = vpop.permute.xlu0 %4938
  %4940 = vrot.lane.b32.xlu0 %v4853, 20
  %v4941 = vpop.permute.xlu0 %4940
  %4942 = vrot.lane.b32.xlu0 %v4854, 20
  %v4943 = vpop.permute.xlu0 %4942
  %4944 = vrot.lane.b32.xlu0 %v4855, 20
  %v4945 = vpop.permute.xlu0 %4944
  %4946 = vrot.lane.b32.xlu0 %v4856, 20
  %v4947 = vpop.permute.xlu0 %4946
  %4948 = vrot.lane.b32.xlu0 %v4857, 20
  %v4949 = vpop.permute.xlu0 %4948
  %4950 = vrot.lane.b32.xlu0 %v4858, 20
  %v4951 = vpop.permute.xlu0 %4950
  %4952 = vrot.lane.b32.xlu0 %v4859, 20
  %v4953 = vpop.permute.xlu0 %4952
  %4954 = vrot.lane.b32.xlu0 %v4860, 20
  %v4955 = vpop.permute.xlu0 %4954
  %4956 = vrot.lane.b32.xlu0 %v4861, 20
  %v4957 = vpop.permute.xlu0 %4956
  %4990 = vst.msk [vmem:[#allocation3] sm:$0xff] %vm1616, %v4895
  %4991 = vst.msk [vmem:[#allocation3 + $0x8] sm:$0xff] %vm1616, %v4897
  %4992 = vst.msk [vmem:[#allocation3 + $0x10] sm:$0xff] %vm1616, %v4899
  %4993 = vst.msk [vmem:[#allocation3 + $0x18] sm:$0xff] %vm1616, %v4901
  %4994 = vst.msk [vmem:[#allocation3 + $0x20] sm:$0xff] %vm1616, %v4903
  %4995 = vst.msk [vmem:[#allocation3 + $0x28] sm:$0xff] %vm1616, %v4905
  %4996 = vst.msk [vmem:[#allocation3 + $0x30] sm:$0xff] %vm1616, %v4907
  %4997 = vst.msk [vmem:[#allocation3 + $0x38] sm:$0xff] %vm1616, %v4909
  %4998 = vst.msk [vmem:[#allocation3 + $0x40] sm:$0xff] %vm1616, %v4911
  %4999 = vst.msk [vmem:[#allocation3 + $0x48] sm:$0xff] %vm1616, %v4913
  %5000 = vst.msk [vmem:[#allocation3 + $0x50] sm:$0xff] %vm1616, %v4915
  %5001 = vst.msk [vmem:[#allocation3 + $0x58] sm:$0xff] %vm1616, %v4917
  %5002 = vst.msk [vmem:[#allocation3 + $0x60] sm:$0xff] %vm1616, %v4919
  %5003 = vst.msk [vmem:[#allocation3 + $0x68] sm:$0xff] %vm1616, %v4921
  %5004 = vst.msk [vmem:[#allocation3 + $0x70] sm:$0xff] %vm1616, %v4923
  %5005 = vst.msk [vmem:[#allocation3 + $0x78] sm:$0xff] %vm1616, %v4925
  %5006 = vst.msk [vmem:[#allocation3 + $0x80] sm:$0xff] %vm1616, %v4927
  %5007 = vst.msk [vmem:[#allocation3 + $0x88] sm:$0xff] %vm1616, %v4929
  %5008 = vst.msk [vmem:[#allocation3 + $0x90] sm:$0xff] %vm1616, %v4931
  %5009 = vst.msk [vmem:[#allocation3 + $0x98] sm:$0xff] %vm1616, %v4933
  %5010 = vst.msk [vmem:[#allocation3 + $0xa0] sm:$0xff] %vm1616, %v4935
  %5011 = vst.msk [vmem:[#allocation3 + $0xa8] sm:$0xff] %vm1616, %v4937
  %5012 = vst.msk [vmem:[#allocation3 + $0xb0] sm:$0xff] %vm1616, %v4939
  %5013 = vst.msk [vmem:[#allocation3 + $0xb8] sm:$0xff] %vm1616, %v4941
  %5014 = vst.msk [vmem:[#allocation3 + $0xc0] sm:$0xff] %vm1616, %v4943
  %5015 = vst.msk [vmem:[#allocation3 + $0xc8] sm:$0xff] %vm1616, %v4945
  %5016 = vst.msk [vmem:[#allocation3 + $0xd0] sm:$0xff] %vm1616, %v4947
  %5017 = vst.msk [vmem:[#allocation3 + $0xd8] sm:$0xff] %vm1616, %v4949
  %5018 = vst.msk [vmem:[#allocation3 + $0xe0] sm:$0xff] %vm1616, %v4951
  %5019 = vst.msk [vmem:[#allocation3 + $0xe8] sm:$0xff] %vm1616, %v4953
  %5020 = vst.msk [vmem:[#allocation3 + $0xf0] sm:$0xff] %vm1616, %v4955
  %5021 = vst.msk [vmem:[#allocation3 + $0xf8] sm:$0xff] %vm1616, %v4957
  %v5022 = vld [vmem:[%s1649] sm:$0xff]
  %v5023 = vld [vmem:[%s1649 + $0x8] sm:$0xff]
  %v5024 = vld [vmem:[%s1649 + $0x18] sm:$0xff]
  %v5025 = vld [vmem:[%s1649 + $0x20] sm:$0xff]
  %v5026 = vld [vmem:[%s1649 + $0x30] sm:$0xff]
  %v5027 = vld [vmem:[%s1649 + $0x38] sm:$0xff]
  %v5028 = vld [vmem:[%s1649 + $0x48] sm:$0xff]
  %v5029 = vld [vmem:[%s1649 + $0x50] sm:$0xff]
  %v5030 = vld [vmem:[%s1649 + $0x60] sm:$0xff]
  %v5031 = vld [vmem:[%s1649 + $0x68] sm:$0xff]
  %v5032 = vld [vmem:[%s1649 + $0x78] sm:$0xff]
  %v5033 = vld [vmem:[%s1649 + $0x80] sm:$0xff]
  %v5034 = vld [vmem:[%s1649 + $0x90] sm:$0xff]
  %v5035 = vld [vmem:[%s1649 + $0x98] sm:$0xff]
  %v5036 = vld [vmem:[%s1649 + $0xa8] sm:$0xff]
  %v5037 = vld [vmem:[%s1649 + $0xb0] sm:$0xff]
  %v5038 = vld [vmem:[%s1649 + $0xc0] sm:$0xff]
  %v5039 = vld [vmem:[%s1649 + $0xc8] sm:$0xff]
  %v5040 = vld [vmem:[%s1649 + $0xd8] sm:$0xff]
  %v5041 = vld [vmem:[%s1649 + $0xe0] sm:$0xff]
  %v5042 = vld [vmem:[%s1649 + $0xf0] sm:$0xff]
  %v5043 = vld [vmem:[%s1649 + $0xf8] sm:$0xff]
  %v5044 = vld [vmem:[%s1649 + $0x108] sm:$0xff]
  %v5045 = vld [vmem:[%s1649 + $0x110] sm:$0xff]
  %v5046 = vld [vmem:[%s1649 + $0x120] sm:$0xff]
  %v5047 = vld [vmem:[%s1649 + $0x128] sm:$0xff]
  %v5048 = vld [vmem:[%s1649 + $0x138] sm:$0xff]
  %v5049 = vld [vmem:[%s1649 + $0x140] sm:$0xff]
  %v5050 = vld [vmem:[%s1649 + $0x150] sm:$0xff]
  %v5051 = vld [vmem:[%s1649 + $0x158] sm:$0xff]
  %v5052 = vld [vmem:[%s1649 + $0x168] sm:$0xff]
  %v5053 = vld [vmem:[%s1649 + $0x170] sm:$0xff]
  %v5054 = vld [vmem:[%s1649 + $0x1b0] sm:$0xff]
  %v5055 = vld [vmem:[%s1649 + $0x1b8] sm:$0xff]
  %v5056 = vld [vmem:[%s1649 + $0x1c8] sm:$0xff]
  %v5057 = vld [vmem:[%s1649 + $0x1d0] sm:$0xff]
  %v5058 = vld [vmem:[%s1649 + $0x1e0] sm:$0xff]
  %v5059 = vld [vmem:[%s1649 + $0x1e8] sm:$0xff]
  %v5060 = vld [vmem:[%s1649 + $0x1f8] sm:$0xff]
  %v5061 = vld [vmem:[%s1649 + $0x200] sm:$0xff]
  %v5062 = vld [vmem:[%s1649 + $0x210] sm:$0xff]
  %v5063 = vld [vmem:[%s1649 + $0x218] sm:$0xff]
  %v5064 = vld [vmem:[%s1649 + $0x228] sm:$0xff]
  %v5065 = vld [vmem:[%s1649 + $0x230] sm:$0xff]
  %v5066 = vld [vmem:[%s1649 + $0x240] sm:$0xff]
  %v5067 = vld [vmem:[%s1649 + $0x248] sm:$0xff]
  %v5068 = vld [vmem:[%s1649 + $0x258] sm:$0xff]
  %v5069 = vld [vmem:[%s1649 + $0x260] sm:$0xff]
  %v5070 = vld [vmem:[%s1649 + $0x270] sm:$0xff]
  %v5071 = vld [vmem:[%s1649 + $0x278] sm:$0xff]
  %v5072 = vld [vmem:[%s1649 + $0x288] sm:$0xff]
  %v5073 = vld [vmem:[%s1649 + $0x290] sm:$0xff]
  %v5074 = vld [vmem:[%s1649 + $0x2a0] sm:$0xff]
  %v5075 = vld [vmem:[%s1649 + $0x2a8] sm:$0xff]
  %v5076 = vld [vmem:[%s1649 + $0x2b8] sm:$0xff]
  %v5077 = vld [vmem:[%s1649 + $0x2c0] sm:$0xff]
  %v5078 = vld [vmem:[%s1649 + $0x2d0] sm:$0xff]
  %v5079 = vld [vmem:[%s1649 + $0x2d8] sm:$0xff]
  %v5080 = vld [vmem:[%s1649 + $0x2e8] sm:$0xff]
  %v5081 = vld [vmem:[%s1649 + $0x2f0] sm:$0xff]
  %v5082 = vld [vmem:[%s1649 + $0x300] sm:$0xff]
  %v5083 = vld [vmem:[%s1649 + $0x308] sm:$0xff]
  %v5084 = vld [vmem:[%s1649 + $0x318] sm:$0xff]
  %v5085 = vld [vmem:[%s1649 + $0x320] sm:$0xff]
  %v5086 = vpack.c.bf16 %v5023, %v5022
  %v5087 = vpack.c.bf16 %v5025, %v5024
  %v5088 = vpack.c.bf16 %v5027, %v5026
  %v5089 = vpack.c.bf16 %v5029, %v5028
  %v5090 = vpack.c.bf16 %v5031, %v5030
  %v5091 = vpack.c.bf16 %v5033, %v5032
  %v5092 = vpack.c.bf16 %v5035, %v5034
  %v5093 = vpack.c.bf16 %v5037, %v5036
  %v5094 = vpack.c.bf16 %v5039, %v5038
  %v5095 = vpack.c.bf16 %v5041, %v5040
  %v5096 = vpack.c.bf16 %v5043, %v5042
  %v5097 = vpack.c.bf16 %v5045, %v5044
  %v5098 = vpack.c.bf16 %v5047, %v5046
  %v5099 = vpack.c.bf16 %v5049, %v5048
  %v5100 = vpack.c.bf16 %v5051, %v5050
  %v5101 = vpack.c.bf16 %v5053, %v5052
  %v5102 = vpack.c.bf16 %v5055, %v5054
  %v5103 = vpack.c.bf16 %v5057, %v5056
  %v5104 = vpack.c.bf16 %v5059, %v5058
  %v5105 = vpack.c.bf16 %v5061, %v5060
  %v5106 = vpack.c.bf16 %v5063, %v5062
  %v5107 = vpack.c.bf16 %v5065, %v5064
  %v5108 = vpack.c.bf16 %v5067, %v5066
  %v5109 = vpack.c.bf16 %v5069, %v5068
  %v5110 = vpack.c.bf16 %v5071, %v5070
  %v5111 = vpack.c.bf16 %v5073, %v5072
  %v5112 = vpack.c.bf16 %v5075, %v5074
  %v5113 = vpack.c.bf16 %v5077, %v5076
  %v5114 = vpack.c.bf16 %v5079, %v5078
  %v5115 = vpack.c.bf16 %v5081, %v5080
  %v5116 = vpack.c.bf16 %v5083, %v5082
  %v5117 = vpack.c.bf16 %v5085, %v5084
  %5150 = vrot.lane.b32.xlu0 %v5086, 24
  %v5151 = vpop.permute.xlu0 %5150
  %5152 = vrot.lane.b32.xlu0 %v5087, 24
  %v5153 = vpop.permute.xlu0 %5152
  %5154 = vrot.lane.b32.xlu0 %v5088, 24
  %v5155 = vpop.permute.xlu0 %5154
  %5156 = vrot.lane.b32.xlu0 %v5089, 24
  %v5157 = vpop.permute.xlu0 %5156
  %5158 = vrot.lane.b32.xlu0 %v5090, 24
  %v5159 = vpop.permute.xlu0 %5158
  %5160 = vrot.lane.b32.xlu0 %v5091, 24
  %v5161 = vpop.permute.xlu0 %5160
  %5162 = vrot.lane.b32.xlu0 %v5092, 24
  %v5163 = vpop.permute.xlu0 %5162
  %5164 = vrot.lane.b32.xlu0 %v5093, 24
  %v5165 = vpop.permute.xlu0 %5164
  %5166 = vrot.lane.b32.xlu0 %v5094, 24
  %v5167 = vpop.permute.xlu0 %5166
  %5168 = vrot.lane.b32.xlu0 %v5095, 24
  %v5169 = vpop.permute.xlu0 %5168
  %5170 = vrot.lane.b32.xlu0 %v5096, 24
  %v5171 = vpop.permute.xlu0 %5170
  %5172 = vrot.lane.b32.xlu0 %v5097, 24
  %v5173 = vpop.permute.xlu0 %5172
  %5174 = vrot.lane.b32.xlu0 %v5098, 24
  %v5175 = vpop.permute.xlu0 %5174
  %5176 = vrot.lane.b32.xlu0 %v5099, 24
  %v5177 = vpop.permute.xlu0 %5176
  %5178 = vrot.lane.b32.xlu0 %v5100, 24
  %v5179 = vpop.permute.xlu0 %5178
  %5180 = vrot.lane.b32.xlu0 %v5101, 24
  %v5181 = vpop.permute.xlu0 %5180
  %5182 = vrot.lane.b32.xlu0 %v5102, 24
  %v5183 = vpop.permute.xlu0 %5182
  %5184 = vrot.lane.b32.xlu0 %v5103, 24
  %v5185 = vpop.permute.xlu0 %5184
  %5186 = vrot.lane.b32.xlu0 %v5104, 24
  %v5187 = vpop.permute.xlu0 %5186
  %5188 = vrot.lane.b32.xlu0 %v5105, 24
  %v5189 = vpop.permute.xlu0 %5188
  %5190 = vrot.lane.b32.xlu0 %v5106, 24
  %v5191 = vpop.permute.xlu0 %5190
  %5192 = vrot.lane.b32.xlu0 %v5107, 24
  %v5193 = vpop.permute.xlu0 %5192
  %5194 = vrot.lane.b32.xlu0 %v5108, 24
  %v5195 = vpop.permute.xlu0 %5194
  %5196 = vrot.lane.b32.xlu0 %v5109, 24
  %v5197 = vpop.permute.xlu0 %5196
  %5198 = vrot.lane.b32.xlu0 %v5110, 24
  %v5199 = vpop.permute.xlu0 %5198
  %5200 = vrot.lane.b32.xlu0 %v5111, 24
  %v5201 = vpop.permute.xlu0 %5200
  %5202 = vrot.lane.b32.xlu0 %v5112, 24
  %v5203 = vpop.permute.xlu0 %5202
  %5204 = vrot.lane.b32.xlu0 %v5113, 24
  %v5205 = vpop.permute.xlu0 %5204
  %5206 = vrot.lane.b32.xlu0 %v5114, 24
  %v5207 = vpop.permute.xlu0 %5206
  %5208 = vrot.lane.b32.xlu0 %v5115, 24
  %v5209 = vpop.permute.xlu0 %5208
  %5210 = vrot.lane.b32.xlu0 %v5116, 24
  %v5211 = vpop.permute.xlu0 %5210
  %5212 = vrot.lane.b32.xlu0 %v5117, 24
  %v5213 = vpop.permute.xlu0 %5212
  %5246 = vst.msk [vmem:[#allocation3] sm:$0xff] %vm1874, %v5151
  %5247 = vst.msk [vmem:[#allocation3 + $0x8] sm:$0xff] %vm1874, %v5153
  %5248 = vst.msk [vmem:[#allocation3 + $0x10] sm:$0xff] %vm1874, %v5155
  %5249 = vst.msk [vmem:[#allocation3 + $0x18] sm:$0xff] %vm1874, %v5157
  %5250 = vst.msk [vmem:[#allocation3 + $0x20] sm:$0xff] %vm1874, %v5159
  %5251 = vst.msk [vmem:[#allocation3 + $0x28] sm:$0xff] %vm1874, %v5161
  %5252 = vst.msk [vmem:[#allocation3 + $0x30] sm:$0xff] %vm1874, %v5163
  %5253 = vst.msk [vmem:[#allocation3 + $0x38] sm:$0xff] %vm1874, %v5165
  %5254 = vst.msk [vmem:[#allocation3 + $0x40] sm:$0xff] %vm1874, %v5167
  %5255 = vst.msk [vmem:[#allocation3 + $0x48] sm:$0xff] %vm1874, %v5169
  %5256 = vst.msk [vmem:[#allocation3 + $0x50] sm:$0xff] %vm1874, %v5171
  %5257 = vst.msk [vmem:[#allocation3 + $0x58] sm:$0xff] %vm1874, %v5173
  %5258 = vst.msk [vmem:[#allocation3 + $0x60] sm:$0xff] %vm1874, %v5175
  %5259 = vst.msk [vmem:[#allocation3 + $0x68] sm:$0xff] %vm1874, %v5177
  %5260 = vst.msk [vmem:[#allocation3 + $0x70] sm:$0xff] %vm1874, %v5179
  %5261 = vst.msk [vmem:[#allocation3 + $0x78] sm:$0xff] %vm1874, %v5181
  %5262 = vst.msk [vmem:[#allocation3 + $0x80] sm:$0xff] %vm1874, %v5183
  %5263 = vst.msk [vmem:[#allocation3 + $0x88] sm:$0xff] %vm1874, %v5185
  %5264 = vst.msk [vmem:[#allocation3 + $0x90] sm:$0xff] %vm1874, %v5187
  %5265 = vst.msk [vmem:[#allocation3 + $0x98] sm:$0xff] %vm1874, %v5189
  %5266 = vst.msk [vmem:[#allocation3 + $0xa0] sm:$0xff] %vm1874, %v5191
  %5267 = vst.msk [vmem:[#allocation3 + $0xa8] sm:$0xff] %vm1874, %v5193
  %5268 = vst.msk [vmem:[#allocation3 + $0xb0] sm:$0xff] %vm1874, %v5195
  %5269 = vst.msk [vmem:[#allocation3 + $0xb8] sm:$0xff] %vm1874, %v5197
  %5270 = vst.msk [vmem:[#allocation3 + $0xc0] sm:$0xff] %vm1874, %v5199
  %5271 = vst.msk [vmem:[#allocation3 + $0xc8] sm:$0xff] %vm1874, %v5201
  %5272 = vst.msk [vmem:[#allocation3 + $0xd0] sm:$0xff] %vm1874, %v5203
  %5273 = vst.msk [vmem:[#allocation3 + $0xd8] sm:$0xff] %vm1874, %v5205
  %5274 = vst.msk [vmem:[#allocation3 + $0xe0] sm:$0xff] %vm1874, %v5207
  %5275 = vst.msk [vmem:[#allocation3 + $0xe8] sm:$0xff] %vm1874, %v5209
  %5276 = vst.msk [vmem:[#allocation3 + $0xf0] sm:$0xff] %vm1874, %v5211
  %5277 = vst.msk [vmem:[#allocation3 + $0xf8] sm:$0xff] %vm1874, %v5213
  %v5278 = vld [vmem:[%s1649 + $0x1] sm:$0xff]
  %v5279 = vld [vmem:[%s1649 + $0x9] sm:$0xff]
  %v5280 = vld [vmem:[%s1649 + $0x19] sm:$0xff]
  %v5281 = vld [vmem:[%s1649 + $0x21] sm:$0xff]
  %v5282 = vld [vmem:[%s1649 + $0x31] sm:$0xff]
  %v5283 = vld [vmem:[%s1649 + $0x39] sm:$0xff]
  %v5284 = vld [vmem:[%s1649 + $0x49] sm:$0xff]
  %v5285 = vld [vmem:[%s1649 + $0x51] sm:$0xff]
  %v5286 = vld [vmem:[%s1649 + $0x61] sm:$0xff]
  %v5287 = vld [vmem:[%s1649 + $0x69] sm:$0xff]
  %v5288 = vld [vmem:[%s1649 + $0x79] sm:$0xff]
  %v5289 = vld [vmem:[%s1649 + $0x81] sm:$0xff]
  %v5290 = vld [vmem:[%s1649 + $0x91] sm:$0xff]
  %v5291 = vld [vmem:[%s1649 + $0x99] sm:$0xff]
  %v5292 = vld [vmem:[%s1649 + $0xa9] sm:$0xff]
  %v5293 = vld [vmem:[%s1649 + $0xb1] sm:$0xff]
  %v5294 = vld [vmem:[%s1649 + $0xc1] sm:$0xff]
  %v5295 = vld [vmem:[%s1649 + $0xc9] sm:$0xff]
  %v5296 = vld [vmem:[%s1649 + $0xd9] sm:$0xff]
  %v5297 = vld [vmem:[%s1649 + $0xe1] sm:$0xff]
  %v5298 = vld [vmem:[%s1649 + $0xf1] sm:$0xff]
  %v5299 = vld [vmem:[%s1649 + $0xf9] sm:$0xff]
  %v5300 = vld [vmem:[%s1649 + $0x109] sm:$0xff]
  %v5301 = vld [vmem:[%s1649 + $0x111] sm:$0xff]
  %v5302 = vld [vmem:[%s1649 + $0x121] sm:$0xff]
  %v5303 = vld [vmem:[%s1649 + $0x129] sm:$0xff]
  %v5304 = vld [vmem:[%s1649 + $0x139] sm:$0xff]
  %v5305 = vld [vmem:[%s1649 + $0x141] sm:$0xff]
  %v5306 = vld [vmem:[%s1649 + $0x151] sm:$0xff]
  %v5307 = vld [vmem:[%s1649 + $0x159] sm:$0xff]
  %v5308 = vld [vmem:[%s1649 + $0x169] sm:$0xff]
  %v5309 = vld [vmem:[%s1649 + $0x171] sm:$0xff]
  %v5310 = vld [vmem:[%s1649 + $0x1b1] sm:$0xff]
  %v5311 = vld [vmem:[%s1649 + $0x1b9] sm:$0xff]
  %v5312 = vld [vmem:[%s1649 + $0x1c9] sm:$0xff]
  %v5313 = vld [vmem:[%s1649 + $0x1d1] sm:$0xff]
  %v5314 = vld [vmem:[%s1649 + $0x1e1] sm:$0xff]
  %v5315 = vld [vmem:[%s1649 + $0x1e9] sm:$0xff]
  %v5316 = vld [vmem:[%s1649 + $0x1f9] sm:$0xff]
  %v5317 = vld [vmem:[%s1649 + $0x201] sm:$0xff]
  %v5318 = vld [vmem:[%s1649 + $0x211] sm:$0xff]
  %v5319 = vld [vmem:[%s1649 + $0x219] sm:$0xff]
  %v5320 = vld [vmem:[%s1649 + $0x229] sm:$0xff]
  %v5321 = vld [vmem:[%s1649 + $0x231] sm:$0xff]
  %v5322 = vld [vmem:[%s1649 + $0x241] sm:$0xff]
  %v5323 = vld [vmem:[%s1649 + $0x249] sm:$0xff]
  %v5324 = vld [vmem:[%s1649 + $0x259] sm:$0xff]
  %v5325 = vld [vmem:[%s1649 + $0x261] sm:$0xff]
  %v5326 = vld [vmem:[%s1649 + $0x271] sm:$0xff]
  %v5327 = vld [vmem:[%s1649 + $0x279] sm:$0xff]
  %v5328 = vld [vmem:[%s1649 + $0x289] sm:$0xff]
  %v5329 = vld [vmem:[%s1649 + $0x291] sm:$0xff]
  %v5330 = vld [vmem:[%s1649 + $0x2a1] sm:$0xff]
  %v5331 = vld [vmem:[%s1649 + $0x2a9] sm:$0xff]
  %v5332 = vld [vmem:[%s1649 + $0x2b9] sm:$0xff]
  %v5333 = vld [vmem:[%s1649 + $0x2c1] sm:$0xff]
  %v5334 = vld [vmem:[%s1649 + $0x2d1] sm:$0xff]
  %v5335 = vld [vmem:[%s1649 + $0x2d9] sm:$0xff]
  %v5336 = vld [vmem:[%s1649 + $0x2e9] sm:$0xff]
  %v5337 = vld [vmem:[%s1649 + $0x2f1] sm:$0xff]
  %v5338 = vld [vmem:[%s1649 + $0x301] sm:$0xff]
  %v5339 = vld [vmem:[%s1649 + $0x309] sm:$0xff]
  %v5340 = vld [vmem:[%s1649 + $0x319] sm:$0xff]
  %v5341 = vld [vmem:[%s1649 + $0x321] sm:$0xff]
  %v5342 = vpack.c.bf16 %v5279, %v5278
  %v5343 = vpack.c.bf16 %v5281, %v5280
  %v5344 = vpack.c.bf16 %v5283, %v5282
  %v5345 = vpack.c.bf16 %v5285, %v5284
  %v5346 = vpack.c.bf16 %v5287, %v5286
  %v5347 = vpack.c.bf16 %v5289, %v5288
  %v5348 = vpack.c.bf16 %v5291, %v5290
  %v5349 = vpack.c.bf16 %v5293, %v5292
  %v5350 = vpack.c.bf16 %v5295, %v5294
  %v5351 = vpack.c.bf16 %v5297, %v5296
  %v5352 = vpack.c.bf16 %v5299, %v5298
  %v5353 = vpack.c.bf16 %v5301, %v5300
  %v5354 = vpack.c.bf16 %v5303, %v5302
  %v5355 = vpack.c.bf16 %v5305, %v5304
  %v5356 = vpack.c.bf16 %v5307, %v5306
  %v5357 = vpack.c.bf16 %v5309, %v5308
  %v5358 = vpack.c.bf16 %v5311, %v5310
  %v5359 = vpack.c.bf16 %v5313, %v5312
  %v5360 = vpack.c.bf16 %v5315, %v5314
  %v5361 = vpack.c.bf16 %v5317, %v5316
  %v5362 = vpack.c.bf16 %v5319, %v5318
  %v5363 = vpack.c.bf16 %v5321, %v5320
  %v5364 = vpack.c.bf16 %v5323, %v5322
  %v5365 = vpack.c.bf16 %v5325, %v5324
  %v5366 = vpack.c.bf16 %v5327, %v5326
  %v5367 = vpack.c.bf16 %v5329, %v5328
  %v5368 = vpack.c.bf16 %v5331, %v5330
  %v5369 = vpack.c.bf16 %v5333, %v5332
  %v5370 = vpack.c.bf16 %v5335, %v5334
  %v5371 = vpack.c.bf16 %v5337, %v5336
  %v5372 = vpack.c.bf16 %v5339, %v5338
  %v5373 = vpack.c.bf16 %v5341, %v5340
  %5406 = vrot.lane.b32.xlu0 %v5342, 28
  %v5407 = vpop.permute.xlu0 %5406
  %5408 = vrot.lane.b32.xlu0 %v5343, 28
  %v5409 = vpop.permute.xlu0 %5408
  %5410 = vrot.lane.b32.xlu0 %v5344, 28
  %v5411 = vpop.permute.xlu0 %5410
  %5412 = vrot.lane.b32.xlu0 %v5345, 28
  %v5413 = vpop.permute.xlu0 %5412
  %5414 = vrot.lane.b32.xlu0 %v5346, 28
  %v5415 = vpop.permute.xlu0 %5414
  %5416 = vrot.lane.b32.xlu0 %v5347, 28
  %v5417 = vpop.permute.xlu0 %5416
  %5418 = vrot.lane.b32.xlu0 %v5348, 28
  %v5419 = vpop.permute.xlu0 %5418
  %5420 = vrot.lane.b32.xlu0 %v5349, 28
  %v5421 = vpop.permute.xlu0 %5420
  %5422 = vrot.lane.b32.xlu0 %v5350, 28
  %v5423 = vpop.permute.xlu0 %5422
  %5424 = vrot.lane.b32.xlu0 %v5351, 28
  %v5425 = vpop.permute.xlu0 %5424
  %5426 = vrot.lane.b32.xlu0 %v5352, 28
  %v5427 = vpop.permute.xlu0 %5426
  %5428 = vrot.lane.b32.xlu0 %v5353, 28
  %v5429 = vpop.permute.xlu0 %5428
  %5430 = vrot.lane.b32.xlu0 %v5354, 28
  %v5431 = vpop.permute.xlu0 %5430
  %5432 = vrot.lane.b32.xlu0 %v5355, 28
  %v5433 = vpop.permute.xlu0 %5432
  %5434 = vrot.lane.b32.xlu0 %v5356, 28
  %v5435 = vpop.permute.xlu0 %5434
  %5436 = vrot.lane.b32.xlu0 %v5357, 28
  %v5437 = vpop.permute.xlu0 %5436
  %5438 = vrot.lane.b32.xlu0 %v5358, 28
  %v5439 = vpop.permute.xlu0 %5438
  %5440 = vrot.lane.b32.xlu0 %v5359, 28
  %v5441 = vpop.permute.xlu0 %5440
  %5442 = vrot.lane.b32.xlu0 %v5360, 28
  %v5443 = vpop.permute.xlu0 %5442
  %5444 = vrot.lane.b32.xlu0 %v5361, 28
  %v5445 = vpop.permute.xlu0 %5444
  %5446 = vrot.lane.b32.xlu0 %v5362, 28
  %v5447 = vpop.permute.xlu0 %5446
  %5448 = vrot.lane.b32.xlu0 %v5363, 28
  %v5449 = vpop.permute.xlu0 %5448
  %5450 = vrot.lane.b32.xlu0 %v5364, 28
  %v5451 = vpop.permute.xlu0 %5450
  %5452 = vrot.lane.b32.xlu0 %v5365, 28
  %v5453 = vpop.permute.xlu0 %5452
  %5454 = vrot.lane.b32.xlu0 %v5366, 28
  %v5455 = vpop.permute.xlu0 %5454
  %5456 = vrot.lane.b32.xlu0 %v5367, 28
  %v5457 = vpop.permute.xlu0 %5456
  %5458 = vrot.lane.b32.xlu0 %v5368, 28
  %v5459 = vpop.permute.xlu0 %5458
  %5460 = vrot.lane.b32.xlu0 %v5369, 28
  %v5461 = vpop.permute.xlu0 %5460
  %5462 = vrot.lane.b32.xlu0 %v5370, 28
  %v5463 = vpop.permute.xlu0 %5462
  %5464 = vrot.lane.b32.xlu0 %v5371, 28
  %v5465 = vpop.permute.xlu0 %5464
  %5466 = vrot.lane.b32.xlu0 %v5372, 28
  %v5467 = vpop.permute.xlu0 %5466
  %5468 = vrot.lane.b32.xlu0 %v5373, 28
  %v5469 = vpop.permute.xlu0 %5468
  %5502 = vst.msk [vmem:[#allocation3] sm:$0xff] %vm2131, %v5407
  %5503 = vst.msk [vmem:[#allocation3 + $0x8] sm:$0xff] %vm2131, %v5409
  %5504 = vst.msk [vmem:[#allocation3 + $0x10] sm:$0xff] %vm2131, %v5411
  %5505 = vst.msk [vmem:[#allocation3 + $0x18] sm:$0xff] %vm2131, %v5413
  %5506 = vst.msk [vmem:[#allocation3 + $0x20] sm:$0xff] %vm2131, %v5415
  %5507 = vst.msk [vmem:[#allocation3 + $0x28] sm:$0xff] %vm2131, %v5417
  %5508 = vst.msk [vmem:[#allocation3 + $0x30] sm:$0xff] %vm2131, %v5419
  %5509 = vst.msk [vmem:[#allocation3 + $0x38] sm:$0xff] %vm2131, %v5421
  %5510 = vst.msk [vmem:[#allocation3 + $0x40] sm:$0xff] %vm2131, %v5423
  %5511 = vst.msk [vmem:[#allocation3 + $0x48] sm:$0xff] %vm2131, %v5425
  %5512 = vst.msk [vmem:[#allocation3 + $0x50] sm:$0xff] %vm2131, %v5427
  %5513 = vst.msk [vmem:[#allocation3 + $0x58] sm:$0xff] %vm2131, %v5429
  %5514 = vst.msk [vmem:[#allocation3 + $0x60] sm:$0xff] %vm2131, %v5431
  %5515 = vst.msk [vmem:[#allocation3 + $0x68] sm:$0xff] %vm2131, %v5433
  %5516 = vst.msk [vmem:[#allocation3 + $0x70] sm:$0xff] %vm2131, %v5435
  %5517 = vst.msk [vmem:[#allocation3 + $0x78] sm:$0xff] %vm2131, %v5437
  %5518 = vst.msk [vmem:[#allocation3 + $0x80] sm:$0xff] %vm2131, %v5439
  %5519 = vst.msk [vmem:[#allocation3 + $0x88] sm:$0xff] %vm2131, %v5441
  %5520 = vst.msk [vmem:[#allocation3 + $0x90] sm:$0xff] %vm2131, %v5443
  %5521 = vst.msk [vmem:[#allocation3 + $0x98] sm:$0xff] %vm2131, %v5445
  %5522 = vst.msk [vmem:[#allocation3 + $0xa0] sm:$0xff] %vm2131, %v5447
  %5523 = vst.msk [vmem:[#allocation3 + $0xa8] sm:$0xff] %vm2131, %v5449
  %5524 = vst.msk [vmem:[#allocation3 + $0xb0] sm:$0xff] %vm2131, %v5451
  %5525 = vst.msk [vmem:[#allocation3 + $0xb8] sm:$0xff] %vm2131, %v5453
  %5526 = vst.msk [vmem:[#allocation3 + $0xc0] sm:$0xff] %vm2131, %v5455
  %5527 = vst.msk [vmem:[#allocation3 + $0xc8] sm:$0xff] %vm2131, %v5457
  %5528 = vst.msk [vmem:[#allocation3 + $0xd0] sm:$0xff] %vm2131, %v5459
  %5529 = vst.msk [vmem:[#allocation3 + $0xd8] sm:$0xff] %vm2131, %v5461
  %5530 = vst.msk [vmem:[#allocation3 + $0xe0] sm:$0xff] %vm2131, %v5463
  %5531 = vst.msk [vmem:[#allocation3 + $0xe8] sm:$0xff] %vm2131, %v5465
  %5532 = vst.msk [vmem:[#allocation3 + $0xf0] sm:$0xff] %vm2131, %v5467
  %5533 = vst.msk [vmem:[#allocation3 + $0xf8] sm:$0xff] %vm2131, %v5469
  %v5534 = vld [vmem:[%s1649 + $0x2] sm:$0xff]
  %v5535 = vld [vmem:[%s1649 + $0xa] sm:$0xff]
  %v5536 = vld [vmem:[%s1649 + $0x1a] sm:$0xff]
  %v5537 = vld [vmem:[%s1649 + $0x22] sm:$0xff]
  %v5538 = vld [vmem:[%s1649 + $0x32] sm:$0xff]
  %v5539 = vld [vmem:[%s1649 + $0x3a] sm:$0xff]
  %v5540 = vld [vmem:[%s1649 + $0x4a] sm:$0xff]
  %v5541 = vld [vmem:[%s1649 + $0x52] sm:$0xff]
  %v5542 = vld [vmem:[%s1649 + $0x62] sm:$0xff]
  %v5543 = vld [vmem:[%s1649 + $0x6a] sm:$0xff]
  %v5544 = vld [vmem:[%s1649 + $0x7a] sm:$0xff]
  %v5545 = vld [vmem:[%s1649 + $0x82] sm:$0xff]
  %v5546 = vld [vmem:[%s1649 + $0x92] sm:$0xff]
  %v5547 = vld [vmem:[%s1649 + $0x9a] sm:$0xff]
  %v5548 = vld [vmem:[%s1649 + $0xaa] sm:$0xff]
  %v5549 = vld [vmem:[%s1649 + $0xb2] sm:$0xff]
  %v5550 = vld [vmem:[%s1649 + $0xc2] sm:$0xff]
  %v5551 = vld [vmem:[%s1649 + $0xca] sm:$0xff]
  %v5552 = vld [vmem:[%s1649 + $0xda] sm:$0xff]
  %v5553 = vld [vmem:[%s1649 + $0xe2] sm:$0xff]
  %v5554 = vld [vmem:[%s1649 + $0xf2] sm:$0xff]
  %v5555 = vld [vmem:[%s1649 + $0xfa] sm:$0xff]
  %v5556 = vld [vmem:[%s1649 + $0x10a] sm:$0xff]
  %v5557 = vld [vmem:[%s1649 + $0x112] sm:$0xff]
  %v5558 = vld [vmem:[%s1649 + $0x122] sm:$0xff]
  %v5559 = vld [vmem:[%s1649 + $0x12a] sm:$0xff]
  %v5560 = vld [vmem:[%s1649 + $0x13a] sm:$0xff]
  %v5561 = vld [vmem:[%s1649 + $0x142] sm:$0xff]
  %v5562 = vld [vmem:[%s1649 + $0x152] sm:$0xff]
  %v5563 = vld [vmem:[%s1649 + $0x15a] sm:$0xff]
  %v5564 = vld [vmem:[%s1649 + $0x16a] sm:$0xff]
  %v5565 = vld [vmem:[%s1649 + $0x172] sm:$0xff]
  %v5566 = vld [vmem:[%s1649 + $0x1b2] sm:$0xff]
  %v5567 = vld [vmem:[%s1649 + $0x1ba] sm:$0xff]
  %v5568 = vld [vmem:[%s1649 + $0x1ca] sm:$0xff]
  %v5569 = vld [vmem:[%s1649 + $0x1d2] sm:$0xff]
  %v5570 = vld [vmem:[%s1649 + $0x1e2] sm:$0xff]
  %v5571 = vld [vmem:[%s1649 + $0x1ea] sm:$0xff]
  %v5572 = vld [vmem:[%s1649 + $0x1fa] sm:$0xff]
  %v5573 = vld [vmem:[%s1649 + $0x202] sm:$0xff]
  %v5574 = vld [vmem:[%s1649 + $0x212] sm:$0xff]
  %v5575 = vld [vmem:[%s1649 + $0x21a] sm:$0xff]
  %v5576 = vld [vmem:[%s1649 + $0x22a] sm:$0xff]
  %v5577 = vld [vmem:[%s1649 + $0x232] sm:$0xff]
  %v5578 = vld [vmem:[%s1649 + $0x242] sm:$0xff]
  %v5579 = vld [vmem:[%s1649 + $0x24a] sm:$0xff]
  %v5580 = vld [vmem:[%s1649 + $0x25a] sm:$0xff]
  %v5581 = vld [vmem:[%s1649 + $0x262] sm:$0xff]
  %v5582 = vld [vmem:[%s1649 + $0x272] sm:$0xff]
  %v5583 = vld [vmem:[%s1649 + $0x27a] sm:$0xff]
  %v5584 = vld [vmem:[%s1649 + $0x28a] sm:$0xff]
  %v5585 = vld [vmem:[%s1649 + $0x292] sm:$0xff]
  %v5586 = vld [vmem:[%s1649 + $0x2a2] sm:$0xff]
  %v5587 = vld [vmem:[%s1649 + $0x2aa] sm:$0xff]
  %v5588 = vld [vmem:[%s1649 + $0x2ba] sm:$0xff]
  %v5589 = vld [vmem:[%s1649 + $0x2c2] sm:$0xff]
  %v5590 = vld [vmem:[%s1649 + $0x2d2] sm:$0xff]
  %v5591 = vld [vmem:[%s1649 + $0x2da] sm:$0xff]
  %v5592 = vld [vmem:[%s1649 + $0x2ea] sm:$0xff]
  %v5593 = vld [vmem:[%s1649 + $0x2f2] sm:$0xff]
  %v5594 = vld [vmem:[%s1649 + $0x302] sm:$0xff]
  %v5595 = vld [vmem:[%s1649 + $0x30a] sm:$0xff]
  %v5596 = vld [vmem:[%s1649 + $0x31a] sm:$0xff]
  %v5597 = vld [vmem:[%s1649 + $0x322] sm:$0xff]
  %v5598 = vpack.c.bf16 %v5535, %v5534
  %v5599 = vpack.c.bf16 %v5537, %v5536
  %v5600 = vpack.c.bf16 %v5539, %v5538
  %v5601 = vpack.c.bf16 %v5541, %v5540
  %v5602 = vpack.c.bf16 %v5543, %v5542
  %v5603 = vpack.c.bf16 %v5545, %v5544
  %v5604 = vpack.c.bf16 %v5547, %v5546
  %v5605 = vpack.c.bf16 %v5549, %v5548
  %v5606 = vpack.c.bf16 %v5551, %v5550
  %v5607 = vpack.c.bf16 %v5553, %v5552
  %v5608 = vpack.c.bf16 %v5555, %v5554
  %v5609 = vpack.c.bf16 %v5557, %v5556
  %v5610 = vpack.c.bf16 %v5559, %v5558
  %v5611 = vpack.c.bf16 %v5561, %v5560
  %v5612 = vpack.c.bf16 %v5563, %v5562
  %v5613 = vpack.c.bf16 %v5565, %v5564
  %v5614 = vpack.c.bf16 %v5567, %v5566
  %v5615 = vpack.c.bf16 %v5569, %v5568
  %v5616 = vpack.c.bf16 %v5571, %v5570
  %v5617 = vpack.c.bf16 %v5573, %v5572
  %v5618 = vpack.c.bf16 %v5575, %v5574
  %v5619 = vpack.c.bf16 %v5577, %v5576
  %v5620 = vpack.c.bf16 %v5579, %v5578
  %v5621 = vpack.c.bf16 %v5581, %v5580
  %v5622 = vpack.c.bf16 %v5583, %v5582
  %v5623 = vpack.c.bf16 %v5585, %v5584
  %v5624 = vpack.c.bf16 %v5587, %v5586
  %v5625 = vpack.c.bf16 %v5589, %v5588
  %v5626 = vpack.c.bf16 %v5591, %v5590
  %v5627 = vpack.c.bf16 %v5593, %v5592
  %v5628 = vpack.c.bf16 %v5595, %v5594
  %v5629 = vpack.c.bf16 %v5597, %v5596
  %5662 = vrot.lane.b32.xlu0 %v5598, 32
  %v5663 = vpop.permute.xlu0 %5662
  %5664 = vrot.lane.b32.xlu0 %v5599, 32
  %v5665 = vpop.permute.xlu0 %5664
  %5666 = vrot.lane.b32.xlu0 %v5600, 32
  %v5667 = vpop.permute.xlu0 %5666
  %5668 = vrot.lane.b32.xlu0 %v5601, 32
  %v5669 = vpop.permute.xlu0 %5668
  %5670 = vrot.lane.b32.xlu0 %v5602, 32
  %v5671 = vpop.permute.xlu0 %5670
  %5672 = vrot.lane.b32.xlu0 %v5603, 32
  %v5673 = vpop.permute.xlu0 %5672
  %5674 = vrot.lane.b32.xlu0 %v5604, 32
  %v5675 = vpop.permute.xlu0 %5674
  %5676 = vrot.lane.b32.xlu0 %v5605, 32
  %v5677 = vpop.permute.xlu0 %5676
  %5678 = vrot.lane.b32.xlu0 %v5606, 32
  %v5679 = vpop.permute.xlu0 %5678
  %5680 = vrot.lane.b32.xlu0 %v5607, 32
  %v5681 = vpop.permute.xlu0 %5680
  %5682 = vrot.lane.b32.xlu0 %v5608, 32
  %v5683 = vpop.permute.xlu0 %5682
  %5684 = vrot.lane.b32.xlu0 %v5609, 32
  %v5685 = vpop.permute.xlu0 %5684
  %5686 = vrot.lane.b32.xlu0 %v5610, 32
  %v5687 = vpop.permute.xlu0 %5686
  %5688 = vrot.lane.b32.xlu0 %v5611, 32
  %v5689 = vpop.permute.xlu0 %5688
  %5690 = vrot.lane.b32.xlu0 %v5612, 32
  %v5691 = vpop.permute.xlu0 %5690
  %5692 = vrot.lane.b32.xlu0 %v5613, 32
  %v5693 = vpop.permute.xlu0 %5692
  %5694 = vrot.lane.b32.xlu0 %v5614, 32
  %v5695 = vpop.permute.xlu0 %5694
  %5696 = vrot.lane.b32.xlu0 %v5615, 32
  %v5697 = vpop.permute.xlu0 %5696
  %5698 = vrot.lane.b32.xlu0 %v5616, 32
  %v5699 = vpop.permute.xlu0 %5698
  %5700 = vrot.lane.b32.xlu0 %v5617, 32
  %v5701 = vpop.permute.xlu0 %5700
  %5702 = vrot.lane.b32.xlu0 %v5618, 32
  %v5703 = vpop.permute.xlu0 %5702
  %5704 = vrot.lane.b32.xlu0 %v5619, 32
  %v5705 = vpop.permute.xlu0 %5704
  %5706 = vrot.lane.b32.xlu0 %v5620, 32
  %v5707 = vpop.permute.xlu0 %5706
  %5708 = vrot.lane.b32.xlu0 %v5621, 32
  %v5709 = vpop.permute.xlu0 %5708
  %5710 = vrot.lane.b32.xlu0 %v5622, 32
  %v5711 = vpop.permute.xlu0 %5710
  %5712 = vrot.lane.b32.xlu0 %v5623, 32
  %v5713 = vpop.permute.xlu0 %5712
  %5714 = vrot.lane.b32.xlu0 %v5624, 32
  %v5715 = vpop.permute.xlu0 %5714
  %5716 = vrot.lane.b32.xlu0 %v5625, 32
  %v5717 = vpop.permute.xlu0 %5716
  %5718 = vrot.lane.b32.xlu0 %v5626, 32
  %v5719 = vpop.permute.xlu0 %5718
  %5720 = vrot.lane.b32.xlu0 %v5627, 32
  %v5721 = vpop.permute.xlu0 %5720
  %5722 = vrot.lane.b32.xlu0 %v5628, 32
  %v5723 = vpop.permute.xlu0 %5722
  %5724 = vrot.lane.b32.xlu0 %v5629, 32
  %v5725 = vpop.permute.xlu0 %5724
  %5758 = vst.msk [vmem:[#allocation3] sm:$0xff] %vm2388, %v5663
  %5759 = vst.msk [vmem:[#allocation3 + $0x8] sm:$0xff] %vm2388, %v5665
  %5760 = vst.msk [vmem:[#allocation3 + $0x10] sm:$0xff] %vm2388, %v5667
  %5761 = vst.msk [vmem:[#allocation3 + $0x18] sm:$0xff] %vm2388, %v5669
  %5762 = vst.msk [vmem:[#allocation3 + $0x20] sm:$0xff] %vm2388, %v5671
  %5763 = vst.msk [vmem:[#allocation3 + $0x28] sm:$0xff] %vm2388, %v5673
  %5764 = vst.msk [vmem:[#allocation3 + $0x30] sm:$0xff] %vm2388, %v5675
  %5765 = vst.msk [vmem:[#allocation3 + $0x38] sm:$0xff] %vm2388, %v5677
  %5766 = vst.msk [vmem:[#allocation3 + $0x40] sm:$0xff] %vm2388, %v5679
  %5767 = vst.msk [vmem:[#allocation3 + $0x48] sm:$0xff] %vm2388, %v5681
  %5768 = vst.msk [vmem:[#allocation3 + $0x50] sm:$0xff] %vm2388, %v5683
  %5769 = vst.msk [vmem:[#allocation3 + $0x58] sm:$0xff] %vm2388, %v5685
  %5770 = vst.msk [vmem:[#allocation3 + $0x60] sm:$0xff] %vm2388, %v5687
  %5771 = vst.msk [vmem:[#allocation3 + $0x68] sm:$0xff] %vm2388, %v5689
  %5772 = vst.msk [vmem:[#allocation3 + $0x70] sm:$0xff] %vm2388, %v5691
  %5773 = vst.msk [vmem:[#allocation3 + $0x78] sm:$0xff] %vm2388, %v5693
  %5774 = vst.msk [vmem:[#allocation3 + $0x80] sm:$0xff] %vm2388, %v5695
  %5775 = vst.msk [vmem:[#allocation3 + $0x88] sm:$0xff] %vm2388, %v5697
  %5776 = vst.msk [vmem:[#allocation3 + $0x90] sm:$0xff] %vm2388, %v5699
  %5777 = vst.msk [vmem:[#allocation3 + $0x98] sm:$0xff] %vm2388, %v5701
  %5778 = vst.msk [vmem:[#allocation3 + $0xa0] sm:$0xff] %vm2388, %v5703
  %5779 = vst.msk [vmem:[#allocation3 + $0xa8] sm:$0xff] %vm2388, %v5705
  %5780 = vst.msk [vmem:[#allocation3 + $0xb0] sm:$0xff] %vm2388, %v5707
  %5781 = vst.msk [vmem:[#allocation3 + $0xb8] sm:$0xff] %vm2388, %v5709
  %5782 = vst.msk [vmem:[#allocation3 + $0xc0] sm:$0xff] %vm2388, %v5711
  %5783 = vst.msk [vmem:[#allocation3 + $0xc8] sm:$0xff] %vm2388, %v5713
  %5784 = vst.msk [vmem:[#allocation3 + $0xd0] sm:$0xff] %vm2388, %v5715
  %5785 = vst.msk [vmem:[#allocation3 + $0xd8] sm:$0xff] %vm2388, %v5717
  %5786 = vst.msk [vmem:[#allocation3 + $0xe0] sm:$0xff] %vm2388, %v5719
  %5787 = vst.msk [vmem:[#allocation3 + $0xe8] sm:$0xff] %vm2388, %v5721
  %5788 = vst.msk [vmem:[#allocation3 + $0xf0] sm:$0xff] %vm2388, %v5723
  %5789 = vst.msk [vmem:[#allocation3 + $0xf8] sm:$0xff] %vm2388, %v5725
  %v5790 = vld [vmem:[#allocation3] sm:$0xff]
  %v5791 = vld [vmem:[#allocation3 + $0x8] sm:$0xff]
  %v5792 = vld [vmem:[#allocation3 + $0x10] sm:$0xff]
  %v5793 = vld [vmem:[#allocation3 + $0x18] sm:$0xff]
  %v5794 = vld [vmem:[#allocation3 + $0x20] sm:$0xff]
  %v5795 = vld [vmem:[#allocation3 + $0x28] sm:$0xff]
  %v5796 = vld [vmem:[#allocation3 + $0x30] sm:$0xff]
  %v5797 = vld [vmem:[#allocation3 + $0x38] sm:$0xff]
  %v5798 = vld [vmem:[#allocation3 + $0x40] sm:$0xff]
  %v5799 = vld [vmem:[#allocation3 + $0x48] sm:$0xff]
  %v5800 = vld [vmem:[#allocation3 + $0x50] sm:$0xff]
  %v5801 = vld [vmem:[#allocation3 + $0x58] sm:$0xff]
  %v5802 = vld [vmem:[#allocation3 + $0x60] sm:$0xff]
  %v5803 = vld [vmem:[#allocation3 + $0x68] sm:$0xff]
  %v5804 = vld [vmem:[#allocation3 + $0x70] sm:$0xff]
  %v5805 = vld [vmem:[#allocation3 + $0x78] sm:$0xff]
  %v5806 = vld [vmem:[#allocation3 + $0x80] sm:$0xff]
  %v5807 = vld [vmem:[#allocation3 + $0x88] sm:$0xff]
  %v5808 = vld [vmem:[#allocation3 + $0x90] sm:$0xff]
  %v5809 = vld [vmem:[#allocation3 + $0x98] sm:$0xff]
  %v5810 = vld [vmem:[#allocation3 + $0xa0] sm:$0xff]
  %v5811 = vld [vmem:[#allocation3 + $0xa8] sm:$0xff]
  %v5812 = vld [vmem:[#allocation3 + $0xb0] sm:$0xff]
  %v5813 = vld [vmem:[#allocation3 + $0xb8] sm:$0xff]
  %v5814 = vld [vmem:[#allocation3 + $0xc0] sm:$0xff]
  %v5815 = vld [vmem:[#allocation3 + $0xc8] sm:$0xff]
  %v5816 = vld [vmem:[#allocation3 + $0xd0] sm:$0xff]
  %v5817 = vld [vmem:[#allocation3 + $0xd8] sm:$0xff]
  %v5818 = vld [vmem:[#allocation3 + $0xe0] sm:$0xff]
  %v5819 = vld [vmem:[#allocation3 + $0xe8] sm:$0xff]
  %v5820 = vld [vmem:[#allocation3 + $0xf0] sm:$0xff]
  %v5821 = vld [vmem:[#allocation3 + $0xf8] sm:$0xff]
  %v5822 = vld [vmem:[%s4] sm:$0xf]
  %v5823 = vld [vmem:[%s4 + $0x4] sm:$0xf]
  %v5824 = vld [vmem:[%s4 + $0x8] sm:$0xf]
  %v5825 = vld [vmem:[%s4 + $0xc] sm:$0xf]
  %v5826 = vld [vmem:[%s4 + $0x10] sm:$0x3]
  %v5832 = vunpack.c.l.b16 %v5822
  %v5833 = vunpack.c.l.b16 %v5823
  %v5834 = vunpack.c.l.b16 %v5824
  %v5835 = vunpack.c.l.b16 %v5825
  %v5836 = vunpack.c.l.b16 %v5826
  %v5837 = vpack.c.b16 %v5833, %v5832
  %v5838 = vpack.c.b16 %v5835, %v5834
  %v5839 = vpack.c.b16 %v5836, %v5836
  %v5843 = vsel %vm2473, %v5790, 0
  %v5846 = vsel %vm2473, %v5791, 0
  %v5849 = vsel %vm2473, %v5792, 0
  %v5852 = vsel %vm2473, %v5793, 0
  %v5855 = vsel %vm2473, %v5794, 0
  %v5858 = vsel %vm2473, %v5795, 0
  %v5861 = vsel %vm2473, %v5796, 0
  %v5864 = vsel %vm2473, %v5797, 0
  %v5867 = vsel %vm2473, %v5798, 0
  %v5870 = vsel %vm2473, %v5799, 0
  %v5873 = vsel %vm2473, %v5800, 0
  %v5876 = vsel %vm2473, %v5801, 0
  %v5879 = vsel %vm2473, %v5802, 0
  %v5882 = vsel %vm2473, %v5803, 0
  %v5885 = vsel %vm2473, %v5804, 0
  %v5888 = vsel %vm2473, %v5805, 0
  %v5891 = vsel %vm2473, %v5806, 0
  %v5894 = vsel %vm2473, %v5807, 0
  %v5897 = vsel %vm2473, %v5808, 0
  %v5900 = vsel %vm2473, %v5809, 0
  %v5903 = vsel %vm2473, %v5810, 0
  %v5906 = vsel %vm2473, %v5811, 0
  %v5909 = vsel %vm2473, %v5812, 0
  %v5912 = vsel %vm2473, %v5813, 0
  %v5915 = vsel %vm2473, %v5814, 0
  %v5918 = vsel %vm2473, %v5815, 0
  %v5921 = vsel %vm2473, %v5816, 0
  %v5924 = vsel %vm2473, %v5817, 0
  %v5927 = vsel %vm2473, %v5818, 0
  %v5930 = vsel %vm2473, %v5819, 0
  %v5933 = vsel %vm2473, %v5820, 0
  %v5936 = vsel %vm2473, %v5821, 0
  %v5939 = vsel %vm2570, %v5839, 0
  %5941 = vmatprep.subr.bf16.mxu0 0
  %5942 = vmatpush1.bf16.msra.mxu0 %v5837
  %5943 = vmatprep.subr.bf16.mxu0 0
  %5944 = vmatpush1.bf16.msra.mxu0 %v5838
  %5945 = vmatprep.subr.bf16.mxu0 0
  %5946 = vmatpush1.bf16.msra.mxu0 %v5939
  %5947 = vmatprep.subr.bf16.mxu0 0
  %5948 = vmatpush1.bf16.msra.mxu0 0
  %5949 = vmatprep.subr.bf16.mxu0 0
  %5950 = vmatpush1.bf16.msra.mxu0 0
  %5951 = vmatprep.subr.bf16.mxu0 0
  %5952 = vmatpush1.bf16.msra.mxu0 0
  %5953 = vmatprep.subr.bf16.mxu0 0
  %5954 = vmatpush1.bf16.msra.mxu0 0
  %5955 = vmatprep.subr.bf16.mxu0 0
  %5956 = vmatpush1.bf16.msra.mxu0 0
  %5957 = vmatprep.subr.bf16.mxu0 0
  %5958 = vmatpush1.bf16.msra.mxu0 0
  %5959 = vmatprep.subr.bf16.mxu0 0
  %5960 = vmatpush1.bf16.msra.mxu0 0
  %5961 = vmatprep.subr.bf16.mxu0 0
  %5962 = vmatpush1.bf16.msra.mxu0 0
  %5963 = vmatprep.subr.bf16.mxu0 0
  %5964 = vmatpush1.bf16.msra.mxu0 0
  %5965 = vmatprep.subr.bf16.mxu0 0
  %5966 = vmatpush1.bf16.msra.mxu0 0
  %5967 = vmatprep.subr.bf16.mxu0 0
  %5968 = vmatpush1.bf16.msra.mxu0 0
  %5969 = vmatprep.subr.bf16.mxu0 0
  %5970 = vmatpush1.bf16.msra.mxu0 0
  %5971 = vmatprep.subr.bf16.mxu0 0
  %5972 = vmatpush1.bf16.msra.mxu0 0
  %5973 = vmatprep.mubr.bf16.mxu0 0
  %5974 = vmatmul.mubr.bf16.gmra.mrb[0].mxu0 %v5843
  %v5975 = vpop.f32.mrb[0].mxu0
  %v5976 = vadd.f32 0.0, %v5975
  %v5977 = vpop.f32.mrb[0].mxu0
  %v5978 = vpop.f32.mrb[0].mxu0
  %v5979 = vadd.f32 0.0, %v5978
  %v5980 = vpop.f32.mrb[0].mxu0
  %5981 = vmatprep.mubr.bf16.mxu0 0
  %5982 = vmatmul.mubr.bf16.gmra.mrb[0].mxu0 %v5846
  %v5983 = vpop.f32.mrb[0].mxu0
  %v5984 = vadd.f32 0.0, %v5983
  %v5985 = vpop.f32.mrb[0].mxu0
  %v5986 = vpop.f32.mrb[0].mxu0
  %v5987 = vadd.f32 0.0, %v5986
  %v5988 = vpop.f32.mrb[0].mxu0
  %5989 = vmatprep.mubr.bf16.mxu0 0
  %5990 = vmatmul.mubr.bf16.gmra.mrb[0].mxu0 %v5849
  %v5991 = vpop.f32.mrb[0].mxu0
  %v5992 = vadd.f32 0.0, %v5991
  %v5993 = vpop.f32.mrb[0].mxu0
  %v5994 = vpop.f32.mrb[0].mxu0
  %v5995 = vadd.f32 0.0, %v5994
  %v5996 = vpop.f32.mrb[0].mxu0
  %5997 = vmatprep.mubr.bf16.mxu0 0
  %5998 = vmatmul.mubr.bf16.gmra.mrb[0].mxu0 %v5852
  %v5999 = vpop.f32.mrb[0].mxu0
  %v6000 = vadd.f32 0.0, %v5999
  %v6001 = vpop.f32.mrb[0].mxu0
  %v6002 = vpop.f32.mrb[0].mxu0
  %v6003 = vadd.f32 0.0, %v6002
  %v6004 = vpop.f32.mrb[0].mxu0
  %6005 = vmatprep.mubr.bf16.mxu0 0
  %6006 = vmatmul.mubr.bf16.gmra.mrb[0].mxu0 %v5855
  %v6007 = vpop.f32.mrb[0].mxu0
  %v6008 = vadd.f32 0.0, %v6007
  %v6009 = vpop.f32.mrb[0].mxu0
  %v6010 = vpop.f32.mrb[0].mxu0
  %v6011 = vadd.f32 0.0, %v6010
  %v6012 = vpop.f32.mrb[0].mxu0
  %6013 = vmatprep.mubr.bf16.mxu0 0
  %6014 = vmatmul.mubr.bf16.gmra.mrb[0].mxu0 %v5858
  %v6015 = vpop.f32.mrb[0].mxu0
  %v6016 = vadd.f32 0.0, %v6015
  %v6017 = vpop.f32.mrb[0].mxu0
  %v6018 = vpop.f32.mrb[0].mxu0
  %v6019 = vadd.f32 0.0, %v6018
  %v6020 = vpop.f32.mrb[0].mxu0
  %6021 = vmatprep.mubr.bf16.mxu0 0
  %6022 = vmatmul.mubr.bf16.gmra.mrb[0].mxu0 %v5861
  %v6023 = vpop.f32.mrb[0].mxu0
  %v6024 = vadd.f32 0.0, %v6023
  %v6025 = vpop.f32.mrb[0].mxu0
  %v6026 = vpop.f32.mrb[0].mxu0
  %v6027 = vadd.f32 0.0, %v6026
  %v6028 = vpop.f32.mrb[0].mxu0
  %6029 = vmatprep.mubr.bf16.mxu0 0
  %6030 = vmatmul.mubr.bf16.gmra.mrb[0].mxu0 %v5864
  %v6031 = vpop.f32.mrb[0].mxu0
  %v6032 = vadd.f32 0.0, %v6031
  %v6033 = vpop.f32.mrb[0].mxu0
  %v6034 = vpop.f32.mrb[0].mxu0
  %v6035 = vadd.f32 0.0, %v6034
  %v6036 = vpop.f32.mrb[0].mxu0
  %6037 = vmatprep.mubr.bf16.mxu0 0
  %6038 = vmatmul.mubr.bf16.gmra.mrb[0].mxu0 %v5867
  %v6039 = vpop.f32.mrb[0].mxu0
  %v6040 = vadd.f32 0.0, %v6039
  %v6041 = vpop.f32.mrb[0].mxu0
  %v6042 = vpop.f32.mrb[0].mxu0
  %v6043 = vadd.f32 0.0, %v6042
  %v6044 = vpop.f32.mrb[0].mxu0
  %6045 = vmatprep.mubr.bf16.mxu0 0
  %6046 = vmatmul.mubr.bf16.gmra.mrb[0].mxu0 %v5870
  %v6047 = vpop.f32.mrb[0].mxu0
  %v6048 = vadd.f32 0.0, %v6047
  %v6049 = vpop.f32.mrb[0].mxu0
  %v6050 = vpop.f32.mrb[0].mxu0
  %v6051 = vadd.f32 0.0, %v6050
  %v6052 = vpop.f32.mrb[0].mxu0
  %6053 = vmatprep.mubr.bf16.mxu0 0
  %6054 = vmatmul.mubr.bf16.gmra.mrb[0].mxu0 %v5873
  %v6055 = vpop.f32.mrb[0].mxu0
  %v6056 = vadd.f32 0.0, %v6055
  %v6057 = vpop.f32.mrb[0].mxu0
  %v6058 = vpop.f32.mrb[0].mxu0
  %v6059 = vadd.f32 0.0, %v6058
  %v6060 = vpop.f32.mrb[0].mxu0
  %6061 = vmatprep.mubr.bf16.mxu0 0
  %6062 = vmatmul.mubr.bf16.gmra.mrb[0].mxu0 %v5876
  %v6063 = vpop.f32.mrb[0].mxu0
  %v6064 = vadd.f32 0.0, %v6063
  %v6065 = vpop.f32.mrb[0].mxu0
  %v6066 = vpop.f32.mrb[0].mxu0
  %v6067 = vadd.f32 0.0, %v6066
  %v6068 = vpop.f32.mrb[0].mxu0
  %6069 = vmatprep.mubr.bf16.mxu0 0
  %6070 = vmatmul.mubr.bf16.gmra.mrb[0].mxu0 %v5879
  %v6071 = vpop.f32.mrb[0].mxu0
  %v6072 = vadd.f32 0.0, %v6071
  %v6073 = vpop.f32.mrb[0].mxu0
  %v6074 = vpop.f32.mrb[0].mxu0
  %v6075 = vadd.f32 0.0, %v6074
  %v6076 = vpop.f32.mrb[0].mxu0
  %6077 = vmatprep.mubr.bf16.mxu0 0
  %6078 = vmatmul.mubr.bf16.gmra.mrb[0].mxu0 %v5882
  %v6079 = vpop.f32.mrb[0].mxu0
  %v6080 = vadd.f32 0.0, %v6079
  %v6081 = vpop.f32.mrb[0].mxu0
  %v6082 = vpop.f32.mrb[0].mxu0
  %v6083 = vadd.f32 0.0, %v6082
  %v6084 = vpop.f32.mrb[0].mxu0
  %6085 = vmatprep.mubr.bf16.mxu0 0
  %6086 = vmatmul.mubr.bf16.gmra.mrb[0].mxu0 %v5885
  %v6087 = vpop.f32.mrb[0].mxu0
  %v6088 = vadd.f32 0.0, %v6087
  %v6089 = vpop.f32.mrb[0].mxu0
  %v6090 = vpop.f32.mrb[0].mxu0
  %v6091 = vadd.f32 0.0, %v6090
  %v6092 = vpop.f32.mrb[0].mxu0
  %6093 = vmatprep.mubr.bf16.mxu0 0
  %6094 = vmatmul.mubr.bf16.gmra.mrb[0].mxu0 %v5888
  %v6095 = vpop.f32.mrb[0].mxu0
  %v6096 = vadd.f32 0.0, %v6095
  %v6097 = vpop.f32.mrb[0].mxu0
  %v6098 = vpop.f32.mrb[0].mxu0
  %v6099 = vadd.f32 0.0, %v6098
  %v6100 = vpop.f32.mrb[0].mxu0
  %6101 = vmatprep.mubr.bf16.mxu0 0
  %6102 = vmatmul.mubr.bf16.gmra.mrb[0].mxu0 %v5891
  %v6103 = vpop.f32.mrb[0].mxu0
  %v6104 = vadd.f32 0.0, %v6103
  %v6105 = vpop.f32.mrb[0].mxu0
  %v6106 = vpop.f32.mrb[0].mxu0
  %v6107 = vadd.f32 0.0, %v6106
  %v6108 = vpop.f32.mrb[0].mxu0
  %6109 = vmatprep.mubr.bf16.mxu0 0
  %6110 = vmatmul.mubr.bf16.gmra.mrb[0].mxu0 %v5894
  %v6111 = vpop.f32.mrb[0].mxu0
  %v6112 = vadd.f32 0.0, %v6111
  %v6113 = vpop.f32.mrb[0].mxu0
  %v6114 = vpop.f32.mrb[0].mxu0
  %v6115 = vadd.f32 0.0, %v6114
  %v6116 = vpop.f32.mrb[0].mxu0
  %6117 = vmatprep.mubr.bf16.mxu0 0
  %6118 = vmatmul.mubr.bf16.gmra.mrb[0].mxu0 %v5897
  %v6119 = vpop.f32.mrb[0].mxu0
  %v6120 = vadd.f32 0.0, %v6119
  %v6121 = vpop.f32.mrb[0].mxu0
  %v6122 = vpop.f32.mrb[0].mxu0
  %v6123 = vadd.f32 0.0, %v6122
  %v6124 = vpop.f32.mrb[0].mxu0
  %6125 = vmatprep.mubr.bf16.mxu0 0
  %6126 = vmatmul.mubr.bf16.gmra.mrb[0].mxu0 %v5900
  %v6127 = vpop.f32.mrb[0].mxu0
  %v6128 = vadd.f32 0.0, %v6127
  %v6129 = vpop.f32.mrb[0].mxu0
  %v6130 = vpop.f32.mrb[0].mxu0
  %v6131 = vadd.f32 0.0, %v6130
  %v6132 = vpop.f32.mrb[0].mxu0
  %6133 = vmatprep.mubr.bf16.mxu0 0
  %6134 = vmatmul.mubr.bf16.gmra.mrb[0].mxu0 %v5903
  %v6135 = vpop.f32.mrb[0].mxu0
  %v6136 = vadd.f32 0.0, %v6135
  %v6137 = vpop.f32.mrb[0].mxu0
  %v6138 = vpop.f32.mrb[0].mxu0
  %v6139 = vadd.f32 0.0, %v6138
  %v6140 = vpop.f32.mrb[0].mxu0
  %6141 = vmatprep.mubr.bf16.mxu0 0
  %6142 = vmatmul.mubr.bf16.gmra.mrb[0].mxu0 %v5906
  %v6143 = vpop.f32.mrb[0].mxu0
  %v6144 = vadd.f32 0.0, %v6143
  %v6145 = vpop.f32.mrb[0].mxu0
  %v6146 = vpop.f32.mrb[0].mxu0
  %v6147 = vadd.f32 0.0, %v6146
  %v6148 = vpop.f32.mrb[0].mxu0
  %6149 = vmatprep.mubr.bf16.mxu0 0
  %6150 = vmatmul.mubr.bf16.gmra.mrb[0].mxu0 %v5909
  %v6151 = vpop.f32.mrb[0].mxu0
  %v6152 = vadd.f32 0.0, %v6151
  %v6153 = vpop.f32.mrb[0].mxu0
  %v6154 = vpop.f32.mrb[0].mxu0
  %v6155 = vadd.f32 0.0, %v6154
  %v6156 = vpop.f32.mrb[0].mxu0
  %6157 = vmatprep.mubr.bf16.mxu0 0
  %6158 = vmatmul.mubr.bf16.gmra.mrb[0].mxu0 %v5912
  %v6159 = vpop.f32.mrb[0].mxu0
  %v6160 = vadd.f32 0.0, %v6159
  %v6161 = vpop.f32.mrb[0].mxu0
  %v6162 = vpop.f32.mrb[0].mxu0
  %v6163 = vadd.f32 0.0, %v6162
  %v6164 = vpop.f32.mrb[0].mxu0
  %6165 = vmatprep.mubr.bf16.mxu0 0
  %6166 = vmatmul.mubr.bf16.gmra.mrb[0].mxu0 %v5915
  %v6167 = vpop.f32.mrb[0].mxu0
  %v6168 = vadd.f32 0.0, %v6167
  %v6169 = vpop.f32.mrb[0].mxu0
  %v6170 = vpop.f32.mrb[0].mxu0
  %v6171 = vadd.f32 0.0, %v6170
  %v6172 = vpop.f32.mrb[0].mxu0
  %6173 = vmatprep.mubr.bf16.mxu0 0
  %6174 = vmatmul.mubr.bf16.gmra.mrb[0].mxu0 %v5918
  %v6175 = vpop.f32.mrb[0].mxu0
  %v6176 = vadd.f32 0.0, %v6175
  %v6177 = vpop.f32.mrb[0].mxu0
  %v6178 = vpop.f32.mrb[0].mxu0
  %v6179 = vadd.f32 0.0, %v6178
  %v6180 = vpop.f32.mrb[0].mxu0
  %6181 = vmatprep.mubr.bf16.mxu0 0
  %6182 = vmatmul.mubr.bf16.gmra.mrb[0].mxu0 %v5921
  %v6183 = vpop.f32.mrb[0].mxu0
  %v6184 = vadd.f32 0.0, %v6183
  %v6185 = vpop.f32.mrb[0].mxu0
  %v6186 = vpop.f32.mrb[0].mxu0
  %v6187 = vadd.f32 0.0, %v6186
  %v6188 = vpop.f32.mrb[0].mxu0
  %6189 = vmatprep.mubr.bf16.mxu0 0
  %6190 = vmatmul.mubr.bf16.gmra.mrb[0].mxu0 %v5924
  %v6191 = vpop.f32.mrb[0].mxu0
  %v6192 = vadd.f32 0.0, %v6191
  %v6193 = vpop.f32.mrb[0].mxu0
  %v6194 = vpop.f32.mrb[0].mxu0
  %v6195 = vadd.f32 0.0, %v6194
  %v6196 = vpop.f32.mrb[0].mxu0
  %6197 = vmatprep.mubr.bf16.mxu0 0
  %6198 = vmatmul.mubr.bf16.gmra.mrb[0].mxu0 %v5927
  %v6199 = vpop.f32.mrb[0].mxu0
  %v6200 = vadd.f32 0.0, %v6199
  %v6201 = vpop.f32.mrb[0].mxu0
  %v6202 = vpop.f32.mrb[0].mxu0
  %v6203 = vadd.f32 0.0, %v6202
  %v6204 = vpop.f32.mrb[0].mxu0
  %6205 = vmatprep.mubr.bf16.mxu0 0
  %6206 = vmatmul.mubr.bf16.gmra.mrb[0].mxu0 %v5930
  %v6207 = vpop.f32.mrb[0].mxu0
  %v6208 = vadd.f32 0.0, %v6207
  %v6209 = vpop.f32.mrb[0].mxu0
  %v6210 = vpop.f32.mrb[0].mxu0
  %v6211 = vadd.f32 0.0, %v6210
  %v6212 = vpop.f32.mrb[0].mxu0
  %6213 = vmatprep.mubr.bf16.mxu0 0
  %6214 = vmatmul.mubr.bf16.gmra.mrb[0].mxu0 %v5933
  %v6215 = vpop.f32.mrb[0].mxu0
  %v6216 = vadd.f32 0.0, %v6215
  %v6217 = vpop.f32.mrb[0].mxu0
  %v6218 = vpop.f32.mrb[0].mxu0
  %v6219 = vadd.f32 0.0, %v6218
  %v6220 = vpop.f32.mrb[0].mxu0
  %6221 = vmatprep.mubr.bf16.mxu0 0
  %6222 = vmatmul.mubr.bf16.gmra.mrb[0].mxu0 %v5936
  %v6223 = vpop.f32.mrb[0].mxu0
  %v6224 = vadd.f32 0.0, %v6223
  %v6225 = vpop.f32.mrb[0].mxu0
  %v6226 = vpop.f32.mrb[0].mxu0
  %v6227 = vadd.f32 0.0, %v6226
  %v6228 = vpop.f32.mrb[0].mxu0
  %6229 = vdwg.mxu0
  %6230 = vmatprep.subr.mxu0 0.0
  %6231 = vmatpush1.msra.mxu0 %v5976
  %6232 = vmatprep.subr.mxu0 0.0
  %6233 = vmatpush1.msra.mxu0 %v5979
  %6234 = vmatprep.subr.mxu0 0.0
  %6235 = vmatpush1.msra.mxu0 %v5984
  %6236 = vmatprep.subr.mxu0 0.0
  %6237 = vmatpush1.msra.mxu0 %v5987
  %6238 = vmatprep.subr.mxu0 0.0
  %6239 = vmatpush1.msra.mxu0 %v5992
  %6240 = vmatprep.subr.mxu0 0.0
  %6241 = vmatpush1.msra.mxu0 %v5995
  %6242 = vmatprep.subr.mxu0 0.0
  %6243 = vmatpush1.msra.mxu0 %v6000
  %6244 = vmatprep.subr.mxu0 0.0
  %6245 = vmatpush1.msra.mxu0 %v6003
  %6246 = vmatprep.subr.mxu0 0.0
  %6247 = vmatpush1.msra.mxu0 %v6008
  %6248 = vmatprep.subr.mxu0 0.0
  %6249 = vmatpush1.msra.mxu0 %v6011
  %6250 = vmatprep.subr.mxu0 0.0
  %6251 = vmatpush1.msra.mxu0 %v6016
  %6252 = vmatprep.subr.mxu0 0.0
  %6253 = vmatpush1.msra.mxu0 %v6019
  %6254 = vmatprep.subr.mxu0 0.0
  %6255 = vmatpush1.msra.mxu0 %v6024
  %6256 = vmatprep.subr.mxu0 0.0
  %6257 = vmatpush1.msra.mxu0 %v6027
  %6258 = vmatprep.subr.mxu0 0.0
  %6259 = vmatpush1.msra.mxu0 %v6032
  %6260 = vmatprep.subr.mxu0 0.0
  %6261 = vmatpush1.msra.mxu0 %v6035
  %6262 = vmatprep.subr.mxu0 0.0
  %6263 = vmatpush1.msra.mxu0 %v6040
  %6264 = vmatprep.subr.mxu0 0.0
  %6265 = vmatpush1.msra.mxu0 %v6043
  %6266 = vmatprep.subr.mxu0 0.0
  %6267 = vmatpush1.msra.mxu0 %v6048
  %6268 = vmatprep.subr.mxu0 0.0
  %6269 = vmatpush1.msra.mxu0 %v6051
  %6270 = vmatprep.subr.mxu0 0.0
  %6271 = vmatpush1.msra.mxu0 %v6056
  %6272 = vmatprep.subr.mxu0 0.0
  %6273 = vmatpush1.msra.mxu0 %v6059
  %6274 = vmatprep.subr.mxu0 0.0
  %6275 = vmatpush1.msra.mxu0 %v6064
  %6276 = vmatprep.subr.mxu0 0.0
  %6277 = vmatpush1.msra.mxu0 %v6067
  %6278 = vmatprep.subr.mxu0 0.0
  %6279 = vmatpush1.msra.mxu0 %v6072
  %6280 = vmatprep.subr.mxu0 0.0
  %6281 = vmatpush1.msra.mxu0 %v6075
  %6282 = vmatprep.subr.mxu0 0.0
  %6283 = vmatpush1.msra.mxu0 %v6080
  %6284 = vmatprep.subr.mxu0 0.0
  %6285 = vmatpush1.msra.mxu0 %v6083
  %6286 = vmatprep.subr.mxu0 0.0
  %6287 = vmatpush1.msra.mxu0 %v6088
  %6288 = vmatprep.subr.mxu0 0.0
  %6289 = vmatpush1.msra.mxu0 %v6091
  %6290 = vmatprep.subr.mxu0 0.0
  %6291 = vmatpush1.msra.mxu0 %v6096
  %6292 = vmatprep.subr.mxu0 0.0
  %6293 = vmatpush1.msra.mxu0 %v6099
  %6294 = vmatprep.mubr.f32.mxu0 1.0
  %6295 = vmatmul.mubr.f32.gmra.mrb[0].mxu0 1.0
  %v6296 = vpop.f32.mrb[0].mxu0
  %v6297 = vadd.f32 0.0, %v6296
  %v6298 = vpop.f32.mrb[0].mxu0
  %6299 = vdwg.mxu0
  %6300 = vmatprep.subr.mxu0 0.0
  %6301 = vmatpush1.msra.mxu0 %v6104
  %6302 = vmatprep.subr.mxu0 0.0
  %6303 = vmatpush1.msra.mxu0 %v6107
  %6304 = vmatprep.subr.mxu0 0.0
  %6305 = vmatpush1.msra.mxu0 %v6112
  %6306 = vmatprep.subr.mxu0 0.0
  %6307 = vmatpush1.msra.mxu0 %v6115
  %6308 = vmatprep.subr.mxu0 0.0
  %6309 = vmatpush1.msra.mxu0 %v6120
  %6310 = vmatprep.subr.mxu0 0.0
  %6311 = vmatpush1.msra.mxu0 %v6123
  %6312 = vmatprep.subr.mxu0 0.0
  %6313 = vmatpush1.msra.mxu0 %v6128
  %6314 = vmatprep.subr.mxu0 0.0
  %6315 = vmatpush1.msra.mxu0 %v6131
  %6316 = vmatprep.subr.mxu0 0.0
  %6317 = vmatpush1.msra.mxu0 %v6136
  %6318 = vmatprep.subr.mxu0 0.0
  %6319 = vmatpush1.msra.mxu0 %v6139
  %6320 = vmatprep.subr.mxu0 0.0
  %6321 = vmatpush1.msra.mxu0 %v6144
  %6322 = vmatprep.subr.mxu0 0.0
  %6323 = vmatpush1.msra.mxu0 %v6147
  %6324 = vmatprep.subr.mxu0 0.0
  %6325 = vmatpush1.msra.mxu0 %v6152
  %6326 = vmatprep.subr.mxu0 0.0
  %6327 = vmatpush1.msra.mxu0 %v6155
  %6328 = vmatprep.subr.mxu0 0.0
  %6329 = vmatpush1.msra.mxu0 %v6160
  %6330 = vmatprep.subr.mxu0 0.0
  %6331 = vmatpush1.msra.mxu0 %v6163
  %6332 = vmatprep.subr.mxu0 0.0
  %6333 = vmatpush1.msra.mxu0 %v6168
  %6334 = vmatprep.subr.mxu0 0.0
  %6335 = vmatpush1.msra.mxu0 %v6171
  %6336 = vmatprep.subr.mxu0 0.0
  %6337 = vmatpush1.msra.mxu0 %v6176
  %6338 = vmatprep.subr.mxu0 0.0
  %6339 = vmatpush1.msra.mxu0 %v6179
  %6340 = vmatprep.subr.mxu0 0.0
  %6341 = vmatpush1.msra.mxu0 %v6184
  %6342 = vmatprep.subr.mxu0 0.0
  %6343 = vmatpush1.msra.mxu0 %v6187
  %6344 = vmatprep.subr.mxu0 0.0
  %6345 = vmatpush1.msra.mxu0 %v6192
  %6346 = vmatprep.subr.mxu0 0.0
  %6347 = vmatpush1.msra.mxu0 %v6195
  %6348 = vmatprep.subr.mxu0 0.0
  %6349 = vmatpush1.msra.mxu0 %v6200
  %6350 = vmatprep.subr.mxu0 0.0
  %6351 = vmatpush1.msra.mxu0 %v6203
  %6352 = vmatprep.subr.mxu0 0.0
  %6353 = vmatpush1.msra.mxu0 %v6208
  %6354 = vmatprep.subr.mxu0 0.0
  %6355 = vmatpush1.msra.mxu0 %v6211
  %6356 = vmatprep.subr.mxu0 0.0
  %6357 = vmatpush1.msra.mxu0 %v6216
  %6358 = vmatprep.subr.mxu0 0.0
  %6359 = vmatpush1.msra.mxu0 %v6219
  %6360 = vmatprep.subr.mxu0 0.0
  %6361 = vmatpush1.msra.mxu0 %v6224
  %6362 = vmatprep.subr.mxu0 0.0
  %6363 = vmatpush1.msra.mxu0 %v6227
  %6364 = vmatprep.mubr.f32.mxu0 1.0
  %6365 = vmatmul.mubr.f32.gmra.mrb[0].mxu0 1.0
  %v6366 = vpop.f32.mrb[0].mxu0
  %v6367 = vadd.f32 %v6297, %v6366
  %v6368 = vpop.f32.mrb[0].mxu0
  %6369 = vdwg.mxu0
  %v6370 = vmul.f32 %v6367, 0.001953125
  %v6371 = vlaneseq
  %v6372 = vshrl.u32 %v6371, 7
  %v6373 = vsub.s32 0, %v6372
  %v6374 = vrot.slane %v6370, %v6373
  %v6375 = vsub.f32 %v5976, %v6374
  %v6376 = vsub.f32 %v5979, %v6374
  %v6377 = vsub.f32 %v5984, %v6374
  %v6378 = vsub.f32 %v5987, %v6374
  %v6379 = vsub.f32 %v5992, %v6374
  %v6380 = vsub.f32 %v5995, %v6374
  %v6381 = vsub.f32 %v6000, %v6374
  %v6382 = vsub.f32 %v6003, %v6374
  %v6383 = vsub.f32 %v6008, %v6374
  %v6384 = vsub.f32 %v6011, %v6374
  %v6385 = vsub.f32 %v6016, %v6374
  %v6386 = vsub.f32 %v6019, %v6374
  %v6387 = vsub.f32 %v6024, %v6374
  %v6388 = vsub.f32 %v6027, %v6374
  %v6389 = vsub.f32 %v6032, %v6374
  %v6390 = vsub.f32 %v6035, %v6374
  %v6391 = vsub.f32 %v6040, %v6374
  %v6392 = vsub.f32 %v6043, %v6374
  %v6393 = vsub.f32 %v6048, %v6374
  %v6394 = vsub.f32 %v6051, %v6374
  %v6395 = vsub.f32 %v6056, %v6374
  %v6396 = vsub.f32 %v6059, %v6374
  %v6397 = vsub.f32 %v6064, %v6374
  %v6398 = vsub.f32 %v6067, %v6374
  %v6399 = vsub.f32 %v6072, %v6374
  %v6400 = vsub.f32 %v6075, %v6374
  %v6401 = vsub.f32 %v6080, %v6374
  %v6402 = vsub.f32 %v6083, %v6374
  %v6403 = vsub.f32 %v6088, %v6374
  %v6404 = vsub.f32 %v6091, %v6374
  %v6405 = vsub.f32 %v6096, %v6374
  %v6406 = vsub.f32 %v6099, %v6374
  %v6407 = vsub.f32 %v6104, %v6374
  %v6408 = vsub.f32 %v6107, %v6374
  %v6409 = vsub.f32 %v6112, %v6374
  %v6410 = vsub.f32 %v6115, %v6374
  %v6411 = vsub.f32 %v6120, %v6374
  %v6412 = vsub.f32 %v6123, %v6374
  %v6413 = vsub.f32 %v6128, %v6374
  %v6414 = vsub.f32 %v6131, %v6374
  %v6415 = vsub.f32 %v6136, %v6374
  %v6416 = vsub.f32 %v6139, %v6374
  %v6417 = vsub.f32 %v6144, %v6374
  %v6418 = vsub.f32 %v6147, %v6374
  %v6419 = vsub.f32 %v6152, %v6374
  %v6420 = vsub.f32 %v6155, %v6374
  %v6421 = vsub.f32 %v6160, %v6374
  %v6422 = vsub.f32 %v6163, %v6374
  %v6423 = vsub.f32 %v6168, %v6374
  %v6424 = vsub.f32 %v6171, %v6374
  %v6425 = vsub.f32 %v6176, %v6374
  %v6426 = vsub.f32 %v6179, %v6374
  %v6427 = vsub.f32 %v6184, %v6374
  %v6428 = vsub.f32 %v6187, %v6374
  %v6429 = vsub.f32 %v6192, %v6374
  %v6430 = vsub.f32 %v6195, %v6374
  %v6431 = vsub.f32 %v6200, %v6374
  %v6432 = vsub.f32 %v6203, %v6374
  %v6433 = vsub.f32 %v6208, %v6374
  %v6434 = vsub.f32 %v6211, %v6374
  %v6435 = vsub.f32 %v6216, %v6374
  %v6436 = vsub.f32 %v6219, %v6374
  %v6437 = vsub.f32 %v6224, %v6374
  %v6438 = vsub.f32 %v6227, %v6374
  %v6439 = vmul.f32 %v6375, %v6375
  %v6440 = vmul.f32 %v6376, %v6376
  %v6441 = vmul.f32 %v6377, %v6377
  %v6442 = vmul.f32 %v6378, %v6378
  %v6443 = vmul.f32 %v6379, %v6379
  %v6444 = vmul.f32 %v6380, %v6380
  %v6445 = vmul.f32 %v6381, %v6381
  %v6446 = vmul.f32 %v6382, %v6382
  %v6447 = vmul.f32 %v6383, %v6383
  %v6448 = vmul.f32 %v6384, %v6384
  %v6449 = vmul.f32 %v6385, %v6385
  %v6450 = vmul.f32 %v6386, %v6386
  %v6451 = vmul.f32 %v6387, %v6387
  %v6452 = vmul.f32 %v6388, %v6388
  %v6453 = vmul.f32 %v6389, %v6389
  %v6454 = vmul.f32 %v6390, %v6390
  %v6455 = vmul.f32 %v6391, %v6391
  %v6456 = vmul.f32 %v6392, %v6392
  %v6457 = vmul.f32 %v6393, %v6393
  %v6458 = vmul.f32 %v6394, %v6394
  %v6459 = vmul.f32 %v6395, %v6395
  %v6460 = vmul.f32 %v6396, %v6396
  %v6461 = vmul.f32 %v6397, %v6397
  %v6462 = vmul.f32 %v6398, %v6398
  %v6463 = vmul.f32 %v6399, %v6399
  %v6464 = vmul.f32 %v6400, %v6400
  %v6465 = vmul.f32 %v6401, %v6401
  %v6466 = vmul.f32 %v6402, %v6402
  %v6467 = vmul.f32 %v6403, %v6403
  %v6468 = vmul.f32 %v6404, %v6404
  %v6469 = vmul.f32 %v6405, %v6405
  %v6470 = vmul.f32 %v6406, %v6406
  %v6471 = vmul.f32 %v6407, %v6407
  %v6472 = vmul.f32 %v6408, %v6408
  %v6473 = vmul.f32 %v6409, %v6409
  %v6474 = vmul.f32 %v6410, %v6410
  %v6475 = vmul.f32 %v6411, %v6411
  %v6476 = vmul.f32 %v6412, %v6412
  %v6477 = vmul.f32 %v6413, %v6413
  %v6478 = vmul.f32 %v6414, %v6414
  %v6479 = vmul.f32 %v6415, %v6415
  %v6480 = vmul.f32 %v6416, %v6416
  %v6481 = vmul.f32 %v6417, %v6417
  %v6482 = vmul.f32 %v6418, %v6418
  %v6483 = vmul.f32 %v6419, %v6419
  %v6484 = vmul.f32 %v6420, %v6420
  %v6485 = vmul.f32 %v6421, %v6421
  %v6486 = vmul.f32 %v6422, %v6422
  %v6487 = vmul.f32 %v6423, %v6423
  %v6488 = vmul.f32 %v6424, %v6424
  %v6489 = vmul.f32 %v6425, %v6425
  %v6490 = vmul.f32 %v6426, %v6426
  %v6491 = vmul.f32 %v6427, %v6427
  %v6492 = vmul.f32 %v6428, %v6428
  %v6493 = vmul.f32 %v6429, %v6429
  %v6494 = vmul.f32 %v6430, %v6430
  %v6495 = vmul.f32 %v6431, %v6431
  %v6496 = vmul.f32 %v6432, %v6432
  %v6497 = vmul.f32 %v6433, %v6433
  %v6498 = vmul.f32 %v6434, %v6434
  %v6499 = vmul.f32 %v6435, %v6435
  %v6500 = vmul.f32 %v6436, %v6436
  %v6501 = vmul.f32 %v6437, %v6437
  %v6502 = vmul.f32 %v6438, %v6438
  %6503 = vmatprep.subr.mxu0 0.0
  %6504 = vmatpush1.msra.mxu0 %v6439
  %6505 = vmatprep.subr.mxu0 0.0
  %6506 = vmatpush1.msra.mxu0 %v6440
  %6507 = vmatprep.subr.mxu0 0.0
  %6508 = vmatpush1.msra.mxu0 %v6441
  %6509 = vmatprep.subr.mxu0 0.0
  %6510 = vmatpush1.msra.mxu0 %v6442
  %6511 = vmatprep.subr.mxu0 0.0
  %6512 = vmatpush1.msra.mxu0 %v6443
  %6513 = vmatprep.subr.mxu0 0.0
  %6514 = vmatpush1.msra.mxu0 %v6444
  %6515 = vmatprep.subr.mxu0 0.0
  %6516 = vmatpush1.msra.mxu0 %v6445
  %6517 = vmatprep.subr.mxu0 0.0
  %6518 = vmatpush1.msra.mxu0 %v6446
  %6519 = vmatprep.subr.mxu0 0.0
  %6520 = vmatpush1.msra.mxu0 %v6447
  %6521 = vmatprep.subr.mxu0 0.0
  %6522 = vmatpush1.msra.mxu0 %v6448
  %6523 = vmatprep.subr.mxu0 0.0
  %6524 = vmatpush1.msra.mxu0 %v6449
  %6525 = vmatprep.subr.mxu0 0.0
  %6526 = vmatpush1.msra.mxu0 %v6450
  %6527 = vmatprep.subr.mxu0 0.0
  %6528 = vmatpush1.msra.mxu0 %v6451
  %6529 = vmatprep.subr.mxu0 0.0
  %6530 = vmatpush1.msra.mxu0 %v6452
  %6531 = vmatprep.subr.mxu0 0.0
  %6532 = vmatpush1.msra.mxu0 %v6453
  %6533 = vmatprep.subr.mxu0 0.0
  %6534 = vmatpush1.msra.mxu0 %v6454
  %6535 = vmatprep.subr.mxu0 0.0
  %6536 = vmatpush1.msra.mxu0 %v6455
  %6537 = vmatprep.subr.mxu0 0.0
  %6538 = vmatpush1.msra.mxu0 %v6456
  %6539 = vmatprep.subr.mxu0 0.0
  %6540 = vmatpush1.msra.mxu0 %v6457
  %6541 = vmatprep.subr.mxu0 0.0
  %6542 = vmatpush1.msra.mxu0 %v6458
  %6543 = vmatprep.subr.mxu0 0.0
  %6544 = vmatpush1.msra.mxu0 %v6459
  %6545 = vmatprep.subr.mxu0 0.0
  %6546 = vmatpush1.msra.mxu0 %v6460
  %6547 = vmatprep.subr.mxu0 0.0
  %6548 = vmatpush1.msra.mxu0 %v6461
  %6549 = vmatprep.subr.mxu0 0.0
  %6550 = vmatpush1.msra.mxu0 %v6462
  %6551 = vmatprep.subr.mxu0 0.0
  %6552 = vmatpush1.msra.mxu0 %v6463
  %6553 = vmatprep.subr.mxu0 0.0
  %6554 = vmatpush1.msra.mxu0 %v6464
  %6555 = vmatprep.subr.mxu0 0.0
  %6556 = vmatpush1.msra.mxu0 %v6465
  %6557 = vmatprep.subr.mxu0 0.0
  %6558 = vmatpush1.msra.mxu0 %v6466
  %6559 = vmatprep.subr.mxu0 0.0
  %6560 = vmatpush1.msra.mxu0 %v6467
  %6561 = vmatprep.subr.mxu0 0.0
  %6562 = vmatpush1.msra.mxu0 %v6468
  %6563 = vmatprep.subr.mxu0 0.0
  %6564 = vmatpush1.msra.mxu0 %v6469
  %6565 = vmatprep.subr.mxu0 0.0
  %6566 = vmatpush1.msra.mxu0 %v6470
  %6567 = vmatprep.mubr.f32.mxu0 1.0
  %6568 = vmatmul.mubr.f32.gmra.mrb[0].mxu0 1.0
  %v6569 = vpop.f32.mrb[0].mxu0
  %v6570 = vadd.f32 0.0, %v6569
  %v6571 = vpop.f32.mrb[0].mxu0
  %6572 = vdwg.mxu0
  %6573 = vmatprep.subr.mxu0 0.0
  %6574 = vmatpush1.msra.mxu0 %v6471
  %6575 = vmatprep.subr.mxu0 0.0
  %6576 = vmatpush1.msra.mxu0 %v6472
  %6577 = vmatprep.subr.mxu0 0.0
  %6578 = vmatpush1.msra.mxu0 %v6473
  %6579 = vmatprep.subr.mxu0 0.0
  %6580 = vmatpush1.msra.mxu0 %v6474
  %6581 = vmatprep.subr.mxu0 0.0
  %6582 = vmatpush1.msra.mxu0 %v6475
  %6583 = vmatprep.subr.mxu0 0.0
  %6584 = vmatpush1.msra.mxu0 %v6476
  %6585 = vmatprep.subr.mxu0 0.0
  %6586 = vmatpush1.msra.mxu0 %v6477
  %6587 = vmatprep.subr.mxu0 0.0
  %6588 = vmatpush1.msra.mxu0 %v6478
  %6589 = vmatprep.subr.mxu0 0.0
  %6590 = vmatpush1.msra.mxu0 %v6479
  %6591 = vmatprep.subr.mxu0 0.0
  %6592 = vmatpush1.msra.mxu0 %v6480
  %6593 = vmatprep.subr.mxu0 0.0
  %6594 = vmatpush1.msra.mxu0 %v6481
  %6595 = vmatprep.subr.mxu0 0.0
  %6596 = vmatpush1.msra.mxu0 %v6482
  %6597 = vmatprep.subr.mxu0 0.0
  %6598 = vmatpush1.msra.mxu0 %v6483
  %6599 = vmatprep.subr.mxu0 0.0
  %6600 = vmatpush1.msra.mxu0 %v6484
  %6601 = vmatprep.subr.mxu0 0.0
  %6602 = vmatpush1.msra.mxu0 %v6485
  %6603 = vmatprep.subr.mxu0 0.0
  %6604 = vmatpush1.msra.mxu0 %v6486
  %6605 = vmatprep.subr.mxu0 0.0
  %6606 = vmatpush1.msra.mxu0 %v6487
  %6607 = vmatprep.subr.mxu0 0.0
  %6608 = vmatpush1.msra.mxu0 %v6488
  %6609 = vmatprep.subr.mxu0 0.0
  %6610 = vmatpush1.msra.mxu0 %v6489
  %6611 = vmatprep.subr.mxu0 0.0
  %6612 = vmatpush1.msra.mxu0 %v6490
  %6613 = vmatprep.subr.mxu0 0.0
  %6614 = vmatpush1.msra.mxu0 %v6491
  %6615 = vmatprep.subr.mxu0 0.0
  %6616 = vmatpush1.msra.mxu0 %v6492
  %6617 = vmatprep.subr.mxu0 0.0
  %6618 = vmatpush1.msra.mxu0 %v6493
  %6619 = vmatprep.subr.mxu0 0.0
  %6620 = vmatpush1.msra.mxu0 %v6494
  %6621 = vmatprep.subr.mxu0 0.0
  %6622 = vmatpush1.msra.mxu0 %v6495
  %6623 = vmatprep.subr.mxu0 0.0
  %6624 = vmatpush1.msra.mxu0 %v6496
  %6625 = vmatprep.subr.mxu0 0.0
  %6626 = vmatpush1.msra.mxu0 %v6497
  %6627 = vmatprep.subr.mxu0 0.0
  %6628 = vmatpush1.msra.mxu0 %v6498
  %6629 = vmatprep.subr.mxu0 0.0
  %6630 = vmatpush1.msra.mxu0 %v6499
  %6631 = vmatprep.subr.mxu0 0.0
  %6632 = vmatpush1.msra.mxu0 %v6500
  %6633 = vmatprep.subr.mxu0 0.0
  %6634 = vmatpush1.msra.mxu0 %v6501
  %6635 = vmatprep.subr.mxu0 0.0
  %6636 = vmatpush1.msra.mxu0 %v6502
  %6637 = vmatprep.mubr.f32.mxu0 1.0
  %6638 = vmatmul.mubr.f32.gmra.mrb[0].mxu0 1.0
  %v6639 = vpop.f32.mrb[0].mxu0
  %v6640 = vadd.f32 %v6570, %v6639
  %v6641 = vpop.f32.mrb[0].mxu0
  %6642 = vdwg.mxu0
  %v6643 = vmul.f32 %v6640, 0.001953125
  %v6644 = vld [vmem:[%s5] sm:$0x1]
  %v6645 = vadd.f32 %v6643, 1e-05
  %v6646 = vrsqrt.pop %v6645
  %v6647 = vmul.f32 %v6644, %v6646
  %v6649 = vlaneseq
  %v6650 = vshrl.u32 %v6649, 7
  %v6651 = vsub.s32 0, %v6650
  %v6652 = vrot.slane %v6647, %v6651
  %v6654 = vmul.f32 %v6375, %v6652
  %v6655 = vmul.f32 %v6376, %v6652
  %v6656 = vmul.f32 %v6377, %v6652
  %v6657 = vmul.f32 %v6378, %v6652
  %v6658 = vmul.f32 %v6379, %v6652
  %v6659 = vmul.f32 %v6380, %v6652
  %v6660 = vmul.f32 %v6381, %v6652
  %v6661 = vmul.f32 %v6382, %v6652
  %v6662 = vmul.f32 %v6383, %v6652
  %v6663 = vmul.f32 %v6384, %v6652
  %v6664 = vmul.f32 %v6385, %v6652
  %v6665 = vmul.f32 %v6386, %v6652
  %v6666 = vmul.f32 %v6387, %v6652
  %v6667 = vmul.f32 %v6388, %v6652
  %v6668 = vmul.f32 %v6389, %v6652
  %v6669 = vmul.f32 %v6390, %v6652
  %v6670 = vmul.f32 %v6391, %v6652
  %v6671 = vmul.f32 %v6392, %v6652
  %v6672 = vmul.f32 %v6393, %v6652
  %v6673 = vmul.f32 %v6394, %v6652
  %v6674 = vmul.f32 %v6395, %v6652
  %v6675 = vmul.f32 %v6396, %v6652
  %v6676 = vmul.f32 %v6397, %v6652
  %v6677 = vmul.f32 %v6398, %v6652
  %v6678 = vmul.f32 %v6399, %v6652
  %v6679 = vmul.f32 %v6400, %v6652
  %v6680 = vmul.f32 %v6401, %v6652
  %v6681 = vmul.f32 %v6402, %v6652
  %v6682 = vmul.f32 %v6403, %v6652
  %v6683 = vmul.f32 %v6404, %v6652
  %v6684 = vmul.f32 %v6405, %v6652
  %v6685 = vmul.f32 %v6406, %v6652
  %v6686 = vmul.f32 %v6407, %v6652
  %v6687 = vmul.f32 %v6408, %v6652
  %v6688 = vmul.f32 %v6409, %v6652
  %v6689 = vmul.f32 %v6410, %v6652
  %v6690 = vmul.f32 %v6411, %v6652
  %v6691 = vmul.f32 %v6412, %v6652
  %v6692 = vmul.f32 %v6413, %v6652
  %v6693 = vmul.f32 %v6414, %v6652
  %v6694 = vmul.f32 %v6415, %v6652
  %v6695 = vmul.f32 %v6416, %v6652
  %v6696 = vmul.f32 %v6417, %v6652
  %v6697 = vmul.f32 %v6418, %v6652
  %v6698 = vmul.f32 %v6419, %v6652
  %v6699 = vmul.f32 %v6420, %v6652
  %v6700 = vmul.f32 %v6421, %v6652
  %v6701 = vmul.f32 %v6422, %v6652
  %v6702 = vmul.f32 %v6423, %v6652
  %v6703 = vmul.f32 %v6424, %v6652
  %v6704 = vmul.f32 %v6425, %v6652
  %v6705 = vmul.f32 %v6426, %v6652
  %v6706 = vmul.f32 %v6427, %v6652
  %v6707 = vmul.f32 %v6428, %v6652
  %v6708 = vmul.f32 %v6429, %v6652
  %v6709 = vmul.f32 %v6430, %v6652
  %v6710 = vmul.f32 %v6431, %v6652
  %v6711 = vmul.f32 %v6432, %v6652
  %v6712 = vmul.f32 %v6433, %v6652
  %v6713 = vmul.f32 %v6434, %v6652
  %v6714 = vmul.f32 %v6435, %v6652
  %v6715 = vmul.f32 %v6436, %v6652
  %v6716 = vmul.f32 %v6437, %v6652
  %v6717 = vmul.f32 %v6438, %v6652
  %v6718 = vld [vmem:[%s6] sm:$0x1]
  %v6720 = vlaneseq
  %v6721 = vshrl.u32 %v6720, 7
  %v6722 = vsub.s32 0, %v6721
  %v6723 = vrot.slane %v6718, %v6722
  %v6725 = vadd.f32 %v6654, %v6723
  %v6726 = vadd.f32 %v6655, %v6723
  %v6727 = vadd.f32 %v6656, %v6723
  %v6728 = vadd.f32 %v6657, %v6723
  %v6729 = vadd.f32 %v6658, %v6723
  %v6730 = vadd.f32 %v6659, %v6723
  %v6731 = vadd.f32 %v6660, %v6723
  %v6732 = vadd.f32 %v6661, %v6723
  %v6733 = vadd.f32 %v6662, %v6723
  %v6734 = vadd.f32 %v6663, %v6723
  %v6735 = vadd.f32 %v6664, %v6723
  %v6736 = vadd.f32 %v6665, %v6723
  %v6737 = vadd.f32 %v6666, %v6723
  %v6738 = vadd.f32 %v6667, %v6723
  %v6739 = vadd.f32 %v6668, %v6723
  %v6740 = vadd.f32 %v6669, %v6723
  %v6741 = vadd.f32 %v6670, %v6723
  %v6742 = vadd.f32 %v6671, %v6723
  %v6743 = vadd.f32 %v6672, %v6723
  %v6744 = vadd.f32 %v6673, %v6723
  %v6745 = vadd.f32 %v6674, %v6723
  %v6746 = vadd.f32 %v6675, %v6723
  %v6747 = vadd.f32 %v6676, %v6723
  %v6748 = vadd.f32 %v6677, %v6723
  %v6749 = vadd.f32 %v6678, %v6723
  %v6750 = vadd.f32 %v6679, %v6723
  %v6751 = vadd.f32 %v6680, %v6723
  %v6752 = vadd.f32 %v6681, %v6723
  %v6753 = vadd.f32 %v6682, %v6723
  %v6754 = vadd.f32 %v6683, %v6723
  %v6755 = vadd.f32 %v6684, %v6723
  %v6756 = vadd.f32 %v6685, %v6723
  %v6757 = vadd.f32 %v6686, %v6723
  %v6758 = vadd.f32 %v6687, %v6723
  %v6759 = vadd.f32 %v6688, %v6723
  %v6760 = vadd.f32 %v6689, %v6723
  %v6761 = vadd.f32 %v6690, %v6723
  %v6762 = vadd.f32 %v6691, %v6723
  %v6763 = vadd.f32 %v6692, %v6723
  %v6764 = vadd.f32 %v6693, %v6723
  %v6765 = vadd.f32 %v6694, %v6723
  %v6766 = vadd.f32 %v6695, %v6723
  %v6767 = vadd.f32 %v6696, %v6723
  %v6768 = vadd.f32 %v6697, %v6723
  %v6769 = vadd.f32 %v6698, %v6723
  %v6770 = vadd.f32 %v6699, %v6723
  %v6771 = vadd.f32 %v6700, %v6723
  %v6772 = vadd.f32 %v6701, %v6723
  %v6773 = vadd.f32 %v6702, %v6723
  %v6774 = vadd.f32 %v6703, %v6723
  %v6775 = vadd.f32 %v6704, %v6723
  %v6776 = vadd.f32 %v6705, %v6723
  %v6777 = vadd.f32 %v6706, %v6723
  %v6778 = vadd.f32 %v6707, %v6723
  %v6779 = vadd.f32 %v6708, %v6723
  %v6780 = vadd.f32 %v6709, %v6723
  %v6781 = vadd.f32 %v6710, %v6723
  %v6782 = vadd.f32 %v6711, %v6723
  %v6783 = vadd.f32 %v6712, %v6723
  %v6784 = vadd.f32 %v6713, %v6723
  %v6785 = vadd.f32 %v6714, %v6723
  %v6786 = vadd.f32 %v6715, %v6723
  %v6787 = vadd.f32 %v6716, %v6723
  %v6788 = vadd.f32 %v6717, %v6723
  %v6789 = vadd.f32 %v6725, %v3550
  %v6790 = vadd.f32 %v6726, %v3551
  %v6791 = vadd.f32 %v6727, %v3552
  %v6792 = vadd.f32 %v6728, %v3553
  %v6793 = vadd.f32 %v6729, %v3554
  %v6794 = vadd.f32 %v6730, %v3555
  %v6795 = vadd.f32 %v6731, %v3556
  %v6796 = vadd.f32 %v6732, %v3557
  %v6797 = vadd.f32 %v6733, %v3558
  %v6798 = vadd.f32 %v6734, %v3559
  %v6799 = vadd.f32 %v6735, %v3560
  %v6800 = vadd.f32 %v6736, %v3561
  %v6801 = vadd.f32 %v6737, %v3562
  %v6802 = vadd.f32 %v6738, %v3563
  %v6803 = vadd.f32 %v6739, %v3564
  %v6804 = vadd.f32 %v6740, %v3565
  %v6805 = vadd.f32 %v6741, %v3566
  %v6806 = vadd.f32 %v6742, %v3567
  %v6807 = vadd.f32 %v6743, %v3568
  %v6808 = vadd.f32 %v6744, %v3569
  %v6809 = vadd.f32 %v6745, %v3570
  %v6810 = vadd.f32 %v6746, %v3571
  %v6811 = vadd.f32 %v6747, %v3572
  %v6812 = vadd.f32 %v6748, %v3573
  %v6813 = vadd.f32 %v6749, %v3574
  %v6814 = vadd.f32 %v6750, %v3575
  %v6815 = vadd.f32 %v6751, %v3576
  %v6816 = vadd.f32 %v6752, %v3577
  %v6817 = vadd.f32 %v6753, %v3578
  %v6818 = vadd.f32 %v6754, %v3579
  %v6819 = vadd.f32 %v6755, %v3580
  %v6820 = vadd.f32 %v6756, %v3581
  %v6821 = vadd.f32 %v6757, %v3582
  %v6822 = vadd.f32 %v6758, %v3583
  %v6823 = vadd.f32 %v6759, %v3584
  %v6824 = vadd.f32 %v6760, %v3585
  %v6825 = vadd.f32 %v6761, %v3586
  %v6826 = vadd.f32 %v6762, %v3587
  %v6827 = vadd.f32 %v6763, %v3588
  %v6828 = vadd.f32 %v6764, %v3589
  %v6829 = vadd.f32 %v6765, %v3590
  %v6830 = vadd.f32 %v6766, %v3591
  %v6831 = vadd.f32 %v6767, %v3592
  %v6832 = vadd.f32 %v6768, %v3593
  %v6833 = vadd.f32 %v6769, %v3594
  %v6834 = vadd.f32 %v6770, %v3595
  %v6835 = vadd.f32 %v6771, %v3596
  %v6836 = vadd.f32 %v6772, %v3597
  %v6837 = vadd.f32 %v6773, %v3598
  %v6838 = vadd.f32 %v6774, %v3599
  %v6839 = vadd.f32 %v6775, %v3600
  %v6840 = vadd.f32 %v6776, %v3601
  %v6841 = vadd.f32 %v6777, %v3602
  %v6842 = vadd.f32 %v6778, %v3603
  %v6843 = vadd.f32 %v6779, %v3604
  %v6844 = vadd.f32 %v6780, %v3605
  %v6845 = vadd.f32 %v6781, %v3606
  %v6846 = vadd.f32 %v6782, %v3607
  %v6847 = vadd.f32 %v6783, %v3608
  %v6848 = vadd.f32 %v6784, %v3609
  %v6849 = vadd.f32 %v6785, %v3610
  %v6850 = vadd.f32 %v6786, %v3611
  %v6851 = vadd.f32 %v6787, %v3612
  %v6852 = vadd.f32 %v6788, %v3613
  %v6853 = vmax.f32 %v6789, 0.0
  %v6854 = vmax.f32 %v6790, 0.0
  %v6855 = vmax.f32 %v6791, 0.0
  %v6856 = vmax.f32 %v6792, 0.0
  %v6857 = vmax.f32 %v6793, 0.0
  %v6858 = vmax.f32 %v6794, 0.0
  %v6859 = vmax.f32 %v6795, 0.0
  %v6860 = vmax.f32 %v6796, 0.0
  %v6861 = vmax.f32 %v6797, 0.0
  %v6862 = vmax.f32 %v6798, 0.0
  %v6863 = vmax.f32 %v6799, 0.0
  %v6864 = vmax.f32 %v6800, 0.0
  %v6865 = vmax.f32 %v6801, 0.0
  %v6866 = vmax.f32 %v6802, 0.0
  %v6867 = vmax.f32 %v6803, 0.0
  %v6868 = vmax.f32 %v6804, 0.0
  %v6869 = vmax.f32 %v6805, 0.0
  %v6870 = vmax.f32 %v6806, 0.0
  %v6871 = vmax.f32 %v6807, 0.0
  %v6872 = vmax.f32 %v6808, 0.0
  %v6873 = vmax.f32 %v6809, 0.0
  %v6874 = vmax.f32 %v6810, 0.0
  %v6875 = vmax.f32 %v6811, 0.0
  %v6876 = vmax.f32 %v6812, 0.0
  %v6877 = vmax.f32 %v6813, 0.0
  %v6878 = vmax.f32 %v6814, 0.0
  %v6879 = vmax.f32 %v6815, 0.0
  %v6880 = vmax.f32 %v6816, 0.0
  %v6881 = vmax.f32 %v6817, 0.0
  %v6882 = vmax.f32 %v6818, 0.0
  %v6883 = vmax.f32 %v6819, 0.0
  %v6884 = vmax.f32 %v6820, 0.0
  %v6885 = vmax.f32 %v6821, 0.0
  %v6886 = vmax.f32 %v6822, 0.0
  %v6887 = vmax.f32 %v6823, 0.0
  %v6888 = vmax.f32 %v6824, 0.0
  %v6889 = vmax.f32 %v6825, 0.0
  %v6890 = vmax.f32 %v6826, 0.0
  %v6891 = vmax.f32 %v6827, 0.0
  %v6892 = vmax.f32 %v6828, 0.0
  %v6893 = vmax.f32 %v6829, 0.0
  %v6894 = vmax.f32 %v6830, 0.0
  %v6895 = vmax.f32 %v6831, 0.0
  %v6896 = vmax.f32 %v6832, 0.0
  %v6897 = vmax.f32 %v6833, 0.0
  %v6898 = vmax.f32 %v6834, 0.0
  %v6899 = vmax.f32 %v6835, 0.0
  %v6900 = vmax.f32 %v6836, 0.0
  %v6901 = vmax.f32 %v6837, 0.0
  %v6902 = vmax.f32 %v6838, 0.0
  %v6903 = vmax.f32 %v6839, 0.0
  %v6904 = vmax.f32 %v6840, 0.0
  %v6905 = vmax.f32 %v6841, 0.0
  %v6906 = vmax.f32 %v6842, 0.0
  %v6907 = vmax.f32 %v6843, 0.0
  %v6908 = vmax.f32 %v6844, 0.0
  %v6909 = vmax.f32 %v6845, 0.0
  %v6910 = vmax.f32 %v6846, 0.0
  %v6911 = vmax.f32 %v6847, 0.0
  %v6912 = vmax.f32 %v6848, 0.0
  %v6913 = vmax.f32 %v6849, 0.0
  %v6914 = vmax.f32 %v6850, 0.0
  %v6915 = vmax.f32 %v6851, 0.0
  %v6916 = vmax.f32 %v6852, 0.0
  %6917 = vxpose.xlu0.b32.start [1/16] %v6853, 128
  %6918 = vxpose.xlu0.b32.cont [2/16] %v6854, 128
  %6919 = vxpose.xlu0.b32.cont [3/16] %v6855, 128
  %6920 = vxpose.xlu0.b32.cont [4/16] %v6856, 128
  %6921 = vxpose.xlu0.b32.cont [5/16] %v6857, 128
  %6922 = vxpose.xlu0.b32.cont [6/16] %v6858, 128
  %6923 = vxpose.xlu0.b32.cont [7/16] %v6859, 128
  %6924 = vxpose.xlu0.b32.cont [8/16] %v6860, 128
  %6925 = vxpose.xlu0.b32.cont [9/16] %v6861, 128
  %6926 = vxpose.xlu0.b32.cont [10/16] %v6862, 128
  %6927 = vxpose.xlu0.b32.cont [11/16] %v6863, 128
  %6928 = vxpose.xlu0.b32.cont [12/16] %v6864, 128
  %6929 = vxpose.xlu0.b32.cont [13/16] %v6865, 128
  %6930 = vxpose.xlu0.b32.cont [14/16] %v6866, 128
  %6931 = vxpose.xlu0.b32.cont [15/16] %v6867, 128
  %6932 = vxpose.xlu0.b32.end [16/16] %v6868, 128
  %v6933 = vpop.trf.xlu0
  %v6934 = vpop.trf.xlu0
  %v6935 = vpop.trf.xlu0
  %v6936 = vpop.trf.xlu0
  %v6937 = vpop.trf.xlu0
  %v6938 = vpop.trf.xlu0
  %v6939 = vpop.trf.xlu0
  %v6940 = vpop.trf.xlu0
  %v6941 = vpop.trf.xlu0
  %v6942 = vpop.trf.xlu0
  %v6943 = vpop.trf.xlu0
  %v6944 = vpop.trf.xlu0
  %v6945 = vpop.trf.xlu0
  %v6946 = vpop.trf.xlu0
  %v6947 = vpop.trf.xlu0
  %v6948 = vpop.trf.xlu0
  %6949 = vxpose.xlu0.b32.start [1/16] %v6869, 128
  %6950 = vxpose.xlu0.b32.cont [2/16] %v6870, 128
  %6951 = vxpose.xlu0.b32.cont [3/16] %v6871, 128
  %6952 = vxpose.xlu0.b32.cont [4/16] %v6872, 128
  %6953 = vxpose.xlu0.b32.cont [5/16] %v6873, 128
  %6954 = vxpose.xlu0.b32.cont [6/16] %v6874, 128
  %6955 = vxpose.xlu0.b32.cont [7/16] %v6875, 128
  %6956 = vxpose.xlu0.b32.cont [8/16] %v6876, 128
  %6957 = vxpose.xlu0.b32.cont [9/16] %v6877, 128
  %6958 = vxpose.xlu0.b32.cont [10/16] %v6878, 128
  %6959 = vxpose.xlu0.b32.cont [11/16] %v6879, 128
  %6960 = vxpose.xlu0.b32.cont [12/16] %v6880, 128
  %6961 = vxpose.xlu0.b32.cont [13/16] %v6881, 128
  %6962 = vxpose.xlu0.b32.cont [14/16] %v6882, 128
  %6963 = vxpose.xlu0.b32.cont [15/16] %v6883, 128
  %6964 = vxpose.xlu0.b32.end [16/16] %v6884, 128
  %v6965 = vpop.trf.xlu0
  %v6966 = vpop.trf.xlu0
  %v6967 = vpop.trf.xlu0
  %v6968 = vpop.trf.xlu0
  %v6969 = vpop.trf.xlu0
  %v6970 = vpop.trf.xlu0
  %v6971 = vpop.trf.xlu0
  %v6972 = vpop.trf.xlu0
  %v6973 = vpop.trf.xlu0
  %v6974 = vpop.trf.xlu0
  %v6975 = vpop.trf.xlu0
  %v6976 = vpop.trf.xlu0
  %v6977 = vpop.trf.xlu0
  %v6978 = vpop.trf.xlu0
  %v6979 = vpop.trf.xlu0
  %v6980 = vpop.trf.xlu0
  %6981 = vxpose.xlu0.b32.start [1/16] %v6885, 128
  %6982 = vxpose.xlu0.b32.cont [2/16] %v6886, 128
  %6983 = vxpose.xlu0.b32.cont [3/16] %v6887, 128
  %6984 = vxpose.xlu0.b32.cont [4/16] %v6888, 128
  %6985 = vxpose.xlu0.b32.cont [5/16] %v6889, 128
  %6986 = vxpose.xlu0.b32.cont [6/16] %v6890, 128
  %6987 = vxpose.xlu0.b32.cont [7/16] %v6891, 128
  %6988 = vxpose.xlu0.b32.cont [8/16] %v6892, 128
  %6989 = vxpose.xlu0.b32.cont [9/16] %v6893, 128
  %6990 = vxpose.xlu0.b32.cont [10/16] %v6894, 128
  %6991 = vxpose.xlu0.b32.cont [11/16] %v6895, 128
  %6992 = vxpose.xlu0.b32.cont [12/16] %v6896, 128
  %6993 = vxpose.xlu0.b32.cont [13/16] %v6897, 128
  %6994 = vxpose.xlu0.b32.cont [14/16] %v6898, 128
  %6995 = vxpose.xlu0.b32.cont [15/16] %v6899, 128
  %6996 = vxpose.xlu0.b32.end [16/16] %v6900, 128
  %v6997 = vpop.trf.xlu0
  %v6998 = vpop.trf.xlu0
  %v6999 = vpop.trf.xlu0
  %v7000 = vpop.trf.xlu0
  %v7001 = vpop.trf.xlu0
  %v7002 = vpop.trf.xlu0
  %v7003 = vpop.trf.xlu0
  %v7004 = vpop.trf.xlu0
  %v7005 = vpop.trf.xlu0
  %v7006 = vpop.trf.xlu0
  %v7007 = vpop.trf.xlu0
  %v7008 = vpop.trf.xlu0
  %v7009 = vpop.trf.xlu0
  %v7010 = vpop.trf.xlu0
  %v7011 = vpop.trf.xlu0
  %v7012 = vpop.trf.xlu0
  %7013 = vxpose.xlu0.b32.start [1/16] %v6901, 128
  %7014 = vxpose.xlu0.b32.cont [2/16] %v6902, 128
  %7015 = vxpose.xlu0.b32.cont [3/16] %v6903, 128
  %7016 = vxpose.xlu0.b32.cont [4/16] %v6904, 128
  %7017 = vxpose.xlu0.b32.cont [5/16] %v6905, 128
  %7018 = vxpose.xlu0.b32.cont [6/16] %v6906, 128
  %7019 = vxpose.xlu0.b32.cont [7/16] %v6907, 128
  %7020 = vxpose.xlu0.b32.cont [8/16] %v6908, 128
  %7021 = vxpose.xlu0.b32.cont [9/16] %v6909, 128
  %7022 = vxpose.xlu0.b32.cont [10/16] %v6910, 128
  %7023 = vxpose.xlu0.b32.cont [11/16] %v6911, 128
  %7024 = vxpose.xlu0.b32.cont [12/16] %v6912, 128
  %7025 = vxpose.xlu0.b32.cont [13/16] %v6913, 128
  %7026 = vxpose.xlu0.b32.cont [14/16] %v6914, 128
  %7027 = vxpose.xlu0.b32.cont [15/16] %v6915, 128
  %7028 = vxpose.xlu0.b32.end [16/16] %v6916, 128
  %v7029 = vpop.trf.xlu0
  %v7030 = vpop.trf.xlu0
  %v7031 = vpop.trf.xlu0
  %v7032 = vpop.trf.xlu0
  %v7033 = vpop.trf.xlu0
  %v7034 = vpop.trf.xlu0
  %v7035 = vpop.trf.xlu0
  %v7036 = vpop.trf.xlu0
  %v7037 = vpop.trf.xlu0
  %v7038 = vpop.trf.xlu0
  %v7039 = vpop.trf.xlu0
  %v7040 = vpop.trf.xlu0
  %v7041 = vpop.trf.xlu0
  %v7042 = vpop.trf.xlu0
  %v7043 = vpop.trf.xlu0
  %v7044 = vpop.trf.xlu0
  %v7049 = vcombine.low %v6933, %v6965
  %v7050 = vcombine.low %v6997, %v7029
  %7053 = vst [vmem:[%s7] sm:$0xff] %v7049
  %7054 = vst [vmem:[%s7 + $0x8] sm:$0xff] %v7050
  // Predicated region
  $region30: #{basic_block_forward.1} parent=0 // pred_check
    _
  $region31: #{basic_block_forward.1} parent=0 // pred_check_branch
    %7056 = sbr.rel (0) target = $region33
  $region32: #{basic_block_forward.1} parent=0 // pred_region
    _
  $region33: #{basic_block_forward.1} parent=0 // pred_fallthru
    _
  // Predicated region
  $region34: #{basic_block_forward.1} parent=0 // pred_check
    _
  $region35: #{basic_block_forward.1} parent=0 // pred_check_branch
    %7058 = sbr.rel (0) target = $region37
  $region36: #{basic_block_forward.1} parent=0 // pred_region
    _
  $region37: #{basic_block_forward.1} parent=0 // pred_fallthru
    _

</llo_original>
